<compile_context>
chip_gen: v7x
topology: tpu7x:2x2x1
jax: 0.10.0
libtpu: 0.0.40
codegen_flags: <defaults>
</compile_context>

<pallas_src>
import numpy as np

import jax
import jax.numpy as jnp
from jax.experimental import pallas as pl
from jax.experimental.pallas import tpu as pltpu


# ----------------------------------------------------------------------------
# Parameter init (PyTorch layouts, normal(0, 0.02) matching __init_weights)
# ----------------------------------------------------------------------------
def init_unet_params(key, n_layers, in_channels, inner_channels, out_channels,
                     start_num_filters):
    enc_ch = [min(start_num_filters * (2 ** i), inner_channels)
              for i in range(n_layers)]
    enc_ch[-1] = inner_channels

    params = {"enc": [], "dec": [], "head": None, "enc_ch": enc_ch}

    c_in = in_channels
    for i in range(n_layers):
        key, k = jax.random.split(key)
        params["enc"].append(
            0.02 * jax.random.normal(k, (enc_ch[i], c_in, 4, 4), jnp.float32))
        c_in = enc_ch[i]

    dec_in = inner_channels
    for j in range(n_layers - 1):
        c_out = enc_ch[n_layers - 2 - j]
        key, k = jax.random.split(key)
        params["dec"].append(
            0.02 * jax.random.normal(k, (dec_in, c_out, 4, 4), jnp.float32))
        dec_in = c_out + enc_ch[n_layers - 2 - j]          # channel concat w/ skip

    assert dec_in == 2 * start_num_filters
    key, k = jax.random.split(key)
    params["head"] = 0.02 * jax.random.normal(
        k, (2 * start_num_filters, out_channels, 4, 4), jnp.float32)
    return params


# ----------------------------------------------------------------------------
# One-time (init-time) packing of conv kernels into dense GEMM matrices.
# Flattening order is CHW-major, i.e. row/col index = c*H*W + h*W + w.
# ----------------------------------------------------------------------------
def _conv2d_dense(w, H, W, stride, pad):
    """Dense A s.t. flat_out = flat_in @ A for Conv2d(bias=False). w: (Co,Ci,kh,kw)."""
    Co, Ci, kh, kw = w.shape
    Ho = (H + 2 * pad - kh) // stride + 1
    Wo = (W + 2 * pad - kw) // stride + 1
    A = np.zeros((Ci, H, W, Co, Ho, Wo), np.float32)
    wt = np.transpose(np.asarray(w, np.float32), (1, 0, 2, 3))   # (Ci, Co, kh, kw)
    for i in range(kh):
        for j in range(kw):
            for oh in range(Ho):
                ih = oh * stride - pad + i
                if ih < 0 or ih >= H:
                    continue
                for ow in range(Wo):
                    iw = ow * stride - pad + j
                    if iw < 0 or iw >= W:
                        continue
                    A[:, ih, iw, :, oh, ow] = wt[:, :, i, j]
    return A.reshape(Ci * H * W, Co * Ho * Wo), Ho, Wo


def _conv_transpose2d_dense(w, H, W, stride, pad):
    """Dense B s.t. flat_out = flat_in @ B for ConvTranspose2d(bias=False).
    w: (Ci, Co, kh, kw) (PyTorch ConvTranspose2d layout)."""
    Ci, Co, kh, kw = w.shape
    Ho = (H - 1) * stride - 2 * pad + kh
    Wo = (W - 1) * stride - 2 * pad + kw
    B = np.zeros((Ci, H, W, Co, Ho, Wo), np.float32)
    wn = np.asarray(w, np.float32)
    for i in range(kh):
        for j in range(kw):
            for h in range(H):
                oh = h * stride - pad + i
                if oh < 0 or oh >= Ho:
                    continue
                for wi in range(W):
                    ow = wi * stride - pad + j
                    if ow < 0 or ow >= Wo:
                        continue
                    B[:, h, wi, :, oh, ow] = wn[:, :, i, j]
    return B.reshape(Ci * H * W, Co * Ho * Wo), Ho, Wo


def pack_unet_params(params, H, W):
    """Pack conv kernels into bf16 per-layer GEMM matrices (done once, not per call)."""
    n = len(params["enc"])
    enc_ch = params["enc_ch"]
    mats = []

    h, w_sp = H, W
    for wt in params["enc"]:
        A, h, w_sp = _conv2d_dense(np.asarray(wt), h, w_sp, stride=2, pad=1)
        mats.append(A)

    up_weights = list(params["dec"]) + [params["head"]]
    for j, wt in enumerate(up_weights):
        B, oh, ow = _conv_transpose2d_dense(np.asarray(wt), h, w_sp, stride=2, pad=1)
        if j == 0:
            mats.append(B)                                  # input = bottleneck only
        else:
            split = enc_ch[n - 1 - j] * h * w_sp            # rows of the convT-out part
            mats.append(B[:split])                          # multiplies d_{j-1}
            mats.append(B[split:])                          # multiplies the skip
        h, w_sp = oh, ow

    out_channels = int(np.asarray(params["head"]).shape[1])
    return {
        "mats": [jnp.asarray(m, jnp.bfloat16) for m in mats],
        "n_layers": n,
        "in_dim": int(np.asarray(params["enc"][0]).shape[1]) * H * W,
        "out_shape": (out_channels, h, w_sp),
    }


# ----------------------------------------------------------------------------
# Fused Pallas kernel: whole U-Net forward for a (TB, ...) batch tile per step.
# ----------------------------------------------------------------------------
def _make_unet_kernel(n_layers):
    n = n_layers

    def kernel(*refs):
        x_ref = refs[0]
        o_ref = refs[-1]
        w_refs = refs[1:-1]
        enc_w = w_refs[:n]
        up_w = w_refs[n:]

        def mm(a_bf16, w_ref):
            # bf16 x bf16 on the MXU, f32 accumulation. M = TB batch rows.
            return jnp.dot(a_bf16, w_ref[...], preferred_element_type=jnp.float32)

        def lrelu(t):
            return jnp.maximum(t, 0.2 * t)          # LeakyReLU(0.2), 2 VPU ops

        def relu(t):
            return jnp.maximum(t, 0.0)

        # ---- Encoder: Conv k4 s2 p1 (packed GEMM) + LeakyReLU(0.2) ----
        h = x_ref[...]                               # (TB, Cin*H*W) bf16
        skips = []                                   # decoder-ready: relu(conv), bf16
        for i in range(n - 1):
            pre = mm(h, enc_w[i])                    # f32
            # relu(lrelu(pre)) == relu(pre): store the skip already ReLU'd in bf16.
            skips.append(relu(pre).astype(jnp.bfloat16))
            h = lrelu(pre).astype(jnp.bfloat16)      # next encoder input
        pre = mm(h, enc_w[n - 1])
        # Bottleneck: skip the redundant LeakyReLU, the decoder ReLUs it anyway.
        d = relu(pre).astype(jnp.bfloat16)

        # ---- Decoder + head: ReLU -> ConvTranspose k4 s2 p1 (packed GEMM).
        #      Channel-concat skips are row-split GEMMs (no in-kernel concat):
        #      relu(concat([d, skip])) @ W == relu(d) @ W_top + relu(skip) @ W_bot.
        k = 0
        for j in range(n):
            if j == 0:
                acc = mm(d, up_w[k])
                k += 1
            else:
                acc = mm(d, up_w[k]) + mm(skips[n - 1 - j], up_w[k + 1])
                k += 2
            if j < n - 1:
                d = relu(acc).astype(jnp.bfloat16)   # ReLU before the next convT
            else:
                o_ref[...] = jnp.tanh(acc)           # Tanh head epilogue, f32 store

    return kernel


def _choose_batch_tile(N):
    """Batch tile TB: multiple of 8 (sublanes); 256 fills the v6e/v7x MXU
    (128 already fills v5e). For small N, aim for >=2 grid steps (v7x has 2 TCs)."""
    if N >= 512:
        return 256
    half = -(-N // 2)
    return max(8, min(256, -(-half // 8) * 8))


def unet_forward(packed, img_nchw):
    N = img_nchw.shape[0]
    in_dim = packed["in_dim"]
    co, Ho, Wo = packed["out_shape"]
    out_dim = co * Ho * Wo
    mats = packed["mats"]

    # ---- Fold batch into the GEMM M dimension; keep >=2 grid steps for v7x. ----
    TB = _choose_batch_tile(N)
    grid_steps = max(2, -(-N // TB))
    Npad = TB * grid_steps

    # NCHW -> CHW-flat bf16 rows (matches packing order); zero-pad the batch.
    x = img_nchw.reshape(N, in_dim).astype(jnp.bfloat16)
    if Npad != N:
        x = jnp.pad(x, ((0, Npad - N), (0, 0)))

    # Advisory cost so XLA overlaps the (dominant) weight DMA with neighbors.
    flops = 2 * Npad * sum(int(m.shape[0]) * int(m.shape[1]) for m in mats)
    bytes_accessed = (sum(int(m.size) * m.dtype.itemsize for m in mats)
                      + int(x.size) * 2 + Npad * out_dim * 4)
    cost = pl.CostEstimate(flops=flops, transcendentals=Npad * out_dim,
                           bytes_accessed=bytes_accessed)

    def build(single_buffer_weights):
        in_specs = [pl.BlockSpec((TB, in_dim), lambda b: (b, 0))]
        for m in mats:
            if single_buffer_weights:
                # Constant-index weights: fetched once, no need to double-buffer.
                spec = pl.BlockSpec(m.shape, lambda b: (0, 0),
                                    pipeline_mode=pl.Buffered(1))
            else:
                spec = pl.BlockSpec(m.shape, lambda b: (0, 0))
            in_specs.append(spec)
        return pl.pallas_call(
            _make_unet_kernel(packed["n_layers"]),
            out_shape=jax.ShapeDtypeStruct((Npad, out_dim), jnp.float32),
            grid_spec=pltpu.PrefetchScalarGridSpec(
                num_scalar_prefetch=0,
                grid=(grid_steps,),                  # batch tiles
                in_specs=in_specs,
                out_specs=pl.BlockSpec((TB, out_dim), lambda b: (b, 0)),
            ),
            compiler_params=pltpu.CompilerParams(
                dimension_semantics=("parallel",)),  # v7x: 2 TCs split the tiles
            cost_estimate=cost,
        )

    try:
        out = build(True)(x, *mats)
        out = jax.block_until_ready(out)
    except Exception:
        # Fallback if this jax/Mosaic build rejects pipeline_mode=Buffered(1).
        out = build(False)(x, *mats)
        out = jax.block_until_ready(out)

    return out[:N].reshape(N, co, Ho, Wo)            # back to NCHW


if __name__ == "__main__":
    n_layers = 3
    in_channels = 3
    inner_channels = 32
    out_channels = 3
    start_num_filters = 8
    H = W = 16

    key = jax.random.PRNGKey(0)
    k_img, k_par = jax.random.split(key)

    img = jax.random.normal(k_img, (2, in_channels, H, W), jnp.float32)
    params = init_unet_params(k_par, n_layers, in_channels, inner_channels,
                              out_channels, start_num_filters)
    packed = pack_unet_params(params, H, W)          # one-time weight packing

    out = unet_forward(packed, img)
    out = jax.block_until_ready(out)

    assert out.shape == (2, out_channels, H, W), out.shape
    assert bool(jnp.all(jnp.isfinite(out)))
    assert bool(jnp.all(jnp.abs(out) <= 1.0 + 1e-6))     # tanh head

    print("KERNEL_OK")
</pallas_src>

<mosaic_0001>
module attributes {stable_mosaic.version = 11 : i64} {
  func.func @kernel(%arg0: i32, %arg1: memref<8x768xbf16, #tpu.memory_space<vmem>>, %arg2: memref<768x512xbf16, #tpu.memory_space<vmem>>, %arg3: memref<512x256xbf16, #tpu.memory_space<vmem>>, %arg4: memref<256x128xbf16, #tpu.memory_space<vmem>>, %arg5: memref<128x256xbf16, #tpu.memory_space<vmem>>, %arg6: memref<256x512xbf16, #tpu.memory_space<vmem>>, %arg7: memref<256x512xbf16, #tpu.memory_space<vmem>>, %arg8: memref<512x768xbf16, #tpu.memory_space<vmem>>, %arg9: memref<512x768xbf16, #tpu.memory_space<vmem>>, %arg10: memref<8x768xf32, #tpu.memory_space<vmem>>) attributes {dimension_semantics = [#tpu.dimension_semantics<parallel>], iteration_bounds = array<i64: 2>, scalar_prefetch = 0 : i64, scratch_operands = 0 : i64, tpu.core_type = #tpu.core_type<tc>, window_params = [{transform_indices = @transform_0, window_bounds = array<i64: 8, 768>}, {pipeline_mode = #tpu.pipeline_mode<synchronous>, transform_indices = @transform_1, window_bounds = array<i64: 768, 512>}, {pipeline_mode = #tpu.pipeline_mode<synchronous>, transform_indices = @transform_2, window_bounds = array<i64: 512, 256>}, {pipeline_mode = #tpu.pipeline_mode<synchronous>, transform_indices = @transform_3, window_bounds = array<i64: 256, 128>}, {pipeline_mode = #tpu.pipeline_mode<synchronous>, transform_indices = @transform_4, window_bounds = array<i64: 128, 256>}, {pipeline_mode = #tpu.pipeline_mode<synchronous>, transform_indices = @transform_5, window_bounds = array<i64: 256, 512>}, {pipeline_mode = #tpu.pipeline_mode<synchronous>, transform_indices = @transform_6, window_bounds = array<i64: 256, 512>}, {pipeline_mode = #tpu.pipeline_mode<synchronous>, transform_indices = @transform_7, window_bounds = array<i64: 512, 768>}, {pipeline_mode = #tpu.pipeline_mode<synchronous>, transform_indices = @transform_8, window_bounds = array<i64: 512, 768>}, {transform_indices = @transform_9, window_bounds = array<i64: 8, 768>}]} {
    %c0 = arith.constant 0 : index
    %c0_0 = arith.constant 0 : index
    %0 = vector.load %arg1[%c0, %c0_0] : memref<8x768xbf16, #tpu.memory_space<vmem>>, vector<8x768xbf16>
    %c0_1 = arith.constant 0 : index
    %c0_2 = arith.constant 0 : index
    %1 = vector.load %arg2[%c0_1, %c0_2] : memref<768x512xbf16, #tpu.memory_space<vmem>>, vector<768x512xbf16>
    %cst = arith.constant dense<0.000000e+00> : vector<8x512xf32>
    %2 = tpu.matmul %0, %1, %cst {dimension_numbers = #tpu.dot_dimension_numbers<[1], [0], [0], [1], [0, 0, 1, 1], [], []>} : vector<8x768xbf16>, vector<768x512xbf16>, vector<8x512xf32> -> vector<8x512xf32>
    %cst_3 = arith.constant 0.000000e+00 : f32
    %3 = vector.broadcast %cst_3 : f32 to vector<8x512xf32>
    %4 = arith.maximumf %2, %3 : vector<8x512xf32>
    %5 = arith.truncf %4 : vector<8x512xf32> to vector<8x512xbf16>
    %cst_4 = arith.constant 2.000000e-01 : f32
    %6 = vector.broadcast %cst_4 : f32 to vector<8x512xf32>
    %7 = arith.mulf %6, %2 : vector<8x512xf32>
    %8 = arith.maximumf %2, %7 : vector<8x512xf32>
    %9 = arith.truncf %8 : vector<8x512xf32> to vector<8x512xbf16>
    %c0_5 = arith.constant 0 : index
    %c0_6 = arith.constant 0 : index
    %10 = vector.load %arg3[%c0_5, %c0_6] : memref<512x256xbf16, #tpu.memory_space<vmem>>, vector<512x256xbf16>
    %cst_7 = arith.constant dense<0.000000e+00> : vector<8x256xf32>
    %11 = tpu.matmul %9, %10, %cst_7 {dimension_numbers = #tpu.dot_dimension_numbers<[1], [0], [0], [1], [0, 0, 1, 1], [], []>} : vector<8x512xbf16>, vector<512x256xbf16>, vector<8x256xf32> -> vector<8x256xf32>
    %cst_8 = arith.constant 0.000000e+00 : f32
    %12 = vector.broadcast %cst_8 : f32 to vector<8x256xf32>
    %13 = arith.maximumf %11, %12 : vector<8x256xf32>
    %14 = arith.truncf %13 : vector<8x256xf32> to vector<8x256xbf16>
    %cst_9 = arith.constant 2.000000e-01 : f32
    %15 = vector.broadcast %cst_9 : f32 to vector<8x256xf32>
    %16 = arith.mulf %15, %11 : vector<8x256xf32>
    %17 = arith.maximumf %11, %16 : vector<8x256xf32>
    %18 = arith.truncf %17 : vector<8x256xf32> to vector<8x256xbf16>
    %c0_10 = arith.constant 0 : index
    %c0_11 = arith.constant 0 : index
    %19 = vector.load %arg4[%c0_10, %c0_11] : memref<256x128xbf16, #tpu.memory_space<vmem>>, vector<256x128xbf16>
    %cst_12 = arith.constant dense<0.000000e+00> : vector<8x128xf32>
    %20 = tpu.matmul %18, %19, %cst_12 {dimension_numbers = #tpu.dot_dimension_numbers<[1], [0], [0], [1], [0, 0, 1, 1], [], []>} : vector<8x256xbf16>, vector<256x128xbf16>, vector<8x128xf32> -> vector<8x128xf32>
    %cst_13 = arith.constant 0.000000e+00 : f32
    %21 = vector.broadcast %cst_13 : f32 to vector<8x128xf32>
    %22 = arith.maximumf %20, %21 : vector<8x128xf32>
    %23 = arith.truncf %22 : vector<8x128xf32> to vector<8x128xbf16>
    %c0_14 = arith.constant 0 : index
    %c0_15 = arith.constant 0 : index
    %24 = vector.load %arg5[%c0_14, %c0_15] : memref<128x256xbf16, #tpu.memory_space<vmem>>, vector<128x256xbf16>
    %cst_16 = arith.constant dense<0.000000e+00> : vector<8x256xf32>
    %25 = tpu.matmul %23, %24, %cst_16 {dimension_numbers = #tpu.dot_dimension_numbers<[1], [0], [0], [1], [0, 0, 1, 1], [], []>} : vector<8x128xbf16>, vector<128x256xbf16>, vector<8x256xf32> -> vector<8x256xf32>
    %cst_17 = arith.constant 0.000000e+00 : f32
    %26 = vector.broadcast %cst_17 : f32 to vector<8x256xf32>
    %27 = arith.maximumf %25, %26 : vector<8x256xf32>
    %28 = arith.truncf %27 : vector<8x256xf32> to vector<8x256xbf16>
    %c0_18 = arith.constant 0 : index
    %c0_19 = arith.constant 0 : index
    %29 = vector.load %arg6[%c0_18, %c0_19] : memref<256x512xbf16, #tpu.memory_space<vmem>>, vector<256x512xbf16>
    %cst_20 = arith.constant dense<0.000000e+00> : vector<8x512xf32>
    %30 = tpu.matmul %28, %29, %cst_20 {dimension_numbers = #tpu.dot_dimension_numbers<[1], [0], [0], [1], [0, 0, 1, 1], [], []>} : vector<8x256xbf16>, vector<256x512xbf16>, vector<8x512xf32> -> vector<8x512xf32>
    %c0_21 = arith.constant 0 : index
    %c0_22 = arith.constant 0 : index
    %31 = vector.load %arg7[%c0_21, %c0_22] : memref<256x512xbf16, #tpu.memory_space<vmem>>, vector<256x512xbf16>
    %cst_23 = arith.constant dense<0.000000e+00> : vector<8x512xf32>
    %32 = tpu.matmul %14, %31, %cst_23 {dimension_numbers = #tpu.dot_dimension_numbers<[1], [0], [0], [1], [0, 0, 1, 1], [], []>} : vector<8x256xbf16>, vector<256x512xbf16>, vector<8x512xf32> -> vector<8x512xf32>
    %33 = arith.addf %30, %32 : vector<8x512xf32>
    %cst_24 = arith.constant 0.000000e+00 : f32
    %34 = vector.broadcast %cst_24 : f32 to vector<8x512xf32>
    %35 = arith.maximumf %33, %34 : vector<8x512xf32>
    %36 = arith.truncf %35 : vector<8x512xf32> to vector<8x512xbf16>
    %c0_25 = arith.constant 0 : index
    %c0_26 = arith.constant 0 : index
    %37 = vector.load %arg8[%c0_25, %c0_26] : memref<512x768xbf16, #tpu.memory_space<vmem>>, vector<512x768xbf16>
    %cst_27 = arith.constant dense<0.000000e+00> : vector<8x768xf32>
    %38 = tpu.matmul %36, %37, %cst_27 {dimension_numbers = #tpu.dot_dimension_numbers<[1], [0], [0], [1], [0, 0, 1, 1], [], []>} : vector<8x512xbf16>, vector<512x768xbf16>, vector<8x768xf32> -> vector<8x768xf32>
    %c0_28 = arith.constant 0 : index
    %c0_29 = arith.constant 0 : index
    %39 = vector.load %arg9[%c0_28, %c0_29] : memref<512x768xbf16, #tpu.memory_space<vmem>>, vector<512x768xbf16>
    %cst_30 = arith.constant dense<0.000000e+00> : vector<8x768xf32>
    %40 = tpu.matmul %5, %39, %cst_30 {dimension_numbers = #tpu.dot_dimension_numbers<[1], [0], [0], [1], [0, 0, 1, 1], [], []>} : vector<8x512xbf16>, vector<512x768xbf16>, vector<8x768xf32> -> vector<8x768xf32>
    %41 = arith.addf %38, %40 : vector<8x768xf32>
    %42 = math.tanh %41 : vector<8x768xf32>
    %c0_31 = arith.constant 0 : index
    %c0_32 = arith.constant 0 : index
    %43 = vector.load %arg10[%c0_31, %c0_32] : memref<8x768xf32, #tpu.memory_space<vmem>>, vector<8x768xf32>
    tpu.vector_store %arg10[%c0_31, %c0_32], %42 {strides = array<i32>} : memref<8x768xf32, #tpu.memory_space<vmem>>, vector<8x768xf32>,
    return
  }
  func.func @transform_0(%arg0: i32) -> (i32, i32) {
    %c0_i32 = arith.constant 0 : i32
    %c0_i32_0 = arith.constant 0 : i32
    return %arg0, %c0_i32 : i32, i32
  }
  func.func @transform_1(%arg0: i32) -> (i32, i32) {
    %c0_i32 = arith.constant 0 : i32
    %c0_i32_0 = arith.constant 0 : i32
    %c0_i32_1 = arith.constant 0 : i32
    return %c0_i32, %c0_i32_0 : i32, i32
  }
  func.func @transform_2(%arg0: i32) -> (i32, i32) {
    %c0_i32 = arith.constant 0 : i32
    %c0_i32_0 = arith.constant 0 : i32
    %c0_i32_1 = arith.constant 0 : i32
    return %c0_i32, %c0_i32_0 : i32, i32
  }
  func.func @transform_3(%arg0: i32) -> (i32, i32) {
    %c0_i32 = arith.constant 0 : i32
    %c0_i32_0 = arith.constant 0 : i32
    %c0_i32_1 = arith.constant 0 : i32
    return %c0_i32, %c0_i32_0 : i32, i32
  }
  func.func @transform_4(%arg0: i32) -> (i32, i32) {
    %c0_i32 = arith.constant 0 : i32
    %c0_i32_0 = arith.constant 0 : i32
    %c0_i32_1 = arith.constant 0 : i32
    return %c0_i32, %c0_i32_0 : i32, i32
  }
  func.func @transform_5(%arg0: i32) -> (i32, i32) {
    %c0_i32 = arith.constant 0 : i32
    %c0_i32_0 = arith.constant 0 : i32
    %c0_i32_1 = arith.constant 0 : i32
    return %c0_i32, %c0_i32_0 : i32, i32
  }
  func.func @transform_6(%arg0: i32) -> (i32, i32) {
    %c0_i32 = arith.constant 0 : i32
    %c0_i32_0 = arith.constant 0 : i32
    %c0_i32_1 = arith.constant 0 : i32
    return %c0_i32, %c0_i32_0 : i32, i32
  }
  func.func @transform_7(%arg0: i32) -> (i32, i32) {
    %c0_i32 = arith.constant 0 : i32
    %c0_i32_0 = arith.constant 0 : i32
    %c0_i32_1 = arith.constant 0 : i32
    return %c0_i32, %c0_i32_0 : i32, i32
  }
  func.func @transform_8(%arg0: i32) -> (i32, i32) {
    %c0_i32 = arith.constant 0 : i32
    %c0_i32_0 = arith.constant 0 : i32
    %c0_i32_1 = arith.constant 0 : i32
    return %c0_i32, %c0_i32_0 : i32, i32
  }
  func.func @transform_9(%arg0: i32) -> (i32, i32) {
    %c0_i32 = arith.constant 0 : i32
    %c0_i32_0 = arith.constant 0 : i32
    return %arg0, %c0_i32 : i32, i32
  }
}

module attributes {stable_mosaic.version = 11 : i64} {
  func.func @kernel(%arg0: i32, %arg1: memref<8x768xbf16, #tpu.memory_space<vmem>>, %arg2: memref<768x512xbf16, #tpu.memory_space<vmem>>, %arg3: memref<512x256xbf16, #tpu.memory_space<vmem>>, %arg4: memref<256x128xbf16, #tpu.memory_space<vmem>>, %arg5: memref<128x256xbf16, #tpu.memory_space<vmem>>, %arg6: memref<256x512xbf16, #tpu.memory_space<vmem>>, %arg7: memref<256x512xbf16, #tpu.memory_space<vmem>>, %arg8: memref<512x768xbf16, #tpu.memory_space<vmem>>, %arg9: memref<512x768xbf16, #tpu.memory_space<vmem>>, %arg10: memref<8x768xf32, #tpu.memory_space<vmem>>) attributes {dimension_semantics = [#tpu.dimension_semantics<parallel>], iteration_bounds = array<i64: 2>, scalar_prefetch = 0 : i64, scratch_operands = 0 : i64, tpu.core_type = #tpu.core_type<tc>, window_params = [{transform_indices = @transform_0, window_bounds = array<i64: 8, 768>}, {pipeline_mode = #tpu.pipeline_mode<synchronous>, transform_indices = @transform_1, window_bounds = array<i64: 768, 512>}, {pipeline_mode = #tpu.pipeline_mode<synchronous>, transform_indices = @transform_2, window_bounds = array<i64: 512, 256>}, {pipeline_mode = #tpu.pipeline_mode<synchronous>, transform_indices = @transform_3, window_bounds = array<i64: 256, 128>}, {pipeline_mode = #tpu.pipeline_mode<synchronous>, transform_indices = @transform_4, window_bounds = array<i64: 128, 256>}, {pipeline_mode = #tpu.pipeline_mode<synchronous>, transform_indices = @transform_5, window_bounds = array<i64: 256, 512>}, {pipeline_mode = #tpu.pipeline_mode<synchronous>, transform_indices = @transform_6, window_bounds = array<i64: 256, 512>}, {pipeline_mode = #tpu.pipeline_mode<synchronous>, transform_indices = @transform_7, window_bounds = array<i64: 512, 768>}, {pipeline_mode = #tpu.pipeline_mode<synchronous>, transform_indices = @transform_8, window_bounds = array<i64: 512, 768>}, {transform_indices = @transform_9, window_bounds = array<i64: 8, 768>}]} {
    %c0 = arith.constant 0 : index
    %c0_0 = arith.constant 0 : index
    %0 = vector.load %arg1[%c0, %c0_0] : memref<8x768xbf16, #tpu.memory_space<vmem>>, vector<8x768xbf16>
    %c0_1 = arith.constant 0 : index
    %c0_2 = arith.constant 0 : index
    %1 = vector.load %arg2[%c0_1, %c0_2] : memref<768x512xbf16, #tpu.memory_space<vmem>>, vector<768x512xbf16>
    %cst = arith.constant dense<0.000000e+00> : vector<8x512xf32>
    %2 = tpu.matmul %0, %1, %cst {dimension_numbers = #tpu.dot_dimension_numbers<[1], [0], [0], [1], [0, 0, 1, 1], [], []>} : vector<8x768xbf16>, vector<768x512xbf16>, vector<8x512xf32> -> vector<8x512xf32>
    %cst_3 = arith.constant 0.000000e+00 : f32
    %3 = vector.broadcast %cst_3 : f32 to vector<8x512xf32>
    %4 = arith.maximumf %2, %3 : vector<8x512xf32>
    %5 = arith.truncf %4 : vector<8x512xf32> to vector<8x512xbf16>
    %cst_4 = arith.constant 2.000000e-01 : f32
    %6 = vector.broadcast %cst_4 : f32 to vector<8x512xf32>
    %7 = arith.mulf %6, %2 : vector<8x512xf32>
    %8 = arith.maximumf %2, %7 : vector<8x512xf32>
    %9 = arith.truncf %8 : vector<8x512xf32> to vector<8x512xbf16>
    %c0_5 = arith.constant 0 : index
    %c0_6 = arith.constant 0 : index
    %10 = vector.load %arg3[%c0_5, %c0_6] : memref<512x256xbf16, #tpu.memory_space<vmem>>, vector<512x256xbf16>
    %cst_7 = arith.constant dense<0.000000e+00> : vector<8x256xf32>
    %11 = tpu.matmul %9, %10, %cst_7 {dimension_numbers = #tpu.dot_dimension_numbers<[1], [0], [0], [1], [0, 0, 1, 1], [], []>} : vector<8x512xbf16>, vector<512x256xbf16>, vector<8x256xf32> -> vector<8x256xf32>
    %cst_8 = arith.constant 0.000000e+00 : f32
    %12 = vector.broadcast %cst_8 : f32 to vector<8x256xf32>
    %13 = arith.maximumf %11, %12 : vector<8x256xf32>
    %14 = arith.truncf %13 : vector<8x256xf32> to vector<8x256xbf16>
    %cst_9 = arith.constant 2.000000e-01 : f32
    %15 = vector.broadcast %cst_9 : f32 to vector<8x256xf32>
    %16 = arith.mulf %15, %11 : vector<8x256xf32>
    %17 = arith.maximumf %11, %16 : vector<8x256xf32>
    %18 = arith.truncf %17 : vector<8x256xf32> to vector<8x256xbf16>
    %c0_10 = arith.constant 0 : index
    %c0_11 = arith.constant 0 : index
    %19 = vector.load %arg4[%c0_10, %c0_11] : memref<256x128xbf16, #tpu.memory_space<vmem>>, vector<256x128xbf16>
    %cst_12 = arith.constant dense<0.000000e+00> : vector<8x128xf32>
    %20 = tpu.matmul %18, %19, %cst_12 {dimension_numbers = #tpu.dot_dimension_numbers<[1], [0], [0], [1], [0, 0, 1, 1], [], []>} : vector<8x256xbf16>, vector<256x128xbf16>, vector<8x128xf32> -> vector<8x128xf32>
    %cst_13 = arith.constant 0.000000e+00 : f32
    %21 = vector.broadcast %cst_13 : f32 to vector<8x128xf32>
    %22 = arith.maximumf %20, %21 : vector<8x128xf32>
    %23 = arith.truncf %22 : vector<8x128xf32> to vector<8x128xbf16>
    %c0_14 = arith.constant 0 : index
    %c0_15 = arith.constant 0 : index
    %24 = vector.load %arg5[%c0_14, %c0_15] : memref<128x256xbf16, #tpu.memory_space<vmem>>, vector<128x256xbf16>
    %cst_16 = arith.constant dense<0.000000e+00> : vector<8x256xf32>
    %25 = tpu.matmul %23, %24, %cst_16 {dimension_numbers = #tpu.dot_dimension_numbers<[1], [0], [0], [1], [0, 0, 1, 1], [], []>} : vector<8x128xbf16>, vector<128x256xbf16>, vector<8x256xf32> -> vector<8x256xf32>
    %cst_17 = arith.constant 0.000000e+00 : f32
    %26 = vector.broadcast %cst_17 : f32 to vector<8x256xf32>
    %27 = arith.maximumf %25, %26 : vector<8x256xf32>
    %28 = arith.truncf %27 : vector<8x256xf32> to vector<8x256xbf16>
    %c0_18 = arith.constant 0 : index
    %c0_19 = arith.constant 0 : index
    %29 = vector.load %arg6[%c0_18, %c0_19] : memref<256x512xbf16, #tpu.memory_space<vmem>>, vector<256x512xbf16>
    %cst_20 = arith.constant dense<0.000000e+00> : vector<8x512xf32>
    %30 = tpu.matmul %28, %29, %cst_20 {dimension_numbers = #tpu.dot_dimension_numbers<[1], [0], [0], [1], [0, 0, 1, 1], [], []>} : vector<8x256xbf16>, vector<256x512xbf16>, vector<8x512xf32> -> vector<8x512xf32>
    %c0_21 = arith.constant 0 : index
    %c0_22 = arith.constant 0 : index
    %31 = vector.load %arg7[%c0_21, %c0_22] : memref<256x512xbf16, #tpu.memory_space<vmem>>, vector<256x512xbf16>
    %cst_23 = arith.constant dense<0.000000e+00> : vector<8x512xf32>
    %32 = tpu.matmul %14, %31, %cst_23 {dimension_numbers = #tpu.dot_dimension_numbers<[1], [0], [0], [1], [0, 0, 1, 1], [], []>} : vector<8x256xbf16>, vector<256x512xbf16>, vector<8x512xf32> -> vector<8x512xf32>
    %33 = arith.addf %30, %32 : vector<8x512xf32>
    %cst_24 = arith.constant 0.000000e+00 : f32
    %34 = vector.broadcast %cst_24 : f32 to vector<8x512xf32>
    %35 = arith.maximumf %33, %34 : vector<8x512xf32>
    %36 = arith.truncf %35 : vector<8x512xf32> to vector<8x512xbf16>
    %c0_25 = arith.constant 0 : index
    %c0_26 = arith.constant 0 : index
    %37 = vector.load %arg8[%c0_25, %c0_26] : memref<512x768xbf16, #tpu.memory_space<vmem>>, vector<512x768xbf16>
    %cst_27 = arith.constant dense<0.000000e+00> : vector<8x768xf32>
    %38 = tpu.matmul %36, %37, %cst_27 {dimension_numbers = #tpu.dot_dimension_numbers<[1], [0], [0], [1], [0, 0, 1, 1], [], []>} : vector<8x512xbf16>, vector<512x768xbf16>, vector<8x768xf32> -> vector<8x768xf32>
    %c0_28 = arith.constant 0 : index
    %c0_29 = arith.constant 0 : index
    %39 = vector.load %arg9[%c0_28, %c0_29] : memref<512x768xbf16, #tpu.memory_space<vmem>>, vector<512x768xbf16>
    %cst_30 = arith.constant dense<0.000000e+00> : vector<8x768xf32>
    %40 = tpu.matmul %5, %39, %cst_30 {dimension_numbers = #tpu.dot_dimension_numbers<[1], [0], [0], [1], [0, 0, 1, 1], [], []>} : vector<8x512xbf16>, vector<512x768xbf16>, vector<8x768xf32> -> vector<8x768xf32>
    %41 = arith.addf %38, %40 : vector<8x768xf32>
    %42 = math.tanh %41 : vector<8x768xf32>
    %c0_31 = arith.constant 0 : index
    %c0_32 = arith.constant 0 : index
    %43 = vector.load %arg10[%c0_31, %c0_32] : memref<8x768xf32, #tpu.memory_space<vmem>>, vector<8x768xf32>
    tpu.vector_store %arg10[%c0_31, %c0_32], %42 {strides = array<i32>} : memref<8x768xf32, #tpu.memory_space<vmem>>, vector<8x768xf32>,
    return
  }
  func.func @transform_0(%arg0: i32) -> (i32, i32) {
    %c0_i32 = arith.constant 0 : i32
    %c0_i32_0 = arith.constant 0 : i32
    return %arg0, %c0_i32 : i32, i32
  }
  func.func @transform_1(%arg0: i32) -> (i32, i32) {
    %c0_i32 = arith.constant 0 : i32
    %c0_i32_0 = arith.constant 0 : i32
    %c0_i32_1 = arith.constant 0 : i32
    return %c0_i32, %c0_i32_0 : i32, i32
  }
  func.func @transform_2(%arg0: i32) -> (i32, i32) {
    %c0_i32 = arith.constant 0 : i32
    %c0_i32_0 = arith.constant 0 : i32
    %c0_i32_1 = arith.constant 0 : i32
    return %c0_i32, %c0_i32_0 : i32, i32
  }
  func.func @transform_3(%arg0: i32) -> (i32, i32) {
    %c0_i32 = arith.constant 0 : i32
    %c0_i32_0 = arith.constant 0 : i32
    %c0_i32_1 = arith.constant 0 : i32
    return %c0_i32, %c0_i32_0 : i32, i32
  }
  func.func @transform_4(%arg0: i32) -> (i32, i32) {
    %c0_i32 = arith.constant 0 : i32
    %c0_i32_0 = arith.constant 0 : i32
    %c0_i32_1 = arith.constant 0 : i32
    return %c0_i32, %c0_i32_0 : i32, i32
  }
  func.func @transform_5(%arg0: i32) -> (i32, i32) {
    %c0_i32 = arith.constant 0 : i32
    %c0_i32_0 = arith.constant 0 : i32
    %c0_i32_1 = arith.constant 0 : i32
    return %c0_i32, %c0_i32_0 : i32, i32
  }
  func.func @transform_6(%arg0: i32) -> (i32, i32) {
    %c0_i32 = arith.constant 0 : i32
    %c0_i32_0 = arith.constant 0 : i32
    %c0_i32_1 = arith.constant 0 : i32
    return %c0_i32, %c0_i32_0 : i32, i32
  }
  func.func @transform_7(%arg0: i32) -> (i32, i32) {
    %c0_i32 = arith.constant 0 : i32
    %c0_i32_0 = arith.constant 0 : i32
    %c0_i32_1 = arith.constant 0 : i32
    return %c0_i32, %c0_i32_0 : i32, i32
  }
  func.func @transform_8(%arg0: i32) -> (i32, i32) {
    %c0_i32 = arith.constant 0 : i32
    %c0_i32_0 = arith.constant 0 : i32
    %c0_i32_1 = arith.constant 0 : i32
    return %c0_i32, %c0_i32_0 : i32, i32
  }
  func.func @transform_9(%arg0: i32) -> (i32, i32) {
    %c0_i32 = arith.constant 0 : i32
    %c0_i32_0 = arith.constant 0 : i32
    return %arg0, %c0_i32 : i32, i32
  }
}

</mosaic_0001>

<llo_original>
// kernel: tpu_custom_call.1
$region0: #{tpu_custom_call.1}
  #allocation0 [shape = 'u32[]', space=smem, size = 0x4, offset = 0x4, fixed_abs, tag = 'smem constant byte address 0x4 - core index']
  #allocation1 [shape = 'u32[144,128]{1,0:T(1,128)}', space=vmem, size = 0x12000, scoped, tag = 'internal scratch']
  %s0 = inlined_call_operand.hbm [shape: bf16[16,768], index: 0, kind: input, shape index: {}]
  %s1 = inlined_call_operand.hbm [shape: bf16[768,512], index: 1, kind: input, shape index: {}]
  %s2 = inlined_call_operand.hbm [shape: bf16[512,256], index: 2, kind: input, shape index: {}]
  %s3 = inlined_call_operand.hbm [shape: bf16[256,128], index: 3, kind: input, shape index: {}]
  %s4 = inlined_call_operand.hbm [shape: bf16[128,256], index: 4, kind: input, shape index: {}]
  %s5 = inlined_call_operand.hbm [shape: bf16[256,512], index: 5, kind: input, shape index: {}]
  %s6 = inlined_call_operand.hbm [shape: bf16[256,512], index: 6, kind: input, shape index: {}]
  %s7 = inlined_call_operand.hbm [shape: bf16[512,768], index: 7, kind: input, shape index: {}]
  %s8 = inlined_call_operand.hbm [shape: bf16[512,768], index: 8, kind: input, shape index: {}]
  %s9 = inlined_call_operand.hbm [shape: f32[16,768], index: 9, kind: output, shape index: {}]
  %s10 = sld [smem:[#allocation0]]
  $region105: #{tpu_custom_call.1} parent=0
    _
  %s12 = ssub.s32 1, %s10
  %s13 = scalar_select 0, %s12, %s10
  $region1: #{tpu_custom_call.1} parent=0
    #allocation2 [shape = 'u8[24576]{0}', space=vmem, size = 0x6000, scoped, tag = 'input window, operand 0']
    #allocation3 [shape = 's32[2]{0}', space=sflag, size = 0x8, scoped, tag = 'scoped memory for tpu_custom_call.1']
    #allocation4 [shape = 's32[2]{0}', space=sflag, size = 0x8, scoped, tag = 'scoped memory for tpu_custom_call.1']
    #allocation5 [shape = 'u8[786432]{0}', space=vmem, size = 0xc0000, scoped, tag = 'input window, operand 1, single buffered']
    #allocation6 [shape = 's32[1]{0}', space=sflag, size = 0x4, scoped, tag = 'scoped memory for tpu_custom_call.1']
    #allocation7 [shape = 'u8[262144]{0}', space=vmem, size = 0x40000, scoped, tag = 'input window, operand 2, single buffered']
    #allocation8 [shape = 'u8[65536]{0}', space=vmem, size = 0x10000, scoped, tag = 'input window, operand 3, single buffered']
    #allocation9 [shape = 's32[1]{0}', space=sflag, size = 0x4, scoped, tag = 'scoped memory for tpu_custom_call.1']
    #allocation10 [shape = 'u8[65536]{0}', space=vmem, size = 0x10000, scoped, tag = 'input window, operand 4, single buffered']
    #allocation11 [shape = 'u8[262144]{0}', space=vmem, size = 0x40000, scoped, tag = 'input window, operand 5, single buffered']
    #allocation12 [shape = 's32[1]{0}', space=sflag, size = 0x4, scoped, tag = 'scoped memory for tpu_custom_call.1']
    #allocation13 [shape = 'u8[262144]{0}', space=vmem, size = 0x40000, scoped, tag = 'input window, operand 6, single buffered']
    #allocation14 [shape = 'u8[786432]{0}', space=vmem, size = 0xc0000, scoped, tag = 'input window, operand 7, single buffered']
    #allocation15 [shape = 's32[1]{0}', space=sflag, size = 0x4, scoped, tag = 'scoped memory for tpu_custom_call.1']
    #allocation16 [shape = 'u8[786432]{0}', space=vmem, size = 0xc0000, scoped, tag = 'input window, operand 8, single buffered']
    #allocation17 [shape = 'u8[49152]{0}', space=vmem, size = 0xc000, scoped, tag = 'output window, operand 0']
    %14 = vsyncpa [#allocation3], 0
    %s15 = scalar_lea.sflag [#allocation3], 1
    %16 = vsyncpa %s15, 0
    %17 = vsyncpa [#allocation6], 0
    %18 = vsyncpa [#allocation9], 0
    %19 = vsyncpa [#allocation12], 0
    %20 = vsyncpa [#allocation15], 0
    %21 = vsyncpa [#allocation4], 0
    %s22 = scalar_lea.sflag [#allocation4], 1
    %23 = vsyncpa %s22, 0
    loop: start=0, step=1, limit=4
    $region2: #{tpu_custom_call.1} parent=1 // loop_pre_header
      _
    $region3: #{tpu_custom_call.1} parent=1 // loop_header
      %s25 = sphi 0, %s29
      %p26 = scmp.ge.s32.totalorder %s25, 4
      %s35 = sphi 0, %s37
      %s38 = sphi 0, %s35
      %s39 = sphi 0, %s38
      %s55 = sphi 0, %s39
      %s59 = sphi 0, %s59
      %s61 = sphi 0, %s59
      %s62 = sphi 0, %s61
      %s76 = sphi 0, %s62
      %s80 = sphi 0, %s80
      %s82 = sphi 0, %s80
      %s83 = sphi 0, %s82
      %s97 = sphi 0, %s83
      %s101 = sphi 0, %s101
      %s103 = sphi 0, %s101
      %s104 = sphi 0, %s103
      %s118 = sphi 0, %s104
      %s122 = sphi 0, %s122
      %s124 = sphi 0, %s122
      %s125 = sphi 0, %s124
      %s139 = sphi 0, %s125
      %s143 = sphi 0, %s143
      %s145 = sphi 0, %s143
      %s146 = sphi 0, %s145
      %s160 = sphi 0, %s146
      %s164 = sphi 0, %s164
      %s166 = sphi 0, %s164
      %s167 = sphi 0, %s166
      %s181 = sphi 0, %s167
      %s185 = sphi 0, %s185
      %s187 = sphi 0, %s185
      %s188 = sphi 0, %s187
      %s202 = sphi 0, %s188
      %s206 = sphi 0, %s206
      %s208 = sphi 0, %s206
      %s209 = sphi 0, %s208
      %s223 = sphi 0, %s209
      %s229 = sphi 0, %s231
      %s232 = sphi 0, %s229
      %s233 = sphi 0, %s232
      %s249 = sphi 0, %s233
    $region4: #{tpu_custom_call.1} parent=1 // loop_header_branch
      %28 = sbr.rel (%p26) target = $region8
    $region5: #{tpu_custom_call.1} parent=1 // loop_body
      %s30 = ssub.s32 %s25, 1
      %s31 = ssub.s32 %s25, 2
      %s32 = sadd.s32 %s25, 1
      %s33 = ssub.s32 %s25, %s32
      %p34 = scmp.eq.s32.totalorder %s33, 0
      %s36 = sadd.s32 %s35, 1
      %s37 = scalar_select %p34, %s35, %s36
      %p40 = pneg %p34
      %p41 = scmp.eq.s32.totalorder %s25, 1
      %p42 = por %p40, %p41
      %p43 = scmp.ne.s32.totalorder %s35, %s38
      %p44 = scmp.eq.s32.totalorder %s25, 0
      %p45 = por %p43, %p44
      %p46 = scmp.ne.s32.totalorder %s35, %s38
      %p47 = scmp.eq.s32.totalorder %s30, 1
      %p48 = por %p46, %p47
      %p49 = scmp.ne.s32.totalorder %s38, %s39
      %p50 = scmp.eq.s32.totalorder %s30, 0
      %p51 = por %p49, %p50
      %p52 = scmp.ne.s32.totalorder %s38, %s39
      %p53 = scmp.eq.s32.totalorder %s31, 1
      %p54 = por %p52, %p53
      %p56 = scmp.ne.s32.totalorder %s39, %s55
      %p57 = scmp.eq.s32.totalorder %s31, 0
      %p58 = por %p56, %p57
      %s60 = sadd.s32 %s59, 1
      %p63 = scmp.eq.s32.totalorder %s25, 1
      %p64 = scmp.ne.s32.totalorder %s59, %s61
      %p65 = scmp.eq.s32.totalorder %s25, 0
      %p66 = por %p64, %p65
      %p67 = scmp.ne.s32.totalorder %s59, %s61
      %p68 = scmp.eq.s32.totalorder %s30, 1
      %p69 = por %p67, %p68
      %p70 = scmp.ne.s32.totalorder %s61, %s62
      %p71 = scmp.eq.s32.totalorder %s30, 0
      %p72 = por %p70, %p71
      %p73 = scmp.ne.s32.totalorder %s61, %s62
      %p74 = scmp.eq.s32.totalorder %s31, 1
      %p75 = por %p73, %p74
      %p77 = scmp.ne.s32.totalorder %s62, %s76
      %p78 = scmp.eq.s32.totalorder %s31, 0
      %p79 = por %p77, %p78
      %s81 = sadd.s32 %s80, 1
      %p84 = scmp.eq.s32.totalorder %s25, 1
      %p85 = scmp.ne.s32.totalorder %s80, %s82
      %p86 = scmp.eq.s32.totalorder %s25, 0
      %p87 = por %p85, %p86
      %p88 = scmp.ne.s32.totalorder %s80, %s82
      %p89 = scmp.eq.s32.totalorder %s30, 1
      %p90 = por %p88, %p89
      %p91 = scmp.ne.s32.totalorder %s82, %s83
      %p92 = scmp.eq.s32.totalorder %s30, 0
      %p93 = por %p91, %p92
      %p94 = scmp.ne.s32.totalorder %s82, %s83
      %p95 = scmp.eq.s32.totalorder %s31, 1
      %p96 = por %p94, %p95
      %p98 = scmp.ne.s32.totalorder %s83, %s97
      %p99 = scmp.eq.s32.totalorder %s31, 0
      %p100 = por %p98, %p99
      %s102 = sadd.s32 %s101, 1
      %p105 = scmp.eq.s32.totalorder %s25, 1
      %p106 = scmp.ne.s32.totalorder %s101, %s103
      %p107 = scmp.eq.s32.totalorder %s25, 0
      %p108 = por %p106, %p107
      %p109 = scmp.ne.s32.totalorder %s101, %s103
      %p110 = scmp.eq.s32.totalorder %s30, 1
      %p111 = por %p109, %p110
      %p112 = scmp.ne.s32.totalorder %s103, %s104
      %p113 = scmp.eq.s32.totalorder %s30, 0
      %p114 = por %p112, %p113
      %p115 = scmp.ne.s32.totalorder %s103, %s104
      %p116 = scmp.eq.s32.totalorder %s31, 1
      %p117 = por %p115, %p116
      %p119 = scmp.ne.s32.totalorder %s104, %s118
      %p120 = scmp.eq.s32.totalorder %s31, 0
      %p121 = por %p119, %p120
      %s123 = sadd.s32 %s122, 1
      %p126 = scmp.eq.s32.totalorder %s25, 1
      %p127 = scmp.ne.s32.totalorder %s122, %s124
      %p128 = scmp.eq.s32.totalorder %s25, 0
      %p129 = por %p127, %p128
      %p130 = scmp.ne.s32.totalorder %s122, %s124
      %p131 = scmp.eq.s32.totalorder %s30, 1
      %p132 = por %p130, %p131
      %p133 = scmp.ne.s32.totalorder %s124, %s125
      %p134 = scmp.eq.s32.totalorder %s30, 0
      %p135 = por %p133, %p134
      %p136 = scmp.ne.s32.totalorder %s124, %s125
      %p137 = scmp.eq.s32.totalorder %s31, 1
      %p138 = por %p136, %p137
      %p140 = scmp.ne.s32.totalorder %s125, %s139
      %p141 = scmp.eq.s32.totalorder %s31, 0
      %p142 = por %p140, %p141
      %s144 = sadd.s32 %s143, 1
      %p147 = scmp.eq.s32.totalorder %s25, 1
      %p148 = scmp.ne.s32.totalorder %s143, %s145
      %p149 = scmp.eq.s32.totalorder %s25, 0
      %p150 = por %p148, %p149
      %p151 = scmp.ne.s32.totalorder %s143, %s145
      %p152 = scmp.eq.s32.totalorder %s30, 1
      %p153 = por %p151, %p152
      %p154 = scmp.ne.s32.totalorder %s145, %s146
      %p155 = scmp.eq.s32.totalorder %s30, 0
      %p156 = por %p154, %p155
      %p157 = scmp.ne.s32.totalorder %s145, %s146
      %p158 = scmp.eq.s32.totalorder %s31, 1
      %p159 = por %p157, %p158
      %p161 = scmp.ne.s32.totalorder %s146, %s160
      %p162 = scmp.eq.s32.totalorder %s31, 0
      %p163 = por %p161, %p162
      %s165 = sadd.s32 %s164, 1
      %p168 = scmp.eq.s32.totalorder %s25, 1
      %p169 = scmp.ne.s32.totalorder %s164, %s166
      %p170 = scmp.eq.s32.totalorder %s25, 0
      %p171 = por %p169, %p170
      %p172 = scmp.ne.s32.totalorder %s164, %s166
      %p173 = scmp.eq.s32.totalorder %s30, 1
      %p174 = por %p172, %p173
      %p175 = scmp.ne.s32.totalorder %s166, %s167
      %p176 = scmp.eq.s32.totalorder %s30, 0
      %p177 = por %p175, %p176
      %p178 = scmp.ne.s32.totalorder %s166, %s167
      %p179 = scmp.eq.s32.totalorder %s31, 1
      %p180 = por %p178, %p179
      %p182 = scmp.ne.s32.totalorder %s167, %s181
      %p183 = scmp.eq.s32.totalorder %s31, 0
      %p184 = por %p182, %p183
      %s186 = sadd.s32 %s185, 1
      %p189 = scmp.eq.s32.totalorder %s25, 1
      %p190 = scmp.ne.s32.totalorder %s185, %s187
      %p191 = scmp.eq.s32.totalorder %s25, 0
      %p192 = por %p190, %p191
      %p193 = scmp.ne.s32.totalorder %s185, %s187
      %p194 = scmp.eq.s32.totalorder %s30, 1
      %p195 = por %p193, %p194
      %p196 = scmp.ne.s32.totalorder %s187, %s188
      %p197 = scmp.eq.s32.totalorder %s30, 0
      %p198 = por %p196, %p197
      %p199 = scmp.ne.s32.totalorder %s187, %s188
      %p200 = scmp.eq.s32.totalorder %s31, 1
      %p201 = por %p199, %p200
      %p203 = scmp.ne.s32.totalorder %s188, %s202
      %p204 = scmp.eq.s32.totalorder %s31, 0
      %p205 = por %p203, %p204
      %s207 = sadd.s32 %s206, 1
      %p210 = scmp.eq.s32.totalorder %s25, 1
      %p211 = scmp.ne.s32.totalorder %s206, %s208
      %p212 = scmp.eq.s32.totalorder %s25, 0
      %p213 = por %p211, %p212
      %p214 = scmp.ne.s32.totalorder %s206, %s208
      %p215 = scmp.eq.s32.totalorder %s30, 1
      %p216 = por %p214, %p215
      %p217 = scmp.ne.s32.totalorder %s208, %s209
      %p218 = scmp.eq.s32.totalorder %s30, 0
      %p219 = por %p217, %p218
      %p220 = scmp.ne.s32.totalorder %s208, %s209
      %p221 = scmp.eq.s32.totalorder %s31, 1
      %p222 = por %p220, %p221
      %p224 = scmp.ne.s32.totalorder %s209, %s223
      %p225 = scmp.eq.s32.totalorder %s31, 0
      %p226 = por %p224, %p225
      %s227 = ssub.s32 %s25, %s32
      %p228 = scmp.eq.s32.totalorder %s227, 0
      %s230 = sadd.s32 %s229, 1
      %s231 = scalar_select %p228, %s229, %s230
      %p234 = pneg %p228
      %p235 = scmp.eq.s32.totalorder %s25, 1
      %p236 = por %p234, %p235
      %p237 = scmp.ne.s32.totalorder %s229, %s232
      %p238 = scmp.eq.s32.totalorder %s25, 0
      %p239 = por %p237, %p238
      %p240 = scmp.ne.s32.totalorder %s229, %s232
      %p241 = scmp.eq.s32.totalorder %s30, 1
      %p242 = por %p240, %p241
      %p243 = scmp.ne.s32.totalorder %s232, %s233
      %p244 = scmp.eq.s32.totalorder %s30, 0
      %p245 = por %p243, %p244
      %p246 = scmp.ne.s32.totalorder %s232, %s233
      %p247 = scmp.eq.s32.totalorder %s31, 1
      %p248 = por %p246, %p247
      %p250 = scmp.ne.s32.totalorder %s233, %s249
      %p251 = scmp.eq.s32.totalorder %s31, 0
      %p252 = por %p250, %p251
      %p253 = scmp.le.s32.totalorder 1, %s25
      %p254 = scmp.lt.s32.totalorder %s25, 3
      %p255 = pnand %p253, %p254
      %p256 = pneg %p255
      // Predicated region
      $region9: #{tpu_custom_call.1} parent=5 // pred_check
        _
      $region10: #{tpu_custom_call.1} parent=5 // pred_check_branch
        %258 = sbr.rel (%p255) target = $region12
      $region11: #{tpu_custom_call.1} parent=5 // pred_region
        %s259 = ssub.s32 %s25, 1
        // Predicated region
        $region13: #{tpu_custom_call.1} parent=11 // pred_check
          %p260 = pneg %p72
        $region14: #{tpu_custom_call.1} parent=11 // pred_check_branch
          %262 = sbr.rel (%p260) target = $region16
        $region15: #{tpu_custom_call.1} parent=11 // pred_region
          %s264 = ssub.s32 24576, 24576
          %265 = vsyncadd [#allocation6], %s264
          %s266 = sshll.u32 [#allocation5], 4
          %s267 = int_to_ptr.vmem [resolvable:$true] %s266
          %272 = dma.hbm_to_vmem [thread:$0]  %s1, 24576, %s267, [#allocation6], 256, 256, 16
        $region16: #{tpu_custom_call.1} parent=11 // pred_fallthru
          _
        // Predicated region
        $region17: #{tpu_custom_call.1} parent=11 // pred_check
          %p273 = pneg %p93
        $region18: #{tpu_custom_call.1} parent=11 // pred_check_branch
          %275 = sbr.rel (%p273) target = $region20
        $region19: #{tpu_custom_call.1} parent=11 // pred_region
          %s277 = ssub.s32 8192, 8192
          %278 = vsyncadd [#allocation6], %s277
          %s279 = sshll.u32 [#allocation7], 4
          %s280 = int_to_ptr.vmem [resolvable:$true] %s279
          %285 = dma.hbm_to_vmem [thread:$0]  %s2, 8192, %s280, [#allocation6], 128, 128, 8
        $region20: #{tpu_custom_call.1} parent=11 // pred_fallthru
          _
        // Predicated region
        $region21: #{tpu_custom_call.1} parent=11 // pred_check
          %p286 = pneg %p114
        $region22: #{tpu_custom_call.1} parent=11 // pred_check_branch
          %288 = sbr.rel (%p286) target = $region24
        $region23: #{tpu_custom_call.1} parent=11 // pred_region
          %s290 = ssub.s32 2048, 2048
          %291 = vsyncadd [#allocation9], %s290
          %s292 = sshll.u32 [#allocation8], 4
          %s293 = int_to_ptr.vmem [resolvable:$true] %s292
          %298 = dma.hbm_to_vmem [thread:$0]  %s3, 2048, %s293, [#allocation9], 64, 64, 4
        $region24: #{tpu_custom_call.1} parent=11 // pred_fallthru
          _
        // Predicated region
        $region25: #{tpu_custom_call.1} parent=11 // pred_check
          %p299 = pneg %p135
        $region26: #{tpu_custom_call.1} parent=11 // pred_check_branch
          %301 = sbr.rel (%p299) target = $region28
        $region27: #{tpu_custom_call.1} parent=11 // pred_region
          %s303 = ssub.s32 2048, 2048
          %304 = vsyncadd [#allocation9], %s303
          %s305 = sshll.u32 [#allocation10], 4
          %s306 = int_to_ptr.vmem [resolvable:$true] %s305
          %311 = dma.hbm_to_vmem [thread:$0]  %s4, 2048, %s306, [#allocation9], 128, 128, 8
        $region28: #{tpu_custom_call.1} parent=11 // pred_fallthru
          _
        // Predicated region
        $region29: #{tpu_custom_call.1} parent=11 // pred_check
          %p312 = pneg %p156
        $region30: #{tpu_custom_call.1} parent=11 // pred_check_branch
          %314 = sbr.rel (%p312) target = $region32
        $region31: #{tpu_custom_call.1} parent=11 // pred_region
          %s316 = ssub.s32 8192, 8192
          %317 = vsyncadd [#allocation12], %s316
          %s318 = sshll.u32 [#allocation11], 4
          %s319 = int_to_ptr.vmem [resolvable:$true] %s318
          %324 = dma.hbm_to_vmem [thread:$0]  %s5, 8192, %s319, [#allocation12], 256, 256, 16
        $region32: #{tpu_custom_call.1} parent=11 // pred_fallthru
          _
        // Predicated region
        $region33: #{tpu_custom_call.1} parent=11 // pred_check
          %p325 = pneg %p177
        $region34: #{tpu_custom_call.1} parent=11 // pred_check_branch
          %327 = sbr.rel (%p325) target = $region36
        $region35: #{tpu_custom_call.1} parent=11 // pred_region
          %s329 = ssub.s32 8192, 8192
          %330 = vsyncadd [#allocation12], %s329
          %s331 = sshll.u32 [#allocation13], 4
          %s332 = int_to_ptr.vmem [resolvable:$true] %s331
          %337 = dma.hbm_to_vmem [thread:$0]  %s6, 8192, %s332, [#allocation12], 256, 256, 16
        $region36: #{tpu_custom_call.1} parent=11 // pred_fallthru
          _
        // Predicated region
        $region37: #{tpu_custom_call.1} parent=11 // pred_check
          %p338 = pneg %p198
        $region38: #{tpu_custom_call.1} parent=11 // pred_check_branch
          %340 = sbr.rel (%p338) target = $region40
        $region39: #{tpu_custom_call.1} parent=11 // pred_region
          %s342 = ssub.s32 24576, 24576
          %343 = vsyncadd [#allocation15], %s342
          %s344 = sshll.u32 [#allocation14], 4
          %s345 = int_to_ptr.vmem [resolvable:$true] %s344
          %350 = dma.hbm_to_vmem [thread:$0]  %s7, 24576, %s345, [#allocation15], 384, 384, 24
        $region40: #{tpu_custom_call.1} parent=11 // pred_fallthru
          _
        // Predicated region
        $region41: #{tpu_custom_call.1} parent=11 // pred_check
          %p351 = pneg %p219
        $region42: #{tpu_custom_call.1} parent=11 // pred_check_branch
          %353 = sbr.rel (%p351) target = $region44
        $region43: #{tpu_custom_call.1} parent=11 // pred_region
          %s355 = ssub.s32 24576, 24576
          %356 = vsyncadd [#allocation15], %s355
          %s357 = sshll.u32 [#allocation16], 4
          %s358 = int_to_ptr.vmem [resolvable:$true] %s357
          %363 = dma.hbm_to_vmem [thread:$0]  %s8, 24576, %s358, [#allocation15], 384, 384, 24
        $region44: #{tpu_custom_call.1} parent=11 // pred_fallthru
          _
      $region12: #{tpu_custom_call.1} parent=5 // pred_fallthru
        _
      %p364 = scmp.lt.s32.totalorder %s25, 2
      // Predicated region
      $region45: #{tpu_custom_call.1} parent=5 // pred_check
        %p365 = pneg %p364
      $region46: #{tpu_custom_call.1} parent=5 // pred_check_branch
        %367 = sbr.rel (%p365) target = $region48
      $region47: #{tpu_custom_call.1} parent=5 // pred_region
        // Predicated region
        $region49: #{tpu_custom_call.1} parent=47 // pred_check
          %p368 = pneg %p45
        $region50: #{tpu_custom_call.1} parent=47 // pred_check_branch
          %370 = sbr.rel (%p368) target = $region52
        $region51: #{tpu_custom_call.1} parent=47 // pred_region
          %s371 = sand.u32 %s35, 1
          %s372 = scalar_lea.sflag [#allocation3], %s371
          %s373 = sand.u32 %s35, 1
          %s374 = smul.addr %s373, 24
          %s375 = scalar_lea.vmem [#allocation2], %s374
          %s377 = ssub.s32 384, 384
          %378 = vsyncadd %s372, %s377
          %s379 = smul.addr %s25, 6
          %s380 = smul.addr %s379, 64
          %s381 = scalar_lea.hbm %s0, %s380
          %s383 = sshll.u32 %s375, 4
          %s384 = int_to_ptr.vmem [resolvable:$true] %s383
          %386 = dma.hbm_to_vmem [thread:$0]  %s381, 384, %s384, %s372
        $region52: #{tpu_custom_call.1} parent=47 // pred_fallthru
          _
      $region48: #{tpu_custom_call.1} parent=5 // pred_fallthru
        _
      %p387 = scmp.le.s32.totalorder 1, %s25
      %p388 = scmp.lt.s32.totalorder %s25, 3
      %p389 = pnand %p387, %p388
      %p390 = pneg %p389
      // Predicated region
      $region53: #{tpu_custom_call.1} parent=5 // pred_check
        _
      $region54: #{tpu_custom_call.1} parent=5 // pred_check_branch
        %392 = sbr.rel (%p389) target = $region56
      $region55: #{tpu_custom_call.1} parent=5 // pred_region
        %s393 = ssub.s32 %s25, 1
        %s394 = sand.u32 %s38, 1
        %s395 = scalar_lea.sflag [#allocation3], %s394
        %s396 = sand.u32 %s38, 1
        %s397 = smul.addr %s396, 24
        %s398 = scalar_lea.vmem [#allocation2], %s397
        // Predicated region
        $region57: #{tpu_custom_call.1} parent=55 // pred_check
          %p399 = pneg %p51
        $region58: #{tpu_custom_call.1} parent=55 // pred_check_branch
          %401 = sbr.rel (%p399) target = $region60
        $region59: #{tpu_custom_call.1} parent=55 // pred_region
          %402 = dma.done %s395, 384
        $region60: #{tpu_custom_call.1} parent=55 // pred_fallthru
          _
        // Predicated region
        $region61: #{tpu_custom_call.1} parent=55 // pred_check
          %p403 = pneg %p72
        $region62: #{tpu_custom_call.1} parent=55 // pred_check_branch
          %405 = sbr.rel (%p403) target = $region64
        $region63: #{tpu_custom_call.1} parent=55 // pred_region
          %406 = dma.done [#allocation6], 24576
        $region64: #{tpu_custom_call.1} parent=55 // pred_fallthru
          _
        // Predicated region
        $region65: #{tpu_custom_call.1} parent=55 // pred_check
          %p407 = pneg %p93
        $region66: #{tpu_custom_call.1} parent=55 // pred_check_branch
          %409 = sbr.rel (%p407) target = $region68
        $region67: #{tpu_custom_call.1} parent=55 // pred_region
          %410 = dma.done [#allocation6], 8192
        $region68: #{tpu_custom_call.1} parent=55 // pred_fallthru
          _
        // Predicated region
        $region69: #{tpu_custom_call.1} parent=55 // pred_check
          %p411 = pneg %p114
        $region70: #{tpu_custom_call.1} parent=55 // pred_check_branch
          %413 = sbr.rel (%p411) target = $region72
        $region71: #{tpu_custom_call.1} parent=55 // pred_region
          %414 = dma.done [#allocation9], 2048
        $region72: #{tpu_custom_call.1} parent=55 // pred_fallthru
          _
        // Predicated region
        $region73: #{tpu_custom_call.1} parent=55 // pred_check
          %p415 = pneg %p135
        $region74: #{tpu_custom_call.1} parent=55 // pred_check_branch
          %417 = sbr.rel (%p415) target = $region76
        $region75: #{tpu_custom_call.1} parent=55 // pred_region
          %418 = dma.done [#allocation9], 2048
        $region76: #{tpu_custom_call.1} parent=55 // pred_fallthru
          _
        // Predicated region
        $region77: #{tpu_custom_call.1} parent=55 // pred_check
          %p419 = pneg %p156
        $region78: #{tpu_custom_call.1} parent=55 // pred_check_branch
          %421 = sbr.rel (%p419) target = $region80
        $region79: #{tpu_custom_call.1} parent=55 // pred_region
          %422 = dma.done [#allocation12], 8192
        $region80: #{tpu_custom_call.1} parent=55 // pred_fallthru
          _
        // Predicated region
        $region81: #{tpu_custom_call.1} parent=55 // pred_check
          %p423 = pneg %p177
        $region82: #{tpu_custom_call.1} parent=55 // pred_check_branch
          %425 = sbr.rel (%p423) target = $region84
        $region83: #{tpu_custom_call.1} parent=55 // pred_region
          %426 = dma.done [#allocation12], 8192
        $region84: #{tpu_custom_call.1} parent=55 // pred_fallthru
          _
        // Predicated region
        $region85: #{tpu_custom_call.1} parent=55 // pred_check
          %p427 = pneg %p198
        $region86: #{tpu_custom_call.1} parent=55 // pred_check_branch
          %429 = sbr.rel (%p427) target = $region88
        $region87: #{tpu_custom_call.1} parent=55 // pred_region
          %430 = dma.done [#allocation15], 24576
        $region88: #{tpu_custom_call.1} parent=55 // pred_fallthru
          _
        // Predicated region
        $region89: #{tpu_custom_call.1} parent=55 // pred_check
          %p431 = pneg %p219
        $region90: #{tpu_custom_call.1} parent=55 // pred_check_branch
          %433 = sbr.rel (%p431) target = $region92
        $region91: #{tpu_custom_call.1} parent=55 // pred_region
          %434 = dma.done [#allocation15], 24576
        $region92: #{tpu_custom_call.1} parent=55 // pred_fallthru
          _
        %s435 = sand.u32 %s38, 1
        %s436 = scalar_lea.sflag [#allocation3], %s435
        %s437 = sand.u32 %s38, 1
        %s438 = smul.addr %s437, 24
        %s439 = scalar_lea.vmem [#allocation2], %s438
        %p440 = pneg %p51
        %p441 = pneg %p48
        %p442 = pneg %p72
        %p443 = pneg %p69
        %p444 = pneg %p93
        %p445 = pneg %p90
        %p446 = pneg %p114
        %p447 = pneg %p111
        %p448 = pneg %p135
        %p449 = pneg %p132
        %p450 = pneg %p156
        %p451 = pneg %p153
        %p452 = pneg %p177
        %p453 = pneg %p174
        %p454 = pneg %p198
        %p455 = pneg %p195
        %p456 = pneg %p219
        %p457 = pneg %p216
        %p458 = pneg %p245
        %p459 = pneg %p242
        %s460 = sand.u32 %s232, 1
        %s461 = scalar_lea.sflag [#allocation4], %s460
        %s462 = sand.u32 %s232, 1
        %s463 = smul.addr %s462, 48
        %s464 = scalar_lea.vmem [#allocation17], %s463
        %v466 = vld [vmem:[%s398] sm:$0xff]
        %v467 = vld [vmem:[%s398 + $0x8] sm:$0xff]
        %v468 = vld [vmem:[%s398 + $0x10] sm:$0xff]
        %v469 = vld [vmem:[#allocation5] sm:$0xff]
        %v470 = vld [vmem:[#allocation5 + $0x8] sm:$0xff]
        %v471 = vld [vmem:[#allocation5 + $0x10] sm:$0xff]
        %v472 = vld [vmem:[#allocation5 + $0x18] sm:$0xff]
        %v473 = vld [vmem:[#allocation5 + $0x20] sm:$0xff]
        %v474 = vld [vmem:[#allocation5 + $0x28] sm:$0xff]
        %v475 = vld [vmem:[#allocation5 + $0x30] sm:$0xff]
        %v476 = vld [vmem:[#allocation5 + $0x38] sm:$0xff]
        %v477 = vld [vmem:[#allocation5 + $0x40] sm:$0xff]
        %v478 = vld [vmem:[#allocation5 + $0x48] sm:$0xff]
        %v479 = vld [vmem:[#allocation5 + $0x50] sm:$0xff]
        %v480 = vld [vmem:[#allocation5 + $0x58] sm:$0xff]
        %v481 = vld [vmem:[#allocation5 + $0x60] sm:$0xff]
        %v482 = vld [vmem:[#allocation5 + $0x68] sm:$0xff]
        %v483 = vld [vmem:[#allocation5 + $0x70] sm:$0xff]
        %v484 = vld [vmem:[#allocation5 + $0x78] sm:$0xff]
        %v485 = vld [vmem:[#allocation5 + $0x80] sm:$0xff]
        %v486 = vld [vmem:[#allocation5 + $0x88] sm:$0xff]
        %v487 = vld [vmem:[#allocation5 + $0x90] sm:$0xff]
        %v488 = vld [vmem:[#allocation5 + $0x98] sm:$0xff]
        %v489 = vld [vmem:[#allocation5 + $0xa0] sm:$0xff]
        %v490 = vld [vmem:[#allocation5 + $0xa8] sm:$0xff]
        %v491 = vld [vmem:[#allocation5 + $0xb0] sm:$0xff]
        %v492 = vld [vmem:[#allocation5 + $0xb8] sm:$0xff]
        %v493 = vld [vmem:[#allocation5 + $0xc0] sm:$0xff]
        %v494 = vld [vmem:[#allocation5 + $0xc8] sm:$0xff]
        %v495 = vld [vmem:[#allocation5 + $0xd0] sm:$0xff]
        %v496 = vld [vmem:[#allocation5 + $0xd8] sm:$0xff]
        %v497 = vld [vmem:[#allocation5 + $0xe0] sm:$0xff]
        %v498 = vld [vmem:[#allocation5 + $0xe8] sm:$0xff]
        %v499 = vld [vmem:[#allocation5 + $0xf0] sm:$0xff]
        %v500 = vld [vmem:[#allocation5 + $0xf8] sm:$0xff]
        %v501 = vld [vmem:[#allocation5 + $0x100] sm:$0xff]
        %v502 = vld [vmem:[#allocation5 + $0x108] sm:$0xff]
        %v503 = vld [vmem:[#allocation5 + $0x110] sm:$0xff]
        %v504 = vld [vmem:[#allocation5 + $0x118] sm:$0xff]
        %v505 = vld [vmem:[#allocation5 + $0x120] sm:$0xff]
        %v506 = vld [vmem:[#allocation5 + $0x128] sm:$0xff]
        %v507 = vld [vmem:[#allocation5 + $0x130] sm:$0xff]
        %v508 = vld [vmem:[#allocation5 + $0x138] sm:$0xff]
        %v509 = vld [vmem:[#allocation5 + $0x140] sm:$0xff]
        %v510 = vld [vmem:[#allocation5 + $0x148] sm:$0xff]
        %v511 = vld [vmem:[#allocation5 + $0x150] sm:$0xff]
        %v512 = vld [vmem:[#allocation5 + $0x158] sm:$0xff]
        %v513 = vld [vmem:[#allocation5 + $0x160] sm:$0xff]
        %v514 = vld [vmem:[#allocation5 + $0x168] sm:$0xff]
        %v515 = vld [vmem:[#allocation5 + $0x170] sm:$0xff]
        %v516 = vld [vmem:[#allocation5 + $0x178] sm:$0xff]
        %v517 = vld [vmem:[#allocation5 + $0x180] sm:$0xff]
        %v518 = vld [vmem:[#allocation5 + $0x188] sm:$0xff]
        %v519 = vld [vmem:[#allocation5 + $0x190] sm:$0xff]
        %v520 = vld [vmem:[#allocation5 + $0x198] sm:$0xff]
        %v521 = vld [vmem:[#allocation5 + $0x1a0] sm:$0xff]
        %v522 = vld [vmem:[#allocation5 + $0x1a8] sm:$0xff]
        %v523 = vld [vmem:[#allocation5 + $0x1b0] sm:$0xff]
        %v524 = vld [vmem:[#allocation5 + $0x1b8] sm:$0xff]
        %v525 = vld [vmem:[#allocation5 + $0x1c0] sm:$0xff]
        %v526 = vld [vmem:[#allocation5 + $0x1c8] sm:$0xff]
        %v527 = vld [vmem:[#allocation5 + $0x1d0] sm:$0xff]
        %v528 = vld [vmem:[#allocation5 + $0x1d8] sm:$0xff]
        %v529 = vld [vmem:[#allocation5 + $0x1e0] sm:$0xff]
        %v530 = vld [vmem:[#allocation5 + $0x1e8] sm:$0xff]
        %v531 = vld [vmem:[#allocation5 + $0x1f0] sm:$0xff]
        %v532 = vld [vmem:[#allocation5 + $0x1f8] sm:$0xff]
        %v533 = vld [vmem:[#allocation5 + $0x200] sm:$0xff]
        %v534 = vld [vmem:[#allocation5 + $0x208] sm:$0xff]
        %v535 = vld [vmem:[#allocation5 + $0x210] sm:$0xff]
        %v536 = vld [vmem:[#allocation5 + $0x218] sm:$0xff]
        %v537 = vld [vmem:[#allocation5 + $0x220] sm:$0xff]
        %v538 = vld [vmem:[#allocation5 + $0x228] sm:$0xff]
        %v539 = vld [vmem:[#allocation5 + $0x230] sm:$0xff]
        %v540 = vld [vmem:[#allocation5 + $0x238] sm:$0xff]
        %v541 = vld [vmem:[#allocation5 + $0x240] sm:$0xff]
        %v542 = vld [vmem:[#allocation5 + $0x248] sm:$0xff]
        %v543 = vld [vmem:[#allocation5 + $0x250] sm:$0xff]
        %v544 = vld [vmem:[#allocation5 + $0x258] sm:$0xff]
        %v545 = vld [vmem:[#allocation5 + $0x260] sm:$0xff]
        %v546 = vld [vmem:[#allocation5 + $0x268] sm:$0xff]
        %v547 = vld [vmem:[#allocation5 + $0x270] sm:$0xff]
        %v548 = vld [vmem:[#allocation5 + $0x278] sm:$0xff]
        %v549 = vld [vmem:[#allocation5 + $0x280] sm:$0xff]
        %v550 = vld [vmem:[#allocation5 + $0x288] sm:$0xff]
        %v551 = vld [vmem:[#allocation5 + $0x290] sm:$0xff]
        %v552 = vld [vmem:[#allocation5 + $0x298] sm:$0xff]
        %v553 = vld [vmem:[#allocation5 + $0x2a0] sm:$0xff]
        %v554 = vld [vmem:[#allocation5 + $0x2a8] sm:$0xff]
        %v555 = vld [vmem:[#allocation5 + $0x2b0] sm:$0xff]
        %v556 = vld [vmem:[#allocation5 + $0x2b8] sm:$0xff]
        %v557 = vld [vmem:[#allocation5 + $0x2c0] sm:$0xff]
        %v558 = vld [vmem:[#allocation5 + $0x2c8] sm:$0xff]
        %v559 = vld [vmem:[#allocation5 + $0x2d0] sm:$0xff]
        %v560 = vld [vmem:[#allocation5 + $0x2d8] sm:$0xff]
        %v561 = vld [vmem:[#allocation5 + $0x2e0] sm:$0xff]
        %v562 = vld [vmem:[#allocation5 + $0x2e8] sm:$0xff]
        %v563 = vld [vmem:[#allocation5 + $0x2f0] sm:$0xff]
        %v564 = vld [vmem:[#allocation5 + $0x2f8] sm:$0xff]
        %v565 = vld [vmem:[#allocation5 + $0x300] sm:$0xff]
        %v566 = vld [vmem:[#allocation5 + $0x308] sm:$0xff]
        %v567 = vld [vmem:[#allocation5 + $0x310] sm:$0xff]
        %v568 = vld [vmem:[#allocation5 + $0x318] sm:$0xff]
        %v569 = vld [vmem:[#allocation5 + $0x320] sm:$0xff]
        %v570 = vld [vmem:[#allocation5 + $0x328] sm:$0xff]
        %v571 = vld [vmem:[#allocation5 + $0x330] sm:$0xff]
        %v572 = vld [vmem:[#allocation5 + $0x338] sm:$0xff]
        %v573 = vld [vmem:[#allocation5 + $0x340] sm:$0xff]
        %v574 = vld [vmem:[#allocation5 + $0x348] sm:$0xff]
        %v575 = vld [vmem:[#allocation5 + $0x350] sm:$0xff]
        %v576 = vld [vmem:[#allocation5 + $0x358] sm:$0xff]
        %v577 = vld [vmem:[#allocation5 + $0x360] sm:$0xff]
        %v578 = vld [vmem:[#allocation5 + $0x368] sm:$0xff]
        %v579 = vld [vmem:[#allocation5 + $0x370] sm:$0xff]
        %v580 = vld [vmem:[#allocation5 + $0x378] sm:$0xff]
        %v581 = vld [vmem:[#allocation5 + $0x380] sm:$0xff]
        %v582 = vld [vmem:[#allocation5 + $0x388] sm:$0xff]
        %v583 = vld [vmem:[#allocation5 + $0x390] sm:$0xff]
        %v584 = vld [vmem:[#allocation5 + $0x398] sm:$0xff]
        %v585 = vld [vmem:[#allocation5 + $0x3a0] sm:$0xff]
        %v586 = vld [vmem:[#allocation5 + $0x3a8] sm:$0xff]
        %v587 = vld [vmem:[#allocation5 + $0x3b0] sm:$0xff]
        %v588 = vld [vmem:[#allocation5 + $0x3b8] sm:$0xff]
        %v589 = vld [vmem:[#allocation5 + $0x3c0] sm:$0xff]
        %v590 = vld [vmem:[#allocation5 + $0x3c8] sm:$0xff]
        %v591 = vld [vmem:[#allocation5 + $0x3d0] sm:$0xff]
        %v592 = vld [vmem:[#allocation5 + $0x3d8] sm:$0xff]
        %v593 = vld [vmem:[#allocation5 + $0x3e0] sm:$0xff]
        %v594 = vld [vmem:[#allocation5 + $0x3e8] sm:$0xff]
        %v595 = vld [vmem:[#allocation5 + $0x3f0] sm:$0xff]
        %v596 = vld [vmem:[#allocation5 + $0x3f8] sm:$0xff]
        %v597 = vld [vmem:[#allocation5 + $0x400] sm:$0xff]
        %v598 = vld [vmem:[#allocation5 + $0x408] sm:$0xff]
        %v599 = vld [vmem:[#allocation5 + $0x410] sm:$0xff]
        %v600 = vld [vmem:[#allocation5 + $0x418] sm:$0xff]
        %v601 = vld [vmem:[#allocation5 + $0x420] sm:$0xff]
        %v602 = vld [vmem:[#allocation5 + $0x428] sm:$0xff]
        %v603 = vld [vmem:[#allocation5 + $0x430] sm:$0xff]
        %v604 = vld [vmem:[#allocation5 + $0x438] sm:$0xff]
        %v605 = vld [vmem:[#allocation5 + $0x440] sm:$0xff]
        %v606 = vld [vmem:[#allocation5 + $0x448] sm:$0xff]
        %v607 = vld [vmem:[#allocation5 + $0x450] sm:$0xff]
        %v608 = vld [vmem:[#allocation5 + $0x458] sm:$0xff]
        %v609 = vld [vmem:[#allocation5 + $0x460] sm:$0xff]
        %v610 = vld [vmem:[#allocation5 + $0x468] sm:$0xff]
        %v611 = vld [vmem:[#allocation5 + $0x470] sm:$0xff]
        %v612 = vld [vmem:[#allocation5 + $0x478] sm:$0xff]
        %v613 = vld [vmem:[#allocation5 + $0x480] sm:$0xff]
        %v614 = vld [vmem:[#allocation5 + $0x488] sm:$0xff]
        %v615 = vld [vmem:[#allocation5 + $0x490] sm:$0xff]
        %v616 = vld [vmem:[#allocation5 + $0x498] sm:$0xff]
        %v617 = vld [vmem:[#allocation5 + $0x4a0] sm:$0xff]
        %v618 = vld [vmem:[#allocation5 + $0x4a8] sm:$0xff]
        %v619 = vld [vmem:[#allocation5 + $0x4b0] sm:$0xff]
        %v620 = vld [vmem:[#allocation5 + $0x4b8] sm:$0xff]
        %v621 = vld [vmem:[#allocation5 + $0x4c0] sm:$0xff]
        %v622 = vld [vmem:[#allocation5 + $0x4c8] sm:$0xff]
        %v623 = vld [vmem:[#allocation5 + $0x4d0] sm:$0xff]
        %v624 = vld [vmem:[#allocation5 + $0x4d8] sm:$0xff]
        %v625 = vld [vmem:[#allocation5 + $0x4e0] sm:$0xff]
        %v626 = vld [vmem:[#allocation5 + $0x4e8] sm:$0xff]
        %v627 = vld [vmem:[#allocation5 + $0x4f0] sm:$0xff]
        %v628 = vld [vmem:[#allocation5 + $0x4f8] sm:$0xff]
        %v629 = vld [vmem:[#allocation5 + $0x500] sm:$0xff]
        %v630 = vld [vmem:[#allocation5 + $0x508] sm:$0xff]
        %v631 = vld [vmem:[#allocation5 + $0x510] sm:$0xff]
        %v632 = vld [vmem:[#allocation5 + $0x518] sm:$0xff]
        %v633 = vld [vmem:[#allocation5 + $0x520] sm:$0xff]
        %v634 = vld [vmem:[#allocation5 + $0x528] sm:$0xff]
        %v635 = vld [vmem:[#allocation5 + $0x530] sm:$0xff]
        %v636 = vld [vmem:[#allocation5 + $0x538] sm:$0xff]
        %v637 = vld [vmem:[#allocation5 + $0x540] sm:$0xff]
        %v638 = vld [vmem:[#allocation5 + $0x548] sm:$0xff]
        %v639 = vld [vmem:[#allocation5 + $0x550] sm:$0xff]
        %v640 = vld [vmem:[#allocation5 + $0x558] sm:$0xff]
        %v641 = vld [vmem:[#allocation5 + $0x560] sm:$0xff]
        %v642 = vld [vmem:[#allocation5 + $0x568] sm:$0xff]
        %v643 = vld [vmem:[#allocation5 + $0x570] sm:$0xff]
        %v644 = vld [vmem:[#allocation5 + $0x578] sm:$0xff]
        %v645 = vld [vmem:[#allocation5 + $0x580] sm:$0xff]
        %v646 = vld [vmem:[#allocation5 + $0x588] sm:$0xff]
        %v647 = vld [vmem:[#allocation5 + $0x590] sm:$0xff]
        %v648 = vld [vmem:[#allocation5 + $0x598] sm:$0xff]
        %v649 = vld [vmem:[#allocation5 + $0x5a0] sm:$0xff]
        %v650 = vld [vmem:[#allocation5 + $0x5a8] sm:$0xff]
        %v651 = vld [vmem:[#allocation5 + $0x5b0] sm:$0xff]
        %v652 = vld [vmem:[#allocation5 + $0x5b8] sm:$0xff]
        %v653 = vld [vmem:[#allocation5 + $0x5c0] sm:$0xff]
        %v654 = vld [vmem:[#allocation5 + $0x5c8] sm:$0xff]
        %v655 = vld [vmem:[#allocation5 + $0x5d0] sm:$0xff]
        %v656 = vld [vmem:[#allocation5 + $0x5d8] sm:$0xff]
        %v657 = vld [vmem:[#allocation5 + $0x5e0] sm:$0xff]
        %v658 = vld [vmem:[#allocation5 + $0x5e8] sm:$0xff]
        %v659 = vld [vmem:[#allocation5 + $0x5f0] sm:$0xff]
        %v660 = vld [vmem:[#allocation5 + $0x5f8] sm:$0xff]
        %v664 = vunpack.c.l.b16 %v466
        %v665 = vunpack.c.h.b16 %v466
        %v666 = vunpack.c.l.b16 %v467
        %v667 = vunpack.c.h.b16 %v467
        %v668 = vunpack.c.l.b16 %v468
        %v669 = vunpack.c.h.b16 %v468
        %v670 = vpack.c.b16 %v664, %v664
        %v671 = vpack.c.b16 %v665, %v665
        %v672 = vpack.c.b16 %v666, %v666
        %v673 = vpack.c.b16 %v667, %v667
        %v674 = vpack.c.b16 %v668, %v668
        %v675 = vpack.c.b16 %v669, %v669
        %v874 = vunpack.c.l.b16 %v469
        %v875 = vunpack.c.h.b16 %v469
        %v876 = vunpack.c.l.b16 %v470
        %v877 = vunpack.c.h.b16 %v470
        %v878 = vunpack.c.l.b16 %v471
        %v879 = vunpack.c.h.b16 %v471
        %v880 = vunpack.c.l.b16 %v472
        %v881 = vunpack.c.h.b16 %v472
        %v882 = vunpack.c.l.b16 %v473
        %v883 = vunpack.c.h.b16 %v473
        %v884 = vunpack.c.l.b16 %v474
        %v885 = vunpack.c.h.b16 %v474
        %v886 = vunpack.c.l.b16 %v475
        %v887 = vunpack.c.h.b16 %v475
        %v888 = vunpack.c.l.b16 %v476
        %v889 = vunpack.c.h.b16 %v476
        %v890 = vunpack.c.l.b16 %v477
        %v891 = vunpack.c.h.b16 %v477
        %v892 = vunpack.c.l.b16 %v478
        %v893 = vunpack.c.h.b16 %v478
        %v894 = vunpack.c.l.b16 %v479
        %v895 = vunpack.c.h.b16 %v479
        %v896 = vunpack.c.l.b16 %v480
        %v897 = vunpack.c.h.b16 %v480
        %v898 = vunpack.c.l.b16 %v481
        %v899 = vunpack.c.h.b16 %v481
        %v900 = vunpack.c.l.b16 %v482
        %v901 = vunpack.c.h.b16 %v482
        %v902 = vunpack.c.l.b16 %v483
        %v903 = vunpack.c.h.b16 %v483
        %v904 = vunpack.c.l.b16 %v484
        %v905 = vunpack.c.h.b16 %v484
        %v906 = vunpack.c.l.b16 %v485
        %v907 = vunpack.c.h.b16 %v485
        %v908 = vunpack.c.l.b16 %v486
        %v909 = vunpack.c.h.b16 %v486
        %v910 = vunpack.c.l.b16 %v487
        %v911 = vunpack.c.h.b16 %v487
        %v912 = vunpack.c.l.b16 %v488
        %v913 = vunpack.c.h.b16 %v488
        %v914 = vunpack.c.l.b16 %v489
        %v915 = vunpack.c.h.b16 %v489
        %v916 = vunpack.c.l.b16 %v490
        %v917 = vunpack.c.h.b16 %v490
        %v918 = vunpack.c.l.b16 %v491
        %v919 = vunpack.c.h.b16 %v491
        %v920 = vunpack.c.l.b16 %v492
        %v921 = vunpack.c.h.b16 %v492
        %v922 = vunpack.c.l.b16 %v493
        %v923 = vunpack.c.h.b16 %v493
        %v924 = vunpack.c.l.b16 %v494
        %v925 = vunpack.c.h.b16 %v494
        %v926 = vunpack.c.l.b16 %v495
        %v927 = vunpack.c.h.b16 %v495
        %v928 = vunpack.c.l.b16 %v496
        %v929 = vunpack.c.h.b16 %v496
        %v930 = vunpack.c.l.b16 %v497
        %v931 = vunpack.c.h.b16 %v497
        %v932 = vunpack.c.l.b16 %v498
        %v933 = vunpack.c.h.b16 %v498
        %v934 = vunpack.c.l.b16 %v499
        %v935 = vunpack.c.h.b16 %v499
        %v936 = vunpack.c.l.b16 %v500
        %v937 = vunpack.c.h.b16 %v500
        %v938 = vunpack.c.l.b16 %v501
        %v939 = vunpack.c.h.b16 %v501
        %v940 = vunpack.c.l.b16 %v502
        %v941 = vunpack.c.h.b16 %v502
        %v942 = vunpack.c.l.b16 %v503
        %v943 = vunpack.c.h.b16 %v503
        %v944 = vunpack.c.l.b16 %v504
        %v945 = vunpack.c.h.b16 %v504
        %v946 = vunpack.c.l.b16 %v505
        %v947 = vunpack.c.h.b16 %v505
        %v948 = vunpack.c.l.b16 %v506
        %v949 = vunpack.c.h.b16 %v506
        %v950 = vunpack.c.l.b16 %v507
        %v951 = vunpack.c.h.b16 %v507
        %v952 = vunpack.c.l.b16 %v508
        %v953 = vunpack.c.h.b16 %v508
        %v954 = vunpack.c.l.b16 %v509
        %v955 = vunpack.c.h.b16 %v509
        %v956 = vunpack.c.l.b16 %v510
        %v957 = vunpack.c.h.b16 %v510
        %v958 = vunpack.c.l.b16 %v511
        %v959 = vunpack.c.h.b16 %v511
        %v960 = vunpack.c.l.b16 %v512
        %v961 = vunpack.c.h.b16 %v512
        %v962 = vunpack.c.l.b16 %v513
        %v963 = vunpack.c.h.b16 %v513
        %v964 = vunpack.c.l.b16 %v514
        %v965 = vunpack.c.h.b16 %v514
        %v966 = vunpack.c.l.b16 %v515
        %v967 = vunpack.c.h.b16 %v515
        %v968 = vunpack.c.l.b16 %v516
        %v969 = vunpack.c.h.b16 %v516
        %v970 = vunpack.c.l.b16 %v517
        %v971 = vunpack.c.h.b16 %v517
        %v972 = vunpack.c.l.b16 %v518
        %v973 = vunpack.c.h.b16 %v518
        %v974 = vunpack.c.l.b16 %v519
        %v975 = vunpack.c.h.b16 %v519
        %v976 = vunpack.c.l.b16 %v520
        %v977 = vunpack.c.h.b16 %v520
        %v978 = vunpack.c.l.b16 %v521
        %v979 = vunpack.c.h.b16 %v521
        %v980 = vunpack.c.l.b16 %v522
        %v981 = vunpack.c.h.b16 %v522
        %v982 = vunpack.c.l.b16 %v523
        %v983 = vunpack.c.h.b16 %v523
        %v984 = vunpack.c.l.b16 %v524
        %v985 = vunpack.c.h.b16 %v524
        %v986 = vunpack.c.l.b16 %v525
        %v987 = vunpack.c.h.b16 %v525
        %v988 = vunpack.c.l.b16 %v526
        %v989 = vunpack.c.h.b16 %v526
        %v990 = vunpack.c.l.b16 %v527
        %v991 = vunpack.c.h.b16 %v527
        %v992 = vunpack.c.l.b16 %v528
        %v993 = vunpack.c.h.b16 %v528
        %v994 = vunpack.c.l.b16 %v529
        %v995 = vunpack.c.h.b16 %v529
        %v996 = vunpack.c.l.b16 %v530
        %v997 = vunpack.c.h.b16 %v530
        %v998 = vunpack.c.l.b16 %v531
        %v999 = vunpack.c.h.b16 %v531
        %v1000 = vunpack.c.l.b16 %v532
        %v1001 = vunpack.c.h.b16 %v532
        %v1002 = vunpack.c.l.b16 %v533
        %v1003 = vunpack.c.h.b16 %v533
        %v1004 = vunpack.c.l.b16 %v534
        %v1005 = vunpack.c.h.b16 %v534
        %v1006 = vunpack.c.l.b16 %v535
        %v1007 = vunpack.c.h.b16 %v535
        %v1008 = vunpack.c.l.b16 %v536
        %v1009 = vunpack.c.h.b16 %v536
        %v1010 = vunpack.c.l.b16 %v537
        %v1011 = vunpack.c.h.b16 %v537
        %v1012 = vunpack.c.l.b16 %v538
        %v1013 = vunpack.c.h.b16 %v538
        %v1014 = vunpack.c.l.b16 %v539
        %v1015 = vunpack.c.h.b16 %v539
        %v1016 = vunpack.c.l.b16 %v540
        %v1017 = vunpack.c.h.b16 %v540
        %v1018 = vunpack.c.l.b16 %v541
        %v1019 = vunpack.c.h.b16 %v541
        %v1020 = vunpack.c.l.b16 %v542
        %v1021 = vunpack.c.h.b16 %v542
        %v1022 = vunpack.c.l.b16 %v543
        %v1023 = vunpack.c.h.b16 %v543
        %v1024 = vunpack.c.l.b16 %v544
        %v1025 = vunpack.c.h.b16 %v544
        %v1026 = vunpack.c.l.b16 %v545
        %v1027 = vunpack.c.h.b16 %v545
        %v1028 = vunpack.c.l.b16 %v546
        %v1029 = vunpack.c.h.b16 %v546
        %v1030 = vunpack.c.l.b16 %v547
        %v1031 = vunpack.c.h.b16 %v547
        %v1032 = vunpack.c.l.b16 %v548
        %v1033 = vunpack.c.h.b16 %v548
        %v1034 = vunpack.c.l.b16 %v549
        %v1035 = vunpack.c.h.b16 %v549
        %v1036 = vunpack.c.l.b16 %v550
        %v1037 = vunpack.c.h.b16 %v550
        %v1038 = vunpack.c.l.b16 %v551
        %v1039 = vunpack.c.h.b16 %v551
        %v1040 = vunpack.c.l.b16 %v552
        %v1041 = vunpack.c.h.b16 %v552
        %v1042 = vunpack.c.l.b16 %v553
        %v1043 = vunpack.c.h.b16 %v553
        %v1044 = vunpack.c.l.b16 %v554
        %v1045 = vunpack.c.h.b16 %v554
        %v1046 = vunpack.c.l.b16 %v555
        %v1047 = vunpack.c.h.b16 %v555
        %v1048 = vunpack.c.l.b16 %v556
        %v1049 = vunpack.c.h.b16 %v556
        %v1050 = vunpack.c.l.b16 %v557
        %v1051 = vunpack.c.h.b16 %v557
        %v1052 = vunpack.c.l.b16 %v558
        %v1053 = vunpack.c.h.b16 %v558
        %v1054 = vunpack.c.l.b16 %v559
        %v1055 = vunpack.c.h.b16 %v559
        %v1056 = vunpack.c.l.b16 %v560
        %v1057 = vunpack.c.h.b16 %v560
        %v1058 = vunpack.c.l.b16 %v561
        %v1059 = vunpack.c.h.b16 %v561
        %v1060 = vunpack.c.l.b16 %v562
        %v1061 = vunpack.c.h.b16 %v562
        %v1062 = vunpack.c.l.b16 %v563
        %v1063 = vunpack.c.h.b16 %v563
        %v1064 = vunpack.c.l.b16 %v564
        %v1065 = vunpack.c.h.b16 %v564
        %v1066 = vunpack.c.l.b16 %v565
        %v1067 = vunpack.c.h.b16 %v565
        %v1068 = vunpack.c.l.b16 %v566
        %v1069 = vunpack.c.h.b16 %v566
        %v1070 = vunpack.c.l.b16 %v567
        %v1071 = vunpack.c.h.b16 %v567
        %v1072 = vunpack.c.l.b16 %v568
        %v1073 = vunpack.c.h.b16 %v568
        %v1074 = vunpack.c.l.b16 %v569
        %v1075 = vunpack.c.h.b16 %v569
        %v1076 = vunpack.c.l.b16 %v570
        %v1077 = vunpack.c.h.b16 %v570
        %v1078 = vunpack.c.l.b16 %v571
        %v1079 = vunpack.c.h.b16 %v571
        %v1080 = vunpack.c.l.b16 %v572
        %v1081 = vunpack.c.h.b16 %v572
        %v1082 = vunpack.c.l.b16 %v573
        %v1083 = vunpack.c.h.b16 %v573
        %v1084 = vunpack.c.l.b16 %v574
        %v1085 = vunpack.c.h.b16 %v574
        %v1086 = vunpack.c.l.b16 %v575
        %v1087 = vunpack.c.h.b16 %v575
        %v1088 = vunpack.c.l.b16 %v576
        %v1089 = vunpack.c.h.b16 %v576
        %v1090 = vunpack.c.l.b16 %v577
        %v1091 = vunpack.c.h.b16 %v577
        %v1092 = vunpack.c.l.b16 %v578
        %v1093 = vunpack.c.h.b16 %v578
        %v1094 = vunpack.c.l.b16 %v579
        %v1095 = vunpack.c.h.b16 %v579
        %v1096 = vunpack.c.l.b16 %v580
        %v1097 = vunpack.c.h.b16 %v580
        %v1098 = vunpack.c.l.b16 %v581
        %v1099 = vunpack.c.h.b16 %v581
        %v1100 = vunpack.c.l.b16 %v582
        %v1101 = vunpack.c.h.b16 %v582
        %v1102 = vunpack.c.l.b16 %v583
        %v1103 = vunpack.c.h.b16 %v583
        %v1104 = vunpack.c.l.b16 %v584
        %v1105 = vunpack.c.h.b16 %v584
        %v1106 = vunpack.c.l.b16 %v585
        %v1107 = vunpack.c.h.b16 %v585
        %v1108 = vunpack.c.l.b16 %v586
        %v1109 = vunpack.c.h.b16 %v586
        %v1110 = vunpack.c.l.b16 %v587
        %v1111 = vunpack.c.h.b16 %v587
        %v1112 = vunpack.c.l.b16 %v588
        %v1113 = vunpack.c.h.b16 %v588
        %v1114 = vunpack.c.l.b16 %v589
        %v1115 = vunpack.c.h.b16 %v589
        %v1116 = vunpack.c.l.b16 %v590
        %v1117 = vunpack.c.h.b16 %v590
        %v1118 = vunpack.c.l.b16 %v591
        %v1119 = vunpack.c.h.b16 %v591
        %v1120 = vunpack.c.l.b16 %v592
        %v1121 = vunpack.c.h.b16 %v592
        %v1122 = vunpack.c.l.b16 %v593
        %v1123 = vunpack.c.h.b16 %v593
        %v1124 = vunpack.c.l.b16 %v594
        %v1125 = vunpack.c.h.b16 %v594
        %v1126 = vunpack.c.l.b16 %v595
        %v1127 = vunpack.c.h.b16 %v595
        %v1128 = vunpack.c.l.b16 %v596
        %v1129 = vunpack.c.h.b16 %v596
        %v1130 = vunpack.c.l.b16 %v597
        %v1131 = vunpack.c.h.b16 %v597
        %v1132 = vunpack.c.l.b16 %v598
        %v1133 = vunpack.c.h.b16 %v598
        %v1134 = vunpack.c.l.b16 %v599
        %v1135 = vunpack.c.h.b16 %v599
        %v1136 = vunpack.c.l.b16 %v600
        %v1137 = vunpack.c.h.b16 %v600
        %v1138 = vunpack.c.l.b16 %v601
        %v1139 = vunpack.c.h.b16 %v601
        %v1140 = vunpack.c.l.b16 %v602
        %v1141 = vunpack.c.h.b16 %v602
        %v1142 = vunpack.c.l.b16 %v603
        %v1143 = vunpack.c.h.b16 %v603
        %v1144 = vunpack.c.l.b16 %v604
        %v1145 = vunpack.c.h.b16 %v604
        %v1146 = vunpack.c.l.b16 %v605
        %v1147 = vunpack.c.h.b16 %v605
        %v1148 = vunpack.c.l.b16 %v606
        %v1149 = vunpack.c.h.b16 %v606
        %v1150 = vunpack.c.l.b16 %v607
        %v1151 = vunpack.c.h.b16 %v607
        %v1152 = vunpack.c.l.b16 %v608
        %v1153 = vunpack.c.h.b16 %v608
        %v1154 = vunpack.c.l.b16 %v609
        %v1155 = vunpack.c.h.b16 %v609
        %v1156 = vunpack.c.l.b16 %v610
        %v1157 = vunpack.c.h.b16 %v610
        %v1158 = vunpack.c.l.b16 %v611
        %v1159 = vunpack.c.h.b16 %v611
        %v1160 = vunpack.c.l.b16 %v612
        %v1161 = vunpack.c.h.b16 %v612
        %v1162 = vunpack.c.l.b16 %v613
        %v1163 = vunpack.c.h.b16 %v613
        %v1164 = vunpack.c.l.b16 %v614
        %v1165 = vunpack.c.h.b16 %v614
        %v1166 = vunpack.c.l.b16 %v615
        %v1167 = vunpack.c.h.b16 %v615
        %v1168 = vunpack.c.l.b16 %v616
        %v1169 = vunpack.c.h.b16 %v616
        %v1170 = vunpack.c.l.b16 %v617
        %v1171 = vunpack.c.h.b16 %v617
        %v1172 = vunpack.c.l.b16 %v618
        %v1173 = vunpack.c.h.b16 %v618
        %v1174 = vunpack.c.l.b16 %v619
        %v1175 = vunpack.c.h.b16 %v619
        %v1176 = vunpack.c.l.b16 %v620
        %v1177 = vunpack.c.h.b16 %v620
        %v1178 = vunpack.c.l.b16 %v621
        %v1179 = vunpack.c.h.b16 %v621
        %v1180 = vunpack.c.l.b16 %v622
        %v1181 = vunpack.c.h.b16 %v622
        %v1182 = vunpack.c.l.b16 %v623
        %v1183 = vunpack.c.h.b16 %v623
        %v1184 = vunpack.c.l.b16 %v624
        %v1185 = vunpack.c.h.b16 %v624
        %v1186 = vunpack.c.l.b16 %v625
        %v1187 = vunpack.c.h.b16 %v625
        %v1188 = vunpack.c.l.b16 %v626
        %v1189 = vunpack.c.h.b16 %v626
        %v1190 = vunpack.c.l.b16 %v627
        %v1191 = vunpack.c.h.b16 %v627
        %v1192 = vunpack.c.l.b16 %v628
        %v1193 = vunpack.c.h.b16 %v628
        %v1194 = vunpack.c.l.b16 %v629
        %v1195 = vunpack.c.h.b16 %v629
        %v1196 = vunpack.c.l.b16 %v630
        %v1197 = vunpack.c.h.b16 %v630
        %v1198 = vunpack.c.l.b16 %v631
        %v1199 = vunpack.c.h.b16 %v631
        %v1200 = vunpack.c.l.b16 %v632
        %v1201 = vunpack.c.h.b16 %v632
        %v1202 = vunpack.c.l.b16 %v633
        %v1203 = vunpack.c.h.b16 %v633
        %v1204 = vunpack.c.l.b16 %v634
        %v1205 = vunpack.c.h.b16 %v634
        %v1206 = vunpack.c.l.b16 %v635
        %v1207 = vunpack.c.h.b16 %v635
        %v1208 = vunpack.c.l.b16 %v636
        %v1209 = vunpack.c.h.b16 %v636
        %v1210 = vunpack.c.l.b16 %v637
        %v1211 = vunpack.c.h.b16 %v637
        %v1212 = vunpack.c.l.b16 %v638
        %v1213 = vunpack.c.h.b16 %v638
        %v1214 = vunpack.c.l.b16 %v639
        %v1215 = vunpack.c.h.b16 %v639
        %v1216 = vunpack.c.l.b16 %v640
        %v1217 = vunpack.c.h.b16 %v640
        %v1218 = vunpack.c.l.b16 %v641
        %v1219 = vunpack.c.h.b16 %v641
        %v1220 = vunpack.c.l.b16 %v642
        %v1221 = vunpack.c.h.b16 %v642
        %v1222 = vunpack.c.l.b16 %v643
        %v1223 = vunpack.c.h.b16 %v643
        %v1224 = vunpack.c.l.b16 %v644
        %v1225 = vunpack.c.h.b16 %v644
        %v1226 = vunpack.c.l.b16 %v645
        %v1227 = vunpack.c.h.b16 %v645
        %v1228 = vunpack.c.l.b16 %v646
        %v1229 = vunpack.c.h.b16 %v646
        %v1230 = vunpack.c.l.b16 %v647
        %v1231 = vunpack.c.h.b16 %v647
        %v1232 = vunpack.c.l.b16 %v648
        %v1233 = vunpack.c.h.b16 %v648
        %v1234 = vunpack.c.l.b16 %v649
        %v1235 = vunpack.c.h.b16 %v649
        %v1236 = vunpack.c.l.b16 %v650
        %v1237 = vunpack.c.h.b16 %v650
        %v1238 = vunpack.c.l.b16 %v651
        %v1239 = vunpack.c.h.b16 %v651
        %v1240 = vunpack.c.l.b16 %v652
        %v1241 = vunpack.c.h.b16 %v652
        %v1242 = vunpack.c.l.b16 %v653
        %v1243 = vunpack.c.h.b16 %v653
        %v1244 = vunpack.c.l.b16 %v654
        %v1245 = vunpack.c.h.b16 %v654
        %v1246 = vunpack.c.l.b16 %v655
        %v1247 = vunpack.c.h.b16 %v655
        %v1248 = vunpack.c.l.b16 %v656
        %v1249 = vunpack.c.h.b16 %v656
        %v1250 = vunpack.c.l.b16 %v657
        %v1251 = vunpack.c.h.b16 %v657
        %v1252 = vunpack.c.l.b16 %v658
        %v1253 = vunpack.c.h.b16 %v658
        %v1254 = vunpack.c.l.b16 %v659
        %v1255 = vunpack.c.h.b16 %v659
        %v1256 = vunpack.c.l.b16 %v660
        %v1257 = vunpack.c.h.b16 %v660
        %v1258 = vpack.c.b16 %v878, %v874
        %v1259 = vpack.c.b16 %v879, %v875
        %v1260 = vpack.c.b16 %v880, %v876
        %v1261 = vpack.c.b16 %v881, %v877
        %v1262 = vpack.c.b16 %v886, %v882
        %v1263 = vpack.c.b16 %v887, %v883
        %v1264 = vpack.c.b16 %v888, %v884
        %v1265 = vpack.c.b16 %v889, %v885
        %v1266 = vpack.c.b16 %v894, %v890
        %v1267 = vpack.c.b16 %v895, %v891
        %v1268 = vpack.c.b16 %v896, %v892
        %v1269 = vpack.c.b16 %v897, %v893
        %v1270 = vpack.c.b16 %v902, %v898
        %v1271 = vpack.c.b16 %v903, %v899
        %v1272 = vpack.c.b16 %v904, %v900
        %v1273 = vpack.c.b16 %v905, %v901
        %v1274 = vpack.c.b16 %v910, %v906
        %v1275 = vpack.c.b16 %v911, %v907
        %v1276 = vpack.c.b16 %v912, %v908
        %v1277 = vpack.c.b16 %v913, %v909
        %v1278 = vpack.c.b16 %v918, %v914
        %v1279 = vpack.c.b16 %v919, %v915
        %v1280 = vpack.c.b16 %v920, %v916
        %v1281 = vpack.c.b16 %v921, %v917
        %v1282 = vpack.c.b16 %v926, %v922
        %v1283 = vpack.c.b16 %v927, %v923
        %v1284 = vpack.c.b16 %v928, %v924
        %v1285 = vpack.c.b16 %v929, %v925
        %v1286 = vpack.c.b16 %v934, %v930
        %v1287 = vpack.c.b16 %v935, %v931
        %v1288 = vpack.c.b16 %v936, %v932
        %v1289 = vpack.c.b16 %v937, %v933
        %v1290 = vpack.c.b16 %v942, %v938
        %v1291 = vpack.c.b16 %v943, %v939
        %v1292 = vpack.c.b16 %v944, %v940
        %v1293 = vpack.c.b16 %v945, %v941
        %v1294 = vpack.c.b16 %v950, %v946
        %v1295 = vpack.c.b16 %v951, %v947
        %v1296 = vpack.c.b16 %v952, %v948
        %v1297 = vpack.c.b16 %v953, %v949
        %v1298 = vpack.c.b16 %v958, %v954
        %v1299 = vpack.c.b16 %v959, %v955
        %v1300 = vpack.c.b16 %v960, %v956
        %v1301 = vpack.c.b16 %v961, %v957
        %v1302 = vpack.c.b16 %v966, %v962
        %v1303 = vpack.c.b16 %v967, %v963
        %v1304 = vpack.c.b16 %v968, %v964
        %v1305 = vpack.c.b16 %v969, %v965
        %v1306 = vpack.c.b16 %v974, %v970
        %v1307 = vpack.c.b16 %v975, %v971
        %v1308 = vpack.c.b16 %v976, %v972
        %v1309 = vpack.c.b16 %v977, %v973
        %v1310 = vpack.c.b16 %v982, %v978
        %v1311 = vpack.c.b16 %v983, %v979
        %v1312 = vpack.c.b16 %v984, %v980
        %v1313 = vpack.c.b16 %v985, %v981
        %v1314 = vpack.c.b16 %v990, %v986
        %v1315 = vpack.c.b16 %v991, %v987
        %v1316 = vpack.c.b16 %v992, %v988
        %v1317 = vpack.c.b16 %v993, %v989
        %v1318 = vpack.c.b16 %v998, %v994
        %v1319 = vpack.c.b16 %v999, %v995
        %v1320 = vpack.c.b16 %v1000, %v996
        %v1321 = vpack.c.b16 %v1001, %v997
        %v1322 = vpack.c.b16 %v1006, %v1002
        %v1323 = vpack.c.b16 %v1007, %v1003
        %v1324 = vpack.c.b16 %v1008, %v1004
        %v1325 = vpack.c.b16 %v1009, %v1005
        %v1326 = vpack.c.b16 %v1014, %v1010
        %v1327 = vpack.c.b16 %v1015, %v1011
        %v1328 = vpack.c.b16 %v1016, %v1012
        %v1329 = vpack.c.b16 %v1017, %v1013
        %v1330 = vpack.c.b16 %v1022, %v1018
        %v1331 = vpack.c.b16 %v1023, %v1019
        %v1332 = vpack.c.b16 %v1024, %v1020
        %v1333 = vpack.c.b16 %v1025, %v1021
        %v1334 = vpack.c.b16 %v1030, %v1026
        %v1335 = vpack.c.b16 %v1031, %v1027
        %v1336 = vpack.c.b16 %v1032, %v1028
        %v1337 = vpack.c.b16 %v1033, %v1029
        %v1338 = vpack.c.b16 %v1038, %v1034
        %v1339 = vpack.c.b16 %v1039, %v1035
        %v1340 = vpack.c.b16 %v1040, %v1036
        %v1341 = vpack.c.b16 %v1041, %v1037
        %v1342 = vpack.c.b16 %v1046, %v1042
        %v1343 = vpack.c.b16 %v1047, %v1043
        %v1344 = vpack.c.b16 %v1048, %v1044
        %v1345 = vpack.c.b16 %v1049, %v1045
        %v1346 = vpack.c.b16 %v1054, %v1050
        %v1347 = vpack.c.b16 %v1055, %v1051
        %v1348 = vpack.c.b16 %v1056, %v1052
        %v1349 = vpack.c.b16 %v1057, %v1053
        %v1350 = vpack.c.b16 %v1062, %v1058
        %v1351 = vpack.c.b16 %v1063, %v1059
        %v1352 = vpack.c.b16 %v1064, %v1060
        %v1353 = vpack.c.b16 %v1065, %v1061
        %v1354 = vpack.c.b16 %v1070, %v1066
        %v1355 = vpack.c.b16 %v1071, %v1067
        %v1356 = vpack.c.b16 %v1072, %v1068
        %v1357 = vpack.c.b16 %v1073, %v1069
        %v1358 = vpack.c.b16 %v1078, %v1074
        %v1359 = vpack.c.b16 %v1079, %v1075
        %v1360 = vpack.c.b16 %v1080, %v1076
        %v1361 = vpack.c.b16 %v1081, %v1077
        %v1362 = vpack.c.b16 %v1086, %v1082
        %v1363 = vpack.c.b16 %v1087, %v1083
        %v1364 = vpack.c.b16 %v1088, %v1084
        %v1365 = vpack.c.b16 %v1089, %v1085
        %v1366 = vpack.c.b16 %v1094, %v1090
        %v1367 = vpack.c.b16 %v1095, %v1091
        %v1368 = vpack.c.b16 %v1096, %v1092
        %v1369 = vpack.c.b16 %v1097, %v1093
        %v1370 = vpack.c.b16 %v1102, %v1098
        %v1371 = vpack.c.b16 %v1103, %v1099
        %v1372 = vpack.c.b16 %v1104, %v1100
        %v1373 = vpack.c.b16 %v1105, %v1101
        %v1374 = vpack.c.b16 %v1110, %v1106
        %v1375 = vpack.c.b16 %v1111, %v1107
        %v1376 = vpack.c.b16 %v1112, %v1108
        %v1377 = vpack.c.b16 %v1113, %v1109
        %v1378 = vpack.c.b16 %v1118, %v1114
        %v1379 = vpack.c.b16 %v1119, %v1115
        %v1380 = vpack.c.b16 %v1120, %v1116
        %v1381 = vpack.c.b16 %v1121, %v1117
        %v1382 = vpack.c.b16 %v1126, %v1122
        %v1383 = vpack.c.b16 %v1127, %v1123
        %v1384 = vpack.c.b16 %v1128, %v1124
        %v1385 = vpack.c.b16 %v1129, %v1125
        %v1386 = vpack.c.b16 %v1134, %v1130
        %v1387 = vpack.c.b16 %v1135, %v1131
        %v1388 = vpack.c.b16 %v1136, %v1132
        %v1389 = vpack.c.b16 %v1137, %v1133
        %v1390 = vpack.c.b16 %v1142, %v1138
        %v1391 = vpack.c.b16 %v1143, %v1139
        %v1392 = vpack.c.b16 %v1144, %v1140
        %v1393 = vpack.c.b16 %v1145, %v1141
        %v1394 = vpack.c.b16 %v1150, %v1146
        %v1395 = vpack.c.b16 %v1151, %v1147
        %v1396 = vpack.c.b16 %v1152, %v1148
        %v1397 = vpack.c.b16 %v1153, %v1149
        %v1398 = vpack.c.b16 %v1158, %v1154
        %v1399 = vpack.c.b16 %v1159, %v1155
        %v1400 = vpack.c.b16 %v1160, %v1156
        %v1401 = vpack.c.b16 %v1161, %v1157
        %v1402 = vpack.c.b16 %v1166, %v1162
        %v1403 = vpack.c.b16 %v1167, %v1163
        %v1404 = vpack.c.b16 %v1168, %v1164
        %v1405 = vpack.c.b16 %v1169, %v1165
        %v1406 = vpack.c.b16 %v1174, %v1170
        %v1407 = vpack.c.b16 %v1175, %v1171
        %v1408 = vpack.c.b16 %v1176, %v1172
        %v1409 = vpack.c.b16 %v1177, %v1173
        %v1410 = vpack.c.b16 %v1182, %v1178
        %v1411 = vpack.c.b16 %v1183, %v1179
        %v1412 = vpack.c.b16 %v1184, %v1180
        %v1413 = vpack.c.b16 %v1185, %v1181
        %v1414 = vpack.c.b16 %v1190, %v1186
        %v1415 = vpack.c.b16 %v1191, %v1187
        %v1416 = vpack.c.b16 %v1192, %v1188
        %v1417 = vpack.c.b16 %v1193, %v1189
        %v1418 = vpack.c.b16 %v1198, %v1194
        %v1419 = vpack.c.b16 %v1199, %v1195
        %v1420 = vpack.c.b16 %v1200, %v1196
        %v1421 = vpack.c.b16 %v1201, %v1197
        %v1422 = vpack.c.b16 %v1206, %v1202
        %v1423 = vpack.c.b16 %v1207, %v1203
        %v1424 = vpack.c.b16 %v1208, %v1204
        %v1425 = vpack.c.b16 %v1209, %v1205
        %v1426 = vpack.c.b16 %v1214, %v1210
        %v1427 = vpack.c.b16 %v1215, %v1211
        %v1428 = vpack.c.b16 %v1216, %v1212
        %v1429 = vpack.c.b16 %v1217, %v1213
        %v1430 = vpack.c.b16 %v1222, %v1218
        %v1431 = vpack.c.b16 %v1223, %v1219
        %v1432 = vpack.c.b16 %v1224, %v1220
        %v1433 = vpack.c.b16 %v1225, %v1221
        %v1434 = vpack.c.b16 %v1230, %v1226
        %v1435 = vpack.c.b16 %v1231, %v1227
        %v1436 = vpack.c.b16 %v1232, %v1228
        %v1437 = vpack.c.b16 %v1233, %v1229
        %v1438 = vpack.c.b16 %v1238, %v1234
        %v1439 = vpack.c.b16 %v1239, %v1235
        %v1440 = vpack.c.b16 %v1240, %v1236
        %v1441 = vpack.c.b16 %v1241, %v1237
        %v1442 = vpack.c.b16 %v1246, %v1242
        %v1443 = vpack.c.b16 %v1247, %v1243
        %v1444 = vpack.c.b16 %v1248, %v1244
        %v1445 = vpack.c.b16 %v1249, %v1245
        %v1446 = vpack.c.b16 %v1254, %v1250
        %v1447 = vpack.c.b16 %v1255, %v1251
        %v1448 = vpack.c.b16 %v1256, %v1252
        %v1449 = vpack.c.b16 %v1257, %v1253
        %1642 = vmatprep.subr.bf16.mxu0 %v1259
        %1643 = vmatpush1.bf16.msra.mxu0 %v1258
        %1644 = vmatprep.subr.bf16.mxu0 %v1263
        %1645 = vmatpush1.bf16.msra.mxu0 %v1262
        %1646 = vmatprep.subr.bf16.mxu0 %v1267
        %1647 = vmatpush1.bf16.msra.mxu0 %v1266
        %1648 = vmatprep.subr.bf16.mxu0 %v1271
        %1649 = vmatpush1.bf16.msra.mxu0 %v1270
        %1650 = vmatprep.subr.bf16.mxu0 %v1275
        %1651 = vmatpush1.bf16.msra.mxu0 %v1274
        %1652 = vmatprep.subr.bf16.mxu0 %v1279
        %1653 = vmatpush1.bf16.msra.mxu0 %v1278
        %1654 = vmatprep.subr.bf16.mxu0 %v1283
        %1655 = vmatpush1.bf16.msra.mxu0 %v1282
        %1656 = vmatprep.subr.bf16.mxu0 %v1287
        %1657 = vmatpush1.bf16.msra.mxu0 %v1286
        %1658 = vmatprep.subr.bf16.mxu0 %v1291
        %1659 = vmatpush1.bf16.msra.mxu0 %v1290
        %1660 = vmatprep.subr.bf16.mxu0 %v1295
        %1661 = vmatpush1.bf16.msra.mxu0 %v1294
        %1662 = vmatprep.subr.bf16.mxu0 %v1299
        %1663 = vmatpush1.bf16.msra.mxu0 %v1298
        %1664 = vmatprep.subr.bf16.mxu0 %v1303
        %1665 = vmatpush1.bf16.msra.mxu0 %v1302
        %1666 = vmatprep.subr.bf16.mxu0 %v1307
        %1667 = vmatpush1.bf16.msra.mxu0 %v1306
        %1668 = vmatprep.subr.bf16.mxu0 %v1311
        %1669 = vmatpush1.bf16.msra.mxu0 %v1310
        %1670 = vmatprep.subr.bf16.mxu0 %v1315
        %1671 = vmatpush1.bf16.msra.mxu0 %v1314
        %1672 = vmatprep.subr.bf16.mxu0 %v1319
        %1673 = vmatpush1.bf16.msra.mxu0 %v1318
        %1674 = vmatprep.mubr.bf16.mxu0 %v671
        %1675 = vmatmul.mubr.bf16.gmra.mrb[0].mxu0 %v670
        %v1676 = vpop.f32.mrb[0].mxu0
        %v1677 = vadd.f32 0.0, %v1676
        %v1678 = vpop.f32.mrb[0].mxu0
        %v1679 = vadd.f32 0.0, %v1678
        %v1680 = vpop.f32.mrb[0].mxu0
        %v1681 = vpop.f32.mrb[0].mxu0
        %1682 = vdwg.mxu0
        %1683 = vmatprep.subr.bf16.mxu0 %v1323
        %1684 = vmatpush1.bf16.msra.mxu0 %v1322
        %1685 = vmatprep.subr.bf16.mxu0 %v1327
        %1686 = vmatpush1.bf16.msra.mxu0 %v1326
        %1687 = vmatprep.subr.bf16.mxu0 %v1331
        %1688 = vmatpush1.bf16.msra.mxu0 %v1330
        %1689 = vmatprep.subr.bf16.mxu0 %v1335
        %1690 = vmatpush1.bf16.msra.mxu0 %v1334
        %1691 = vmatprep.subr.bf16.mxu0 %v1339
        %1692 = vmatpush1.bf16.msra.mxu0 %v1338
        %1693 = vmatprep.subr.bf16.mxu0 %v1343
        %1694 = vmatpush1.bf16.msra.mxu0 %v1342
        %1695 = vmatprep.subr.bf16.mxu0 %v1347
        %1696 = vmatpush1.bf16.msra.mxu0 %v1346
        %1697 = vmatprep.subr.bf16.mxu0 %v1351
        %1698 = vmatpush1.bf16.msra.mxu0 %v1350
        %1699 = vmatprep.subr.bf16.mxu0 %v1355
        %1700 = vmatpush1.bf16.msra.mxu0 %v1354
        %1701 = vmatprep.subr.bf16.mxu0 %v1359
        %1702 = vmatpush1.bf16.msra.mxu0 %v1358
        %1703 = vmatprep.subr.bf16.mxu0 %v1363
        %1704 = vmatpush1.bf16.msra.mxu0 %v1362
        %1705 = vmatprep.subr.bf16.mxu0 %v1367
        %1706 = vmatpush1.bf16.msra.mxu0 %v1366
        %1707 = vmatprep.subr.bf16.mxu0 %v1371
        %1708 = vmatpush1.bf16.msra.mxu0 %v1370
        %1709 = vmatprep.subr.bf16.mxu0 %v1375
        %1710 = vmatpush1.bf16.msra.mxu0 %v1374
        %1711 = vmatprep.subr.bf16.mxu0 %v1379
        %1712 = vmatpush1.bf16.msra.mxu0 %v1378
        %1713 = vmatprep.subr.bf16.mxu0 %v1383
        %1714 = vmatpush1.bf16.msra.mxu0 %v1382
        %1715 = vmatprep.mubr.bf16.mxu0 %v673
        %1716 = vmatmul.mubr.bf16.gmra.mrb[0].mxu0 %v672
        %v1717 = vpop.f32.mrb[0].mxu0
        %v1718 = vadd.f32 %v1677, %v1717
        %v1719 = vpop.f32.mrb[0].mxu0
        %v1720 = vadd.f32 %v1679, %v1719
        %v1721 = vpop.f32.mrb[0].mxu0
        %v1722 = vpop.f32.mrb[0].mxu0
        %1723 = vdwg.mxu0
        %1724 = vmatprep.subr.bf16.mxu0 %v1387
        %1725 = vmatpush1.bf16.msra.mxu0 %v1386
        %1726 = vmatprep.subr.bf16.mxu0 %v1391
        %1727 = vmatpush1.bf16.msra.mxu0 %v1390
        %1728 = vmatprep.subr.bf16.mxu0 %v1395
        %1729 = vmatpush1.bf16.msra.mxu0 %v1394
        %1730 = vmatprep.subr.bf16.mxu0 %v1399
        %1731 = vmatpush1.bf16.msra.mxu0 %v1398
        %1732 = vmatprep.subr.bf16.mxu0 %v1403
        %1733 = vmatpush1.bf16.msra.mxu0 %v1402
        %1734 = vmatprep.subr.bf16.mxu0 %v1407
        %1735 = vmatpush1.bf16.msra.mxu0 %v1406
        %1736 = vmatprep.subr.bf16.mxu0 %v1411
        %1737 = vmatpush1.bf16.msra.mxu0 %v1410
        %1738 = vmatprep.subr.bf16.mxu0 %v1415
        %1739 = vmatpush1.bf16.msra.mxu0 %v1414
        %1740 = vmatprep.subr.bf16.mxu0 %v1419
        %1741 = vmatpush1.bf16.msra.mxu0 %v1418
        %1742 = vmatprep.subr.bf16.mxu0 %v1423
        %1743 = vmatpush1.bf16.msra.mxu0 %v1422
        %1744 = vmatprep.subr.bf16.mxu0 %v1427
        %1745 = vmatpush1.bf16.msra.mxu0 %v1426
        %1746 = vmatprep.subr.bf16.mxu0 %v1431
        %1747 = vmatpush1.bf16.msra.mxu0 %v1430
        %1748 = vmatprep.subr.bf16.mxu0 %v1435
        %1749 = vmatpush1.bf16.msra.mxu0 %v1434
        %1750 = vmatprep.subr.bf16.mxu0 %v1439
        %1751 = vmatpush1.bf16.msra.mxu0 %v1438
        %1752 = vmatprep.subr.bf16.mxu0 %v1443
        %1753 = vmatpush1.bf16.msra.mxu0 %v1442
        %1754 = vmatprep.subr.bf16.mxu0 %v1447
        %1755 = vmatpush1.bf16.msra.mxu0 %v1446
        %1756 = vmatprep.mubr.bf16.mxu0 %v675
        %1757 = vmatmul.mubr.bf16.gmra.mrb[0].mxu0 %v674
        %v1758 = vpop.f32.mrb[0].mxu0
        %v1759 = vadd.f32 %v1718, %v1758
        %v1760 = vpop.f32.mrb[0].mxu0
        %v1761 = vadd.f32 %v1720, %v1760
        %v1762 = vpop.f32.mrb[0].mxu0
        %v1763 = vpop.f32.mrb[0].mxu0
        %1764 = vdwg.mxu0
        %1765 = vmatprep.subr.bf16.mxu0 %v1261
        %1766 = vmatpush1.bf16.msra.mxu0 %v1260
        %1767 = vmatprep.subr.bf16.mxu0 %v1265
        %1768 = vmatpush1.bf16.msra.mxu0 %v1264
        %1769 = vmatprep.subr.bf16.mxu0 %v1269
        %1770 = vmatpush1.bf16.msra.mxu0 %v1268
        %1771 = vmatprep.subr.bf16.mxu0 %v1273
        %1772 = vmatpush1.bf16.msra.mxu0 %v1272
        %1773 = vmatprep.subr.bf16.mxu0 %v1277
        %1774 = vmatpush1.bf16.msra.mxu0 %v1276
        %1775 = vmatprep.subr.bf16.mxu0 %v1281
        %1776 = vmatpush1.bf16.msra.mxu0 %v1280
        %1777 = vmatprep.subr.bf16.mxu0 %v1285
        %1778 = vmatpush1.bf16.msra.mxu0 %v1284
        %1779 = vmatprep.subr.bf16.mxu0 %v1289
        %1780 = vmatpush1.bf16.msra.mxu0 %v1288
        %1781 = vmatprep.subr.bf16.mxu0 %v1293
        %1782 = vmatpush1.bf16.msra.mxu0 %v1292
        %1783 = vmatprep.subr.bf16.mxu0 %v1297
        %1784 = vmatpush1.bf16.msra.mxu0 %v1296
        %1785 = vmatprep.subr.bf16.mxu0 %v1301
        %1786 = vmatpush1.bf16.msra.mxu0 %v1300
        %1787 = vmatprep.subr.bf16.mxu0 %v1305
        %1788 = vmatpush1.bf16.msra.mxu0 %v1304
        %1789 = vmatprep.subr.bf16.mxu0 %v1309
        %1790 = vmatpush1.bf16.msra.mxu0 %v1308
        %1791 = vmatprep.subr.bf16.mxu0 %v1313
        %1792 = vmatpush1.bf16.msra.mxu0 %v1312
        %1793 = vmatprep.subr.bf16.mxu0 %v1317
        %1794 = vmatpush1.bf16.msra.mxu0 %v1316
        %1795 = vmatprep.subr.bf16.mxu0 %v1321
        %1796 = vmatpush1.bf16.msra.mxu0 %v1320
        %1797 = vmatprep.mubr.bf16.mxu0 %v671
        %1798 = vmatmul.mubr.bf16.gmra.mrb[0].mxu0 %v670
        %v1799 = vpop.f32.mrb[0].mxu0
        %v1800 = vadd.f32 0.0, %v1799
        %v1801 = vpop.f32.mrb[0].mxu0
        %v1802 = vadd.f32 0.0, %v1801
        %v1803 = vpop.f32.mrb[0].mxu0
        %v1804 = vpop.f32.mrb[0].mxu0
        %1805 = vdwg.mxu0
        %1806 = vmatprep.subr.bf16.mxu0 %v1325
        %1807 = vmatpush1.bf16.msra.mxu0 %v1324
        %1808 = vmatprep.subr.bf16.mxu0 %v1329
        %1809 = vmatpush1.bf16.msra.mxu0 %v1328
        %1810 = vmatprep.subr.bf16.mxu0 %v1333
        %1811 = vmatpush1.bf16.msra.mxu0 %v1332
        %1812 = vmatprep.subr.bf16.mxu0 %v1337
        %1813 = vmatpush1.bf16.msra.mxu0 %v1336
        %1814 = vmatprep.subr.bf16.mxu0 %v1341
        %1815 = vmatpush1.bf16.msra.mxu0 %v1340
        %1816 = vmatprep.subr.bf16.mxu0 %v1345
        %1817 = vmatpush1.bf16.msra.mxu0 %v1344
        %1818 = vmatprep.subr.bf16.mxu0 %v1349
        %1819 = vmatpush1.bf16.msra.mxu0 %v1348
        %1820 = vmatprep.subr.bf16.mxu0 %v1353
        %1821 = vmatpush1.bf16.msra.mxu0 %v1352
        %1822 = vmatprep.subr.bf16.mxu0 %v1357
        %1823 = vmatpush1.bf16.msra.mxu0 %v1356
        %1824 = vmatprep.subr.bf16.mxu0 %v1361
        %1825 = vmatpush1.bf16.msra.mxu0 %v1360
        %1826 = vmatprep.subr.bf16.mxu0 %v1365
        %1827 = vmatpush1.bf16.msra.mxu0 %v1364
        %1828 = vmatprep.subr.bf16.mxu0 %v1369
        %1829 = vmatpush1.bf16.msra.mxu0 %v1368
        %1830 = vmatprep.subr.bf16.mxu0 %v1373
        %1831 = vmatpush1.bf16.msra.mxu0 %v1372
        %1832 = vmatprep.subr.bf16.mxu0 %v1377
        %1833 = vmatpush1.bf16.msra.mxu0 %v1376
        %1834 = vmatprep.subr.bf16.mxu0 %v1381
        %1835 = vmatpush1.bf16.msra.mxu0 %v1380
        %1836 = vmatprep.subr.bf16.mxu0 %v1385
        %1837 = vmatpush1.bf16.msra.mxu0 %v1384
        %1838 = vmatprep.mubr.bf16.mxu0 %v673
        %1839 = vmatmul.mubr.bf16.gmra.mrb[0].mxu0 %v672
        %v1840 = vpop.f32.mrb[0].mxu0
        %v1841 = vadd.f32 %v1800, %v1840
        %v1842 = vpop.f32.mrb[0].mxu0
        %v1843 = vadd.f32 %v1802, %v1842
        %v1844 = vpop.f32.mrb[0].mxu0
        %v1845 = vpop.f32.mrb[0].mxu0
        %1846 = vdwg.mxu0
        %1847 = vmatprep.subr.bf16.mxu0 %v1389
        %1848 = vmatpush1.bf16.msra.mxu0 %v1388
        %1849 = vmatprep.subr.bf16.mxu0 %v1393
        %1850 = vmatpush1.bf16.msra.mxu0 %v1392
        %1851 = vmatprep.subr.bf16.mxu0 %v1397
        %1852 = vmatpush1.bf16.msra.mxu0 %v1396
        %1853 = vmatprep.subr.bf16.mxu0 %v1401
        %1854 = vmatpush1.bf16.msra.mxu0 %v1400
        %1855 = vmatprep.subr.bf16.mxu0 %v1405
        %1856 = vmatpush1.bf16.msra.mxu0 %v1404
        %1857 = vmatprep.subr.bf16.mxu0 %v1409
        %1858 = vmatpush1.bf16.msra.mxu0 %v1408
        %1859 = vmatprep.subr.bf16.mxu0 %v1413
        %1860 = vmatpush1.bf16.msra.mxu0 %v1412
        %1861 = vmatprep.subr.bf16.mxu0 %v1417
        %1862 = vmatpush1.bf16.msra.mxu0 %v1416
        %1863 = vmatprep.subr.bf16.mxu0 %v1421
        %1864 = vmatpush1.bf16.msra.mxu0 %v1420
        %1865 = vmatprep.subr.bf16.mxu0 %v1425
        %1866 = vmatpush1.bf16.msra.mxu0 %v1424
        %1867 = vmatprep.subr.bf16.mxu0 %v1429
        %1868 = vmatpush1.bf16.msra.mxu0 %v1428
        %1869 = vmatprep.subr.bf16.mxu0 %v1433
        %1870 = vmatpush1.bf16.msra.mxu0 %v1432
        %1871 = vmatprep.subr.bf16.mxu0 %v1437
        %1872 = vmatpush1.bf16.msra.mxu0 %v1436
        %1873 = vmatprep.subr.bf16.mxu0 %v1441
        %1874 = vmatpush1.bf16.msra.mxu0 %v1440
        %1875 = vmatprep.subr.bf16.mxu0 %v1445
        %1876 = vmatpush1.bf16.msra.mxu0 %v1444
        %1877 = vmatprep.subr.bf16.mxu0 %v1449
        %1878 = vmatpush1.bf16.msra.mxu0 %v1448
        %1879 = vmatprep.mubr.bf16.mxu0 %v675
        %1880 = vmatmul.mubr.bf16.gmra.mrb[0].mxu0 %v674
        %v1881 = vpop.f32.mrb[0].mxu0
        %v1882 = vadd.f32 %v1841, %v1881
        %v1883 = vpop.f32.mrb[0].mxu0
        %v1884 = vadd.f32 %v1843, %v1883
        %v1885 = vpop.f32.mrb[0].mxu0
        %v1886 = vpop.f32.mrb[0].mxu0
        %1887 = vdwg.mxu0
        %v1888 = vmax.f32 %v1759, 0.0
        %v1889 = vmax.f32 %v1761, 0.0
        %v1890 = vmax.f32 %v1882, 0.0
        %v1891 = vmax.f32 %v1884, 0.0
        %v1892 = vpack.c.bf16 %v1888, %v1888
        %v1893 = vpack.c.bf16 %v1889, %v1889
        %v1894 = vpack.c.bf16 %v1890, %v1890
        %v1895 = vpack.c.bf16 %v1891, %v1891
        %v1896 = vmul.f32 %v1759, 0.2
        %v1897 = vmul.f32 %v1761, 0.2
        %v1898 = vmul.f32 %v1882, 0.2
        %v1899 = vmul.f32 %v1884, 0.2
        %v1900 = vmax.f32 %v1759, %v1896
        %v1901 = vmax.f32 %v1761, %v1897
        %v1902 = vmax.f32 %v1882, %v1898
        %v1903 = vmax.f32 %v1884, %v1899
        %v1904 = vpack.c.bf16 %v1900, %v1900
        %v1905 = vpack.c.bf16 %v1901, %v1901
        %v1906 = vpack.c.bf16 %v1902, %v1902
        %v1907 = vpack.c.bf16 %v1903, %v1903
        %v1908 = vld [vmem:[#allocation7] sm:$0xff]
        %v1909 = vld [vmem:[#allocation7 + $0x8] sm:$0xff]
        %v1910 = vld [vmem:[#allocation7 + $0x10] sm:$0xff]
        %v1911 = vld [vmem:[#allocation7 + $0x18] sm:$0xff]
        %v1912 = vld [vmem:[#allocation7 + $0x20] sm:$0xff]
        %v1913 = vld [vmem:[#allocation7 + $0x28] sm:$0xff]
        %v1914 = vld [vmem:[#allocation7 + $0x30] sm:$0xff]
        %v1915 = vld [vmem:[#allocation7 + $0x38] sm:$0xff]
        %v1916 = vld [vmem:[#allocation7 + $0x40] sm:$0xff]
        %v1917 = vld [vmem:[#allocation7 + $0x48] sm:$0xff]
        %v1918 = vld [vmem:[#allocation7 + $0x50] sm:$0xff]
        %v1919 = vld [vmem:[#allocation7 + $0x58] sm:$0xff]
        %v1920 = vld [vmem:[#allocation7 + $0x60] sm:$0xff]
        %v1921 = vld [vmem:[#allocation7 + $0x68] sm:$0xff]
        %v1922 = vld [vmem:[#allocation7 + $0x70] sm:$0xff]
        %v1923 = vld [vmem:[#allocation7 + $0x78] sm:$0xff]
        %v1924 = vld [vmem:[#allocation7 + $0x80] sm:$0xff]
        %v1925 = vld [vmem:[#allocation7 + $0x88] sm:$0xff]
        %v1926 = vld [vmem:[#allocation7 + $0x90] sm:$0xff]
        %v1927 = vld [vmem:[#allocation7 + $0x98] sm:$0xff]
        %v1928 = vld [vmem:[#allocation7 + $0xa0] sm:$0xff]
        %v1929 = vld [vmem:[#allocation7 + $0xa8] sm:$0xff]
        %v1930 = vld [vmem:[#allocation7 + $0xb0] sm:$0xff]
        %v1931 = vld [vmem:[#allocation7 + $0xb8] sm:$0xff]
        %v1932 = vld [vmem:[#allocation7 + $0xc0] sm:$0xff]
        %v1933 = vld [vmem:[#allocation7 + $0xc8] sm:$0xff]
        %v1934 = vld [vmem:[#allocation7 + $0xd0] sm:$0xff]
        %v1935 = vld [vmem:[#allocation7 + $0xd8] sm:$0xff]
        %v1936 = vld [vmem:[#allocation7 + $0xe0] sm:$0xff]
        %v1937 = vld [vmem:[#allocation7 + $0xe8] sm:$0xff]
        %v1938 = vld [vmem:[#allocation7 + $0xf0] sm:$0xff]
        %v1939 = vld [vmem:[#allocation7 + $0xf8] sm:$0xff]
        %v1940 = vld [vmem:[#allocation7 + $0x100] sm:$0xff]
        %v1941 = vld [vmem:[#allocation7 + $0x108] sm:$0xff]
        %v1942 = vld [vmem:[#allocation7 + $0x110] sm:$0xff]
        %v1943 = vld [vmem:[#allocation7 + $0x118] sm:$0xff]
        %v1944 = vld [vmem:[#allocation7 + $0x120] sm:$0xff]
        %v1945 = vld [vmem:[#allocation7 + $0x128] sm:$0xff]
        %v1946 = vld [vmem:[#allocation7 + $0x130] sm:$0xff]
        %v1947 = vld [vmem:[#allocation7 + $0x138] sm:$0xff]
        %v1948 = vld [vmem:[#allocation7 + $0x140] sm:$0xff]
        %v1949 = vld [vmem:[#allocation7 + $0x148] sm:$0xff]
        %v1950 = vld [vmem:[#allocation7 + $0x150] sm:$0xff]
        %v1951 = vld [vmem:[#allocation7 + $0x158] sm:$0xff]
        %v1952 = vld [vmem:[#allocation7 + $0x160] sm:$0xff]
        %v1953 = vld [vmem:[#allocation7 + $0x168] sm:$0xff]
        %v1954 = vld [vmem:[#allocation7 + $0x170] sm:$0xff]
        %v1955 = vld [vmem:[#allocation7 + $0x178] sm:$0xff]
        %v1956 = vld [vmem:[#allocation7 + $0x180] sm:$0xff]
        %v1957 = vld [vmem:[#allocation7 + $0x188] sm:$0xff]
        %v1958 = vld [vmem:[#allocation7 + $0x190] sm:$0xff]
        %v1959 = vld [vmem:[#allocation7 + $0x198] sm:$0xff]
        %v1960 = vld [vmem:[#allocation7 + $0x1a0] sm:$0xff]
        %v1961 = vld [vmem:[#allocation7 + $0x1a8] sm:$0xff]
        %v1962 = vld [vmem:[#allocation7 + $0x1b0] sm:$0xff]
        %v1963 = vld [vmem:[#allocation7 + $0x1b8] sm:$0xff]
        %v1964 = vld [vmem:[#allocation7 + $0x1c0] sm:$0xff]
        %v1965 = vld [vmem:[#allocation7 + $0x1c8] sm:$0xff]
        %v1966 = vld [vmem:[#allocation7 + $0x1d0] sm:$0xff]
        %v1967 = vld [vmem:[#allocation7 + $0x1d8] sm:$0xff]
        %v1968 = vld [vmem:[#allocation7 + $0x1e0] sm:$0xff]
        %v1969 = vld [vmem:[#allocation7 + $0x1e8] sm:$0xff]
        %v1970 = vld [vmem:[#allocation7 + $0x1f0] sm:$0xff]
        %v1971 = vld [vmem:[#allocation7 + $0x1f8] sm:$0xff]
        %v2036 = vunpack.c.l.b16 %v1908
        %v2037 = vunpack.c.h.b16 %v1908
        %v2038 = vunpack.c.l.b16 %v1909
        %v2039 = vunpack.c.h.b16 %v1909
        %v2040 = vunpack.c.l.b16 %v1910
        %v2041 = vunpack.c.h.b16 %v1910
        %v2042 = vunpack.c.l.b16 %v1911
        %v2043 = vunpack.c.h.b16 %v1911
        %v2044 = vunpack.c.l.b16 %v1912
        %v2045 = vunpack.c.h.b16 %v1912
        %v2046 = vunpack.c.l.b16 %v1913
        %v2047 = vunpack.c.h.b16 %v1913
        %v2048 = vunpack.c.l.b16 %v1914
        %v2049 = vunpack.c.h.b16 %v1914
        %v2050 = vunpack.c.l.b16 %v1915
        %v2051 = vunpack.c.h.b16 %v1915
        %v2052 = vunpack.c.l.b16 %v1916
        %v2053 = vunpack.c.h.b16 %v1916
        %v2054 = vunpack.c.l.b16 %v1917
        %v2055 = vunpack.c.h.b16 %v1917
        %v2056 = vunpack.c.l.b16 %v1918
        %v2057 = vunpack.c.h.b16 %v1918
        %v2058 = vunpack.c.l.b16 %v1919
        %v2059 = vunpack.c.h.b16 %v1919
        %v2060 = vunpack.c.l.b16 %v1920
        %v2061 = vunpack.c.h.b16 %v1920
        %v2062 = vunpack.c.l.b16 %v1921
        %v2063 = vunpack.c.h.b16 %v1921
        %v2064 = vunpack.c.l.b16 %v1922
        %v2065 = vunpack.c.h.b16 %v1922
        %v2066 = vunpack.c.l.b16 %v1923
        %v2067 = vunpack.c.h.b16 %v1923
        %v2068 = vunpack.c.l.b16 %v1924
        %v2069 = vunpack.c.h.b16 %v1924
        %v2070 = vunpack.c.l.b16 %v1925
        %v2071 = vunpack.c.h.b16 %v1925
        %v2072 = vunpack.c.l.b16 %v1926
        %v2073 = vunpack.c.h.b16 %v1926
        %v2074 = vunpack.c.l.b16 %v1927
        %v2075 = vunpack.c.h.b16 %v1927
        %v2076 = vunpack.c.l.b16 %v1928
        %v2077 = vunpack.c.h.b16 %v1928
        %v2078 = vunpack.c.l.b16 %v1929
        %v2079 = vunpack.c.h.b16 %v1929
        %v2080 = vunpack.c.l.b16 %v1930
        %v2081 = vunpack.c.h.b16 %v1930
        %v2082 = vunpack.c.l.b16 %v1931
        %v2083 = vunpack.c.h.b16 %v1931
        %v2084 = vunpack.c.l.b16 %v1932
        %v2085 = vunpack.c.h.b16 %v1932
        %v2086 = vunpack.c.l.b16 %v1933
        %v2087 = vunpack.c.h.b16 %v1933
        %v2088 = vunpack.c.l.b16 %v1934
        %v2089 = vunpack.c.h.b16 %v1934
        %v2090 = vunpack.c.l.b16 %v1935
        %v2091 = vunpack.c.h.b16 %v1935
        %v2092 = vunpack.c.l.b16 %v1936
        %v2093 = vunpack.c.h.b16 %v1936
        %v2094 = vunpack.c.l.b16 %v1937
        %v2095 = vunpack.c.h.b16 %v1937
        %v2096 = vunpack.c.l.b16 %v1938
        %v2097 = vunpack.c.h.b16 %v1938
        %v2098 = vunpack.c.l.b16 %v1939
        %v2099 = vunpack.c.h.b16 %v1939
        %v2100 = vunpack.c.l.b16 %v1940
        %v2101 = vunpack.c.h.b16 %v1940
        %v2102 = vunpack.c.l.b16 %v1941
        %v2103 = vunpack.c.h.b16 %v1941
        %v2104 = vunpack.c.l.b16 %v1942
        %v2105 = vunpack.c.h.b16 %v1942
        %v2106 = vunpack.c.l.b16 %v1943
        %v2107 = vunpack.c.h.b16 %v1943
        %v2108 = vunpack.c.l.b16 %v1944
        %v2109 = vunpack.c.h.b16 %v1944
        %v2110 = vunpack.c.l.b16 %v1945
        %v2111 = vunpack.c.h.b16 %v1945
        %v2112 = vunpack.c.l.b16 %v1946
        %v2113 = vunpack.c.h.b16 %v1946
        %v2114 = vunpack.c.l.b16 %v1947
        %v2115 = vunpack.c.h.b16 %v1947
        %v2116 = vunpack.c.l.b16 %v1948
        %v2117 = vunpack.c.h.b16 %v1948
        %v2118 = vunpack.c.l.b16 %v1949
        %v2119 = vunpack.c.h.b16 %v1949
        %v2120 = vunpack.c.l.b16 %v1950
        %v2121 = vunpack.c.h.b16 %v1950
        %v2122 = vunpack.c.l.b16 %v1951
        %v2123 = vunpack.c.h.b16 %v1951
        %v2124 = vunpack.c.l.b16 %v1952
        %v2125 = vunpack.c.h.b16 %v1952
        %v2126 = vunpack.c.l.b16 %v1953
        %v2127 = vunpack.c.h.b16 %v1953
        %v2128 = vunpack.c.l.b16 %v1954
        %v2129 = vunpack.c.h.b16 %v1954
        %v2130 = vunpack.c.l.b16 %v1955
        %v2131 = vunpack.c.h.b16 %v1955
        %v2132 = vunpack.c.l.b16 %v1956
        %v2133 = vunpack.c.h.b16 %v1956
        %v2134 = vunpack.c.l.b16 %v1957
        %v2135 = vunpack.c.h.b16 %v1957
        %v2136 = vunpack.c.l.b16 %v1958
        %v2137 = vunpack.c.h.b16 %v1958
        %v2138 = vunpack.c.l.b16 %v1959
        %v2139 = vunpack.c.h.b16 %v1959
        %v2140 = vunpack.c.l.b16 %v1960
        %v2141 = vunpack.c.h.b16 %v1960
        %v2142 = vunpack.c.l.b16 %v1961
        %v2143 = vunpack.c.h.b16 %v1961
        %v2144 = vunpack.c.l.b16 %v1962
        %v2145 = vunpack.c.h.b16 %v1962
        %v2146 = vunpack.c.l.b16 %v1963
        %v2147 = vunpack.c.h.b16 %v1963
        %v2148 = vunpack.c.l.b16 %v1964
        %v2149 = vunpack.c.h.b16 %v1964
        %v2150 = vunpack.c.l.b16 %v1965
        %v2151 = vunpack.c.h.b16 %v1965
        %v2152 = vunpack.c.l.b16 %v1966
        %v2153 = vunpack.c.h.b16 %v1966
        %v2154 = vunpack.c.l.b16 %v1967
        %v2155 = vunpack.c.h.b16 %v1967
        %v2156 = vunpack.c.l.b16 %v1968
        %v2157 = vunpack.c.h.b16 %v1968
        %v2158 = vunpack.c.l.b16 %v1969
        %v2159 = vunpack.c.h.b16 %v1969
        %v2160 = vunpack.c.l.b16 %v1970
        %v2161 = vunpack.c.h.b16 %v1970
        %v2162 = vunpack.c.l.b16 %v1971
        %v2163 = vunpack.c.h.b16 %v1971
        %v2164 = vpack.c.b16 %v2038, %v2036
        %v2165 = vpack.c.b16 %v2039, %v2037
        %v2166 = vpack.c.b16 %v2042, %v2040
        %v2167 = vpack.c.b16 %v2043, %v2041
        %v2168 = vpack.c.b16 %v2046, %v2044
        %v2169 = vpack.c.b16 %v2047, %v2045
        %v2170 = vpack.c.b16 %v2050, %v2048
        %v2171 = vpack.c.b16 %v2051, %v2049
        %v2172 = vpack.c.b16 %v2054, %v2052
        %v2173 = vpack.c.b16 %v2055, %v2053
        %v2174 = vpack.c.b16 %v2058, %v2056
        %v2175 = vpack.c.b16 %v2059, %v2057
        %v2176 = vpack.c.b16 %v2062, %v2060
        %v2177 = vpack.c.b16 %v2063, %v2061
        %v2178 = vpack.c.b16 %v2066, %v2064
        %v2179 = vpack.c.b16 %v2067, %v2065
        %v2180 = vpack.c.b16 %v2070, %v2068
        %v2181 = vpack.c.b16 %v2071, %v2069
        %v2182 = vpack.c.b16 %v2074, %v2072
        %v2183 = vpack.c.b16 %v2075, %v2073
        %v2184 = vpack.c.b16 %v2078, %v2076
        %v2185 = vpack.c.b16 %v2079, %v2077
        %v2186 = vpack.c.b16 %v2082, %v2080
        %v2187 = vpack.c.b16 %v2083, %v2081
        %v2188 = vpack.c.b16 %v2086, %v2084
        %v2189 = vpack.c.b16 %v2087, %v2085
        %v2190 = vpack.c.b16 %v2090, %v2088
        %v2191 = vpack.c.b16 %v2091, %v2089
        %v2192 = vpack.c.b16 %v2094, %v2092
        %v2193 = vpack.c.b16 %v2095, %v2093
        %v2194 = vpack.c.b16 %v2098, %v2096
        %v2195 = vpack.c.b16 %v2099, %v2097
        %v2196 = vpack.c.b16 %v2102, %v2100
        %v2197 = vpack.c.b16 %v2103, %v2101
        %v2198 = vpack.c.b16 %v2106, %v2104
        %v2199 = vpack.c.b16 %v2107, %v2105
        %v2200 = vpack.c.b16 %v2110, %v2108
        %v2201 = vpack.c.b16 %v2111, %v2109
        %v2202 = vpack.c.b16 %v2114, %v2112
        %v2203 = vpack.c.b16 %v2115, %v2113
        %v2204 = vpack.c.b16 %v2118, %v2116
        %v2205 = vpack.c.b16 %v2119, %v2117
        %v2206 = vpack.c.b16 %v2122, %v2120
        %v2207 = vpack.c.b16 %v2123, %v2121
        %v2208 = vpack.c.b16 %v2126, %v2124
        %v2209 = vpack.c.b16 %v2127, %v2125
        %v2210 = vpack.c.b16 %v2130, %v2128
        %v2211 = vpack.c.b16 %v2131, %v2129
        %v2212 = vpack.c.b16 %v2134, %v2132
        %v2213 = vpack.c.b16 %v2135, %v2133
        %v2214 = vpack.c.b16 %v2138, %v2136
        %v2215 = vpack.c.b16 %v2139, %v2137
        %v2216 = vpack.c.b16 %v2142, %v2140
        %v2217 = vpack.c.b16 %v2143, %v2141
        %v2218 = vpack.c.b16 %v2146, %v2144
        %v2219 = vpack.c.b16 %v2147, %v2145
        %v2220 = vpack.c.b16 %v2150, %v2148
        %v2221 = vpack.c.b16 %v2151, %v2149
        %v2222 = vpack.c.b16 %v2154, %v2152
        %v2223 = vpack.c.b16 %v2155, %v2153
        %v2224 = vpack.c.b16 %v2158, %v2156
        %v2225 = vpack.c.b16 %v2159, %v2157
        %v2226 = vpack.c.b16 %v2162, %v2160
        %v2227 = vpack.c.b16 %v2163, %v2161
        %2292 = vmatprep.subr.bf16.mxu0 %v2165
        %2293 = vmatpush1.bf16.msra.mxu0 %v2164
        %2294 = vmatprep.subr.bf16.mxu0 %v2167
        %2295 = vmatpush1.bf16.msra.mxu0 %v2166
        %2296 = vmatprep.subr.bf16.mxu0 %v2169
        %2297 = vmatpush1.bf16.msra.mxu0 %v2168
        %2298 = vmatprep.subr.bf16.mxu0 %v2171
        %2299 = vmatpush1.bf16.msra.mxu0 %v2170
        %2300 = vmatprep.subr.bf16.mxu0 %v2173
        %2301 = vmatpush1.bf16.msra.mxu0 %v2172
        %2302 = vmatprep.subr.bf16.mxu0 %v2175
        %2303 = vmatpush1.bf16.msra.mxu0 %v2174
        %2304 = vmatprep.subr.bf16.mxu0 %v2177
        %2305 = vmatpush1.bf16.msra.mxu0 %v2176
        %2306 = vmatprep.subr.bf16.mxu0 %v2179
        %2307 = vmatpush1.bf16.msra.mxu0 %v2178
        %2308 = vmatprep.subr.bf16.mxu0 %v2181
        %2309 = vmatpush1.bf16.msra.mxu0 %v2180
        %2310 = vmatprep.subr.bf16.mxu0 %v2183
        %2311 = vmatpush1.bf16.msra.mxu0 %v2182
        %2312 = vmatprep.subr.bf16.mxu0 %v2185
        %2313 = vmatpush1.bf16.msra.mxu0 %v2184
        %2314 = vmatprep.subr.bf16.mxu0 %v2187
        %2315 = vmatpush1.bf16.msra.mxu0 %v2186
        %2316 = vmatprep.subr.bf16.mxu0 %v2189
        %2317 = vmatpush1.bf16.msra.mxu0 %v2188
        %2318 = vmatprep.subr.bf16.mxu0 %v2191
        %2319 = vmatpush1.bf16.msra.mxu0 %v2190
        %2320 = vmatprep.subr.bf16.mxu0 %v2193
        %2321 = vmatpush1.bf16.msra.mxu0 %v2192
        %2322 = vmatprep.subr.bf16.mxu0 %v2195
        %2323 = vmatpush1.bf16.msra.mxu0 %v2194
        %2324 = vmatprep.mubr.bf16.mxu0 %v1905
        %2325 = vmatmul.mubr.bf16.gmra.mrb[0].mxu0 %v1904
        %v2326 = vpop.f32.mrb[0].mxu0
        %v2327 = vadd.f32 0.0, %v2326
        %v2328 = vpop.f32.mrb[0].mxu0
        %v2329 = vadd.f32 0.0, %v2328
        %v2330 = vpop.f32.mrb[0].mxu0
        %v2331 = vpop.f32.mrb[0].mxu0
        %2332 = vdwg.mxu0
        %2333 = vmatprep.subr.bf16.mxu0 %v2197
        %2334 = vmatpush1.bf16.msra.mxu0 %v2196
        %2335 = vmatprep.subr.bf16.mxu0 %v2199
        %2336 = vmatpush1.bf16.msra.mxu0 %v2198
        %2337 = vmatprep.subr.bf16.mxu0 %v2201
        %2338 = vmatpush1.bf16.msra.mxu0 %v2200
        %2339 = vmatprep.subr.bf16.mxu0 %v2203
        %2340 = vmatpush1.bf16.msra.mxu0 %v2202
        %2341 = vmatprep.subr.bf16.mxu0 %v2205
        %2342 = vmatpush1.bf16.msra.mxu0 %v2204
        %2343 = vmatprep.subr.bf16.mxu0 %v2207
        %2344 = vmatpush1.bf16.msra.mxu0 %v2206
        %2345 = vmatprep.subr.bf16.mxu0 %v2209
        %2346 = vmatpush1.bf16.msra.mxu0 %v2208
        %2347 = vmatprep.subr.bf16.mxu0 %v2211
        %2348 = vmatpush1.bf16.msra.mxu0 %v2210
        %2349 = vmatprep.subr.bf16.mxu0 %v2213
        %2350 = vmatpush1.bf16.msra.mxu0 %v2212
        %2351 = vmatprep.subr.bf16.mxu0 %v2215
        %2352 = vmatpush1.bf16.msra.mxu0 %v2214
        %2353 = vmatprep.subr.bf16.mxu0 %v2217
        %2354 = vmatpush1.bf16.msra.mxu0 %v2216
        %2355 = vmatprep.subr.bf16.mxu0 %v2219
        %2356 = vmatpush1.bf16.msra.mxu0 %v2218
        %2357 = vmatprep.subr.bf16.mxu0 %v2221
        %2358 = vmatpush1.bf16.msra.mxu0 %v2220
        %2359 = vmatprep.subr.bf16.mxu0 %v2223
        %2360 = vmatpush1.bf16.msra.mxu0 %v2222
        %2361 = vmatprep.subr.bf16.mxu0 %v2225
        %2362 = vmatpush1.bf16.msra.mxu0 %v2224
        %2363 = vmatprep.subr.bf16.mxu0 %v2227
        %2364 = vmatpush1.bf16.msra.mxu0 %v2226
        %2365 = vmatprep.mubr.bf16.mxu0 %v1907
        %2366 = vmatmul.mubr.bf16.gmra.mrb[0].mxu0 %v1906
        %v2367 = vpop.f32.mrb[0].mxu0
        %v2368 = vadd.f32 %v2327, %v2367
        %v2369 = vpop.f32.mrb[0].mxu0
        %v2370 = vadd.f32 %v2329, %v2369
        %v2371 = vpop.f32.mrb[0].mxu0
        %v2372 = vpop.f32.mrb[0].mxu0
        %2373 = vdwg.mxu0
        %v2374 = vmax.f32 %v2368, 0.0
        %v2375 = vmax.f32 %v2370, 0.0
        %v2376 = vpack.c.bf16 %v2374, %v2374
        %v2377 = vpack.c.bf16 %v2375, %v2375
        %v2378 = vmul.f32 %v2368, 0.2
        %v2379 = vmul.f32 %v2370, 0.2
        %v2380 = vmax.f32 %v2368, %v2378
        %v2381 = vmax.f32 %v2370, %v2379
        %v2382 = vpack.c.bf16 %v2380, %v2380
        %v2383 = vpack.c.bf16 %v2381, %v2381
        %v2384 = vld [vmem:[#allocation8] sm:$0xf]
        %v2385 = vld [vmem:[#allocation8 + $0x4] sm:$0xf]
        %v2386 = vld [vmem:[#allocation8 + $0x8] sm:$0xf]
        %v2387 = vld [vmem:[#allocation8 + $0xc] sm:$0xf]
        %v2388 = vld [vmem:[#allocation8 + $0x10] sm:$0xf]
        %v2389 = vld [vmem:[#allocation8 + $0x14] sm:$0xf]
        %v2390 = vld [vmem:[#allocation8 + $0x18] sm:$0xf]
        %v2391 = vld [vmem:[#allocation8 + $0x1c] sm:$0xf]
        %v2392 = vld [vmem:[#allocation8 + $0x20] sm:$0xf]
        %v2393 = vld [vmem:[#allocation8 + $0x24] sm:$0xf]
        %v2394 = vld [vmem:[#allocation8 + $0x28] sm:$0xf]
        %v2395 = vld [vmem:[#allocation8 + $0x2c] sm:$0xf]
        %v2396 = vld [vmem:[#allocation8 + $0x30] sm:$0xf]
        %v2397 = vld [vmem:[#allocation8 + $0x34] sm:$0xf]
        %v2398 = vld [vmem:[#allocation8 + $0x38] sm:$0xf]
        %v2399 = vld [vmem:[#allocation8 + $0x3c] sm:$0xf]
        %v2400 = vld [vmem:[#allocation8 + $0x40] sm:$0xf]
        %v2401 = vld [vmem:[#allocation8 + $0x44] sm:$0xf]
        %v2402 = vld [vmem:[#allocation8 + $0x48] sm:$0xf]
        %v2403 = vld [vmem:[#allocation8 + $0x4c] sm:$0xf]
        %v2404 = vld [vmem:[#allocation8 + $0x50] sm:$0xf]
        %v2405 = vld [vmem:[#allocation8 + $0x54] sm:$0xf]
        %v2406 = vld [vmem:[#allocation8 + $0x58] sm:$0xf]
        %v2407 = vld [vmem:[#allocation8 + $0x5c] sm:$0xf]
        %v2408 = vld [vmem:[#allocation8 + $0x60] sm:$0xf]
        %v2409 = vld [vmem:[#allocation8 + $0x64] sm:$0xf]
        %v2410 = vld [vmem:[#allocation8 + $0x68] sm:$0xf]
        %v2411 = vld [vmem:[#allocation8 + $0x6c] sm:$0xf]
        %v2412 = vld [vmem:[#allocation8 + $0x70] sm:$0xf]
        %v2413 = vld [vmem:[#allocation8 + $0x74] sm:$0xf]
        %v2414 = vld [vmem:[#allocation8 + $0x78] sm:$0xf]
        %v2415 = vld [vmem:[#allocation8 + $0x7c] sm:$0xf]
        %v2448 = vunpack.c.l.b16 %v2384
        %v2449 = vunpack.c.l.b16 %v2385
        %v2450 = vunpack.c.l.b16 %v2386
        %v2451 = vunpack.c.l.b16 %v2387
        %v2452 = vunpack.c.l.b16 %v2388
        %v2453 = vunpack.c.l.b16 %v2389
        %v2454 = vunpack.c.l.b16 %v2390
        %v2455 = vunpack.c.l.b16 %v2391
        %v2456 = vunpack.c.l.b16 %v2392
        %v2457 = vunpack.c.l.b16 %v2393
        %v2458 = vunpack.c.l.b16 %v2394
        %v2459 = vunpack.c.l.b16 %v2395
        %v2460 = vunpack.c.l.b16 %v2396
        %v2461 = vunpack.c.l.b16 %v2397
        %v2462 = vunpack.c.l.b16 %v2398
        %v2463 = vunpack.c.l.b16 %v2399
        %v2464 = vunpack.c.l.b16 %v2400
        %v2465 = vunpack.c.l.b16 %v2401
        %v2466 = vunpack.c.l.b16 %v2402
        %v2467 = vunpack.c.l.b16 %v2403
        %v2468 = vunpack.c.l.b16 %v2404
        %v2469 = vunpack.c.l.b16 %v2405
        %v2470 = vunpack.c.l.b16 %v2406
        %v2471 = vunpack.c.l.b16 %v2407
        %v2472 = vunpack.c.l.b16 %v2408
        %v2473 = vunpack.c.l.b16 %v2409
        %v2474 = vunpack.c.l.b16 %v2410
        %v2475 = vunpack.c.l.b16 %v2411
        %v2476 = vunpack.c.l.b16 %v2412
        %v2477 = vunpack.c.l.b16 %v2413
        %v2478 = vunpack.c.l.b16 %v2414
        %v2479 = vunpack.c.l.b16 %v2415
        %v2480 = vpack.c.b16 %v2449, %v2448
        %v2481 = vpack.c.b16 %v2451, %v2450
        %v2482 = vpack.c.b16 %v2453, %v2452
        %v2483 = vpack.c.b16 %v2455, %v2454
        %v2484 = vpack.c.b16 %v2457, %v2456
        %v2485 = vpack.c.b16 %v2459, %v2458
        %v2486 = vpack.c.b16 %v2461, %v2460
        %v2487 = vpack.c.b16 %v2463, %v2462
        %v2488 = vpack.c.b16 %v2465, %v2464
        %v2489 = vpack.c.b16 %v2467, %v2466
        %v2490 = vpack.c.b16 %v2469, %v2468
        %v2491 = vpack.c.b16 %v2471, %v2470
        %v2492 = vpack.c.b16 %v2473, %v2472
        %v2493 = vpack.c.b16 %v2475, %v2474
        %v2494 = vpack.c.b16 %v2477, %v2476
        %v2495 = vpack.c.b16 %v2479, %v2478
        %2512 = vmatprep.subr.bf16.mxu0 0
        %2513 = vmatpush1.bf16.msra.mxu0 %v2480
        %2514 = vmatprep.subr.bf16.mxu0 0
        %2515 = vmatpush1.bf16.msra.mxu0 %v2481
        %2516 = vmatprep.subr.bf16.mxu0 0
        %2517 = vmatpush1.bf16.msra.mxu0 %v2482
        %2518 = vmatprep.subr.bf16.mxu0 0
        %2519 = vmatpush1.bf16.msra.mxu0 %v2483
        %2520 = vmatprep.subr.bf16.mxu0 0
        %2521 = vmatpush1.bf16.msra.mxu0 %v2484
        %2522 = vmatprep.subr.bf16.mxu0 0
        %2523 = vmatpush1.bf16.msra.mxu0 %v2485
        %2524 = vmatprep.subr.bf16.mxu0 0
        %2525 = vmatpush1.bf16.msra.mxu0 %v2486
        %2526 = vmatprep.subr.bf16.mxu0 0
        %2527 = vmatpush1.bf16.msra.mxu0 %v2487
        %2528 = vmatprep.subr.bf16.mxu0 0
        %2529 = vmatpush1.bf16.msra.mxu0 %v2488
        %2530 = vmatprep.subr.bf16.mxu0 0
        %2531 = vmatpush1.bf16.msra.mxu0 %v2489
        %2532 = vmatprep.subr.bf16.mxu0 0
        %2533 = vmatpush1.bf16.msra.mxu0 %v2490
        %2534 = vmatprep.subr.bf16.mxu0 0
        %2535 = vmatpush1.bf16.msra.mxu0 %v2491
        %2536 = vmatprep.subr.bf16.mxu0 0
        %2537 = vmatpush1.bf16.msra.mxu0 %v2492
        %2538 = vmatprep.subr.bf16.mxu0 0
        %2539 = vmatpush1.bf16.msra.mxu0 %v2493
        %2540 = vmatprep.subr.bf16.mxu0 0
        %2541 = vmatpush1.bf16.msra.mxu0 %v2494
        %2542 = vmatprep.subr.bf16.mxu0 0
        %2543 = vmatpush1.bf16.msra.mxu0 %v2495
        %2544 = vmatprep.mubr.bf16.mxu0 %v2383
        %2545 = vmatmul.mubr.bf16.gmra.mrb[0].mxu0 %v2382
        %v2546 = vpop.f32.mrb[0].mxu0
        %v2547 = vadd.f32 0.0, %v2546
        %v2548 = vpop.f32.mrb[0].mxu0
        %v2549 = vpop.f32.mrb[0].mxu0
        %v2550 = vpop.f32.mrb[0].mxu0
        %2551 = vdwg.mxu0
        %v2552 = vmax.f32 %v2547, 0.0
        %v2553 = vpack.c.bf16 %v2552, %v2552
        %v2554 = vld [vmem:[#allocation10] sm:$0xff]
        %v2555 = vld [vmem:[#allocation10 + $0x8] sm:$0xff]
        %v2556 = vld [vmem:[#allocation10 + $0x10] sm:$0xff]
        %v2557 = vld [vmem:[#allocation10 + $0x18] sm:$0xff]
        %v2558 = vld [vmem:[#allocation10 + $0x20] sm:$0xff]
        %v2559 = vld [vmem:[#allocation10 + $0x28] sm:$0xff]
        %v2560 = vld [vmem:[#allocation10 + $0x30] sm:$0xff]
        %v2561 = vld [vmem:[#allocation10 + $0x38] sm:$0xff]
        %v2562 = vld [vmem:[#allocation10 + $0x40] sm:$0xff]
        %v2563 = vld [vmem:[#allocation10 + $0x48] sm:$0xff]
        %v2564 = vld [vmem:[#allocation10 + $0x50] sm:$0xff]
        %v2565 = vld [vmem:[#allocation10 + $0x58] sm:$0xff]
        %v2566 = vld [vmem:[#allocation10 + $0x60] sm:$0xff]
        %v2567 = vld [vmem:[#allocation10 + $0x68] sm:$0xff]
        %v2568 = vld [vmem:[#allocation10 + $0x70] sm:$0xff]
        %v2569 = vld [vmem:[#allocation10 + $0x78] sm:$0xff]
        %v2586 = vunpack.c.l.b16 %v2554
        %v2587 = vunpack.c.h.b16 %v2554
        %v2588 = vunpack.c.l.b16 %v2555
        %v2589 = vunpack.c.h.b16 %v2555
        %v2590 = vunpack.c.l.b16 %v2556
        %v2591 = vunpack.c.h.b16 %v2556
        %v2592 = vunpack.c.l.b16 %v2557
        %v2593 = vunpack.c.h.b16 %v2557
        %v2594 = vunpack.c.l.b16 %v2558
        %v2595 = vunpack.c.h.b16 %v2558
        %v2596 = vunpack.c.l.b16 %v2559
        %v2597 = vunpack.c.h.b16 %v2559
        %v2598 = vunpack.c.l.b16 %v2560
        %v2599 = vunpack.c.h.b16 %v2560
        %v2600 = vunpack.c.l.b16 %v2561
        %v2601 = vunpack.c.h.b16 %v2561
        %v2602 = vunpack.c.l.b16 %v2562
        %v2603 = vunpack.c.h.b16 %v2562
        %v2604 = vunpack.c.l.b16 %v2563
        %v2605 = vunpack.c.h.b16 %v2563
        %v2606 = vunpack.c.l.b16 %v2564
        %v2607 = vunpack.c.h.b16 %v2564
        %v2608 = vunpack.c.l.b16 %v2565
        %v2609 = vunpack.c.h.b16 %v2565
        %v2610 = vunpack.c.l.b16 %v2566
        %v2611 = vunpack.c.h.b16 %v2566
        %v2612 = vunpack.c.l.b16 %v2567
        %v2613 = vunpack.c.h.b16 %v2567
        %v2614 = vunpack.c.l.b16 %v2568
        %v2615 = vunpack.c.h.b16 %v2568
        %v2616 = vunpack.c.l.b16 %v2569
        %v2617 = vunpack.c.h.b16 %v2569
        %v2618 = vpack.c.b16 %v2588, %v2586
        %v2619 = vpack.c.b16 %v2589, %v2587
        %v2620 = vpack.c.b16 %v2592, %v2590
        %v2621 = vpack.c.b16 %v2593, %v2591
        %v2622 = vpack.c.b16 %v2596, %v2594
        %v2623 = vpack.c.b16 %v2597, %v2595
        %v2624 = vpack.c.b16 %v2600, %v2598
        %v2625 = vpack.c.b16 %v2601, %v2599
        %v2626 = vpack.c.b16 %v2604, %v2602
        %v2627 = vpack.c.b16 %v2605, %v2603
        %v2628 = vpack.c.b16 %v2608, %v2606
        %v2629 = vpack.c.b16 %v2609, %v2607
        %v2630 = vpack.c.b16 %v2612, %v2610
        %v2631 = vpack.c.b16 %v2613, %v2611
        %v2632 = vpack.c.b16 %v2616, %v2614
        %v2633 = vpack.c.b16 %v2617, %v2615
        %2650 = vmatprep.subr.bf16.mxu0 %v2619
        %2651 = vmatpush1.bf16.msra.mxu0 %v2618
        %2652 = vmatprep.subr.bf16.mxu0 %v2621
        %2653 = vmatpush1.bf16.msra.mxu0 %v2620
        %2654 = vmatprep.subr.bf16.mxu0 %v2623
        %2655 = vmatpush1.bf16.msra.mxu0 %v2622
        %2656 = vmatprep.subr.bf16.mxu0 %v2625
        %2657 = vmatpush1.bf16.msra.mxu0 %v2624
        %2658 = vmatprep.subr.bf16.mxu0 %v2627
        %2659 = vmatpush1.bf16.msra.mxu0 %v2626
        %2660 = vmatprep.subr.bf16.mxu0 %v2629
        %2661 = vmatpush1.bf16.msra.mxu0 %v2628
        %2662 = vmatprep.subr.bf16.mxu0 %v2631
        %2663 = vmatpush1.bf16.msra.mxu0 %v2630
        %2664 = vmatprep.subr.bf16.mxu0 %v2633
        %2665 = vmatpush1.bf16.msra.mxu0 %v2632
        %2666 = vmatprep.subr.bf16.mxu0 0
        %2667 = vmatpush1.bf16.msra.mxu0 0
        %2668 = vmatprep.subr.bf16.mxu0 0
        %2669 = vmatpush1.bf16.msra.mxu0 0
        %2670 = vmatprep.subr.bf16.mxu0 0
        %2671 = vmatpush1.bf16.msra.mxu0 0
        %2672 = vmatprep.subr.bf16.mxu0 0
        %2673 = vmatpush1.bf16.msra.mxu0 0
        %2674 = vmatprep.subr.bf16.mxu0 0
        %2675 = vmatpush1.bf16.msra.mxu0 0
        %2676 = vmatprep.subr.bf16.mxu0 0
        %2677 = vmatpush1.bf16.msra.mxu0 0
        %2678 = vmatprep.subr.bf16.mxu0 0
        %2679 = vmatpush1.bf16.msra.mxu0 0
        %2680 = vmatprep.subr.bf16.mxu0 0
        %2681 = vmatpush1.bf16.msra.mxu0 0
        %2682 = vmatprep.mubr.bf16.mxu0 0
        %2683 = vmatmul.mubr.bf16.gmra.mrb[0].mxu0 %v2553
        %v2684 = vpop.f32.mrb[0].mxu0
        %v2685 = vadd.f32 0.0, %v2684
        %v2686 = vpop.f32.mrb[0].mxu0
        %v2687 = vadd.f32 0.0, %v2686
        %v2688 = vpop.f32.mrb[0].mxu0
        %v2689 = vpop.f32.mrb[0].mxu0
        %2690 = vdwg.mxu0
        %v2691 = vmax.f32 %v2685, 0.0
        %v2692 = vmax.f32 %v2687, 0.0
        %v2693 = vpack.c.bf16 %v2691, %v2691
        %v2694 = vpack.c.bf16 %v2692, %v2692
        %v2695 = vld [vmem:[#allocation11] sm:$0xff]
        %v2696 = vld [vmem:[#allocation11 + $0x8] sm:$0xff]
        %v2697 = vld [vmem:[#allocation11 + $0x10] sm:$0xff]
        %v2698 = vld [vmem:[#allocation11 + $0x18] sm:$0xff]
        %v2699 = vld [vmem:[#allocation11 + $0x20] sm:$0xff]
        %v2700 = vld [vmem:[#allocation11 + $0x28] sm:$0xff]
        %v2701 = vld [vmem:[#allocation11 + $0x30] sm:$0xff]
        %v2702 = vld [vmem:[#allocation11 + $0x38] sm:$0xff]
        %v2703 = vld [vmem:[#allocation11 + $0x40] sm:$0xff]
        %v2704 = vld [vmem:[#allocation11 + $0x48] sm:$0xff]
        %v2705 = vld [vmem:[#allocation11 + $0x50] sm:$0xff]
        %v2706 = vld [vmem:[#allocation11 + $0x58] sm:$0xff]
        %v2707 = vld [vmem:[#allocation11 + $0x60] sm:$0xff]
        %v2708 = vld [vmem:[#allocation11 + $0x68] sm:$0xff]
        %v2709 = vld [vmem:[#allocation11 + $0x70] sm:$0xff]
        %v2710 = vld [vmem:[#allocation11 + $0x78] sm:$0xff]
        %v2711 = vld [vmem:[#allocation11 + $0x80] sm:$0xff]
        %v2712 = vld [vmem:[#allocation11 + $0x88] sm:$0xff]
        %v2713 = vld [vmem:[#allocation11 + $0x90] sm:$0xff]
        %v2714 = vld [vmem:[#allocation11 + $0x98] sm:$0xff]
        %v2715 = vld [vmem:[#allocation11 + $0xa0] sm:$0xff]
        %v2716 = vld [vmem:[#allocation11 + $0xa8] sm:$0xff]
        %v2717 = vld [vmem:[#allocation11 + $0xb0] sm:$0xff]
        %v2718 = vld [vmem:[#allocation11 + $0xb8] sm:$0xff]
        %v2719 = vld [vmem:[#allocation11 + $0xc0] sm:$0xff]
        %v2720 = vld [vmem:[#allocation11 + $0xc8] sm:$0xff]
        %v2721 = vld [vmem:[#allocation11 + $0xd0] sm:$0xff]
        %v2722 = vld [vmem:[#allocation11 + $0xd8] sm:$0xff]
        %v2723 = vld [vmem:[#allocation11 + $0xe0] sm:$0xff]
        %v2724 = vld [vmem:[#allocation11 + $0xe8] sm:$0xff]
        %v2725 = vld [vmem:[#allocation11 + $0xf0] sm:$0xff]
        %v2726 = vld [vmem:[#allocation11 + $0xf8] sm:$0xff]
        %v2727 = vld [vmem:[#allocation11 + $0x100] sm:$0xff]
        %v2728 = vld [vmem:[#allocation11 + $0x108] sm:$0xff]
        %v2729 = vld [vmem:[#allocation11 + $0x110] sm:$0xff]
        %v2730 = vld [vmem:[#allocation11 + $0x118] sm:$0xff]
        %v2731 = vld [vmem:[#allocation11 + $0x120] sm:$0xff]
        %v2732 = vld [vmem:[#allocation11 + $0x128] sm:$0xff]
        %v2733 = vld [vmem:[#allocation11 + $0x130] sm:$0xff]
        %v2734 = vld [vmem:[#allocation11 + $0x138] sm:$0xff]
        %v2735 = vld [vmem:[#allocation11 + $0x140] sm:$0xff]
        %v2736 = vld [vmem:[#allocation11 + $0x148] sm:$0xff]
        %v2737 = vld [vmem:[#allocation11 + $0x150] sm:$0xff]
        %v2738 = vld [vmem:[#allocation11 + $0x158] sm:$0xff]
        %v2739 = vld [vmem:[#allocation11 + $0x160] sm:$0xff]
        %v2740 = vld [vmem:[#allocation11 + $0x168] sm:$0xff]
        %v2741 = vld [vmem:[#allocation11 + $0x170] sm:$0xff]
        %v2742 = vld [vmem:[#allocation11 + $0x178] sm:$0xff]
        %v2743 = vld [vmem:[#allocation11 + $0x180] sm:$0xff]
        %v2744 = vld [vmem:[#allocation11 + $0x188] sm:$0xff]
        %v2745 = vld [vmem:[#allocation11 + $0x190] sm:$0xff]
        %v2746 = vld [vmem:[#allocation11 + $0x198] sm:$0xff]
        %v2747 = vld [vmem:[#allocation11 + $0x1a0] sm:$0xff]
        %v2748 = vld [vmem:[#allocation11 + $0x1a8] sm:$0xff]
        %v2749 = vld [vmem:[#allocation11 + $0x1b0] sm:$0xff]
        %v2750 = vld [vmem:[#allocation11 + $0x1b8] sm:$0xff]
        %v2751 = vld [vmem:[#allocation11 + $0x1c0] sm:$0xff]
        %v2752 = vld [vmem:[#allocation11 + $0x1c8] sm:$0xff]
        %v2753 = vld [vmem:[#allocation11 + $0x1d0] sm:$0xff]
        %v2754 = vld [vmem:[#allocation11 + $0x1d8] sm:$0xff]
        %v2755 = vld [vmem:[#allocation11 + $0x1e0] sm:$0xff]
        %v2756 = vld [vmem:[#allocation11 + $0x1e8] sm:$0xff]
        %v2757 = vld [vmem:[#allocation11 + $0x1f0] sm:$0xff]
        %v2758 = vld [vmem:[#allocation11 + $0x1f8] sm:$0xff]
        %v2759 = vld [vmem:[#allocation13] sm:$0xff]
        %v2760 = vld [vmem:[#allocation13 + $0x8] sm:$0xff]
        %v2761 = vld [vmem:[#allocation13 + $0x10] sm:$0xff]
        %v2762 = vld [vmem:[#allocation13 + $0x18] sm:$0xff]
        %v2763 = vld [vmem:[#allocation13 + $0x20] sm:$0xff]
        %v2764 = vld [vmem:[#allocation13 + $0x28] sm:$0xff]
        %v2765 = vld [vmem:[#allocation13 + $0x30] sm:$0xff]
        %v2766 = vld [vmem:[#allocation13 + $0x38] sm:$0xff]
        %v2767 = vld [vmem:[#allocation13 + $0x40] sm:$0xff]
        %v2768 = vld [vmem:[#allocation13 + $0x48] sm:$0xff]
        %v2769 = vld [vmem:[#allocation13 + $0x50] sm:$0xff]
        %v2770 = vld [vmem:[#allocation13 + $0x58] sm:$0xff]
        %v2771 = vld [vmem:[#allocation13 + $0x60] sm:$0xff]
        %v2772 = vld [vmem:[#allocation13 + $0x68] sm:$0xff]
        %v2773 = vld [vmem:[#allocation13 + $0x70] sm:$0xff]
        %v2774 = vld [vmem:[#allocation13 + $0x78] sm:$0xff]
        %v2775 = vld [vmem:[#allocation13 + $0x80] sm:$0xff]
        %v2776 = vld [vmem:[#allocation13 + $0x88] sm:$0xff]
        %v2777 = vld [vmem:[#allocation13 + $0x90] sm:$0xff]
        %v2778 = vld [vmem:[#allocation13 + $0x98] sm:$0xff]
        %v2779 = vld [vmem:[#allocation13 + $0xa0] sm:$0xff]
        %v2780 = vld [vmem:[#allocation13 + $0xa8] sm:$0xff]
        %v2781 = vld [vmem:[#allocation13 + $0xb0] sm:$0xff]
        %v2782 = vld [vmem:[#allocation13 + $0xb8] sm:$0xff]
        %v2783 = vld [vmem:[#allocation13 + $0xc0] sm:$0xff]
        %v2784 = vld [vmem:[#allocation13 + $0xc8] sm:$0xff]
        %v2785 = vld [vmem:[#allocation13 + $0xd0] sm:$0xff]
        %v2786 = vld [vmem:[#allocation13 + $0xd8] sm:$0xff]
        %v2787 = vld [vmem:[#allocation13 + $0xe0] sm:$0xff]
        %v2788 = vld [vmem:[#allocation13 + $0xe8] sm:$0xff]
        %v2789 = vld [vmem:[#allocation13 + $0xf0] sm:$0xff]
        %v2790 = vld [vmem:[#allocation13 + $0xf8] sm:$0xff]
        %v2791 = vld [vmem:[#allocation13 + $0x100] sm:$0xff]
        %v2792 = vld [vmem:[#allocation13 + $0x108] sm:$0xff]
        %v2793 = vld [vmem:[#allocation13 + $0x110] sm:$0xff]
        %v2794 = vld [vmem:[#allocation13 + $0x118] sm:$0xff]
        %v2795 = vld [vmem:[#allocation13 + $0x120] sm:$0xff]
        %v2796 = vld [vmem:[#allocation13 + $0x128] sm:$0xff]
        %v2797 = vld [vmem:[#allocation13 + $0x130] sm:$0xff]
        %v2798 = vld [vmem:[#allocation13 + $0x138] sm:$0xff]
        %v2799 = vld [vmem:[#allocation13 + $0x140] sm:$0xff]
        %v2800 = vld [vmem:[#allocation13 + $0x148] sm:$0xff]
        %v2801 = vld [vmem:[#allocation13 + $0x150] sm:$0xff]
        %v2802 = vld [vmem:[#allocation13 + $0x158] sm:$0xff]
        %v2803 = vld [vmem:[#allocation13 + $0x160] sm:$0xff]
        %v2804 = vld [vmem:[#allocation13 + $0x168] sm:$0xff]
        %v2805 = vld [vmem:[#allocation13 + $0x170] sm:$0xff]
        %v2806 = vld [vmem:[#allocation13 + $0x178] sm:$0xff]
        %v2807 = vld [vmem:[#allocation13 + $0x180] sm:$0xff]
        %v2808 = vld [vmem:[#allocation13 + $0x188] sm:$0xff]
        %v2809 = vld [vmem:[#allocation13 + $0x190] sm:$0xff]
        %v2810 = vld [vmem:[#allocation13 + $0x198] sm:$0xff]
        %v2811 = vld [vmem:[#allocation13 + $0x1a0] sm:$0xff]
        %v2812 = vld [vmem:[#allocation13 + $0x1a8] sm:$0xff]
        %v2813 = vld [vmem:[#allocation13 + $0x1b0] sm:$0xff]
        %v2814 = vld [vmem:[#allocation13 + $0x1b8] sm:$0xff]
        %v2815 = vld [vmem:[#allocation13 + $0x1c0] sm:$0xff]
        %v2816 = vld [vmem:[#allocation13 + $0x1c8] sm:$0xff]
        %v2817 = vld [vmem:[#allocation13 + $0x1d0] sm:$0xff]
        %v2818 = vld [vmem:[#allocation13 + $0x1d8] sm:$0xff]
        %v2819 = vld [vmem:[#allocation13 + $0x1e0] sm:$0xff]
        %v2820 = vld [vmem:[#allocation13 + $0x1e8] sm:$0xff]
        %v2821 = vld [vmem:[#allocation13 + $0x1f0] sm:$0xff]
        %v2822 = vld [vmem:[#allocation13 + $0x1f8] sm:$0xff]
        %v2887 = vunpack.c.l.b16 %v2759
        %v2888 = vunpack.c.h.b16 %v2759
        %v2889 = vunpack.c.l.b16 %v2760
        %v2890 = vunpack.c.h.b16 %v2760
        %v2891 = vunpack.c.l.b16 %v2761
        %v2892 = vunpack.c.h.b16 %v2761
        %v2893 = vunpack.c.l.b16 %v2762
        %v2894 = vunpack.c.h.b16 %v2762
        %v2895 = vunpack.c.l.b16 %v2763
        %v2896 = vunpack.c.h.b16 %v2763
        %v2897 = vunpack.c.l.b16 %v2764
        %v2898 = vunpack.c.h.b16 %v2764
        %v2899 = vunpack.c.l.b16 %v2765
        %v2900 = vunpack.c.h.b16 %v2765
        %v2901 = vunpack.c.l.b16 %v2766
        %v2902 = vunpack.c.h.b16 %v2766
        %v2903 = vunpack.c.l.b16 %v2767
        %v2904 = vunpack.c.h.b16 %v2767
        %v2905 = vunpack.c.l.b16 %v2768
        %v2906 = vunpack.c.h.b16 %v2768
        %v2907 = vunpack.c.l.b16 %v2769
        %v2908 = vunpack.c.h.b16 %v2769
        %v2909 = vunpack.c.l.b16 %v2770
        %v2910 = vunpack.c.h.b16 %v2770
        %v2911 = vunpack.c.l.b16 %v2771
        %v2912 = vunpack.c.h.b16 %v2771
        %v2913 = vunpack.c.l.b16 %v2772
        %v2914 = vunpack.c.h.b16 %v2772
        %v2915 = vunpack.c.l.b16 %v2773
        %v2916 = vunpack.c.h.b16 %v2773
        %v2917 = vunpack.c.l.b16 %v2774
        %v2918 = vunpack.c.h.b16 %v2774
        %v2919 = vunpack.c.l.b16 %v2775
        %v2920 = vunpack.c.h.b16 %v2775
        %v2921 = vunpack.c.l.b16 %v2776
        %v2922 = vunpack.c.h.b16 %v2776
        %v2923 = vunpack.c.l.b16 %v2777
        %v2924 = vunpack.c.h.b16 %v2777
        %v2925 = vunpack.c.l.b16 %v2778
        %v2926 = vunpack.c.h.b16 %v2778
        %v2927 = vunpack.c.l.b16 %v2779
        %v2928 = vunpack.c.h.b16 %v2779
        %v2929 = vunpack.c.l.b16 %v2780
        %v2930 = vunpack.c.h.b16 %v2780
        %v2931 = vunpack.c.l.b16 %v2781
        %v2932 = vunpack.c.h.b16 %v2781
        %v2933 = vunpack.c.l.b16 %v2782
        %v2934 = vunpack.c.h.b16 %v2782
        %v2935 = vunpack.c.l.b16 %v2783
        %v2936 = vunpack.c.h.b16 %v2783
        %v2937 = vunpack.c.l.b16 %v2784
        %v2938 = vunpack.c.h.b16 %v2784
        %v2939 = vunpack.c.l.b16 %v2785
        %v2940 = vunpack.c.h.b16 %v2785
        %v2941 = vunpack.c.l.b16 %v2786
        %v2942 = vunpack.c.h.b16 %v2786
        %v2943 = vunpack.c.l.b16 %v2787
        %v2944 = vunpack.c.h.b16 %v2787
        %v2945 = vunpack.c.l.b16 %v2788
        %v2946 = vunpack.c.h.b16 %v2788
        %v2947 = vunpack.c.l.b16 %v2789
        %v2948 = vunpack.c.h.b16 %v2789
        %v2949 = vunpack.c.l.b16 %v2790
        %v2950 = vunpack.c.h.b16 %v2790
        %v2951 = vunpack.c.l.b16 %v2791
        %v2952 = vunpack.c.h.b16 %v2791
        %v2953 = vunpack.c.l.b16 %v2792
        %v2954 = vunpack.c.h.b16 %v2792
        %v2955 = vunpack.c.l.b16 %v2793
        %v2956 = vunpack.c.h.b16 %v2793
        %v2957 = vunpack.c.l.b16 %v2794
        %v2958 = vunpack.c.h.b16 %v2794
        %v2959 = vunpack.c.l.b16 %v2795
        %v2960 = vunpack.c.h.b16 %v2795
        %v2961 = vunpack.c.l.b16 %v2796
        %v2962 = vunpack.c.h.b16 %v2796
        %v2963 = vunpack.c.l.b16 %v2797
        %v2964 = vunpack.c.h.b16 %v2797
        %v2965 = vunpack.c.l.b16 %v2798
        %v2966 = vunpack.c.h.b16 %v2798
        %v2967 = vunpack.c.l.b16 %v2799
        %v2968 = vunpack.c.h.b16 %v2799
        %v2969 = vunpack.c.l.b16 %v2800
        %v2970 = vunpack.c.h.b16 %v2800
        %v2971 = vunpack.c.l.b16 %v2801
        %v2972 = vunpack.c.h.b16 %v2801
        %v2973 = vunpack.c.l.b16 %v2802
        %v2974 = vunpack.c.h.b16 %v2802
        %v2975 = vunpack.c.l.b16 %v2803
        %v2976 = vunpack.c.h.b16 %v2803
        %v2977 = vunpack.c.l.b16 %v2804
        %v2978 = vunpack.c.h.b16 %v2804
        %v2979 = vunpack.c.l.b16 %v2805
        %v2980 = vunpack.c.h.b16 %v2805
        %v2981 = vunpack.c.l.b16 %v2806
        %v2982 = vunpack.c.h.b16 %v2806
        %v2983 = vunpack.c.l.b16 %v2807
        %v2984 = vunpack.c.h.b16 %v2807
        %v2985 = vunpack.c.l.b16 %v2808
        %v2986 = vunpack.c.h.b16 %v2808
        %v2987 = vunpack.c.l.b16 %v2809
        %v2988 = vunpack.c.h.b16 %v2809
        %v2989 = vunpack.c.l.b16 %v2810
        %v2990 = vunpack.c.h.b16 %v2810
        %v2991 = vunpack.c.l.b16 %v2811
        %v2992 = vunpack.c.h.b16 %v2811
        %v2993 = vunpack.c.l.b16 %v2812
        %v2994 = vunpack.c.h.b16 %v2812
        %v2995 = vunpack.c.l.b16 %v2813
        %v2996 = vunpack.c.h.b16 %v2813
        %v2997 = vunpack.c.l.b16 %v2814
        %v2998 = vunpack.c.h.b16 %v2814
        %v2999 = vunpack.c.l.b16 %v2815
        %v3000 = vunpack.c.h.b16 %v2815
        %v3001 = vunpack.c.l.b16 %v2816
        %v3002 = vunpack.c.h.b16 %v2816
        %v3003 = vunpack.c.l.b16 %v2817
        %v3004 = vunpack.c.h.b16 %v2817
        %v3005 = vunpack.c.l.b16 %v2818
        %v3006 = vunpack.c.h.b16 %v2818
        %v3007 = vunpack.c.l.b16 %v2819
        %v3008 = vunpack.c.h.b16 %v2819
        %v3009 = vunpack.c.l.b16 %v2820
        %v3010 = vunpack.c.h.b16 %v2820
        %v3011 = vunpack.c.l.b16 %v2821
        %v3012 = vunpack.c.h.b16 %v2821
        %v3013 = vunpack.c.l.b16 %v2822
        %v3014 = vunpack.c.h.b16 %v2822
        %v3015 = vpack.c.b16 %v2891, %v2887
        %v3016 = vpack.c.b16 %v2892, %v2888
        %v3017 = vpack.c.b16 %v2893, %v2889
        %v3018 = vpack.c.b16 %v2894, %v2890
        %v3019 = vpack.c.b16 %v2899, %v2895
        %v3020 = vpack.c.b16 %v2900, %v2896
        %v3021 = vpack.c.b16 %v2901, %v2897
        %v3022 = vpack.c.b16 %v2902, %v2898
        %v3023 = vpack.c.b16 %v2907, %v2903
        %v3024 = vpack.c.b16 %v2908, %v2904
        %v3025 = vpack.c.b16 %v2909, %v2905
        %v3026 = vpack.c.b16 %v2910, %v2906
        %v3027 = vpack.c.b16 %v2915, %v2911
        %v3028 = vpack.c.b16 %v2916, %v2912
        %v3029 = vpack.c.b16 %v2917, %v2913
        %v3030 = vpack.c.b16 %v2918, %v2914
        %v3031 = vpack.c.b16 %v2923, %v2919
        %v3032 = vpack.c.b16 %v2924, %v2920
        %v3033 = vpack.c.b16 %v2925, %v2921
        %v3034 = vpack.c.b16 %v2926, %v2922
        %v3035 = vpack.c.b16 %v2931, %v2927
        %v3036 = vpack.c.b16 %v2932, %v2928
        %v3037 = vpack.c.b16 %v2933, %v2929
        %v3038 = vpack.c.b16 %v2934, %v2930
        %v3039 = vpack.c.b16 %v2939, %v2935
        %v3040 = vpack.c.b16 %v2940, %v2936
        %v3041 = vpack.c.b16 %v2941, %v2937
        %v3042 = vpack.c.b16 %v2942, %v2938
        %v3043 = vpack.c.b16 %v2947, %v2943
        %v3044 = vpack.c.b16 %v2948, %v2944
        %v3045 = vpack.c.b16 %v2949, %v2945
        %v3046 = vpack.c.b16 %v2950, %v2946
        %v3047 = vpack.c.b16 %v2955, %v2951
        %v3048 = vpack.c.b16 %v2956, %v2952
        %v3049 = vpack.c.b16 %v2957, %v2953
        %v3050 = vpack.c.b16 %v2958, %v2954
        %v3051 = vpack.c.b16 %v2963, %v2959
        %v3052 = vpack.c.b16 %v2964, %v2960
        %v3053 = vpack.c.b16 %v2965, %v2961
        %v3054 = vpack.c.b16 %v2966, %v2962
        %v3055 = vpack.c.b16 %v2971, %v2967
        %v3056 = vpack.c.b16 %v2972, %v2968
        %v3057 = vpack.c.b16 %v2973, %v2969
        %v3058 = vpack.c.b16 %v2974, %v2970
        %v3059 = vpack.c.b16 %v2979, %v2975
        %v3060 = vpack.c.b16 %v2980, %v2976
        %v3061 = vpack.c.b16 %v2981, %v2977
        %v3062 = vpack.c.b16 %v2982, %v2978
        %v3063 = vpack.c.b16 %v2987, %v2983
        %v3064 = vpack.c.b16 %v2988, %v2984
        %v3065 = vpack.c.b16 %v2989, %v2985
        %v3066 = vpack.c.b16 %v2990, %v2986
        %v3067 = vpack.c.b16 %v2995, %v2991
        %v3068 = vpack.c.b16 %v2996, %v2992
        %v3069 = vpack.c.b16 %v2997, %v2993
        %v3070 = vpack.c.b16 %v2998, %v2994
        %v3071 = vpack.c.b16 %v3003, %v2999
        %v3072 = vpack.c.b16 %v3004, %v3000
        %v3073 = vpack.c.b16 %v3005, %v3001
        %v3074 = vpack.c.b16 %v3006, %v3002
        %v3075 = vpack.c.b16 %v3011, %v3007
        %v3076 = vpack.c.b16 %v3012, %v3008
        %v3077 = vpack.c.b16 %v3013, %v3009
        %v3078 = vpack.c.b16 %v3014, %v3010
        %3143 = vmatprep.subr.bf16.mxu0 %v3016
        %3144 = vmatpush1.bf16.msra.mxu0 %v3015
        %3145 = vmatprep.subr.bf16.mxu0 %v3020
        %3146 = vmatpush1.bf16.msra.mxu0 %v3019
        %3147 = vmatprep.subr.bf16.mxu0 %v3024
        %3148 = vmatpush1.bf16.msra.mxu0 %v3023
        %3149 = vmatprep.subr.bf16.mxu0 %v3028
        %3150 = vmatpush1.bf16.msra.mxu0 %v3027
        %3151 = vmatprep.subr.bf16.mxu0 %v3032
        %3152 = vmatpush1.bf16.msra.mxu0 %v3031
        %3153 = vmatprep.subr.bf16.mxu0 %v3036
        %3154 = vmatpush1.bf16.msra.mxu0 %v3035
        %3155 = vmatprep.subr.bf16.mxu0 %v3040
        %3156 = vmatpush1.bf16.msra.mxu0 %v3039
        %3157 = vmatprep.subr.bf16.mxu0 %v3044
        %3158 = vmatpush1.bf16.msra.mxu0 %v3043
        %3159 = vmatprep.subr.bf16.mxu0 %v3048
        %3160 = vmatpush1.bf16.msra.mxu0 %v3047
        %3161 = vmatprep.subr.bf16.mxu0 %v3052
        %3162 = vmatpush1.bf16.msra.mxu0 %v3051
        %3163 = vmatprep.subr.bf16.mxu0 %v3056
        %3164 = vmatpush1.bf16.msra.mxu0 %v3055
        %3165 = vmatprep.subr.bf16.mxu0 %v3060
        %3166 = vmatpush1.bf16.msra.mxu0 %v3059
        %3167 = vmatprep.subr.bf16.mxu0 %v3064
        %3168 = vmatpush1.bf16.msra.mxu0 %v3063
        %3169 = vmatprep.subr.bf16.mxu0 %v3068
        %3170 = vmatpush1.bf16.msra.mxu0 %v3067
        %3171 = vmatprep.subr.bf16.mxu0 %v3072
        %3172 = vmatpush1.bf16.msra.mxu0 %v3071
        %3173 = vmatprep.subr.bf16.mxu0 %v3076
        %3174 = vmatpush1.bf16.msra.mxu0 %v3075
        %3175 = vmatprep.mubr.bf16.mxu0 %v2377
        %3176 = vmatmul.mubr.bf16.gmra.mrb[0].mxu0 %v2376
        %v3177 = vpop.f32.mrb[0].mxu0
        %v3178 = vadd.f32 0.0, %v3177
        %v3179 = vpop.f32.mrb[0].mxu0
        %v3180 = vadd.f32 0.0, %v3179
        %v3181 = vpop.f32.mrb[0].mxu0
        %v3182 = vpop.f32.mrb[0].mxu0
        %3183 = vdwg.mxu0
        %3184 = vmatprep.subr.bf16.mxu0 %v3018
        %3185 = vmatpush1.bf16.msra.mxu0 %v3017
        %3186 = vmatprep.subr.bf16.mxu0 %v3022
        %3187 = vmatpush1.bf16.msra.mxu0 %v3021
        %3188 = vmatprep.subr.bf16.mxu0 %v3026
        %3189 = vmatpush1.bf16.msra.mxu0 %v3025
        %3190 = vmatprep.subr.bf16.mxu0 %v3030
        %3191 = vmatpush1.bf16.msra.mxu0 %v3029
        %3192 = vmatprep.subr.bf16.mxu0 %v3034
        %3193 = vmatpush1.bf16.msra.mxu0 %v3033
        %3194 = vmatprep.subr.bf16.mxu0 %v3038
        %3195 = vmatpush1.bf16.msra.mxu0 %v3037
        %3196 = vmatprep.subr.bf16.mxu0 %v3042
        %3197 = vmatpush1.bf16.msra.mxu0 %v3041
        %3198 = vmatprep.subr.bf16.mxu0 %v3046
        %3199 = vmatpush1.bf16.msra.mxu0 %v3045
        %3200 = vmatprep.subr.bf16.mxu0 %v3050
        %3201 = vmatpush1.bf16.msra.mxu0 %v3049
        %3202 = vmatprep.subr.bf16.mxu0 %v3054
        %3203 = vmatpush1.bf16.msra.mxu0 %v3053
        %3204 = vmatprep.subr.bf16.mxu0 %v3058
        %3205 = vmatpush1.bf16.msra.mxu0 %v3057
        %3206 = vmatprep.subr.bf16.mxu0 %v3062
        %3207 = vmatpush1.bf16.msra.mxu0 %v3061
        %3208 = vmatprep.subr.bf16.mxu0 %v3066
        %3209 = vmatpush1.bf16.msra.mxu0 %v3065
        %3210 = vmatprep.subr.bf16.mxu0 %v3070
        %3211 = vmatpush1.bf16.msra.mxu0 %v3069
        %3212 = vmatprep.subr.bf16.mxu0 %v3074
        %3213 = vmatpush1.bf16.msra.mxu0 %v3073
        %3214 = vmatprep.subr.bf16.mxu0 %v3078
        %3215 = vmatpush1.bf16.msra.mxu0 %v3077
        %3216 = vmatprep.mubr.bf16.mxu0 %v2377
        %3217 = vmatmul.mubr.bf16.gmra.mrb[0].mxu0 %v2376
        %v3218 = vpop.f32.mrb[0].mxu0
        %v3219 = vadd.f32 0.0, %v3218
        %v3220 = vpop.f32.mrb[0].mxu0
        %v3221 = vadd.f32 0.0, %v3220
        %v3222 = vpop.f32.mrb[0].mxu0
        %v3223 = vpop.f32.mrb[0].mxu0
        %3224 = vdwg.mxu0
        %v3289 = vunpack.c.l.b16 %v2695
        %v3290 = vunpack.c.h.b16 %v2695
        %v3291 = vunpack.c.l.b16 %v2696
        %v3292 = vunpack.c.h.b16 %v2696
        %v3293 = vunpack.c.l.b16 %v2697
        %v3294 = vunpack.c.h.b16 %v2697
        %v3295 = vunpack.c.l.b16 %v2698
        %v3296 = vunpack.c.h.b16 %v2698
        %v3297 = vunpack.c.l.b16 %v2699
        %v3298 = vunpack.c.h.b16 %v2699
        %v3299 = vunpack.c.l.b16 %v2700
        %v3300 = vunpack.c.h.b16 %v2700
        %v3301 = vunpack.c.l.b16 %v2701
        %v3302 = vunpack.c.h.b16 %v2701
        %v3303 = vunpack.c.l.b16 %v2702
        %v3304 = vunpack.c.h.b16 %v2702
        %v3305 = vunpack.c.l.b16 %v2703
        %v3306 = vunpack.c.h.b16 %v2703
        %v3307 = vunpack.c.l.b16 %v2704
        %v3308 = vunpack.c.h.b16 %v2704
        %v3309 = vunpack.c.l.b16 %v2705
        %v3310 = vunpack.c.h.b16 %v2705
        %v3311 = vunpack.c.l.b16 %v2706
        %v3312 = vunpack.c.h.b16 %v2706
        %v3313 = vunpack.c.l.b16 %v2707
        %v3314 = vunpack.c.h.b16 %v2707
        %v3315 = vunpack.c.l.b16 %v2708
        %v3316 = vunpack.c.h.b16 %v2708
        %v3317 = vunpack.c.l.b16 %v2709
        %v3318 = vunpack.c.h.b16 %v2709
        %v3319 = vunpack.c.l.b16 %v2710
        %v3320 = vunpack.c.h.b16 %v2710
        %v3321 = vunpack.c.l.b16 %v2711
        %v3322 = vunpack.c.h.b16 %v2711
        %v3323 = vunpack.c.l.b16 %v2712
        %v3324 = vunpack.c.h.b16 %v2712
        %v3325 = vunpack.c.l.b16 %v2713
        %v3326 = vunpack.c.h.b16 %v2713
        %v3327 = vunpack.c.l.b16 %v2714
        %v3328 = vunpack.c.h.b16 %v2714
        %v3329 = vunpack.c.l.b16 %v2715
        %v3330 = vunpack.c.h.b16 %v2715
        %v3331 = vunpack.c.l.b16 %v2716
        %v3332 = vunpack.c.h.b16 %v2716
        %v3333 = vunpack.c.l.b16 %v2717
        %v3334 = vunpack.c.h.b16 %v2717
        %v3335 = vunpack.c.l.b16 %v2718
        %v3336 = vunpack.c.h.b16 %v2718
        %v3337 = vunpack.c.l.b16 %v2719
        %v3338 = vunpack.c.h.b16 %v2719
        %v3339 = vunpack.c.l.b16 %v2720
        %v3340 = vunpack.c.h.b16 %v2720
        %v3341 = vunpack.c.l.b16 %v2721
        %v3342 = vunpack.c.h.b16 %v2721
        %v3343 = vunpack.c.l.b16 %v2722
        %v3344 = vunpack.c.h.b16 %v2722
        %v3345 = vunpack.c.l.b16 %v2723
        %v3346 = vunpack.c.h.b16 %v2723
        %v3347 = vunpack.c.l.b16 %v2724
        %v3348 = vunpack.c.h.b16 %v2724
        %v3349 = vunpack.c.l.b16 %v2725
        %v3350 = vunpack.c.h.b16 %v2725
        %v3351 = vunpack.c.l.b16 %v2726
        %v3352 = vunpack.c.h.b16 %v2726
        %v3353 = vunpack.c.l.b16 %v2727
        %v3354 = vunpack.c.h.b16 %v2727
        %v3355 = vunpack.c.l.b16 %v2728
        %v3356 = vunpack.c.h.b16 %v2728
        %v3357 = vunpack.c.l.b16 %v2729
        %v3358 = vunpack.c.h.b16 %v2729
        %v3359 = vunpack.c.l.b16 %v2730
        %v3360 = vunpack.c.h.b16 %v2730
        %v3361 = vunpack.c.l.b16 %v2731
        %v3362 = vunpack.c.h.b16 %v2731
        %v3363 = vunpack.c.l.b16 %v2732
        %v3364 = vunpack.c.h.b16 %v2732
        %v3365 = vunpack.c.l.b16 %v2733
        %v3366 = vunpack.c.h.b16 %v2733
        %v3367 = vunpack.c.l.b16 %v2734
        %v3368 = vunpack.c.h.b16 %v2734
        %v3369 = vunpack.c.l.b16 %v2735
        %v3370 = vunpack.c.h.b16 %v2735
        %v3371 = vunpack.c.l.b16 %v2736
        %v3372 = vunpack.c.h.b16 %v2736
        %v3373 = vunpack.c.l.b16 %v2737
        %v3374 = vunpack.c.h.b16 %v2737
        %v3375 = vunpack.c.l.b16 %v2738
        %v3376 = vunpack.c.h.b16 %v2738
        %v3377 = vunpack.c.l.b16 %v2739
        %v3378 = vunpack.c.h.b16 %v2739
        %v3379 = vunpack.c.l.b16 %v2740
        %v3380 = vunpack.c.h.b16 %v2740
        %v3381 = vunpack.c.l.b16 %v2741
        %v3382 = vunpack.c.h.b16 %v2741
        %v3383 = vunpack.c.l.b16 %v2742
        %v3384 = vunpack.c.h.b16 %v2742
        %v3385 = vunpack.c.l.b16 %v2743
        %v3386 = vunpack.c.h.b16 %v2743
        %v3387 = vunpack.c.l.b16 %v2744
        %v3388 = vunpack.c.h.b16 %v2744
        %v3389 = vunpack.c.l.b16 %v2745
        %v3390 = vunpack.c.h.b16 %v2745
        %v3391 = vunpack.c.l.b16 %v2746
        %v3392 = vunpack.c.h.b16 %v2746
        %v3393 = vunpack.c.l.b16 %v2747
        %v3394 = vunpack.c.h.b16 %v2747
        %v3395 = vunpack.c.l.b16 %v2748
        %v3396 = vunpack.c.h.b16 %v2748
        %v3397 = vunpack.c.l.b16 %v2749
        %v3398 = vunpack.c.h.b16 %v2749
        %v3399 = vunpack.c.l.b16 %v2750
        %v3400 = vunpack.c.h.b16 %v2750
        %v3401 = vunpack.c.l.b16 %v2751
        %v3402 = vunpack.c.h.b16 %v2751
        %v3403 = vunpack.c.l.b16 %v2752
        %v3404 = vunpack.c.h.b16 %v2752
        %v3405 = vunpack.c.l.b16 %v2753
        %v3406 = vunpack.c.h.b16 %v2753
        %v3407 = vunpack.c.l.b16 %v2754
        %v3408 = vunpack.c.h.b16 %v2754
        %v3409 = vunpack.c.l.b16 %v2755
        %v3410 = vunpack.c.h.b16 %v2755
        %v3411 = vunpack.c.l.b16 %v2756
        %v3412 = vunpack.c.h.b16 %v2756
        %v3413 = vunpack.c.l.b16 %v2757
        %v3414 = vunpack.c.h.b16 %v2757
        %v3415 = vunpack.c.l.b16 %v2758
        %v3416 = vunpack.c.h.b16 %v2758
        %v3417 = vpack.c.b16 %v3293, %v3289
        %v3418 = vpack.c.b16 %v3294, %v3290
        %v3419 = vpack.c.b16 %v3295, %v3291
        %v3420 = vpack.c.b16 %v3296, %v3292
        %v3421 = vpack.c.b16 %v3301, %v3297
        %v3422 = vpack.c.b16 %v3302, %v3298
        %v3423 = vpack.c.b16 %v3303, %v3299
        %v3424 = vpack.c.b16 %v3304, %v3300
        %v3425 = vpack.c.b16 %v3309, %v3305
        %v3426 = vpack.c.b16 %v3310, %v3306
        %v3427 = vpack.c.b16 %v3311, %v3307
        %v3428 = vpack.c.b16 %v3312, %v3308
        %v3429 = vpack.c.b16 %v3317, %v3313
        %v3430 = vpack.c.b16 %v3318, %v3314
        %v3431 = vpack.c.b16 %v3319, %v3315
        %v3432 = vpack.c.b16 %v3320, %v3316
        %v3433 = vpack.c.b16 %v3325, %v3321
        %v3434 = vpack.c.b16 %v3326, %v3322
        %v3435 = vpack.c.b16 %v3327, %v3323
        %v3436 = vpack.c.b16 %v3328, %v3324
        %v3437 = vpack.c.b16 %v3333, %v3329
        %v3438 = vpack.c.b16 %v3334, %v3330
        %v3439 = vpack.c.b16 %v3335, %v3331
        %v3440 = vpack.c.b16 %v3336, %v3332
        %v3441 = vpack.c.b16 %v3341, %v3337
        %v3442 = vpack.c.b16 %v3342, %v3338
        %v3443 = vpack.c.b16 %v3343, %v3339
        %v3444 = vpack.c.b16 %v3344, %v3340
        %v3445 = vpack.c.b16 %v3349, %v3345
        %v3446 = vpack.c.b16 %v3350, %v3346
        %v3447 = vpack.c.b16 %v3351, %v3347
        %v3448 = vpack.c.b16 %v3352, %v3348
        %v3449 = vpack.c.b16 %v3357, %v3353
        %v3450 = vpack.c.b16 %v3358, %v3354
        %v3451 = vpack.c.b16 %v3359, %v3355
        %v3452 = vpack.c.b16 %v3360, %v3356
        %v3453 = vpack.c.b16 %v3365, %v3361
        %v3454 = vpack.c.b16 %v3366, %v3362
        %v3455 = vpack.c.b16 %v3367, %v3363
        %v3456 = vpack.c.b16 %v3368, %v3364
        %v3457 = vpack.c.b16 %v3373, %v3369
        %v3458 = vpack.c.b16 %v3374, %v3370
        %v3459 = vpack.c.b16 %v3375, %v3371
        %v3460 = vpack.c.b16 %v3376, %v3372
        %v3461 = vpack.c.b16 %v3381, %v3377
        %v3462 = vpack.c.b16 %v3382, %v3378
        %v3463 = vpack.c.b16 %v3383, %v3379
        %v3464 = vpack.c.b16 %v3384, %v3380
        %v3465 = vpack.c.b16 %v3389, %v3385
        %v3466 = vpack.c.b16 %v3390, %v3386
        %v3467 = vpack.c.b16 %v3391, %v3387
        %v3468 = vpack.c.b16 %v3392, %v3388
        %v3469 = vpack.c.b16 %v3397, %v3393
        %v3470 = vpack.c.b16 %v3398, %v3394
        %v3471 = vpack.c.b16 %v3399, %v3395
        %v3472 = vpack.c.b16 %v3400, %v3396
        %v3473 = vpack.c.b16 %v3405, %v3401
        %v3474 = vpack.c.b16 %v3406, %v3402
        %v3475 = vpack.c.b16 %v3407, %v3403
        %v3476 = vpack.c.b16 %v3408, %v3404
        %v3477 = vpack.c.b16 %v3413, %v3409
        %v3478 = vpack.c.b16 %v3414, %v3410
        %v3479 = vpack.c.b16 %v3415, %v3411
        %v3480 = vpack.c.b16 %v3416, %v3412
        %3545 = vmatprep.subr.bf16.mxu0 %v3418
        %3546 = vmatpush1.bf16.msra.mxu0 %v3417
        %3547 = vmatprep.subr.bf16.mxu0 %v3422
        %3548 = vmatpush1.bf16.msra.mxu0 %v3421
        %3549 = vmatprep.subr.bf16.mxu0 %v3426
        %3550 = vmatpush1.bf16.msra.mxu0 %v3425
        %3551 = vmatprep.subr.bf16.mxu0 %v3430
        %3552 = vmatpush1.bf16.msra.mxu0 %v3429
        %3553 = vmatprep.subr.bf16.mxu0 %v3434
        %3554 = vmatpush1.bf16.msra.mxu0 %v3433
        %3555 = vmatprep.subr.bf16.mxu0 %v3438
        %3556 = vmatpush1.bf16.msra.mxu0 %v3437
        %3557 = vmatprep.subr.bf16.mxu0 %v3442
        %3558 = vmatpush1.bf16.msra.mxu0 %v3441
        %3559 = vmatprep.subr.bf16.mxu0 %v3446
        %3560 = vmatpush1.bf16.msra.mxu0 %v3445
        %3561 = vmatprep.subr.bf16.mxu0 %v3450
        %3562 = vmatpush1.bf16.msra.mxu0 %v3449
        %3563 = vmatprep.subr.bf16.mxu0 %v3454
        %3564 = vmatpush1.bf16.msra.mxu0 %v3453
        %3565 = vmatprep.subr.bf16.mxu0 %v3458
        %3566 = vmatpush1.bf16.msra.mxu0 %v3457
        %3567 = vmatprep.subr.bf16.mxu0 %v3462
        %3568 = vmatpush1.bf16.msra.mxu0 %v3461
        %3569 = vmatprep.subr.bf16.mxu0 %v3466
        %3570 = vmatpush1.bf16.msra.mxu0 %v3465
        %3571 = vmatprep.subr.bf16.mxu0 %v3470
        %3572 = vmatpush1.bf16.msra.mxu0 %v3469
        %3573 = vmatprep.subr.bf16.mxu0 %v3474
        %3574 = vmatpush1.bf16.msra.mxu0 %v3473
        %3575 = vmatprep.subr.bf16.mxu0 %v3478
        %3576 = vmatpush1.bf16.msra.mxu0 %v3477
        %3577 = vmatprep.mubr.bf16.mxu0 %v2694
        %3578 = vmatmul.mubr.bf16.gmra.mrb[0].mxu0 %v2693
        %v3579 = vpop.f32.mrb[0].mxu0
        %v3580 = vadd.f32 %v3178, %v3579
        %v3581 = vpop.f32.mrb[0].mxu0
        %v3582 = vadd.f32 %v3180, %v3581
        %v3583 = vpop.f32.mrb[0].mxu0
        %v3584 = vpop.f32.mrb[0].mxu0
        %3585 = vdwg.mxu0
        %3586 = vmatprep.subr.bf16.mxu0 %v3420
        %3587 = vmatpush1.bf16.msra.mxu0 %v3419
        %3588 = vmatprep.subr.bf16.mxu0 %v3424
        %3589 = vmatpush1.bf16.msra.mxu0 %v3423
        %3590 = vmatprep.subr.bf16.mxu0 %v3428
        %3591 = vmatpush1.bf16.msra.mxu0 %v3427
        %3592 = vmatprep.subr.bf16.mxu0 %v3432
        %3593 = vmatpush1.bf16.msra.mxu0 %v3431
        %3594 = vmatprep.subr.bf16.mxu0 %v3436
        %3595 = vmatpush1.bf16.msra.mxu0 %v3435
        %3596 = vmatprep.subr.bf16.mxu0 %v3440
        %3597 = vmatpush1.bf16.msra.mxu0 %v3439
        %3598 = vmatprep.subr.bf16.mxu0 %v3444
        %3599 = vmatpush1.bf16.msra.mxu0 %v3443
        %3600 = vmatprep.subr.bf16.mxu0 %v3448
        %3601 = vmatpush1.bf16.msra.mxu0 %v3447
        %3602 = vmatprep.subr.bf16.mxu0 %v3452
        %3603 = vmatpush1.bf16.msra.mxu0 %v3451
        %3604 = vmatprep.subr.bf16.mxu0 %v3456
        %3605 = vmatpush1.bf16.msra.mxu0 %v3455
        %3606 = vmatprep.subr.bf16.mxu0 %v3460
        %3607 = vmatpush1.bf16.msra.mxu0 %v3459
        %3608 = vmatprep.subr.bf16.mxu0 %v3464
        %3609 = vmatpush1.bf16.msra.mxu0 %v3463
        %3610 = vmatprep.subr.bf16.mxu0 %v3468
        %3611 = vmatpush1.bf16.msra.mxu0 %v3467
        %3612 = vmatprep.subr.bf16.mxu0 %v3472
        %3613 = vmatpush1.bf16.msra.mxu0 %v3471
        %3614 = vmatprep.subr.bf16.mxu0 %v3476
        %3615 = vmatpush1.bf16.msra.mxu0 %v3475
        %3616 = vmatprep.subr.bf16.mxu0 %v3480
        %3617 = vmatpush1.bf16.msra.mxu0 %v3479
        %3618 = vmatprep.mubr.bf16.mxu0 %v2694
        %3619 = vmatmul.mubr.bf16.gmra.mrb[0].mxu0 %v2693
        %v3620 = vpop.f32.mrb[0].mxu0
        %v3621 = vadd.f32 %v3219, %v3620
        %v3622 = vpop.f32.mrb[0].mxu0
        %v3623 = vadd.f32 %v3221, %v3622
        %v3624 = vpop.f32.mrb[0].mxu0
        %v3625 = vpop.f32.mrb[0].mxu0
        %3626 = vdwg.mxu0
        %v3627 = vmax.f32 %v3580, 0.0
        %v3628 = vmax.f32 %v3582, 0.0
        %v3629 = vmax.f32 %v3621, 0.0
        %v3630 = vmax.f32 %v3623, 0.0
        %v3631 = vpack.c.bf16 %v3627, %v3627
        %v3632 = vpack.c.bf16 %v3628, %v3628
        %v3633 = vpack.c.bf16 %v3629, %v3629
        %v3634 = vpack.c.bf16 %v3630, %v3630
        %v3635 = vld [vmem:[#allocation14] sm:$0xff]
        %v3636 = vld [vmem:[#allocation14 + $0x8] sm:$0xff]
        %v3637 = vld [vmem:[#allocation14 + $0x10] sm:$0xff]
        %v3638 = vld [vmem:[#allocation14 + $0x18] sm:$0xff]
        %v3639 = vld [vmem:[#allocation14 + $0x20] sm:$0xff]
        %v3640 = vld [vmem:[#allocation14 + $0x28] sm:$0xff]
        %v3641 = vld [vmem:[#allocation14 + $0x30] sm:$0xff]
        %v3642 = vld [vmem:[#allocation14 + $0x38] sm:$0xff]
        %v3643 = vld [vmem:[#allocation14 + $0x40] sm:$0xff]
        %v3644 = vld [vmem:[#allocation14 + $0x48] sm:$0xff]
        %v3645 = vld [vmem:[#allocation14 + $0x50] sm:$0xff]
        %v3646 = vld [vmem:[#allocation14 + $0x58] sm:$0xff]
        %v3647 = vld [vmem:[#allocation14 + $0x60] sm:$0xff]
        %v3648 = vld [vmem:[#allocation14 + $0x68] sm:$0xff]
        %v3649 = vld [vmem:[#allocation14 + $0x70] sm:$0xff]
        %v3650 = vld [vmem:[#allocation14 + $0x78] sm:$0xff]
        %v3651 = vld [vmem:[#allocation14 + $0x80] sm:$0xff]
        %v3652 = vld [vmem:[#allocation14 + $0x88] sm:$0xff]
        %v3653 = vld [vmem:[#allocation14 + $0x90] sm:$0xff]
        %v3654 = vld [vmem:[#allocation14 + $0x98] sm:$0xff]
        %v3655 = vld [vmem:[#allocation14 + $0xa0] sm:$0xff]
        %v3656 = vld [vmem:[#allocation14 + $0xa8] sm:$0xff]
        %v3657 = vld [vmem:[#allocation14 + $0xb0] sm:$0xff]
        %v3658 = vld [vmem:[#allocation14 + $0xb8] sm:$0xff]
        %v3659 = vld [vmem:[#allocation14 + $0xc0] sm:$0xff]
        %v3660 = vld [vmem:[#allocation14 + $0xc8] sm:$0xff]
        %v3661 = vld [vmem:[#allocation14 + $0xd0] sm:$0xff]
        %v3662 = vld [vmem:[#allocation14 + $0xd8] sm:$0xff]
        %v3663 = vld [vmem:[#allocation14 + $0xe0] sm:$0xff]
        %v3664 = vld [vmem:[#allocation14 + $0xe8] sm:$0xff]
        %v3665 = vld [vmem:[#allocation14 + $0xf0] sm:$0xff]
        %v3666 = vld [vmem:[#allocation14 + $0xf8] sm:$0xff]
        %v3667 = vld [vmem:[#allocation14 + $0x100] sm:$0xff]
        %v3668 = vld [vmem:[#allocation14 + $0x108] sm:$0xff]
        %v3669 = vld [vmem:[#allocation14 + $0x110] sm:$0xff]
        %v3670 = vld [vmem:[#allocation14 + $0x118] sm:$0xff]
        %v3671 = vld [vmem:[#allocation14 + $0x120] sm:$0xff]
        %v3672 = vld [vmem:[#allocation14 + $0x128] sm:$0xff]
        %v3673 = vld [vmem:[#allocation14 + $0x130] sm:$0xff]
        %v3674 = vld [vmem:[#allocation14 + $0x138] sm:$0xff]
        %v3675 = vld [vmem:[#allocation14 + $0x140] sm:$0xff]
        %v3676 = vld [vmem:[#allocation14 + $0x148] sm:$0xff]
        %v3677 = vld [vmem:[#allocation14 + $0x150] sm:$0xff]
        %v3678 = vld [vmem:[#allocation14 + $0x158] sm:$0xff]
        %v3679 = vld [vmem:[#allocation14 + $0x160] sm:$0xff]
        %v3680 = vld [vmem:[#allocation14 + $0x168] sm:$0xff]
        %v3681 = vld [vmem:[#allocation14 + $0x170] sm:$0xff]
        %v3682 = vld [vmem:[#allocation14 + $0x178] sm:$0xff]
        %v3683 = vld [vmem:[#allocation14 + $0x180] sm:$0xff]
        %v3684 = vld [vmem:[#allocation14 + $0x188] sm:$0xff]
        %v3685 = vld [vmem:[#allocation14 + $0x190] sm:$0xff]
        %v3686 = vld [vmem:[#allocation14 + $0x198] sm:$0xff]
        %v3687 = vld [vmem:[#allocation14 + $0x1a0] sm:$0xff]
        %v3688 = vld [vmem:[#allocation14 + $0x1a8] sm:$0xff]
        %v3689 = vld [vmem:[#allocation14 + $0x1b0] sm:$0xff]
        %v3690 = vld [vmem:[#allocation14 + $0x1b8] sm:$0xff]
        %v3691 = vld [vmem:[#allocation14 + $0x1c0] sm:$0xff]
        %v3692 = vld [vmem:[#allocation14 + $0x1c8] sm:$0xff]
        %v3693 = vld [vmem:[#allocation14 + $0x1d0] sm:$0xff]
        %v3694 = vld [vmem:[#allocation14 + $0x1d8] sm:$0xff]
        %v3695 = vld [vmem:[#allocation14 + $0x1e0] sm:$0xff]
        %v3696 = vld [vmem:[#allocation14 + $0x1e8] sm:$0xff]
        %v3697 = vld [vmem:[#allocation14 + $0x1f0] sm:$0xff]
        %v3698 = vld [vmem:[#allocation14 + $0x1f8] sm:$0xff]
        %v3699 = vld [vmem:[#allocation14 + $0x200] sm:$0xff]
        %v3700 = vld [vmem:[#allocation14 + $0x208] sm:$0xff]
        %v3701 = vld [vmem:[#allocation14 + $0x210] sm:$0xff]
        %v3702 = vld [vmem:[#allocation14 + $0x218] sm:$0xff]
        %v3703 = vld [vmem:[#allocation14 + $0x220] sm:$0xff]
        %v3704 = vld [vmem:[#allocation14 + $0x228] sm:$0xff]
        %v3705 = vld [vmem:[#allocation14 + $0x230] sm:$0xff]
        %v3706 = vld [vmem:[#allocation14 + $0x238] sm:$0xff]
        %v3707 = vld [vmem:[#allocation14 + $0x240] sm:$0xff]
        %v3708 = vld [vmem:[#allocation14 + $0x248] sm:$0xff]
        %v3709 = vld [vmem:[#allocation14 + $0x250] sm:$0xff]
        %v3710 = vld [vmem:[#allocation14 + $0x258] sm:$0xff]
        %v3711 = vld [vmem:[#allocation14 + $0x260] sm:$0xff]
        %v3712 = vld [vmem:[#allocation14 + $0x268] sm:$0xff]
        %v3713 = vld [vmem:[#allocation14 + $0x270] sm:$0xff]
        %v3714 = vld [vmem:[#allocation14 + $0x278] sm:$0xff]
        %v3715 = vld [vmem:[#allocation14 + $0x280] sm:$0xff]
        %v3716 = vld [vmem:[#allocation14 + $0x288] sm:$0xff]
        %v3717 = vld [vmem:[#allocation14 + $0x290] sm:$0xff]
        %v3718 = vld [vmem:[#allocation14 + $0x298] sm:$0xff]
        %v3719 = vld [vmem:[#allocation14 + $0x2a0] sm:$0xff]
        %v3720 = vld [vmem:[#allocation14 + $0x2a8] sm:$0xff]
        %v3721 = vld [vmem:[#allocation14 + $0x2b0] sm:$0xff]
        %v3722 = vld [vmem:[#allocation14 + $0x2b8] sm:$0xff]
        %v3723 = vld [vmem:[#allocation14 + $0x2c0] sm:$0xff]
        %v3724 = vld [vmem:[#allocation14 + $0x2c8] sm:$0xff]
        %v3725 = vld [vmem:[#allocation14 + $0x2d0] sm:$0xff]
        %v3726 = vld [vmem:[#allocation14 + $0x2d8] sm:$0xff]
        %v3727 = vld [vmem:[#allocation14 + $0x2e0] sm:$0xff]
        %v3728 = vld [vmem:[#allocation14 + $0x2e8] sm:$0xff]
        %v3729 = vld [vmem:[#allocation14 + $0x2f0] sm:$0xff]
        %v3730 = vld [vmem:[#allocation14 + $0x2f8] sm:$0xff]
        %v3731 = vld [vmem:[#allocation14 + $0x300] sm:$0xff]
        %v3732 = vld [vmem:[#allocation14 + $0x308] sm:$0xff]
        %v3733 = vld [vmem:[#allocation14 + $0x310] sm:$0xff]
        %v3734 = vld [vmem:[#allocation14 + $0x318] sm:$0xff]
        %v3735 = vld [vmem:[#allocation14 + $0x320] sm:$0xff]
        %v3736 = vld [vmem:[#allocation14 + $0x328] sm:$0xff]
        %v3737 = vld [vmem:[#allocation14 + $0x330] sm:$0xff]
        %v3738 = vld [vmem:[#allocation14 + $0x338] sm:$0xff]
        %v3739 = vld [vmem:[#allocation14 + $0x340] sm:$0xff]
        %v3740 = vld [vmem:[#allocation14 + $0x348] sm:$0xff]
        %v3741 = vld [vmem:[#allocation14 + $0x350] sm:$0xff]
        %v3742 = vld [vmem:[#allocation14 + $0x358] sm:$0xff]
        %v3743 = vld [vmem:[#allocation14 + $0x360] sm:$0xff]
        %v3744 = vld [vmem:[#allocation14 + $0x368] sm:$0xff]
        %v3745 = vld [vmem:[#allocation14 + $0x370] sm:$0xff]
        %v3746 = vld [vmem:[#allocation14 + $0x378] sm:$0xff]
        %v3747 = vld [vmem:[#allocation14 + $0x380] sm:$0xff]
        %v3748 = vld [vmem:[#allocation14 + $0x388] sm:$0xff]
        %v3749 = vld [vmem:[#allocation14 + $0x390] sm:$0xff]
        %v3750 = vld [vmem:[#allocation14 + $0x398] sm:$0xff]
        %v3751 = vld [vmem:[#allocation14 + $0x3a0] sm:$0xff]
        %v3752 = vld [vmem:[#allocation14 + $0x3a8] sm:$0xff]
        %v3753 = vld [vmem:[#allocation14 + $0x3b0] sm:$0xff]
        %v3754 = vld [vmem:[#allocation14 + $0x3b8] sm:$0xff]
        %v3755 = vld [vmem:[#allocation14 + $0x3c0] sm:$0xff]
        %v3756 = vld [vmem:[#allocation14 + $0x3c8] sm:$0xff]
        %v3757 = vld [vmem:[#allocation14 + $0x3d0] sm:$0xff]
        %v3758 = vld [vmem:[#allocation14 + $0x3d8] sm:$0xff]
        %v3759 = vld [vmem:[#allocation14 + $0x3e0] sm:$0xff]
        %v3760 = vld [vmem:[#allocation14 + $0x3e8] sm:$0xff]
        %v3761 = vld [vmem:[#allocation14 + $0x3f0] sm:$0xff]
        %v3762 = vld [vmem:[#allocation14 + $0x3f8] sm:$0xff]
        %v3763 = vld [vmem:[#allocation14 + $0x400] sm:$0xff]
        %v3764 = vld [vmem:[#allocation14 + $0x408] sm:$0xff]
        %v3765 = vld [vmem:[#allocation14 + $0x410] sm:$0xff]
        %v3766 = vld [vmem:[#allocation14 + $0x418] sm:$0xff]
        %v3767 = vld [vmem:[#allocation14 + $0x420] sm:$0xff]
        %v3768 = vld [vmem:[#allocation14 + $0x428] sm:$0xff]
        %v3769 = vld [vmem:[#allocation14 + $0x430] sm:$0xff]
        %v3770 = vld [vmem:[#allocation14 + $0x438] sm:$0xff]
        %v3771 = vld [vmem:[#allocation14 + $0x440] sm:$0xff]
        %v3772 = vld [vmem:[#allocation14 + $0x448] sm:$0xff]
        %v3773 = vld [vmem:[#allocation14 + $0x450] sm:$0xff]
        %v3774 = vld [vmem:[#allocation14 + $0x458] sm:$0xff]
        %v3775 = vld [vmem:[#allocation14 + $0x460] sm:$0xff]
        %v3776 = vld [vmem:[#allocation14 + $0x468] sm:$0xff]
        %v3777 = vld [vmem:[#allocation14 + $0x470] sm:$0xff]
        %v3778 = vld [vmem:[#allocation14 + $0x478] sm:$0xff]
        %v3779 = vld [vmem:[#allocation14 + $0x480] sm:$0xff]
        %v3780 = vld [vmem:[#allocation14 + $0x488] sm:$0xff]
        %v3781 = vld [vmem:[#allocation14 + $0x490] sm:$0xff]
        %v3782 = vld [vmem:[#allocation14 + $0x498] sm:$0xff]
        %v3783 = vld [vmem:[#allocation14 + $0x4a0] sm:$0xff]
        %v3784 = vld [vmem:[#allocation14 + $0x4a8] sm:$0xff]
        %v3785 = vld [vmem:[#allocation14 + $0x4b0] sm:$0xff]
        %v3786 = vld [vmem:[#allocation14 + $0x4b8] sm:$0xff]
        %v3787 = vld [vmem:[#allocation14 + $0x4c0] sm:$0xff]
        %v3788 = vld [vmem:[#allocation14 + $0x4c8] sm:$0xff]
        %v3789 = vld [vmem:[#allocation14 + $0x4d0] sm:$0xff]
        %v3790 = vld [vmem:[#allocation14 + $0x4d8] sm:$0xff]
        %v3791 = vld [vmem:[#allocation14 + $0x4e0] sm:$0xff]
        %v3792 = vld [vmem:[#allocation14 + $0x4e8] sm:$0xff]
        %v3793 = vld [vmem:[#allocation14 + $0x4f0] sm:$0xff]
        %v3794 = vld [vmem:[#allocation14 + $0x4f8] sm:$0xff]
        %v3795 = vld [vmem:[#allocation14 + $0x500] sm:$0xff]
        %v3796 = vld [vmem:[#allocation14 + $0x508] sm:$0xff]
        %v3797 = vld [vmem:[#allocation14 + $0x510] sm:$0xff]
        %v3798 = vld [vmem:[#allocation14 + $0x518] sm:$0xff]
        %v3799 = vld [vmem:[#allocation14 + $0x520] sm:$0xff]
        %v3800 = vld [vmem:[#allocation14 + $0x528] sm:$0xff]
        %v3801 = vld [vmem:[#allocation14 + $0x530] sm:$0xff]
        %v3802 = vld [vmem:[#allocation14 + $0x538] sm:$0xff]
        %v3803 = vld [vmem:[#allocation14 + $0x540] sm:$0xff]
        %v3804 = vld [vmem:[#allocation14 + $0x548] sm:$0xff]
        %v3805 = vld [vmem:[#allocation14 + $0x550] sm:$0xff]
        %v3806 = vld [vmem:[#allocation14 + $0x558] sm:$0xff]
        %v3807 = vld [vmem:[#allocation14 + $0x560] sm:$0xff]
        %v3808 = vld [vmem:[#allocation14 + $0x568] sm:$0xff]
        %v3809 = vld [vmem:[#allocation14 + $0x570] sm:$0xff]
        %v3810 = vld [vmem:[#allocation14 + $0x578] sm:$0xff]
        %v3811 = vld [vmem:[#allocation14 + $0x580] sm:$0xff]
        %v3812 = vld [vmem:[#allocation14 + $0x588] sm:$0xff]
        %v3813 = vld [vmem:[#allocation14 + $0x590] sm:$0xff]
        %v3814 = vld [vmem:[#allocation14 + $0x598] sm:$0xff]
        %v3815 = vld [vmem:[#allocation14 + $0x5a0] sm:$0xff]
        %v3816 = vld [vmem:[#allocation14 + $0x5a8] sm:$0xff]
        %v3817 = vld [vmem:[#allocation14 + $0x5b0] sm:$0xff]
        %v3818 = vld [vmem:[#allocation14 + $0x5b8] sm:$0xff]
        %v3819 = vld [vmem:[#allocation14 + $0x5c0] sm:$0xff]
        %v3820 = vld [vmem:[#allocation14 + $0x5c8] sm:$0xff]
        %v3821 = vld [vmem:[#allocation14 + $0x5d0] sm:$0xff]
        %v3822 = vld [vmem:[#allocation14 + $0x5d8] sm:$0xff]
        %v3823 = vld [vmem:[#allocation14 + $0x5e0] sm:$0xff]
        %v3824 = vld [vmem:[#allocation14 + $0x5e8] sm:$0xff]
        %v3825 = vld [vmem:[#allocation14 + $0x5f0] sm:$0xff]
        %v3826 = vld [vmem:[#allocation14 + $0x5f8] sm:$0xff]
        %v3827 = vld [vmem:[#allocation16] sm:$0xff]
        %v3828 = vld [vmem:[#allocation16 + $0x8] sm:$0xff]
        %v3829 = vld [vmem:[#allocation16 + $0x10] sm:$0xff]
        %v3830 = vld [vmem:[#allocation16 + $0x18] sm:$0xff]
        %v3831 = vld [vmem:[#allocation16 + $0x20] sm:$0xff]
        %v3832 = vld [vmem:[#allocation16 + $0x28] sm:$0xff]
        %v3833 = vld [vmem:[#allocation16 + $0x30] sm:$0xff]
        %v3834 = vld [vmem:[#allocation16 + $0x38] sm:$0xff]
        %v3835 = vld [vmem:[#allocation16 + $0x40] sm:$0xff]
        %v3836 = vld [vmem:[#allocation16 + $0x48] sm:$0xff]
        %v3837 = vld [vmem:[#allocation16 + $0x50] sm:$0xff]
        %v3838 = vld [vmem:[#allocation16 + $0x58] sm:$0xff]
        %v3839 = vld [vmem:[#allocation16 + $0x60] sm:$0xff]
        %v3840 = vld [vmem:[#allocation16 + $0x68] sm:$0xff]
        %v3841 = vld [vmem:[#allocation16 + $0x70] sm:$0xff]
        %v3842 = vld [vmem:[#allocation16 + $0x78] sm:$0xff]
        %v3843 = vld [vmem:[#allocation16 + $0x80] sm:$0xff]
        %v3844 = vld [vmem:[#allocation16 + $0x88] sm:$0xff]
        %v3845 = vld [vmem:[#allocation16 + $0x90] sm:$0xff]
        %v3846 = vld [vmem:[#allocation16 + $0x98] sm:$0xff]
        %v3847 = vld [vmem:[#allocation16 + $0xa0] sm:$0xff]
        %v3848 = vld [vmem:[#allocation16 + $0xa8] sm:$0xff]
        %v3849 = vld [vmem:[#allocation16 + $0xb0] sm:$0xff]
        %v3850 = vld [vmem:[#allocation16 + $0xb8] sm:$0xff]
        %v3851 = vld [vmem:[#allocation16 + $0xc0] sm:$0xff]
        %v3852 = vld [vmem:[#allocation16 + $0xc8] sm:$0xff]
        %v3853 = vld [vmem:[#allocation16 + $0xd0] sm:$0xff]
        %v3854 = vld [vmem:[#allocation16 + $0xd8] sm:$0xff]
        %v3855 = vld [vmem:[#allocation16 + $0xe0] sm:$0xff]
        %v3856 = vld [vmem:[#allocation16 + $0xe8] sm:$0xff]
        %v3857 = vld [vmem:[#allocation16 + $0xf0] sm:$0xff]
        %v3858 = vld [vmem:[#allocation16 + $0xf8] sm:$0xff]
        %v3859 = vld [vmem:[#allocation16 + $0x100] sm:$0xff]
        %v3860 = vld [vmem:[#allocation16 + $0x108] sm:$0xff]
        %v3861 = vld [vmem:[#allocation16 + $0x110] sm:$0xff]
        %v3862 = vld [vmem:[#allocation16 + $0x118] sm:$0xff]
        %v3863 = vld [vmem:[#allocation16 + $0x120] sm:$0xff]
        %v3864 = vld [vmem:[#allocation16 + $0x128] sm:$0xff]
        %v3865 = vld [vmem:[#allocation16 + $0x130] sm:$0xff]
        %v3866 = vld [vmem:[#allocation16 + $0x138] sm:$0xff]
        %v3867 = vld [vmem:[#allocation16 + $0x140] sm:$0xff]
        %v3868 = vld [vmem:[#allocation16 + $0x148] sm:$0xff]
        %v3869 = vld [vmem:[#allocation16 + $0x150] sm:$0xff]
        %v3870 = vld [vmem:[#allocation16 + $0x158] sm:$0xff]
        %v3871 = vld [vmem:[#allocation16 + $0x160] sm:$0xff]
        %v3872 = vld [vmem:[#allocation16 + $0x168] sm:$0xff]
        %v3873 = vld [vmem:[#allocation16 + $0x170] sm:$0xff]
        %v3874 = vld [vmem:[#allocation16 + $0x178] sm:$0xff]
        %v3875 = vld [vmem:[#allocation16 + $0x180] sm:$0xff]
        %v3876 = vld [vmem:[#allocation16 + $0x188] sm:$0xff]
        %v3877 = vld [vmem:[#allocation16 + $0x190] sm:$0xff]
        %v3878 = vld [vmem:[#allocation16 + $0x198] sm:$0xff]
        %v3879 = vld [vmem:[#allocation16 + $0x1a0] sm:$0xff]
        %v3880 = vld [vmem:[#allocation16 + $0x1a8] sm:$0xff]
        %v3881 = vld [vmem:[#allocation16 + $0x1b0] sm:$0xff]
        %v3882 = vld [vmem:[#allocation16 + $0x1b8] sm:$0xff]
        %v3883 = vld [vmem:[#allocation16 + $0x1c0] sm:$0xff]
        %v3884 = vld [vmem:[#allocation16 + $0x1c8] sm:$0xff]
        %v3885 = vld [vmem:[#allocation16 + $0x1d0] sm:$0xff]
        %v3886 = vld [vmem:[#allocation16 + $0x1d8] sm:$0xff]
        %v3887 = vld [vmem:[#allocation16 + $0x1e0] sm:$0xff]
        %v3888 = vld [vmem:[#allocation16 + $0x1e8] sm:$0xff]
        %v3889 = vld [vmem:[#allocation16 + $0x1f0] sm:$0xff]
        %v3890 = vld [vmem:[#allocation16 + $0x1f8] sm:$0xff]
        %v3891 = vld [vmem:[#allocation16 + $0x200] sm:$0xff]
        %v3892 = vld [vmem:[#allocation16 + $0x208] sm:$0xff]
        %v3893 = vld [vmem:[#allocation16 + $0x210] sm:$0xff]
        %v3894 = vld [vmem:[#allocation16 + $0x218] sm:$0xff]
        %v3895 = vld [vmem:[#allocation16 + $0x220] sm:$0xff]
        %v3896 = vld [vmem:[#allocation16 + $0x228] sm:$0xff]
        %v3897 = vld [vmem:[#allocation16 + $0x230] sm:$0xff]
        %v3898 = vld [vmem:[#allocation16 + $0x238] sm:$0xff]
        %v3899 = vld [vmem:[#allocation16 + $0x240] sm:$0xff]
        %v3900 = vld [vmem:[#allocation16 + $0x248] sm:$0xff]
        %v3901 = vld [vmem:[#allocation16 + $0x250] sm:$0xff]
        %v3902 = vld [vmem:[#allocation16 + $0x258] sm:$0xff]
        %v3903 = vld [vmem:[#allocation16 + $0x260] sm:$0xff]
        %v3904 = vld [vmem:[#allocation16 + $0x268] sm:$0xff]
        %v3905 = vld [vmem:[#allocation16 + $0x270] sm:$0xff]
        %v3906 = vld [vmem:[#allocation16 + $0x278] sm:$0xff]
        %v3907 = vld [vmem:[#allocation16 + $0x280] sm:$0xff]
        %v3908 = vld [vmem:[#allocation16 + $0x288] sm:$0xff]
        %v3909 = vld [vmem:[#allocation16 + $0x290] sm:$0xff]
        %v3910 = vld [vmem:[#allocation16 + $0x298] sm:$0xff]
        %v3911 = vld [vmem:[#allocation16 + $0x2a0] sm:$0xff]
        %v3912 = vld [vmem:[#allocation16 + $0x2a8] sm:$0xff]
        %v3913 = vld [vmem:[#allocation16 + $0x2b0] sm:$0xff]
        %v3914 = vld [vmem:[#allocation16 + $0x2b8] sm:$0xff]
        %v3915 = vld [vmem:[#allocation16 + $0x2c0] sm:$0xff]
        %v3916 = vld [vmem:[#allocation16 + $0x2c8] sm:$0xff]
        %v3917 = vld [vmem:[#allocation16 + $0x2d0] sm:$0xff]
        %v3918 = vld [vmem:[#allocation16 + $0x2d8] sm:$0xff]
        %v3919 = vld [vmem:[#allocation16 + $0x2e0] sm:$0xff]
        %v3920 = vld [vmem:[#allocation16 + $0x2e8] sm:$0xff]
        %v3921 = vld [vmem:[#allocation16 + $0x2f0] sm:$0xff]
        %v3922 = vld [vmem:[#allocation16 + $0x2f8] sm:$0xff]
        %v3923 = vld [vmem:[#allocation16 + $0x300] sm:$0xff]
        %v3924 = vld [vmem:[#allocation16 + $0x308] sm:$0xff]
        %v3925 = vld [vmem:[#allocation16 + $0x310] sm:$0xff]
        %v3926 = vld [vmem:[#allocation16 + $0x318] sm:$0xff]
        %v3927 = vld [vmem:[#allocation16 + $0x320] sm:$0xff]
        %v3928 = vld [vmem:[#allocation16 + $0x328] sm:$0xff]
        %v3929 = vld [vmem:[#allocation16 + $0x330] sm:$0xff]
        %v3930 = vld [vmem:[#allocation16 + $0x338] sm:$0xff]
        %v3931 = vld [vmem:[#allocation16 + $0x340] sm:$0xff]
        %v3932 = vld [vmem:[#allocation16 + $0x348] sm:$0xff]
        %v3933 = vld [vmem:[#allocation16 + $0x350] sm:$0xff]
        %v3934 = vld [vmem:[#allocation16 + $0x358] sm:$0xff]
        %v3935 = vld [vmem:[#allocation16 + $0x360] sm:$0xff]
        %v3936 = vld [vmem:[#allocation16 + $0x368] sm:$0xff]
        %v3937 = vld [vmem:[#allocation16 + $0x370] sm:$0xff]
        %v3938 = vld [vmem:[#allocation16 + $0x378] sm:$0xff]
        %v3939 = vld [vmem:[#allocation16 + $0x380] sm:$0xff]
        %v3940 = vld [vmem:[#allocation16 + $0x388] sm:$0xff]
        %v3941 = vld [vmem:[#allocation16 + $0x390] sm:$0xff]
        %v3942 = vld [vmem:[#allocation16 + $0x398] sm:$0xff]
        %v3943 = vld [vmem:[#allocation16 + $0x3a0] sm:$0xff]
        %v3944 = vld [vmem:[#allocation16 + $0x3a8] sm:$0xff]
        %v3945 = vld [vmem:[#allocation16 + $0x3b0] sm:$0xff]
        %v3946 = vld [vmem:[#allocation16 + $0x3b8] sm:$0xff]
        %v3947 = vld [vmem:[#allocation16 + $0x3c0] sm:$0xff]
        %v3948 = vld [vmem:[#allocation16 + $0x3c8] sm:$0xff]
        %v3949 = vld [vmem:[#allocation16 + $0x3d0] sm:$0xff]
        %v3950 = vld [vmem:[#allocation16 + $0x3d8] sm:$0xff]
        %v3951 = vld [vmem:[#allocation16 + $0x3e0] sm:$0xff]
        %v3952 = vld [vmem:[#allocation16 + $0x3e8] sm:$0xff]
        %v3953 = vld [vmem:[#allocation16 + $0x3f0] sm:$0xff]
        %v3954 = vld [vmem:[#allocation16 + $0x3f8] sm:$0xff]
        %v3955 = vld [vmem:[#allocation16 + $0x400] sm:$0xff]
        %v3956 = vld [vmem:[#allocation16 + $0x408] sm:$0xff]
        %v3957 = vld [vmem:[#allocation16 + $0x410] sm:$0xff]
        %v3958 = vld [vmem:[#allocation16 + $0x418] sm:$0xff]
        %v3959 = vld [vmem:[#allocation16 + $0x420] sm:$0xff]
        %v3960 = vld [vmem:[#allocation16 + $0x428] sm:$0xff]
        %v3961 = vld [vmem:[#allocation16 + $0x430] sm:$0xff]
        %v3962 = vld [vmem:[#allocation16 + $0x438] sm:$0xff]
        %v3963 = vld [vmem:[#allocation16 + $0x440] sm:$0xff]
        %v3964 = vld [vmem:[#allocation16 + $0x448] sm:$0xff]
        %v3965 = vld [vmem:[#allocation16 + $0x450] sm:$0xff]
        %v3966 = vld [vmem:[#allocation16 + $0x458] sm:$0xff]
        %v3967 = vld [vmem:[#allocation16 + $0x460] sm:$0xff]
        %v3968 = vld [vmem:[#allocation16 + $0x468] sm:$0xff]
        %v3969 = vld [vmem:[#allocation16 + $0x470] sm:$0xff]
        %v3970 = vld [vmem:[#allocation16 + $0x478] sm:$0xff]
        %v3971 = vld [vmem:[#allocation16 + $0x480] sm:$0xff]
        %v3972 = vld [vmem:[#allocation16 + $0x488] sm:$0xff]
        %v3973 = vld [vmem:[#allocation16 + $0x490] sm:$0xff]
        %v3974 = vld [vmem:[#allocation16 + $0x498] sm:$0xff]
        %v3975 = vld [vmem:[#allocation16 + $0x4a0] sm:$0xff]
        %v3976 = vld [vmem:[#allocation16 + $0x4a8] sm:$0xff]
        %v3977 = vld [vmem:[#allocation16 + $0x4b0] sm:$0xff]
        %v3978 = vld [vmem:[#allocation16 + $0x4b8] sm:$0xff]
        %v3979 = vld [vmem:[#allocation16 + $0x4c0] sm:$0xff]
        %v3980 = vld [vmem:[#allocation16 + $0x4c8] sm:$0xff]
        %v3981 = vld [vmem:[#allocation16 + $0x4d0] sm:$0xff]
        %v3982 = vld [vmem:[#allocation16 + $0x4d8] sm:$0xff]
        %v3983 = vld [vmem:[#allocation16 + $0x4e0] sm:$0xff]
        %v3984 = vld [vmem:[#allocation16 + $0x4e8] sm:$0xff]
        %v3985 = vld [vmem:[#allocation16 + $0x4f0] sm:$0xff]
        %v3986 = vld [vmem:[#allocation16 + $0x4f8] sm:$0xff]
        %v3987 = vld [vmem:[#allocation16 + $0x500] sm:$0xff]
        %v3988 = vld [vmem:[#allocation16 + $0x508] sm:$0xff]
        %v3989 = vld [vmem:[#allocation16 + $0x510] sm:$0xff]
        %v3990 = vld [vmem:[#allocation16 + $0x518] sm:$0xff]
        %v3991 = vld [vmem:[#allocation16 + $0x520] sm:$0xff]
        %v3992 = vld [vmem:[#allocation16 + $0x528] sm:$0xff]
        %v3993 = vld [vmem:[#allocation16 + $0x530] sm:$0xff]
        %v3994 = vld [vmem:[#allocation16 + $0x538] sm:$0xff]
        %v3995 = vld [vmem:[#allocation16 + $0x540] sm:$0xff]
        %v3996 = vld [vmem:[#allocation16 + $0x548] sm:$0xff]
        %v3997 = vld [vmem:[#allocation16 + $0x550] sm:$0xff]
        %v3998 = vld [vmem:[#allocation16 + $0x558] sm:$0xff]
        %v3999 = vld [vmem:[#allocation16 + $0x560] sm:$0xff]
        %v4000 = vld [vmem:[#allocation16 + $0x568] sm:$0xff]
        %v4001 = vld [vmem:[#allocation16 + $0x570] sm:$0xff]
        %v4002 = vld [vmem:[#allocation16 + $0x578] sm:$0xff]
        %v4003 = vld [vmem:[#allocation16 + $0x580] sm:$0xff]
        %v4004 = vld [vmem:[#allocation16 + $0x588] sm:$0xff]
        %v4005 = vld [vmem:[#allocation16 + $0x590] sm:$0xff]
        %v4006 = vld [vmem:[#allocation16 + $0x598] sm:$0xff]
        %v4007 = vld [vmem:[#allocation16 + $0x5a0] sm:$0xff]
        %v4008 = vld [vmem:[#allocation16 + $0x5a8] sm:$0xff]
        %v4009 = vld [vmem:[#allocation16 + $0x5b0] sm:$0xff]
        %v4010 = vld [vmem:[#allocation16 + $0x5b8] sm:$0xff]
        %v4011 = vld [vmem:[#allocation16 + $0x5c0] sm:$0xff]
        %v4012 = vld [vmem:[#allocation16 + $0x5c8] sm:$0xff]
        %v4013 = vld [vmem:[#allocation16 + $0x5d0] sm:$0xff]
        %v4014 = vld [vmem:[#allocation16 + $0x5d8] sm:$0xff]
        %v4015 = vld [vmem:[#allocation16 + $0x5e0] sm:$0xff]
        %v4016 = vld [vmem:[#allocation16 + $0x5e8] sm:$0xff]
        %v4017 = vld [vmem:[#allocation16 + $0x5f0] sm:$0xff]
        %v4018 = vld [vmem:[#allocation16 + $0x5f8] sm:$0xff]
        %v4211 = vunpack.c.l.b16 %v3827
        %v4212 = vunpack.c.h.b16 %v3827
        %v4213 = vunpack.c.l.b16 %v3828
        %v4214 = vunpack.c.h.b16 %v3828
        %v4215 = vunpack.c.l.b16 %v3829
        %v4216 = vunpack.c.h.b16 %v3829
        %v4217 = vunpack.c.l.b16 %v3830
        %v4218 = vunpack.c.h.b16 %v3830
        %v4219 = vunpack.c.l.b16 %v3831
        %v4220 = vunpack.c.h.b16 %v3831
        %v4221 = vunpack.c.l.b16 %v3832
        %v4222 = vunpack.c.h.b16 %v3832
        %v4223 = vunpack.c.l.b16 %v3833
        %v4224 = vunpack.c.h.b16 %v3833
        %v4225 = vunpack.c.l.b16 %v3834
        %v4226 = vunpack.c.h.b16 %v3834
        %v4227 = vunpack.c.l.b16 %v3835
        %v4228 = vunpack.c.h.b16 %v3835
        %v4229 = vunpack.c.l.b16 %v3836
        %v4230 = vunpack.c.h.b16 %v3836
        %v4231 = vunpack.c.l.b16 %v3837
        %v4232 = vunpack.c.h.b16 %v3837
        %v4233 = vunpack.c.l.b16 %v3838
        %v4234 = vunpack.c.h.b16 %v3838
        %v4235 = vunpack.c.l.b16 %v3839
        %v4236 = vunpack.c.h.b16 %v3839
        %v4237 = vunpack.c.l.b16 %v3840
        %v4238 = vunpack.c.h.b16 %v3840
        %v4239 = vunpack.c.l.b16 %v3841
        %v4240 = vunpack.c.h.b16 %v3841
        %v4241 = vunpack.c.l.b16 %v3842
        %v4242 = vunpack.c.h.b16 %v3842
        %v4243 = vunpack.c.l.b16 %v3843
        %v4244 = vunpack.c.h.b16 %v3843
        %v4245 = vunpack.c.l.b16 %v3844
        %v4246 = vunpack.c.h.b16 %v3844
        %v4247 = vunpack.c.l.b16 %v3845
        %v4248 = vunpack.c.h.b16 %v3845
        %v4249 = vunpack.c.l.b16 %v3846
        %v4250 = vunpack.c.h.b16 %v3846
        %v4251 = vunpack.c.l.b16 %v3847
        %v4252 = vunpack.c.h.b16 %v3847
        %v4253 = vunpack.c.l.b16 %v3848
        %v4254 = vunpack.c.h.b16 %v3848
        %v4255 = vunpack.c.l.b16 %v3849
        %v4256 = vunpack.c.h.b16 %v3849
        %v4257 = vunpack.c.l.b16 %v3850
        %v4258 = vunpack.c.h.b16 %v3850
        %v4259 = vunpack.c.l.b16 %v3851
        %v4260 = vunpack.c.h.b16 %v3851
        %v4261 = vunpack.c.l.b16 %v3852
        %v4262 = vunpack.c.h.b16 %v3852
        %v4263 = vunpack.c.l.b16 %v3853
        %v4264 = vunpack.c.h.b16 %v3853
        %v4265 = vunpack.c.l.b16 %v3854
        %v4266 = vunpack.c.h.b16 %v3854
        %v4267 = vunpack.c.l.b16 %v3855
        %v4268 = vunpack.c.h.b16 %v3855
        %v4269 = vunpack.c.l.b16 %v3856
        %v4270 = vunpack.c.h.b16 %v3856
        %v4271 = vunpack.c.l.b16 %v3857
        %v4272 = vunpack.c.h.b16 %v3857
        %v4273 = vunpack.c.l.b16 %v3858
        %v4274 = vunpack.c.h.b16 %v3858
        %v4275 = vunpack.c.l.b16 %v3859
        %v4276 = vunpack.c.h.b16 %v3859
        %v4277 = vunpack.c.l.b16 %v3860
        %v4278 = vunpack.c.h.b16 %v3860
        %v4279 = vunpack.c.l.b16 %v3861
        %v4280 = vunpack.c.h.b16 %v3861
        %v4281 = vunpack.c.l.b16 %v3862
        %v4282 = vunpack.c.h.b16 %v3862
        %v4283 = vunpack.c.l.b16 %v3863
        %v4284 = vunpack.c.h.b16 %v3863
        %v4285 = vunpack.c.l.b16 %v3864
        %v4286 = vunpack.c.h.b16 %v3864
        %v4287 = vunpack.c.l.b16 %v3865
        %v4288 = vunpack.c.h.b16 %v3865
        %v4289 = vunpack.c.l.b16 %v3866
        %v4290 = vunpack.c.h.b16 %v3866
        %v4291 = vunpack.c.l.b16 %v3867
        %v4292 = vunpack.c.h.b16 %v3867
        %v4293 = vunpack.c.l.b16 %v3868
        %v4294 = vunpack.c.h.b16 %v3868
        %v4295 = vunpack.c.l.b16 %v3869
        %v4296 = vunpack.c.h.b16 %v3869
        %v4297 = vunpack.c.l.b16 %v3870
        %v4298 = vunpack.c.h.b16 %v3870
        %v4299 = vunpack.c.l.b16 %v3871
        %v4300 = vunpack.c.h.b16 %v3871
        %v4301 = vunpack.c.l.b16 %v3872
        %v4302 = vunpack.c.h.b16 %v3872
        %v4303 = vunpack.c.l.b16 %v3873
        %v4304 = vunpack.c.h.b16 %v3873
        %v4305 = vunpack.c.l.b16 %v3874
        %v4306 = vunpack.c.h.b16 %v3874
        %v4307 = vunpack.c.l.b16 %v3875
        %v4308 = vunpack.c.h.b16 %v3875
        %v4309 = vunpack.c.l.b16 %v3876
        %v4310 = vunpack.c.h.b16 %v3876
        %v4311 = vunpack.c.l.b16 %v3877
        %v4312 = vunpack.c.h.b16 %v3877
        %v4313 = vunpack.c.l.b16 %v3878
        %v4314 = vunpack.c.h.b16 %v3878
        %v4315 = vunpack.c.l.b16 %v3879
        %v4316 = vunpack.c.h.b16 %v3879
        %v4317 = vunpack.c.l.b16 %v3880
        %v4318 = vunpack.c.h.b16 %v3880
        %v4319 = vunpack.c.l.b16 %v3881
        %v4320 = vunpack.c.h.b16 %v3881
        %v4321 = vunpack.c.l.b16 %v3882
        %v4322 = vunpack.c.h.b16 %v3882
        %v4323 = vunpack.c.l.b16 %v3883
        %v4324 = vunpack.c.h.b16 %v3883
        %v4325 = vunpack.c.l.b16 %v3884
        %v4326 = vunpack.c.h.b16 %v3884
        %v4327 = vunpack.c.l.b16 %v3885
        %v4328 = vunpack.c.h.b16 %v3885
        %v4329 = vunpack.c.l.b16 %v3886
        %v4330 = vunpack.c.h.b16 %v3886
        %v4331 = vunpack.c.l.b16 %v3887
        %v4332 = vunpack.c.h.b16 %v3887
        %v4333 = vunpack.c.l.b16 %v3888
        %v4334 = vunpack.c.h.b16 %v3888
        %v4335 = vunpack.c.l.b16 %v3889
        %v4336 = vunpack.c.h.b16 %v3889
        %v4337 = vunpack.c.l.b16 %v3890
        %v4338 = vunpack.c.h.b16 %v3890
        %v4339 = vunpack.c.l.b16 %v3891
        %v4340 = vunpack.c.h.b16 %v3891
        %v4341 = vunpack.c.l.b16 %v3892
        %v4342 = vunpack.c.h.b16 %v3892
        %v4343 = vunpack.c.l.b16 %v3893
        %v4344 = vunpack.c.h.b16 %v3893
        %v4345 = vunpack.c.l.b16 %v3894
        %v4346 = vunpack.c.h.b16 %v3894
        %v4347 = vunpack.c.l.b16 %v3895
        %v4348 = vunpack.c.h.b16 %v3895
        %v4349 = vunpack.c.l.b16 %v3896
        %v4350 = vunpack.c.h.b16 %v3896
        %v4351 = vunpack.c.l.b16 %v3897
        %v4352 = vunpack.c.h.b16 %v3897
        %v4353 = vunpack.c.l.b16 %v3898
        %v4354 = vunpack.c.h.b16 %v3898
        %v4355 = vunpack.c.l.b16 %v3899
        %v4356 = vunpack.c.h.b16 %v3899
        %v4357 = vunpack.c.l.b16 %v3900
        %v4358 = vunpack.c.h.b16 %v3900
        %v4359 = vunpack.c.l.b16 %v3901
        %v4360 = vunpack.c.h.b16 %v3901
        %v4361 = vunpack.c.l.b16 %v3902
        %v4362 = vunpack.c.h.b16 %v3902
        %v4363 = vunpack.c.l.b16 %v3903
        %v4364 = vunpack.c.h.b16 %v3903
        %v4365 = vunpack.c.l.b16 %v3904
        %v4366 = vunpack.c.h.b16 %v3904
        %v4367 = vunpack.c.l.b16 %v3905
        %v4368 = vunpack.c.h.b16 %v3905
        %v4369 = vunpack.c.l.b16 %v3906
        %v4370 = vunpack.c.h.b16 %v3906
        %v4371 = vunpack.c.l.b16 %v3907
        %v4372 = vunpack.c.h.b16 %v3907
        %v4373 = vunpack.c.l.b16 %v3908
        %v4374 = vunpack.c.h.b16 %v3908
        %v4375 = vunpack.c.l.b16 %v3909
        %v4376 = vunpack.c.h.b16 %v3909
        %v4377 = vunpack.c.l.b16 %v3910
        %v4378 = vunpack.c.h.b16 %v3910
        %v4379 = vunpack.c.l.b16 %v3911
        %v4380 = vunpack.c.h.b16 %v3911
        %v4381 = vunpack.c.l.b16 %v3912
        %v4382 = vunpack.c.h.b16 %v3912
        %v4383 = vunpack.c.l.b16 %v3913
        %v4384 = vunpack.c.h.b16 %v3913
        %v4385 = vunpack.c.l.b16 %v3914
        %v4386 = vunpack.c.h.b16 %v3914
        %v4387 = vunpack.c.l.b16 %v3915
        %v4388 = vunpack.c.h.b16 %v3915
        %v4389 = vunpack.c.l.b16 %v3916
        %v4390 = vunpack.c.h.b16 %v3916
        %v4391 = vunpack.c.l.b16 %v3917
        %v4392 = vunpack.c.h.b16 %v3917
        %v4393 = vunpack.c.l.b16 %v3918
        %v4394 = vunpack.c.h.b16 %v3918
        %v4395 = vunpack.c.l.b16 %v3919
        %v4396 = vunpack.c.h.b16 %v3919
        %v4397 = vunpack.c.l.b16 %v3920
        %v4398 = vunpack.c.h.b16 %v3920
        %v4399 = vunpack.c.l.b16 %v3921
        %v4400 = vunpack.c.h.b16 %v3921
        %v4401 = vunpack.c.l.b16 %v3922
        %v4402 = vunpack.c.h.b16 %v3922
        %v4403 = vunpack.c.l.b16 %v3923
        %v4404 = vunpack.c.h.b16 %v3923
        %v4405 = vunpack.c.l.b16 %v3924
        %v4406 = vunpack.c.h.b16 %v3924
        %v4407 = vunpack.c.l.b16 %v3925
        %v4408 = vunpack.c.h.b16 %v3925
        %v4409 = vunpack.c.l.b16 %v3926
        %v4410 = vunpack.c.h.b16 %v3926
        %v4411 = vunpack.c.l.b16 %v3927
        %v4412 = vunpack.c.h.b16 %v3927
        %v4413 = vunpack.c.l.b16 %v3928
        %v4414 = vunpack.c.h.b16 %v3928
        %v4415 = vunpack.c.l.b16 %v3929
        %v4416 = vunpack.c.h.b16 %v3929
        %v4417 = vunpack.c.l.b16 %v3930
        %v4418 = vunpack.c.h.b16 %v3930
        %v4419 = vunpack.c.l.b16 %v3931
        %v4420 = vunpack.c.h.b16 %v3931
        %v4421 = vunpack.c.l.b16 %v3932
        %v4422 = vunpack.c.h.b16 %v3932
        %v4423 = vunpack.c.l.b16 %v3933
        %v4424 = vunpack.c.h.b16 %v3933
        %v4425 = vunpack.c.l.b16 %v3934
        %v4426 = vunpack.c.h.b16 %v3934
        %v4427 = vunpack.c.l.b16 %v3935
        %v4428 = vunpack.c.h.b16 %v3935
        %v4429 = vunpack.c.l.b16 %v3936
        %v4430 = vunpack.c.h.b16 %v3936
        %v4431 = vunpack.c.l.b16 %v3937
        %v4432 = vunpack.c.h.b16 %v3937
        %v4433 = vunpack.c.l.b16 %v3938
        %v4434 = vunpack.c.h.b16 %v3938
        %v4435 = vunpack.c.l.b16 %v3939
        %v4436 = vunpack.c.h.b16 %v3939
        %v4437 = vunpack.c.l.b16 %v3940
        %v4438 = vunpack.c.h.b16 %v3940
        %v4439 = vunpack.c.l.b16 %v3941
        %v4440 = vunpack.c.h.b16 %v3941
        %v4441 = vunpack.c.l.b16 %v3942
        %v4442 = vunpack.c.h.b16 %v3942
        %v4443 = vunpack.c.l.b16 %v3943
        %v4444 = vunpack.c.h.b16 %v3943
        %v4445 = vunpack.c.l.b16 %v3944
        %v4446 = vunpack.c.h.b16 %v3944
        %v4447 = vunpack.c.l.b16 %v3945
        %v4448 = vunpack.c.h.b16 %v3945
        %v4449 = vunpack.c.l.b16 %v3946
        %v4450 = vunpack.c.h.b16 %v3946
        %v4451 = vunpack.c.l.b16 %v3947
        %v4452 = vunpack.c.h.b16 %v3947
        %v4453 = vunpack.c.l.b16 %v3948
        %v4454 = vunpack.c.h.b16 %v3948
        %v4455 = vunpack.c.l.b16 %v3949
        %v4456 = vunpack.c.h.b16 %v3949
        %v4457 = vunpack.c.l.b16 %v3950
        %v4458 = vunpack.c.h.b16 %v3950
        %v4459 = vunpack.c.l.b16 %v3951
        %v4460 = vunpack.c.h.b16 %v3951
        %v4461 = vunpack.c.l.b16 %v3952
        %v4462 = vunpack.c.h.b16 %v3952
        %v4463 = vunpack.c.l.b16 %v3953
        %v4464 = vunpack.c.h.b16 %v3953
        %v4465 = vunpack.c.l.b16 %v3954
        %v4466 = vunpack.c.h.b16 %v3954
        %v4467 = vunpack.c.l.b16 %v3955
        %v4468 = vunpack.c.h.b16 %v3955
        %v4469 = vunpack.c.l.b16 %v3956
        %v4470 = vunpack.c.h.b16 %v3956
        %v4471 = vunpack.c.l.b16 %v3957
        %v4472 = vunpack.c.h.b16 %v3957
        %v4473 = vunpack.c.l.b16 %v3958
        %v4474 = vunpack.c.h.b16 %v3958
        %v4475 = vunpack.c.l.b16 %v3959
        %v4476 = vunpack.c.h.b16 %v3959
        %v4477 = vunpack.c.l.b16 %v3960
        %v4478 = vunpack.c.h.b16 %v3960
        %v4479 = vunpack.c.l.b16 %v3961
        %v4480 = vunpack.c.h.b16 %v3961
        %v4481 = vunpack.c.l.b16 %v3962
        %v4482 = vunpack.c.h.b16 %v3962
        %v4483 = vunpack.c.l.b16 %v3963
        %v4484 = vunpack.c.h.b16 %v3963
        %v4485 = vunpack.c.l.b16 %v3964
        %v4486 = vunpack.c.h.b16 %v3964
        %v4487 = vunpack.c.l.b16 %v3965
        %v4488 = vunpack.c.h.b16 %v3965
        %v4489 = vunpack.c.l.b16 %v3966
        %v4490 = vunpack.c.h.b16 %v3966
        %v4491 = vunpack.c.l.b16 %v3967
        %v4492 = vunpack.c.h.b16 %v3967
        %v4493 = vunpack.c.l.b16 %v3968
        %v4494 = vunpack.c.h.b16 %v3968
        %v4495 = vunpack.c.l.b16 %v3969
        %v4496 = vunpack.c.h.b16 %v3969
        %v4497 = vunpack.c.l.b16 %v3970
        %v4498 = vunpack.c.h.b16 %v3970
        %v4499 = vunpack.c.l.b16 %v3971
        %v4500 = vunpack.c.h.b16 %v3971
        %v4501 = vunpack.c.l.b16 %v3972
        %v4502 = vunpack.c.h.b16 %v3972
        %v4503 = vunpack.c.l.b16 %v3973
        %v4504 = vunpack.c.h.b16 %v3973
        %v4505 = vunpack.c.l.b16 %v3974
        %v4506 = vunpack.c.h.b16 %v3974
        %v4507 = vunpack.c.l.b16 %v3975
        %v4508 = vunpack.c.h.b16 %v3975
        %v4509 = vunpack.c.l.b16 %v3976
        %v4510 = vunpack.c.h.b16 %v3976
        %v4511 = vunpack.c.l.b16 %v3977
        %v4512 = vunpack.c.h.b16 %v3977
        %v4513 = vunpack.c.l.b16 %v3978
        %v4514 = vunpack.c.h.b16 %v3978
        %v4515 = vunpack.c.l.b16 %v3979
        %v4516 = vunpack.c.h.b16 %v3979
        %v4517 = vunpack.c.l.b16 %v3980
        %v4518 = vunpack.c.h.b16 %v3980
        %v4519 = vunpack.c.l.b16 %v3981
        %v4520 = vunpack.c.h.b16 %v3981
        %v4521 = vunpack.c.l.b16 %v3982
        %v4522 = vunpack.c.h.b16 %v3982
        %v4523 = vunpack.c.l.b16 %v3983
        %v4524 = vunpack.c.h.b16 %v3983
        %v4525 = vunpack.c.l.b16 %v3984
        %v4526 = vunpack.c.h.b16 %v3984
        %v4527 = vunpack.c.l.b16 %v3985
        %v4528 = vunpack.c.h.b16 %v3985
        %v4529 = vunpack.c.l.b16 %v3986
        %v4530 = vunpack.c.h.b16 %v3986
        %v4531 = vunpack.c.l.b16 %v3987
        %v4532 = vunpack.c.h.b16 %v3987
        %v4533 = vunpack.c.l.b16 %v3988
        %v4534 = vunpack.c.h.b16 %v3988
        %v4535 = vunpack.c.l.b16 %v3989
        %v4536 = vunpack.c.h.b16 %v3989
        %v4537 = vunpack.c.l.b16 %v3990
        %v4538 = vunpack.c.h.b16 %v3990
        %v4539 = vunpack.c.l.b16 %v3991
        %v4540 = vunpack.c.h.b16 %v3991
        %v4541 = vunpack.c.l.b16 %v3992
        %v4542 = vunpack.c.h.b16 %v3992
        %v4543 = vunpack.c.l.b16 %v3993
        %v4544 = vunpack.c.h.b16 %v3993
        %v4545 = vunpack.c.l.b16 %v3994
        %v4546 = vunpack.c.h.b16 %v3994
        %v4547 = vunpack.c.l.b16 %v3995
        %v4548 = vunpack.c.h.b16 %v3995
        %v4549 = vunpack.c.l.b16 %v3996
        %v4550 = vunpack.c.h.b16 %v3996
        %v4551 = vunpack.c.l.b16 %v3997
        %v4552 = vunpack.c.h.b16 %v3997
        %v4553 = vunpack.c.l.b16 %v3998
        %v4554 = vunpack.c.h.b16 %v3998
        %v4555 = vunpack.c.l.b16 %v3999
        %v4556 = vunpack.c.h.b16 %v3999
        %v4557 = vunpack.c.l.b16 %v4000
        %v4558 = vunpack.c.h.b16 %v4000
        %v4559 = vunpack.c.l.b16 %v4001
        %v4560 = vunpack.c.h.b16 %v4001
        %v4561 = vunpack.c.l.b16 %v4002
        %v4562 = vunpack.c.h.b16 %v4002
        %v4563 = vunpack.c.l.b16 %v4003
        %v4564 = vunpack.c.h.b16 %v4003
        %v4565 = vunpack.c.l.b16 %v4004
        %v4566 = vunpack.c.h.b16 %v4004
        %v4567 = vunpack.c.l.b16 %v4005
        %v4568 = vunpack.c.h.b16 %v4005
        %v4569 = vunpack.c.l.b16 %v4006
        %v4570 = vunpack.c.h.b16 %v4006
        %v4571 = vunpack.c.l.b16 %v4007
        %v4572 = vunpack.c.h.b16 %v4007
        %v4573 = vunpack.c.l.b16 %v4008
        %v4574 = vunpack.c.h.b16 %v4008
        %v4575 = vunpack.c.l.b16 %v4009
        %v4576 = vunpack.c.h.b16 %v4009
        %v4577 = vunpack.c.l.b16 %v4010
        %v4578 = vunpack.c.h.b16 %v4010
        %v4579 = vunpack.c.l.b16 %v4011
        %v4580 = vunpack.c.h.b16 %v4011
        %v4581 = vunpack.c.l.b16 %v4012
        %v4582 = vunpack.c.h.b16 %v4012
        %v4583 = vunpack.c.l.b16 %v4013
        %v4584 = vunpack.c.h.b16 %v4013
        %v4585 = vunpack.c.l.b16 %v4014
        %v4586 = vunpack.c.h.b16 %v4014
        %v4587 = vunpack.c.l.b16 %v4015
        %v4588 = vunpack.c.h.b16 %v4015
        %v4589 = vunpack.c.l.b16 %v4016
        %v4590 = vunpack.c.h.b16 %v4016
        %v4591 = vunpack.c.l.b16 %v4017
        %v4592 = vunpack.c.h.b16 %v4017
        %v4593 = vunpack.c.l.b16 %v4018
        %v4594 = vunpack.c.h.b16 %v4018
        %v4595 = vpack.c.b16 %v4217, %v4211
        %v4596 = vpack.c.b16 %v4218, %v4212
        %v4597 = vpack.c.b16 %v4219, %v4213
        %v4598 = vpack.c.b16 %v4220, %v4214
        %v4599 = vpack.c.b16 %v4221, %v4215
        %v4600 = vpack.c.b16 %v4222, %v4216
        %v4601 = vpack.c.b16 %v4229, %v4223
        %v4602 = vpack.c.b16 %v4230, %v4224
        %v4603 = vpack.c.b16 %v4231, %v4225
        %v4604 = vpack.c.b16 %v4232, %v4226
        %v4605 = vpack.c.b16 %v4233, %v4227
        %v4606 = vpack.c.b16 %v4234, %v4228
        %v4607 = vpack.c.b16 %v4241, %v4235
        %v4608 = vpack.c.b16 %v4242, %v4236
        %v4609 = vpack.c.b16 %v4243, %v4237
        %v4610 = vpack.c.b16 %v4244, %v4238
        %v4611 = vpack.c.b16 %v4245, %v4239
        %v4612 = vpack.c.b16 %v4246, %v4240
        %v4613 = vpack.c.b16 %v4253, %v4247
        %v4614 = vpack.c.b16 %v4254, %v4248
        %v4615 = vpack.c.b16 %v4255, %v4249
        %v4616 = vpack.c.b16 %v4256, %v4250
        %v4617 = vpack.c.b16 %v4257, %v4251
        %v4618 = vpack.c.b16 %v4258, %v4252
        %v4619 = vpack.c.b16 %v4265, %v4259
        %v4620 = vpack.c.b16 %v4266, %v4260
        %v4621 = vpack.c.b16 %v4267, %v4261
        %v4622 = vpack.c.b16 %v4268, %v4262
        %v4623 = vpack.c.b16 %v4269, %v4263
        %v4624 = vpack.c.b16 %v4270, %v4264
        %v4625 = vpack.c.b16 %v4277, %v4271
        %v4626 = vpack.c.b16 %v4278, %v4272
        %v4627 = vpack.c.b16 %v4279, %v4273
        %v4628 = vpack.c.b16 %v4280, %v4274
        %v4629 = vpack.c.b16 %v4281, %v4275
        %v4630 = vpack.c.b16 %v4282, %v4276
        %v4631 = vpack.c.b16 %v4289, %v4283
        %v4632 = vpack.c.b16 %v4290, %v4284
        %v4633 = vpack.c.b16 %v4291, %v4285
        %v4634 = vpack.c.b16 %v4292, %v4286
        %v4635 = vpack.c.b16 %v4293, %v4287
        %v4636 = vpack.c.b16 %v4294, %v4288
        %v4637 = vpack.c.b16 %v4301, %v4295
        %v4638 = vpack.c.b16 %v4302, %v4296
        %v4639 = vpack.c.b16 %v4303, %v4297
        %v4640 = vpack.c.b16 %v4304, %v4298
        %v4641 = vpack.c.b16 %v4305, %v4299
        %v4642 = vpack.c.b16 %v4306, %v4300
        %v4643 = vpack.c.b16 %v4313, %v4307
        %v4644 = vpack.c.b16 %v4314, %v4308
        %v4645 = vpack.c.b16 %v4315, %v4309
        %v4646 = vpack.c.b16 %v4316, %v4310
        %v4647 = vpack.c.b16 %v4317, %v4311
        %v4648 = vpack.c.b16 %v4318, %v4312
        %v4649 = vpack.c.b16 %v4325, %v4319
        %v4650 = vpack.c.b16 %v4326, %v4320
        %v4651 = vpack.c.b16 %v4327, %v4321
        %v4652 = vpack.c.b16 %v4328, %v4322
        %v4653 = vpack.c.b16 %v4329, %v4323
        %v4654 = vpack.c.b16 %v4330, %v4324
        %v4655 = vpack.c.b16 %v4337, %v4331
        %v4656 = vpack.c.b16 %v4338, %v4332
        %v4657 = vpack.c.b16 %v4339, %v4333
        %v4658 = vpack.c.b16 %v4340, %v4334
        %v4659 = vpack.c.b16 %v4341, %v4335
        %v4660 = vpack.c.b16 %v4342, %v4336
        %v4661 = vpack.c.b16 %v4349, %v4343
        %v4662 = vpack.c.b16 %v4350, %v4344
        %v4663 = vpack.c.b16 %v4351, %v4345
        %v4664 = vpack.c.b16 %v4352, %v4346
        %v4665 = vpack.c.b16 %v4353, %v4347
        %v4666 = vpack.c.b16 %v4354, %v4348
        %v4667 = vpack.c.b16 %v4361, %v4355
        %v4668 = vpack.c.b16 %v4362, %v4356
        %v4669 = vpack.c.b16 %v4363, %v4357
        %v4670 = vpack.c.b16 %v4364, %v4358
        %v4671 = vpack.c.b16 %v4365, %v4359
        %v4672 = vpack.c.b16 %v4366, %v4360
        %v4673 = vpack.c.b16 %v4373, %v4367
        %v4674 = vpack.c.b16 %v4374, %v4368
        %v4675 = vpack.c.b16 %v4375, %v4369
        %v4676 = vpack.c.b16 %v4376, %v4370
        %v4677 = vpack.c.b16 %v4377, %v4371
        %v4678 = vpack.c.b16 %v4378, %v4372
        %v4679 = vpack.c.b16 %v4385, %v4379
        %v4680 = vpack.c.b16 %v4386, %v4380
        %v4681 = vpack.c.b16 %v4387, %v4381
        %v4682 = vpack.c.b16 %v4388, %v4382
        %v4683 = vpack.c.b16 %v4389, %v4383
        %v4684 = vpack.c.b16 %v4390, %v4384
        %v4685 = vpack.c.b16 %v4397, %v4391
        %v4686 = vpack.c.b16 %v4398, %v4392
        %v4687 = vpack.c.b16 %v4399, %v4393
        %v4688 = vpack.c.b16 %v4400, %v4394
        %v4689 = vpack.c.b16 %v4401, %v4395
        %v4690 = vpack.c.b16 %v4402, %v4396
        %v4691 = vpack.c.b16 %v4409, %v4403
        %v4692 = vpack.c.b16 %v4410, %v4404
        %v4693 = vpack.c.b16 %v4411, %v4405
        %v4694 = vpack.c.b16 %v4412, %v4406
        %v4695 = vpack.c.b16 %v4413, %v4407
        %v4696 = vpack.c.b16 %v4414, %v4408
        %v4697 = vpack.c.b16 %v4421, %v4415
        %v4698 = vpack.c.b16 %v4422, %v4416
        %v4699 = vpack.c.b16 %v4423, %v4417
        %v4700 = vpack.c.b16 %v4424, %v4418
        %v4701 = vpack.c.b16 %v4425, %v4419
        %v4702 = vpack.c.b16 %v4426, %v4420
        %v4703 = vpack.c.b16 %v4433, %v4427
        %v4704 = vpack.c.b16 %v4434, %v4428
        %v4705 = vpack.c.b16 %v4435, %v4429
        %v4706 = vpack.c.b16 %v4436, %v4430
        %v4707 = vpack.c.b16 %v4437, %v4431
        %v4708 = vpack.c.b16 %v4438, %v4432
        %v4709 = vpack.c.b16 %v4445, %v4439
        %v4710 = vpack.c.b16 %v4446, %v4440
        %v4711 = vpack.c.b16 %v4447, %v4441
        %v4712 = vpack.c.b16 %v4448, %v4442
        %v4713 = vpack.c.b16 %v4449, %v4443
        %v4714 = vpack.c.b16 %v4450, %v4444
        %v4715 = vpack.c.b16 %v4457, %v4451
        %v4716 = vpack.c.b16 %v4458, %v4452
        %v4717 = vpack.c.b16 %v4459, %v4453
        %v4718 = vpack.c.b16 %v4460, %v4454
        %v4719 = vpack.c.b16 %v4461, %v4455
        %v4720 = vpack.c.b16 %v4462, %v4456
        %v4721 = vpack.c.b16 %v4469, %v4463
        %v4722 = vpack.c.b16 %v4470, %v4464
        %v4723 = vpack.c.b16 %v4471, %v4465
        %v4724 = vpack.c.b16 %v4472, %v4466
        %v4725 = vpack.c.b16 %v4473, %v4467
        %v4726 = vpack.c.b16 %v4474, %v4468
        %v4727 = vpack.c.b16 %v4481, %v4475
        %v4728 = vpack.c.b16 %v4482, %v4476
        %v4729 = vpack.c.b16 %v4483, %v4477
        %v4730 = vpack.c.b16 %v4484, %v4478
        %v4731 = vpack.c.b16 %v4485, %v4479
        %v4732 = vpack.c.b16 %v4486, %v4480
        %v4733 = vpack.c.b16 %v4493, %v4487
        %v4734 = vpack.c.b16 %v4494, %v4488
        %v4735 = vpack.c.b16 %v4495, %v4489
        %v4736 = vpack.c.b16 %v4496, %v4490
        %v4737 = vpack.c.b16 %v4497, %v4491
        %v4738 = vpack.c.b16 %v4498, %v4492
        %v4739 = vpack.c.b16 %v4505, %v4499
        %v4740 = vpack.c.b16 %v4506, %v4500
        %v4741 = vpack.c.b16 %v4507, %v4501
        %v4742 = vpack.c.b16 %v4508, %v4502
        %v4743 = vpack.c.b16 %v4509, %v4503
        %v4744 = vpack.c.b16 %v4510, %v4504
        %v4745 = vpack.c.b16 %v4517, %v4511
        %v4746 = vpack.c.b16 %v4518, %v4512
        %v4747 = vpack.c.b16 %v4519, %v4513
        %v4748 = vpack.c.b16 %v4520, %v4514
        %v4749 = vpack.c.b16 %v4521, %v4515
        %v4750 = vpack.c.b16 %v4522, %v4516
        %v4751 = vpack.c.b16 %v4529, %v4523
        %v4752 = vpack.c.b16 %v4530, %v4524
        %v4753 = vpack.c.b16 %v4531, %v4525
        %v4754 = vpack.c.b16 %v4532, %v4526
        %v4755 = vpack.c.b16 %v4533, %v4527
        %v4756 = vpack.c.b16 %v4534, %v4528
        %v4757 = vpack.c.b16 %v4541, %v4535
        %v4758 = vpack.c.b16 %v4542, %v4536
        %v4759 = vpack.c.b16 %v4543, %v4537
        %v4760 = vpack.c.b16 %v4544, %v4538
        %v4761 = vpack.c.b16 %v4545, %v4539
        %v4762 = vpack.c.b16 %v4546, %v4540
        %v4763 = vpack.c.b16 %v4553, %v4547
        %v4764 = vpack.c.b16 %v4554, %v4548
        %v4765 = vpack.c.b16 %v4555, %v4549
        %v4766 = vpack.c.b16 %v4556, %v4550
        %v4767 = vpack.c.b16 %v4557, %v4551
        %v4768 = vpack.c.b16 %v4558, %v4552
        %v4769 = vpack.c.b16 %v4565, %v4559
        %v4770 = vpack.c.b16 %v4566, %v4560
        %v4771 = vpack.c.b16 %v4567, %v4561
        %v4772 = vpack.c.b16 %v4568, %v4562
        %v4773 = vpack.c.b16 %v4569, %v4563
        %v4774 = vpack.c.b16 %v4570, %v4564
        %v4775 = vpack.c.b16 %v4577, %v4571
        %v4776 = vpack.c.b16 %v4578, %v4572
        %v4777 = vpack.c.b16 %v4579, %v4573
        %v4778 = vpack.c.b16 %v4580, %v4574
        %v4779 = vpack.c.b16 %v4581, %v4575
        %v4780 = vpack.c.b16 %v4582, %v4576
        %v4781 = vpack.c.b16 %v4589, %v4583
        %v4782 = vpack.c.b16 %v4590, %v4584
        %v4783 = vpack.c.b16 %v4591, %v4585
        %v4784 = vpack.c.b16 %v4592, %v4586
        %v4785 = vpack.c.b16 %v4593, %v4587
        %v4786 = vpack.c.b16 %v4594, %v4588
        %4979 = vmatprep.subr.bf16.mxu0 %v4596
        %4980 = vmatpush1.bf16.msra.mxu0 %v4595
        %4981 = vmatprep.subr.bf16.mxu0 %v4602
        %4982 = vmatpush1.bf16.msra.mxu0 %v4601
        %4983 = vmatprep.subr.bf16.mxu0 %v4608
        %4984 = vmatpush1.bf16.msra.mxu0 %v4607
        %4985 = vmatprep.subr.bf16.mxu0 %v4614
        %4986 = vmatpush1.bf16.msra.mxu0 %v4613
        %4987 = vmatprep.subr.bf16.mxu0 %v4620
        %4988 = vmatpush1.bf16.msra.mxu0 %v4619
        %4989 = vmatprep.subr.bf16.mxu0 %v4626
        %4990 = vmatpush1.bf16.msra.mxu0 %v4625
        %4991 = vmatprep.subr.bf16.mxu0 %v4632
        %4992 = vmatpush1.bf16.msra.mxu0 %v4631
        %4993 = vmatprep.subr.bf16.mxu0 %v4638
        %4994 = vmatpush1.bf16.msra.mxu0 %v4637
        %4995 = vmatprep.subr.bf16.mxu0 %v4644
        %4996 = vmatpush1.bf16.msra.mxu0 %v4643
        %4997 = vmatprep.subr.bf16.mxu0 %v4650
        %4998 = vmatpush1.bf16.msra.mxu0 %v4649
        %4999 = vmatprep.subr.bf16.mxu0 %v4656
        %5000 = vmatpush1.bf16.msra.mxu0 %v4655
        %5001 = vmatprep.subr.bf16.mxu0 %v4662
        %5002 = vmatpush1.bf16.msra.mxu0 %v4661
        %5003 = vmatprep.subr.bf16.mxu0 %v4668
        %5004 = vmatpush1.bf16.msra.mxu0 %v4667
        %5005 = vmatprep.subr.bf16.mxu0 %v4674
        %5006 = vmatpush1.bf16.msra.mxu0 %v4673
        %5007 = vmatprep.subr.bf16.mxu0 %v4680
        %5008 = vmatpush1.bf16.msra.mxu0 %v4679
        %5009 = vmatprep.subr.bf16.mxu0 %v4686
        %5010 = vmatpush1.bf16.msra.mxu0 %v4685
        %5011 = vmatprep.mubr.bf16.mxu0 %v1893
        %5012 = vmatmul.mubr.bf16.gmra.mrb[0].mxu0 %v1892
        %v5013 = vpop.f32.mrb[0].mxu0
        %v5014 = vadd.f32 0.0, %v5013
        %v5015 = vpop.f32.mrb[0].mxu0
        %v5016 = vadd.f32 0.0, %v5015
        %v5017 = vpop.f32.mrb[0].mxu0
        %v5018 = vpop.f32.mrb[0].mxu0
        %5019 = vdwg.mxu0
        %5020 = vmatprep.subr.bf16.mxu0 %v4692
        %5021 = vmatpush1.bf16.msra.mxu0 %v4691
        %5022 = vmatprep.subr.bf16.mxu0 %v4698
        %5023 = vmatpush1.bf16.msra.mxu0 %v4697
        %5024 = vmatprep.subr.bf16.mxu0 %v4704
        %5025 = vmatpush1.bf16.msra.mxu0 %v4703
        %5026 = vmatprep.subr.bf16.mxu0 %v4710
        %5027 = vmatpush1.bf16.msra.mxu0 %v4709
        %5028 = vmatprep.subr.bf16.mxu0 %v4716
        %5029 = vmatpush1.bf16.msra.mxu0 %v4715
        %5030 = vmatprep.subr.bf16.mxu0 %v4722
        %5031 = vmatpush1.bf16.msra.mxu0 %v4721
        %5032 = vmatprep.subr.bf16.mxu0 %v4728
        %5033 = vmatpush1.bf16.msra.mxu0 %v4727
        %5034 = vmatprep.subr.bf16.mxu0 %v4734
        %5035 = vmatpush1.bf16.msra.mxu0 %v4733
        %5036 = vmatprep.subr.bf16.mxu0 %v4740
        %5037 = vmatpush1.bf16.msra.mxu0 %v4739
        %5038 = vmatprep.subr.bf16.mxu0 %v4746
        %5039 = vmatpush1.bf16.msra.mxu0 %v4745
        %5040 = vmatprep.subr.bf16.mxu0 %v4752
        %5041 = vmatpush1.bf16.msra.mxu0 %v4751
        %5042 = vmatprep.subr.bf16.mxu0 %v4758
        %5043 = vmatpush1.bf16.msra.mxu0 %v4757
        %5044 = vmatprep.subr.bf16.mxu0 %v4764
        %5045 = vmatpush1.bf16.msra.mxu0 %v4763
        %5046 = vmatprep.subr.bf16.mxu0 %v4770
        %5047 = vmatpush1.bf16.msra.mxu0 %v4769
        %5048 = vmatprep.subr.bf16.mxu0 %v4776
        %5049 = vmatpush1.bf16.msra.mxu0 %v4775
        %5050 = vmatprep.subr.bf16.mxu0 %v4782
        %5051 = vmatpush1.bf16.msra.mxu0 %v4781
        %5052 = vmatprep.mubr.bf16.mxu0 %v1895
        %5053 = vmatmul.mubr.bf16.gmra.mrb[0].mxu0 %v1894
        %v5054 = vpop.f32.mrb[0].mxu0
        %v5055 = vadd.f32 %v5014, %v5054
        %v5056 = vpop.f32.mrb[0].mxu0
        %v5057 = vadd.f32 %v5016, %v5056
        %v5058 = vpop.f32.mrb[0].mxu0
        %v5059 = vpop.f32.mrb[0].mxu0
        %5060 = vdwg.mxu0
        %5061 = vmatprep.subr.bf16.mxu0 %v4598
        %5062 = vmatpush1.bf16.msra.mxu0 %v4597
        %5063 = vmatprep.subr.bf16.mxu0 %v4604
        %5064 = vmatpush1.bf16.msra.mxu0 %v4603
        %5065 = vmatprep.subr.bf16.mxu0 %v4610
        %5066 = vmatpush1.bf16.msra.mxu0 %v4609
        %5067 = vmatprep.subr.bf16.mxu0 %v4616
        %5068 = vmatpush1.bf16.msra.mxu0 %v4615
        %5069 = vmatprep.subr.bf16.mxu0 %v4622
        %5070 = vmatpush1.bf16.msra.mxu0 %v4621
        %5071 = vmatprep.subr.bf16.mxu0 %v4628
        %5072 = vmatpush1.bf16.msra.mxu0 %v4627
        %5073 = vmatprep.subr.bf16.mxu0 %v4634
        %5074 = vmatpush1.bf16.msra.mxu0 %v4633
        %5075 = vmatprep.subr.bf16.mxu0 %v4640
        %5076 = vmatpush1.bf16.msra.mxu0 %v4639
        %5077 = vmatprep.subr.bf16.mxu0 %v4646
        %5078 = vmatpush1.bf16.msra.mxu0 %v4645
        %5079 = vmatprep.subr.bf16.mxu0 %v4652
        %5080 = vmatpush1.bf16.msra.mxu0 %v4651
        %5081 = vmatprep.subr.bf16.mxu0 %v4658
        %5082 = vmatpush1.bf16.msra.mxu0 %v4657
        %5083 = vmatprep.subr.bf16.mxu0 %v4664
        %5084 = vmatpush1.bf16.msra.mxu0 %v4663
        %5085 = vmatprep.subr.bf16.mxu0 %v4670
        %5086 = vmatpush1.bf16.msra.mxu0 %v4669
        %5087 = vmatprep.subr.bf16.mxu0 %v4676
        %5088 = vmatpush1.bf16.msra.mxu0 %v4675
        %5089 = vmatprep.subr.bf16.mxu0 %v4682
        %5090 = vmatpush1.bf16.msra.mxu0 %v4681
        %5091 = vmatprep.subr.bf16.mxu0 %v4688
        %5092 = vmatpush1.bf16.msra.mxu0 %v4687
        %5093 = vmatprep.mubr.bf16.mxu0 %v1893
        %5094 = vmatmul.mubr.bf16.gmra.mrb[0].mxu0 %v1892
        %v5095 = vpop.f32.mrb[0].mxu0
        %v5096 = vadd.f32 0.0, %v5095
        %v5097 = vpop.f32.mrb[0].mxu0
        %v5098 = vadd.f32 0.0, %v5097
        %v5099 = vpop.f32.mrb[0].mxu0
        %v5100 = vpop.f32.mrb[0].mxu0
        %5101 = vdwg.mxu0
        %5102 = vmatprep.subr.bf16.mxu0 %v4694
        %5103 = vmatpush1.bf16.msra.mxu0 %v4693
        %5104 = vmatprep.subr.bf16.mxu0 %v4700
        %5105 = vmatpush1.bf16.msra.mxu0 %v4699
        %5106 = vmatprep.subr.bf16.mxu0 %v4706
        %5107 = vmatpush1.bf16.msra.mxu0 %v4705
        %5108 = vmatprep.subr.bf16.mxu0 %v4712
        %5109 = vmatpush1.bf16.msra.mxu0 %v4711
        %5110 = vmatprep.subr.bf16.mxu0 %v4718
        %5111 = vmatpush1.bf16.msra.mxu0 %v4717
        %5112 = vmatprep.subr.bf16.mxu0 %v4724
        %5113 = vmatpush1.bf16.msra.mxu0 %v4723
        %5114 = vmatprep.subr.bf16.mxu0 %v4730
        %5115 = vmatpush1.bf16.msra.mxu0 %v4729
        %5116 = vmatprep.subr.bf16.mxu0 %v4736
        %5117 = vmatpush1.bf16.msra.mxu0 %v4735
        %5118 = vmatprep.subr.bf16.mxu0 %v4742
        %5119 = vmatpush1.bf16.msra.mxu0 %v4741
        %5120 = vmatprep.subr.bf16.mxu0 %v4748
        %5121 = vmatpush1.bf16.msra.mxu0 %v4747
        %5122 = vmatprep.subr.bf16.mxu0 %v4754
        %5123 = vmatpush1.bf16.msra.mxu0 %v4753
        %5124 = vmatprep.subr.bf16.mxu0 %v4760
        %5125 = vmatpush1.bf16.msra.mxu0 %v4759
        %5126 = vmatprep.subr.bf16.mxu0 %v4766
        %5127 = vmatpush1.bf16.msra.mxu0 %v4765
        %5128 = vmatprep.subr.bf16.mxu0 %v4772
        %5129 = vmatpush1.bf16.msra.mxu0 %v4771
        %5130 = vmatprep.subr.bf16.mxu0 %v4778
        %5131 = vmatpush1.bf16.msra.mxu0 %v4777
        %5132 = vmatprep.subr.bf16.mxu0 %v4784
        %5133 = vmatpush1.bf16.msra.mxu0 %v4783
        %5134 = vmatprep.mubr.bf16.mxu0 %v1895
        %5135 = vmatmul.mubr.bf16.gmra.mrb[0].mxu0 %v1894
        %v5136 = vpop.f32.mrb[0].mxu0
        %v5137 = vadd.f32 %v5096, %v5136
        %v5138 = vpop.f32.mrb[0].mxu0
        %v5139 = vadd.f32 %v5098, %v5138
        %v5140 = vpop.f32.mrb[0].mxu0
        %v5141 = vpop.f32.mrb[0].mxu0
        %5142 = vdwg.mxu0
        %5143 = vmatprep.subr.bf16.mxu0 %v4600
        %5144 = vmatpush1.bf16.msra.mxu0 %v4599
        %5145 = vmatprep.subr.bf16.mxu0 %v4606
        %5146 = vmatpush1.bf16.msra.mxu0 %v4605
        %5147 = vmatprep.subr.bf16.mxu0 %v4612
        %5148 = vmatpush1.bf16.msra.mxu0 %v4611
        %5149 = vmatprep.subr.bf16.mxu0 %v4618
        %5150 = vmatpush1.bf16.msra.mxu0 %v4617
        %5151 = vmatprep.subr.bf16.mxu0 %v4624
        %5152 = vmatpush1.bf16.msra.mxu0 %v4623
        %5153 = vmatprep.subr.bf16.mxu0 %v4630
        %5154 = vmatpush1.bf16.msra.mxu0 %v4629
        %5155 = vmatprep.subr.bf16.mxu0 %v4636
        %5156 = vmatpush1.bf16.msra.mxu0 %v4635
        %5157 = vmatprep.subr.bf16.mxu0 %v4642
        %5158 = vmatpush1.bf16.msra.mxu0 %v4641
        %5159 = vmatprep.subr.bf16.mxu0 %v4648
        %5160 = vmatpush1.bf16.msra.mxu0 %v4647
        %5161 = vmatprep.subr.bf16.mxu0 %v4654
        %5162 = vmatpush1.bf16.msra.mxu0 %v4653
        %5163 = vmatprep.subr.bf16.mxu0 %v4660
        %5164 = vmatpush1.bf16.msra.mxu0 %v4659
        %5165 = vmatprep.subr.bf16.mxu0 %v4666
        %5166 = vmatpush1.bf16.msra.mxu0 %v4665
        %5167 = vmatprep.subr.bf16.mxu0 %v4672
        %5168 = vmatpush1.bf16.msra.mxu0 %v4671
        %5169 = vmatprep.subr.bf16.mxu0 %v4678
        %5170 = vmatpush1.bf16.msra.mxu0 %v4677
        %5171 = vmatprep.subr.bf16.mxu0 %v4684
        %5172 = vmatpush1.bf16.msra.mxu0 %v4683
        %5173 = vmatprep.subr.bf16.mxu0 %v4690
        %5174 = vmatpush1.bf16.msra.mxu0 %v4689
        %5175 = vmatprep.mubr.bf16.mxu0 %v1893
        %5176 = vmatmul.mubr.bf16.gmra.mrb[0].mxu0 %v1892
        %v5177 = vpop.f32.mrb[0].mxu0
        %v5178 = vadd.f32 0.0, %v5177
        %v5179 = vpop.f32.mrb[0].mxu0
        %v5180 = vadd.f32 0.0, %v5179
        %v5181 = vpop.f32.mrb[0].mxu0
        %v5182 = vpop.f32.mrb[0].mxu0
        %5183 = vdwg.mxu0
        %5184 = vmatprep.subr.bf16.mxu0 %v4696
        %5185 = vmatpush1.bf16.msra.mxu0 %v4695
        %5186 = vmatprep.subr.bf16.mxu0 %v4702
        %5187 = vmatpush1.bf16.msra.mxu0 %v4701
        %5188 = vmatprep.subr.bf16.mxu0 %v4708
        %5189 = vmatpush1.bf16.msra.mxu0 %v4707
        %5190 = vmatprep.subr.bf16.mxu0 %v4714
        %5191 = vmatpush1.bf16.msra.mxu0 %v4713
        %5192 = vmatprep.subr.bf16.mxu0 %v4720
        %5193 = vmatpush1.bf16.msra.mxu0 %v4719
        %5194 = vmatprep.subr.bf16.mxu0 %v4726
        %5195 = vmatpush1.bf16.msra.mxu0 %v4725
        %5196 = vmatprep.subr.bf16.mxu0 %v4732
        %5197 = vmatpush1.bf16.msra.mxu0 %v4731
        %5198 = vmatprep.subr.bf16.mxu0 %v4738
        %5199 = vmatpush1.bf16.msra.mxu0 %v4737
        %5200 = vmatprep.subr.bf16.mxu0 %v4744
        %5201 = vmatpush1.bf16.msra.mxu0 %v4743
        %5202 = vmatprep.subr.bf16.mxu0 %v4750
        %5203 = vmatpush1.bf16.msra.mxu0 %v4749
        %5204 = vmatprep.subr.bf16.mxu0 %v4756
        %5205 = vmatpush1.bf16.msra.mxu0 %v4755
        %5206 = vmatprep.subr.bf16.mxu0 %v4762
        %5207 = vmatpush1.bf16.msra.mxu0 %v4761
        %5208 = vmatprep.subr.bf16.mxu0 %v4768
        %5209 = vmatpush1.bf16.msra.mxu0 %v4767
        %5210 = vmatprep.subr.bf16.mxu0 %v4774
        %5211 = vmatpush1.bf16.msra.mxu0 %v4773
        %5212 = vmatprep.subr.bf16.mxu0 %v4780
        %5213 = vmatpush1.bf16.msra.mxu0 %v4779
        %5214 = vmatprep.subr.bf16.mxu0 %v4786
        %5215 = vmatpush1.bf16.msra.mxu0 %v4785
        %5216 = vmatprep.mubr.bf16.mxu0 %v1895
        %5217 = vmatmul.mubr.bf16.gmra.mrb[0].mxu0 %v1894
        %v5218 = vpop.f32.mrb[0].mxu0
        %v5219 = vadd.f32 %v5178, %v5218
        %v5220 = vpop.f32.mrb[0].mxu0
        %v5221 = vadd.f32 %v5180, %v5220
        %v5222 = vpop.f32.mrb[0].mxu0
        %v5223 = vpop.f32.mrb[0].mxu0
        %5224 = vdwg.mxu0
        %v5417 = vunpack.c.l.b16 %v3635
        %v5418 = vunpack.c.h.b16 %v3635
        %v5419 = vunpack.c.l.b16 %v3636
        %v5420 = vunpack.c.h.b16 %v3636
        %v5421 = vunpack.c.l.b16 %v3637
        %v5422 = vunpack.c.h.b16 %v3637
        %v5423 = vunpack.c.l.b16 %v3638
        %v5424 = vunpack.c.h.b16 %v3638
        %v5425 = vunpack.c.l.b16 %v3639
        %v5426 = vunpack.c.h.b16 %v3639
        %v5427 = vunpack.c.l.b16 %v3640
        %v5428 = vunpack.c.h.b16 %v3640
        %v5429 = vunpack.c.l.b16 %v3641
        %v5430 = vunpack.c.h.b16 %v3641
        %v5431 = vunpack.c.l.b16 %v3642
        %v5432 = vunpack.c.h.b16 %v3642
        %v5433 = vunpack.c.l.b16 %v3643
        %v5434 = vunpack.c.h.b16 %v3643
        %v5435 = vunpack.c.l.b16 %v3644
        %v5436 = vunpack.c.h.b16 %v3644
        %v5437 = vunpack.c.l.b16 %v3645
        %v5438 = vunpack.c.h.b16 %v3645
        %v5439 = vunpack.c.l.b16 %v3646
        %v5440 = vunpack.c.h.b16 %v3646
        %v5441 = vunpack.c.l.b16 %v3647
        %v5442 = vunpack.c.h.b16 %v3647
        %v5443 = vunpack.c.l.b16 %v3648
        %v5444 = vunpack.c.h.b16 %v3648
        %v5445 = vunpack.c.l.b16 %v3649
        %v5446 = vunpack.c.h.b16 %v3649
        %v5447 = vunpack.c.l.b16 %v3650
        %v5448 = vunpack.c.h.b16 %v3650
        %v5449 = vunpack.c.l.b16 %v3651
        %v5450 = vunpack.c.h.b16 %v3651
        %v5451 = vunpack.c.l.b16 %v3652
        %v5452 = vunpack.c.h.b16 %v3652
        %v5453 = vunpack.c.l.b16 %v3653
        %v5454 = vunpack.c.h.b16 %v3653
        %v5455 = vunpack.c.l.b16 %v3654
        %v5456 = vunpack.c.h.b16 %v3654
        %v5457 = vunpack.c.l.b16 %v3655
        %v5458 = vunpack.c.h.b16 %v3655
        %v5459 = vunpack.c.l.b16 %v3656
        %v5460 = vunpack.c.h.b16 %v3656
        %v5461 = vunpack.c.l.b16 %v3657
        %v5462 = vunpack.c.h.b16 %v3657
        %v5463 = vunpack.c.l.b16 %v3658
        %v5464 = vunpack.c.h.b16 %v3658
        %v5465 = vunpack.c.l.b16 %v3659
        %v5466 = vunpack.c.h.b16 %v3659
        %v5467 = vunpack.c.l.b16 %v3660
        %v5468 = vunpack.c.h.b16 %v3660
        %v5469 = vunpack.c.l.b16 %v3661
        %v5470 = vunpack.c.h.b16 %v3661
        %v5471 = vunpack.c.l.b16 %v3662
        %v5472 = vunpack.c.h.b16 %v3662
        %v5473 = vunpack.c.l.b16 %v3663
        %v5474 = vunpack.c.h.b16 %v3663
        %v5475 = vunpack.c.l.b16 %v3664
        %v5476 = vunpack.c.h.b16 %v3664
        %v5477 = vunpack.c.l.b16 %v3665
        %v5478 = vunpack.c.h.b16 %v3665
        %v5479 = vunpack.c.l.b16 %v3666
        %v5480 = vunpack.c.h.b16 %v3666
        %v5481 = vunpack.c.l.b16 %v3667
        %v5482 = vunpack.c.h.b16 %v3667
        %v5483 = vunpack.c.l.b16 %v3668
        %v5484 = vunpack.c.h.b16 %v3668
        %v5485 = vunpack.c.l.b16 %v3669
        %v5486 = vunpack.c.h.b16 %v3669
        %v5487 = vunpack.c.l.b16 %v3670
        %v5488 = vunpack.c.h.b16 %v3670
        %v5489 = vunpack.c.l.b16 %v3671
        %v5490 = vunpack.c.h.b16 %v3671
        %v5491 = vunpack.c.l.b16 %v3672
        %v5492 = vunpack.c.h.b16 %v3672
        %v5493 = vunpack.c.l.b16 %v3673
        %v5494 = vunpack.c.h.b16 %v3673
        %v5495 = vunpack.c.l.b16 %v3674
        %v5496 = vunpack.c.h.b16 %v3674
        %v5497 = vunpack.c.l.b16 %v3675
        %v5498 = vunpack.c.h.b16 %v3675
        %v5499 = vunpack.c.l.b16 %v3676
        %v5500 = vunpack.c.h.b16 %v3676
        %v5501 = vunpack.c.l.b16 %v3677
        %v5502 = vunpack.c.h.b16 %v3677
        %v5503 = vunpack.c.l.b16 %v3678
        %v5504 = vunpack.c.h.b16 %v3678
        %v5505 = vunpack.c.l.b16 %v3679
        %v5506 = vunpack.c.h.b16 %v3679
        %v5507 = vunpack.c.l.b16 %v3680
        %v5508 = vunpack.c.h.b16 %v3680
        %v5509 = vunpack.c.l.b16 %v3681
        %v5510 = vunpack.c.h.b16 %v3681
        %v5511 = vunpack.c.l.b16 %v3682
        %v5512 = vunpack.c.h.b16 %v3682
        %v5513 = vunpack.c.l.b16 %v3683
        %v5514 = vunpack.c.h.b16 %v3683
        %v5515 = vunpack.c.l.b16 %v3684
        %v5516 = vunpack.c.h.b16 %v3684
        %v5517 = vunpack.c.l.b16 %v3685
        %v5518 = vunpack.c.h.b16 %v3685
        %v5519 = vunpack.c.l.b16 %v3686
        %v5520 = vunpack.c.h.b16 %v3686
        %v5521 = vunpack.c.l.b16 %v3687
        %v5522 = vunpack.c.h.b16 %v3687
        %v5523 = vunpack.c.l.b16 %v3688
        %v5524 = vunpack.c.h.b16 %v3688
        %v5525 = vunpack.c.l.b16 %v3689
        %v5526 = vunpack.c.h.b16 %v3689
        %v5527 = vunpack.c.l.b16 %v3690
        %v5528 = vunpack.c.h.b16 %v3690
        %v5529 = vunpack.c.l.b16 %v3691
        %v5530 = vunpack.c.h.b16 %v3691
        %v5531 = vunpack.c.l.b16 %v3692
        %v5532 = vunpack.c.h.b16 %v3692
        %v5533 = vunpack.c.l.b16 %v3693
        %v5534 = vunpack.c.h.b16 %v3693
        %v5535 = vunpack.c.l.b16 %v3694
        %v5536 = vunpack.c.h.b16 %v3694
        %v5537 = vunpack.c.l.b16 %v3695
        %v5538 = vunpack.c.h.b16 %v3695
        %v5539 = vunpack.c.l.b16 %v3696
        %v5540 = vunpack.c.h.b16 %v3696
        %v5541 = vunpack.c.l.b16 %v3697
        %v5542 = vunpack.c.h.b16 %v3697
        %v5543 = vunpack.c.l.b16 %v3698
        %v5544 = vunpack.c.h.b16 %v3698
        %v5545 = vunpack.c.l.b16 %v3699
        %v5546 = vunpack.c.h.b16 %v3699
        %v5547 = vunpack.c.l.b16 %v3700
        %v5548 = vunpack.c.h.b16 %v3700
        %v5549 = vunpack.c.l.b16 %v3701
        %v5550 = vunpack.c.h.b16 %v3701
        %v5551 = vunpack.c.l.b16 %v3702
        %v5552 = vunpack.c.h.b16 %v3702
        %v5553 = vunpack.c.l.b16 %v3703
        %v5554 = vunpack.c.h.b16 %v3703
        %v5555 = vunpack.c.l.b16 %v3704
        %v5556 = vunpack.c.h.b16 %v3704
        %v5557 = vunpack.c.l.b16 %v3705
        %v5558 = vunpack.c.h.b16 %v3705
        %v5559 = vunpack.c.l.b16 %v3706
        %v5560 = vunpack.c.h.b16 %v3706
        %v5561 = vunpack.c.l.b16 %v3707
        %v5562 = vunpack.c.h.b16 %v3707
        %v5563 = vunpack.c.l.b16 %v3708
        %v5564 = vunpack.c.h.b16 %v3708
        %v5565 = vunpack.c.l.b16 %v3709
        %v5566 = vunpack.c.h.b16 %v3709
        %v5567 = vunpack.c.l.b16 %v3710
        %v5568 = vunpack.c.h.b16 %v3710
        %v5569 = vunpack.c.l.b16 %v3711
        %v5570 = vunpack.c.h.b16 %v3711
        %v5571 = vunpack.c.l.b16 %v3712
        %v5572 = vunpack.c.h.b16 %v3712
        %v5573 = vunpack.c.l.b16 %v3713
        %v5574 = vunpack.c.h.b16 %v3713
        %v5575 = vunpack.c.l.b16 %v3714
        %v5576 = vunpack.c.h.b16 %v3714
        %v5577 = vunpack.c.l.b16 %v3715
        %v5578 = vunpack.c.h.b16 %v3715
        %v5579 = vunpack.c.l.b16 %v3716
        %v5580 = vunpack.c.h.b16 %v3716
        %v5581 = vunpack.c.l.b16 %v3717
        %v5582 = vunpack.c.h.b16 %v3717
        %v5583 = vunpack.c.l.b16 %v3718
        %v5584 = vunpack.c.h.b16 %v3718
        %v5585 = vunpack.c.l.b16 %v3719
        %v5586 = vunpack.c.h.b16 %v3719
        %v5587 = vunpack.c.l.b16 %v3720
        %v5588 = vunpack.c.h.b16 %v3720
        %v5589 = vunpack.c.l.b16 %v3721
        %v5590 = vunpack.c.h.b16 %v3721
        %v5591 = vunpack.c.l.b16 %v3722
        %v5592 = vunpack.c.h.b16 %v3722
        %v5593 = vunpack.c.l.b16 %v3723
        %v5594 = vunpack.c.h.b16 %v3723
        %v5595 = vunpack.c.l.b16 %v3724
        %v5596 = vunpack.c.h.b16 %v3724
        %v5597 = vunpack.c.l.b16 %v3725
        %v5598 = vunpack.c.h.b16 %v3725
        %v5599 = vunpack.c.l.b16 %v3726
        %v5600 = vunpack.c.h.b16 %v3726
        %v5601 = vunpack.c.l.b16 %v3727
        %v5602 = vunpack.c.h.b16 %v3727
        %v5603 = vunpack.c.l.b16 %v3728
        %v5604 = vunpack.c.h.b16 %v3728
        %v5605 = vunpack.c.l.b16 %v3729
        %v5606 = vunpack.c.h.b16 %v3729
        %v5607 = vunpack.c.l.b16 %v3730
        %v5608 = vunpack.c.h.b16 %v3730
        %v5609 = vunpack.c.l.b16 %v3731
        %v5610 = vunpack.c.h.b16 %v3731
        %v5611 = vunpack.c.l.b16 %v3732
        %v5612 = vunpack.c.h.b16 %v3732
        %v5613 = vunpack.c.l.b16 %v3733
        %v5614 = vunpack.c.h.b16 %v3733
        %v5615 = vunpack.c.l.b16 %v3734
        %v5616 = vunpack.c.h.b16 %v3734
        %v5617 = vunpack.c.l.b16 %v3735
        %v5618 = vunpack.c.h.b16 %v3735
        %v5619 = vunpack.c.l.b16 %v3736
        %v5620 = vunpack.c.h.b16 %v3736
        %v5621 = vunpack.c.l.b16 %v3737
        %v5622 = vunpack.c.h.b16 %v3737
        %v5623 = vunpack.c.l.b16 %v3738
        %v5624 = vunpack.c.h.b16 %v3738
        %v5625 = vunpack.c.l.b16 %v3739
        %v5626 = vunpack.c.h.b16 %v3739
        %v5627 = vunpack.c.l.b16 %v3740
        %v5628 = vunpack.c.h.b16 %v3740
        %v5629 = vunpack.c.l.b16 %v3741
        %v5630 = vunpack.c.h.b16 %v3741
        %v5631 = vunpack.c.l.b16 %v3742
        %v5632 = vunpack.c.h.b16 %v3742
        %v5633 = vunpack.c.l.b16 %v3743
        %v5634 = vunpack.c.h.b16 %v3743
        %v5635 = vunpack.c.l.b16 %v3744
        %v5636 = vunpack.c.h.b16 %v3744
        %v5637 = vunpack.c.l.b16 %v3745
        %v5638 = vunpack.c.h.b16 %v3745
        %v5639 = vunpack.c.l.b16 %v3746
        %v5640 = vunpack.c.h.b16 %v3746
        %v5641 = vunpack.c.l.b16 %v3747
        %v5642 = vunpack.c.h.b16 %v3747
        %v5643 = vunpack.c.l.b16 %v3748
        %v5644 = vunpack.c.h.b16 %v3748
        %v5645 = vunpack.c.l.b16 %v3749
        %v5646 = vunpack.c.h.b16 %v3749
        %v5647 = vunpack.c.l.b16 %v3750
        %v5648 = vunpack.c.h.b16 %v3750
        %v5649 = vunpack.c.l.b16 %v3751
        %v5650 = vunpack.c.h.b16 %v3751
        %v5651 = vunpack.c.l.b16 %v3752
        %v5652 = vunpack.c.h.b16 %v3752
        %v5653 = vunpack.c.l.b16 %v3753
        %v5654 = vunpack.c.h.b16 %v3753
        %v5655 = vunpack.c.l.b16 %v3754
        %v5656 = vunpack.c.h.b16 %v3754
        %v5657 = vunpack.c.l.b16 %v3755
        %v5658 = vunpack.c.h.b16 %v3755
        %v5659 = vunpack.c.l.b16 %v3756
        %v5660 = vunpack.c.h.b16 %v3756
        %v5661 = vunpack.c.l.b16 %v3757
        %v5662 = vunpack.c.h.b16 %v3757
        %v5663 = vunpack.c.l.b16 %v3758
        %v5664 = vunpack.c.h.b16 %v3758
        %v5665 = vunpack.c.l.b16 %v3759
        %v5666 = vunpack.c.h.b16 %v3759
        %v5667 = vunpack.c.l.b16 %v3760
        %v5668 = vunpack.c.h.b16 %v3760
        %v5669 = vunpack.c.l.b16 %v3761
        %v5670 = vunpack.c.h.b16 %v3761
        %v5671 = vunpack.c.l.b16 %v3762
        %v5672 = vunpack.c.h.b16 %v3762
        %v5673 = vunpack.c.l.b16 %v3763
        %v5674 = vunpack.c.h.b16 %v3763
        %v5675 = vunpack.c.l.b16 %v3764
        %v5676 = vunpack.c.h.b16 %v3764
        %v5677 = vunpack.c.l.b16 %v3765
        %v5678 = vunpack.c.h.b16 %v3765
        %v5679 = vunpack.c.l.b16 %v3766
        %v5680 = vunpack.c.h.b16 %v3766
        %v5681 = vunpack.c.l.b16 %v3767
        %v5682 = vunpack.c.h.b16 %v3767
        %v5683 = vunpack.c.l.b16 %v3768
        %v5684 = vunpack.c.h.b16 %v3768
        %v5685 = vunpack.c.l.b16 %v3769
        %v5686 = vunpack.c.h.b16 %v3769
        %v5687 = vunpack.c.l.b16 %v3770
        %v5688 = vunpack.c.h.b16 %v3770
        %v5689 = vunpack.c.l.b16 %v3771
        %v5690 = vunpack.c.h.b16 %v3771
        %v5691 = vunpack.c.l.b16 %v3772
        %v5692 = vunpack.c.h.b16 %v3772
        %v5693 = vunpack.c.l.b16 %v3773
        %v5694 = vunpack.c.h.b16 %v3773
        %v5695 = vunpack.c.l.b16 %v3774
        %v5696 = vunpack.c.h.b16 %v3774
        %v5697 = vunpack.c.l.b16 %v3775
        %v5698 = vunpack.c.h.b16 %v3775
        %v5699 = vunpack.c.l.b16 %v3776
        %v5700 = vunpack.c.h.b16 %v3776
        %v5701 = vunpack.c.l.b16 %v3777
        %v5702 = vunpack.c.h.b16 %v3777
        %v5703 = vunpack.c.l.b16 %v3778
        %v5704 = vunpack.c.h.b16 %v3778
        %v5705 = vunpack.c.l.b16 %v3779
        %v5706 = vunpack.c.h.b16 %v3779
        %v5707 = vunpack.c.l.b16 %v3780
        %v5708 = vunpack.c.h.b16 %v3780
        %v5709 = vunpack.c.l.b16 %v3781
        %v5710 = vunpack.c.h.b16 %v3781
        %v5711 = vunpack.c.l.b16 %v3782
        %v5712 = vunpack.c.h.b16 %v3782
        %v5713 = vunpack.c.l.b16 %v3783
        %v5714 = vunpack.c.h.b16 %v3783
        %v5715 = vunpack.c.l.b16 %v3784
        %v5716 = vunpack.c.h.b16 %v3784
        %v5717 = vunpack.c.l.b16 %v3785
        %v5718 = vunpack.c.h.b16 %v3785
        %v5719 = vunpack.c.l.b16 %v3786
        %v5720 = vunpack.c.h.b16 %v3786
        %v5721 = vunpack.c.l.b16 %v3787
        %v5722 = vunpack.c.h.b16 %v3787
        %v5723 = vunpack.c.l.b16 %v3788
        %v5724 = vunpack.c.h.b16 %v3788
        %v5725 = vunpack.c.l.b16 %v3789
        %v5726 = vunpack.c.h.b16 %v3789
        %v5727 = vunpack.c.l.b16 %v3790
        %v5728 = vunpack.c.h.b16 %v3790
        %v5729 = vunpack.c.l.b16 %v3791
        %v5730 = vunpack.c.h.b16 %v3791
        %v5731 = vunpack.c.l.b16 %v3792
        %v5732 = vunpack.c.h.b16 %v3792
        %v5733 = vunpack.c.l.b16 %v3793
        %v5734 = vunpack.c.h.b16 %v3793
        %v5735 = vunpack.c.l.b16 %v3794
        %v5736 = vunpack.c.h.b16 %v3794
        %v5737 = vunpack.c.l.b16 %v3795
        %v5738 = vunpack.c.h.b16 %v3795
        %v5739 = vunpack.c.l.b16 %v3796
        %v5740 = vunpack.c.h.b16 %v3796
        %v5741 = vunpack.c.l.b16 %v3797
        %v5742 = vunpack.c.h.b16 %v3797
        %v5743 = vunpack.c.l.b16 %v3798
        %v5744 = vunpack.c.h.b16 %v3798
        %v5745 = vunpack.c.l.b16 %v3799
        %v5746 = vunpack.c.h.b16 %v3799
        %v5747 = vunpack.c.l.b16 %v3800
        %v5748 = vunpack.c.h.b16 %v3800
        %v5749 = vunpack.c.l.b16 %v3801
        %v5750 = vunpack.c.h.b16 %v3801
        %v5751 = vunpack.c.l.b16 %v3802
        %v5752 = vunpack.c.h.b16 %v3802
        %v5753 = vunpack.c.l.b16 %v3803
        %v5754 = vunpack.c.h.b16 %v3803
        %v5755 = vunpack.c.l.b16 %v3804
        %v5756 = vunpack.c.h.b16 %v3804
        %v5757 = vunpack.c.l.b16 %v3805
        %v5758 = vunpack.c.h.b16 %v3805
        %v5759 = vunpack.c.l.b16 %v3806
        %v5760 = vunpack.c.h.b16 %v3806
        %v5761 = vunpack.c.l.b16 %v3807
        %v5762 = vunpack.c.h.b16 %v3807
        %v5763 = vunpack.c.l.b16 %v3808
        %v5764 = vunpack.c.h.b16 %v3808
        %v5765 = vunpack.c.l.b16 %v3809
        %v5766 = vunpack.c.h.b16 %v3809
        %v5767 = vunpack.c.l.b16 %v3810
        %v5768 = vunpack.c.h.b16 %v3810
        %v5769 = vunpack.c.l.b16 %v3811
        %v5770 = vunpack.c.h.b16 %v3811
        %v5771 = vunpack.c.l.b16 %v3812
        %v5772 = vunpack.c.h.b16 %v3812
        %v5773 = vunpack.c.l.b16 %v3813
        %v5774 = vunpack.c.h.b16 %v3813
        %v5775 = vunpack.c.l.b16 %v3814
        %v5776 = vunpack.c.h.b16 %v3814
        %v5777 = vunpack.c.l.b16 %v3815
        %v5778 = vunpack.c.h.b16 %v3815
        %v5779 = vunpack.c.l.b16 %v3816
        %v5780 = vunpack.c.h.b16 %v3816
        %v5781 = vunpack.c.l.b16 %v3817
        %v5782 = vunpack.c.h.b16 %v3817
        %v5783 = vunpack.c.l.b16 %v3818
        %v5784 = vunpack.c.h.b16 %v3818
        %v5785 = vunpack.c.l.b16 %v3819
        %v5786 = vunpack.c.h.b16 %v3819
        %v5787 = vunpack.c.l.b16 %v3820
        %v5788 = vunpack.c.h.b16 %v3820
        %v5789 = vunpack.c.l.b16 %v3821
        %v5790 = vunpack.c.h.b16 %v3821
        %v5791 = vunpack.c.l.b16 %v3822
        %v5792 = vunpack.c.h.b16 %v3822
        %v5793 = vunpack.c.l.b16 %v3823
        %v5794 = vunpack.c.h.b16 %v3823
        %v5795 = vunpack.c.l.b16 %v3824
        %v5796 = vunpack.c.h.b16 %v3824
        %v5797 = vunpack.c.l.b16 %v3825
        %v5798 = vunpack.c.h.b16 %v3825
        %v5799 = vunpack.c.l.b16 %v3826
        %v5800 = vunpack.c.h.b16 %v3826
        %v5801 = vpack.c.b16 %v5423, %v5417
        %v5802 = vpack.c.b16 %v5424, %v5418
        %v5803 = vpack.c.b16 %v5425, %v5419
        %v5804 = vpack.c.b16 %v5426, %v5420
        %v5805 = vpack.c.b16 %v5427, %v5421
        %v5806 = vpack.c.b16 %v5428, %v5422
        %v5807 = vpack.c.b16 %v5435, %v5429
        %v5808 = vpack.c.b16 %v5436, %v5430
        %v5809 = vpack.c.b16 %v5437, %v5431
        %v5810 = vpack.c.b16 %v5438, %v5432
        %v5811 = vpack.c.b16 %v5439, %v5433
        %v5812 = vpack.c.b16 %v5440, %v5434
        %v5813 = vpack.c.b16 %v5447, %v5441
        %v5814 = vpack.c.b16 %v5448, %v5442
        %v5815 = vpack.c.b16 %v5449, %v5443
        %v5816 = vpack.c.b16 %v5450, %v5444
        %v5817 = vpack.c.b16 %v5451, %v5445
        %v5818 = vpack.c.b16 %v5452, %v5446
        %v5819 = vpack.c.b16 %v5459, %v5453
        %v5820 = vpack.c.b16 %v5460, %v5454
        %v5821 = vpack.c.b16 %v5461, %v5455
        %v5822 = vpack.c.b16 %v5462, %v5456
        %v5823 = vpack.c.b16 %v5463, %v5457
        %v5824 = vpack.c.b16 %v5464, %v5458
        %v5825 = vpack.c.b16 %v5471, %v5465
        %v5826 = vpack.c.b16 %v5472, %v5466
        %v5827 = vpack.c.b16 %v5473, %v5467
        %v5828 = vpack.c.b16 %v5474, %v5468
        %v5829 = vpack.c.b16 %v5475, %v5469
        %v5830 = vpack.c.b16 %v5476, %v5470
        %v5831 = vpack.c.b16 %v5483, %v5477
        %v5832 = vpack.c.b16 %v5484, %v5478
        %v5833 = vpack.c.b16 %v5485, %v5479
        %v5834 = vpack.c.b16 %v5486, %v5480
        %v5835 = vpack.c.b16 %v5487, %v5481
        %v5836 = vpack.c.b16 %v5488, %v5482
        %v5837 = vpack.c.b16 %v5495, %v5489
        %v5838 = vpack.c.b16 %v5496, %v5490
        %v5839 = vpack.c.b16 %v5497, %v5491
        %v5840 = vpack.c.b16 %v5498, %v5492
        %v5841 = vpack.c.b16 %v5499, %v5493
        %v5842 = vpack.c.b16 %v5500, %v5494
        %v5843 = vpack.c.b16 %v5507, %v5501
        %v5844 = vpack.c.b16 %v5508, %v5502
        %v5845 = vpack.c.b16 %v5509, %v5503
        %v5846 = vpack.c.b16 %v5510, %v5504
        %v5847 = vpack.c.b16 %v5511, %v5505
        %v5848 = vpack.c.b16 %v5512, %v5506
        %v5849 = vpack.c.b16 %v5519, %v5513
        %v5850 = vpack.c.b16 %v5520, %v5514
        %v5851 = vpack.c.b16 %v5521, %v5515
        %v5852 = vpack.c.b16 %v5522, %v5516
        %v5853 = vpack.c.b16 %v5523, %v5517
        %v5854 = vpack.c.b16 %v5524, %v5518
        %v5855 = vpack.c.b16 %v5531, %v5525
        %v5856 = vpack.c.b16 %v5532, %v5526
        %v5857 = vpack.c.b16 %v5533, %v5527
        %v5858 = vpack.c.b16 %v5534, %v5528
        %v5859 = vpack.c.b16 %v5535, %v5529
        %v5860 = vpack.c.b16 %v5536, %v5530
        %v5861 = vpack.c.b16 %v5543, %v5537
        %v5862 = vpack.c.b16 %v5544, %v5538
        %v5863 = vpack.c.b16 %v5545, %v5539
        %v5864 = vpack.c.b16 %v5546, %v5540
        %v5865 = vpack.c.b16 %v5547, %v5541
        %v5866 = vpack.c.b16 %v5548, %v5542
        %v5867 = vpack.c.b16 %v5555, %v5549
        %v5868 = vpack.c.b16 %v5556, %v5550
        %v5869 = vpack.c.b16 %v5557, %v5551
        %v5870 = vpack.c.b16 %v5558, %v5552
        %v5871 = vpack.c.b16 %v5559, %v5553
        %v5872 = vpack.c.b16 %v5560, %v5554
        %v5873 = vpack.c.b16 %v5567, %v5561
        %v5874 = vpack.c.b16 %v5568, %v5562
        %v5875 = vpack.c.b16 %v5569, %v5563
        %v5876 = vpack.c.b16 %v5570, %v5564
        %v5877 = vpack.c.b16 %v5571, %v5565
        %v5878 = vpack.c.b16 %v5572, %v5566
        %v5879 = vpack.c.b16 %v5579, %v5573
        %v5880 = vpack.c.b16 %v5580, %v5574
        %v5881 = vpack.c.b16 %v5581, %v5575
        %v5882 = vpack.c.b16 %v5582, %v5576
        %v5883 = vpack.c.b16 %v5583, %v5577
        %v5884 = vpack.c.b16 %v5584, %v5578
        %v5885 = vpack.c.b16 %v5591, %v5585
        %v5886 = vpack.c.b16 %v5592, %v5586
        %v5887 = vpack.c.b16 %v5593, %v5587
        %v5888 = vpack.c.b16 %v5594, %v5588
        %v5889 = vpack.c.b16 %v5595, %v5589
        %v5890 = vpack.c.b16 %v5596, %v5590
        %v5891 = vpack.c.b16 %v5603, %v5597
        %v5892 = vpack.c.b16 %v5604, %v5598
        %v5893 = vpack.c.b16 %v5605, %v5599
        %v5894 = vpack.c.b16 %v5606, %v5600
        %v5895 = vpack.c.b16 %v5607, %v5601
        %v5896 = vpack.c.b16 %v5608, %v5602
        %v5897 = vpack.c.b16 %v5615, %v5609
        %v5898 = vpack.c.b16 %v5616, %v5610
        %v5899 = vpack.c.b16 %v5617, %v5611
        %v5900 = vpack.c.b16 %v5618, %v5612
        %v5901 = vpack.c.b16 %v5619, %v5613
        %v5902 = vpack.c.b16 %v5620, %v5614
        %v5903 = vpack.c.b16 %v5627, %v5621
        %v5904 = vpack.c.b16 %v5628, %v5622
        %v5905 = vpack.c.b16 %v5629, %v5623
        %v5906 = vpack.c.b16 %v5630, %v5624
        %v5907 = vpack.c.b16 %v5631, %v5625
        %v5908 = vpack.c.b16 %v5632, %v5626
        %v5909 = vpack.c.b16 %v5639, %v5633
        %v5910 = vpack.c.b16 %v5640, %v5634
        %v5911 = vpack.c.b16 %v5641, %v5635
        %v5912 = vpack.c.b16 %v5642, %v5636
        %v5913 = vpack.c.b16 %v5643, %v5637
        %v5914 = vpack.c.b16 %v5644, %v5638
        %v5915 = vpack.c.b16 %v5651, %v5645
        %v5916 = vpack.c.b16 %v5652, %v5646
        %v5917 = vpack.c.b16 %v5653, %v5647
        %v5918 = vpack.c.b16 %v5654, %v5648
        %v5919 = vpack.c.b16 %v5655, %v5649
        %v5920 = vpack.c.b16 %v5656, %v5650
        %v5921 = vpack.c.b16 %v5663, %v5657
        %v5922 = vpack.c.b16 %v5664, %v5658
        %v5923 = vpack.c.b16 %v5665, %v5659
        %v5924 = vpack.c.b16 %v5666, %v5660
        %v5925 = vpack.c.b16 %v5667, %v5661
        %v5926 = vpack.c.b16 %v5668, %v5662
        %v5927 = vpack.c.b16 %v5675, %v5669
        %v5928 = vpack.c.b16 %v5676, %v5670
        %v5929 = vpack.c.b16 %v5677, %v5671
        %v5930 = vpack.c.b16 %v5678, %v5672
        %v5931 = vpack.c.b16 %v5679, %v5673
        %v5932 = vpack.c.b16 %v5680, %v5674
        %v5933 = vpack.c.b16 %v5687, %v5681
        %v5934 = vpack.c.b16 %v5688, %v5682
        %v5935 = vpack.c.b16 %v5689, %v5683
        %v5936 = vpack.c.b16 %v5690, %v5684
        %v5937 = vpack.c.b16 %v5691, %v5685
        %v5938 = vpack.c.b16 %v5692, %v5686
        %v5939 = vpack.c.b16 %v5699, %v5693
        %v5940 = vpack.c.b16 %v5700, %v5694
        %v5941 = vpack.c.b16 %v5701, %v5695
        %v5942 = vpack.c.b16 %v5702, %v5696
        %v5943 = vpack.c.b16 %v5703, %v5697
        %v5944 = vpack.c.b16 %v5704, %v5698
        %v5945 = vpack.c.b16 %v5711, %v5705
        %v5946 = vpack.c.b16 %v5712, %v5706
        %v5947 = vpack.c.b16 %v5713, %v5707
        %v5948 = vpack.c.b16 %v5714, %v5708
        %v5949 = vpack.c.b16 %v5715, %v5709
        %v5950 = vpack.c.b16 %v5716, %v5710
        %v5951 = vpack.c.b16 %v5723, %v5717
        %v5952 = vpack.c.b16 %v5724, %v5718
        %v5953 = vpack.c.b16 %v5725, %v5719
        %v5954 = vpack.c.b16 %v5726, %v5720
        %v5955 = vpack.c.b16 %v5727, %v5721
        %v5956 = vpack.c.b16 %v5728, %v5722
        %v5957 = vpack.c.b16 %v5735, %v5729
        %v5958 = vpack.c.b16 %v5736, %v5730
        %v5959 = vpack.c.b16 %v5737, %v5731
        %v5960 = vpack.c.b16 %v5738, %v5732
        %v5961 = vpack.c.b16 %v5739, %v5733
        %v5962 = vpack.c.b16 %v5740, %v5734
        %v5963 = vpack.c.b16 %v5747, %v5741
        %v5964 = vpack.c.b16 %v5748, %v5742
        %v5965 = vpack.c.b16 %v5749, %v5743
        %v5966 = vpack.c.b16 %v5750, %v5744
        %v5967 = vpack.c.b16 %v5751, %v5745
        %v5968 = vpack.c.b16 %v5752, %v5746
        %v5969 = vpack.c.b16 %v5759, %v5753
        %v5970 = vpack.c.b16 %v5760, %v5754
        %v5971 = vpack.c.b16 %v5761, %v5755
        %v5972 = vpack.c.b16 %v5762, %v5756
        %v5973 = vpack.c.b16 %v5763, %v5757
        %v5974 = vpack.c.b16 %v5764, %v5758
        %v5975 = vpack.c.b16 %v5771, %v5765
        %v5976 = vpack.c.b16 %v5772, %v5766
        %v5977 = vpack.c.b16 %v5773, %v5767
        %v5978 = vpack.c.b16 %v5774, %v5768
        %v5979 = vpack.c.b16 %v5775, %v5769
        %v5980 = vpack.c.b16 %v5776, %v5770
        %v5981 = vpack.c.b16 %v5783, %v5777
        %v5982 = vpack.c.b16 %v5784, %v5778
        %v5983 = vpack.c.b16 %v5785, %v5779
        %v5984 = vpack.c.b16 %v5786, %v5780
        %v5985 = vpack.c.b16 %v5787, %v5781
        %v5986 = vpack.c.b16 %v5788, %v5782
        %v5987 = vpack.c.b16 %v5795, %v5789
        %v5988 = vpack.c.b16 %v5796, %v5790
        %v5989 = vpack.c.b16 %v5797, %v5791
        %v5990 = vpack.c.b16 %v5798, %v5792
        %v5991 = vpack.c.b16 %v5799, %v5793
        %v5992 = vpack.c.b16 %v5800, %v5794
        %6185 = vmatprep.subr.bf16.mxu0 %v5802
        %6186 = vmatpush1.bf16.msra.mxu0 %v5801
        %6187 = vmatprep.subr.bf16.mxu0 %v5808
        %6188 = vmatpush1.bf16.msra.mxu0 %v5807
        %6189 = vmatprep.subr.bf16.mxu0 %v5814
        %6190 = vmatpush1.bf16.msra.mxu0 %v5813
        %6191 = vmatprep.subr.bf16.mxu0 %v5820
        %6192 = vmatpush1.bf16.msra.mxu0 %v5819
        %6193 = vmatprep.subr.bf16.mxu0 %v5826
        %6194 = vmatpush1.bf16.msra.mxu0 %v5825
        %6195 = vmatprep.subr.bf16.mxu0 %v5832
        %6196 = vmatpush1.bf16.msra.mxu0 %v5831
        %6197 = vmatprep.subr.bf16.mxu0 %v5838
        %6198 = vmatpush1.bf16.msra.mxu0 %v5837
        %6199 = vmatprep.subr.bf16.mxu0 %v5844
        %6200 = vmatpush1.bf16.msra.mxu0 %v5843
        %6201 = vmatprep.subr.bf16.mxu0 %v5850
        %6202 = vmatpush1.bf16.msra.mxu0 %v5849
        %6203 = vmatprep.subr.bf16.mxu0 %v5856
        %6204 = vmatpush1.bf16.msra.mxu0 %v5855
        %6205 = vmatprep.subr.bf16.mxu0 %v5862
        %6206 = vmatpush1.bf16.msra.mxu0 %v5861
        %6207 = vmatprep.subr.bf16.mxu0 %v5868
        %6208 = vmatpush1.bf16.msra.mxu0 %v5867
        %6209 = vmatprep.subr.bf16.mxu0 %v5874
        %6210 = vmatpush1.bf16.msra.mxu0 %v5873
        %6211 = vmatprep.subr.bf16.mxu0 %v5880
        %6212 = vmatpush1.bf16.msra.mxu0 %v5879
        %6213 = vmatprep.subr.bf16.mxu0 %v5886
        %6214 = vmatpush1.bf16.msra.mxu0 %v5885
        %6215 = vmatprep.subr.bf16.mxu0 %v5892
        %6216 = vmatpush1.bf16.msra.mxu0 %v5891
        %6217 = vmatprep.mubr.bf16.mxu0 %v3632
        %6218 = vmatmul.mubr.bf16.gmra.mrb[0].mxu0 %v3631
        %v6219 = vpop.f32.mrb[0].mxu0
        %v6220 = vadd.f32 %v5055, %v6219
        %v6221 = vpop.f32.mrb[0].mxu0
        %v6222 = vadd.f32 %v5057, %v6221
        %v6223 = vpop.f32.mrb[0].mxu0
        %v6224 = vpop.f32.mrb[0].mxu0
        %6225 = vdwg.mxu0
        %6226 = vmatprep.subr.bf16.mxu0 %v5898
        %6227 = vmatpush1.bf16.msra.mxu0 %v5897
        %6228 = vmatprep.subr.bf16.mxu0 %v5904
        %6229 = vmatpush1.bf16.msra.mxu0 %v5903
        %6230 = vmatprep.subr.bf16.mxu0 %v5910
        %6231 = vmatpush1.bf16.msra.mxu0 %v5909
        %6232 = vmatprep.subr.bf16.mxu0 %v5916
        %6233 = vmatpush1.bf16.msra.mxu0 %v5915
        %6234 = vmatprep.subr.bf16.mxu0 %v5922
        %6235 = vmatpush1.bf16.msra.mxu0 %v5921
        %6236 = vmatprep.subr.bf16.mxu0 %v5928
        %6237 = vmatpush1.bf16.msra.mxu0 %v5927
        %6238 = vmatprep.subr.bf16.mxu0 %v5934
        %6239 = vmatpush1.bf16.msra.mxu0 %v5933
        %6240 = vmatprep.subr.bf16.mxu0 %v5940
        %6241 = vmatpush1.bf16.msra.mxu0 %v5939
        %6242 = vmatprep.subr.bf16.mxu0 %v5946
        %6243 = vmatpush1.bf16.msra.mxu0 %v5945
        %6244 = vmatprep.subr.bf16.mxu0 %v5952
        %6245 = vmatpush1.bf16.msra.mxu0 %v5951
        %6246 = vmatprep.subr.bf16.mxu0 %v5958
        %6247 = vmatpush1.bf16.msra.mxu0 %v5957
        %6248 = vmatprep.subr.bf16.mxu0 %v5964
        %6249 = vmatpush1.bf16.msra.mxu0 %v5963
        %6250 = vmatprep.subr.bf16.mxu0 %v5970
        %6251 = vmatpush1.bf16.msra.mxu0 %v5969
        %6252 = vmatprep.subr.bf16.mxu0 %v5976
        %6253 = vmatpush1.bf16.msra.mxu0 %v5975
        %6254 = vmatprep.subr.bf16.mxu0 %v5982
        %6255 = vmatpush1.bf16.msra.mxu0 %v5981
        %6256 = vmatprep.subr.bf16.mxu0 %v5988
        %6257 = vmatpush1.bf16.msra.mxu0 %v5987
        %6258 = vmatprep.mubr.bf16.mxu0 %v3634
        %6259 = vmatmul.mubr.bf16.gmra.mrb[0].mxu0 %v3633
        %v6260 = vpop.f32.mrb[0].mxu0
        %v6261 = vadd.f32 %v6220, %v6260
        %v6262 = vpop.f32.mrb[0].mxu0
        %v6263 = vadd.f32 %v6222, %v6262
        %v6264 = vpop.f32.mrb[0].mxu0
        %v6265 = vpop.f32.mrb[0].mxu0
        %6266 = vdwg.mxu0
        %6267 = vmatprep.subr.bf16.mxu0 %v5804
        %6268 = vmatpush1.bf16.msra.mxu0 %v5803
        %6269 = vmatprep.subr.bf16.mxu0 %v5810
        %6270 = vmatpush1.bf16.msra.mxu0 %v5809
        %6271 = vmatprep.subr.bf16.mxu0 %v5816
        %6272 = vmatpush1.bf16.msra.mxu0 %v5815
        %6273 = vmatprep.subr.bf16.mxu0 %v5822
        %6274 = vmatpush1.bf16.msra.mxu0 %v5821
        %6275 = vmatprep.subr.bf16.mxu0 %v5828
        %6276 = vmatpush1.bf16.msra.mxu0 %v5827
        %6277 = vmatprep.subr.bf16.mxu0 %v5834
        %6278 = vmatpush1.bf16.msra.mxu0 %v5833
        %6279 = vmatprep.subr.bf16.mxu0 %v5840
        %6280 = vmatpush1.bf16.msra.mxu0 %v5839
        %6281 = vmatprep.subr.bf16.mxu0 %v5846
        %6282 = vmatpush1.bf16.msra.mxu0 %v5845
        %6283 = vmatprep.subr.bf16.mxu0 %v5852
        %6284 = vmatpush1.bf16.msra.mxu0 %v5851
        %6285 = vmatprep.subr.bf16.mxu0 %v5858
        %6286 = vmatpush1.bf16.msra.mxu0 %v5857
        %6287 = vmatprep.subr.bf16.mxu0 %v5864
        %6288 = vmatpush1.bf16.msra.mxu0 %v5863
        %6289 = vmatprep.subr.bf16.mxu0 %v5870
        %6290 = vmatpush1.bf16.msra.mxu0 %v5869
        %6291 = vmatprep.subr.bf16.mxu0 %v5876
        %6292 = vmatpush1.bf16.msra.mxu0 %v5875
        %6293 = vmatprep.subr.bf16.mxu0 %v5882
        %6294 = vmatpush1.bf16.msra.mxu0 %v5881
        %6295 = vmatprep.subr.bf16.mxu0 %v5888
        %6296 = vmatpush1.bf16.msra.mxu0 %v5887
        %6297 = vmatprep.subr.bf16.mxu0 %v5894
        %6298 = vmatpush1.bf16.msra.mxu0 %v5893
        %6299 = vmatprep.mubr.bf16.mxu0 %v3632
        %6300 = vmatmul.mubr.bf16.gmra.mrb[0].mxu0 %v3631
        %v6301 = vpop.f32.mrb[0].mxu0
        %v6302 = vadd.f32 %v5137, %v6301
        %v6303 = vpop.f32.mrb[0].mxu0
        %v6304 = vadd.f32 %v5139, %v6303
        %v6305 = vpop.f32.mrb[0].mxu0
        %v6306 = vpop.f32.mrb[0].mxu0
        %6307 = vdwg.mxu0
        %6308 = vmatprep.subr.bf16.mxu0 %v5900
        %6309 = vmatpush1.bf16.msra.mxu0 %v5899
        %6310 = vmatprep.subr.bf16.mxu0 %v5906
        %6311 = vmatpush1.bf16.msra.mxu0 %v5905
        %6312 = vmatprep.subr.bf16.mxu0 %v5912
        %6313 = vmatpush1.bf16.msra.mxu0 %v5911
        %6314 = vmatprep.subr.bf16.mxu0 %v5918
        %6315 = vmatpush1.bf16.msra.mxu0 %v5917
        %6316 = vmatprep.subr.bf16.mxu0 %v5924
        %6317 = vmatpush1.bf16.msra.mxu0 %v5923
        %6318 = vmatprep.subr.bf16.mxu0 %v5930
        %6319 = vmatpush1.bf16.msra.mxu0 %v5929
        %6320 = vmatprep.subr.bf16.mxu0 %v5936
        %6321 = vmatpush1.bf16.msra.mxu0 %v5935
        %6322 = vmatprep.subr.bf16.mxu0 %v5942
        %6323 = vmatpush1.bf16.msra.mxu0 %v5941
        %6324 = vmatprep.subr.bf16.mxu0 %v5948
        %6325 = vmatpush1.bf16.msra.mxu0 %v5947
        %6326 = vmatprep.subr.bf16.mxu0 %v5954
        %6327 = vmatpush1.bf16.msra.mxu0 %v5953
        %6328 = vmatprep.subr.bf16.mxu0 %v5960
        %6329 = vmatpush1.bf16.msra.mxu0 %v5959
        %6330 = vmatprep.subr.bf16.mxu0 %v5966
        %6331 = vmatpush1.bf16.msra.mxu0 %v5965
        %6332 = vmatprep.subr.bf16.mxu0 %v5972
        %6333 = vmatpush1.bf16.msra.mxu0 %v5971
        %6334 = vmatprep.subr.bf16.mxu0 %v5978
        %6335 = vmatpush1.bf16.msra.mxu0 %v5977
        %6336 = vmatprep.subr.bf16.mxu0 %v5984
        %6337 = vmatpush1.bf16.msra.mxu0 %v5983
        %6338 = vmatprep.subr.bf16.mxu0 %v5990
        %6339 = vmatpush1.bf16.msra.mxu0 %v5989
        %6340 = vmatprep.mubr.bf16.mxu0 %v3634
        %6341 = vmatmul.mubr.bf16.gmra.mrb[0].mxu0 %v3633
        %v6342 = vpop.f32.mrb[0].mxu0
        %v6343 = vadd.f32 %v6302, %v6342
        %v6344 = vpop.f32.mrb[0].mxu0
        %v6345 = vadd.f32 %v6304, %v6344
        %v6346 = vpop.f32.mrb[0].mxu0
        %v6347 = vpop.f32.mrb[0].mxu0
        %6348 = vdwg.mxu0
        %6349 = vmatprep.subr.bf16.mxu0 %v5806
        %6350 = vmatpush1.bf16.msra.mxu0 %v5805
        %6351 = vmatprep.subr.bf16.mxu0 %v5812
        %6352 = vmatpush1.bf16.msra.mxu0 %v5811
        %6353 = vmatprep.subr.bf16.mxu0 %v5818
        %6354 = vmatpush1.bf16.msra.mxu0 %v5817
        %6355 = vmatprep.subr.bf16.mxu0 %v5824
        %6356 = vmatpush1.bf16.msra.mxu0 %v5823
        %6357 = vmatprep.subr.bf16.mxu0 %v5830
        %6358 = vmatpush1.bf16.msra.mxu0 %v5829
        %6359 = vmatprep.subr.bf16.mxu0 %v5836
        %6360 = vmatpush1.bf16.msra.mxu0 %v5835
        %6361 = vmatprep.subr.bf16.mxu0 %v5842
        %6362 = vmatpush1.bf16.msra.mxu0 %v5841
        %6363 = vmatprep.subr.bf16.mxu0 %v5848
        %6364 = vmatpush1.bf16.msra.mxu0 %v5847
        %6365 = vmatprep.subr.bf16.mxu0 %v5854
        %6366 = vmatpush1.bf16.msra.mxu0 %v5853
        %6367 = vmatprep.subr.bf16.mxu0 %v5860
        %6368 = vmatpush1.bf16.msra.mxu0 %v5859
        %6369 = vmatprep.subr.bf16.mxu0 %v5866
        %6370 = vmatpush1.bf16.msra.mxu0 %v5865
        %6371 = vmatprep.subr.bf16.mxu0 %v5872
        %6372 = vmatpush1.bf16.msra.mxu0 %v5871
        %6373 = vmatprep.subr.bf16.mxu0 %v5878
        %6374 = vmatpush1.bf16.msra.mxu0 %v5877
        %6375 = vmatprep.subr.bf16.mxu0 %v5884
        %6376 = vmatpush1.bf16.msra.mxu0 %v5883
        %6377 = vmatprep.subr.bf16.mxu0 %v5890
        %6378 = vmatpush1.bf16.msra.mxu0 %v5889
        %6379 = vmatprep.subr.bf16.mxu0 %v5896
        %6380 = vmatpush1.bf16.msra.mxu0 %v5895
        %6381 = vmatprep.mubr.bf16.mxu0 %v3632
        %6382 = vmatmul.mubr.bf16.gmra.mrb[0].mxu0 %v3631
        %v6383 = vpop.f32.mrb[0].mxu0
        %v6384 = vadd.f32 %v5219, %v6383
        %v6385 = vpop.f32.mrb[0].mxu0
        %v6386 = vadd.f32 %v5221, %v6385
        %v6387 = vpop.f32.mrb[0].mxu0
        %v6388 = vpop.f32.mrb[0].mxu0
        %6389 = vdwg.mxu0
        %6390 = vmatprep.subr.bf16.mxu0 %v5902
        %6391 = vmatpush1.bf16.msra.mxu0 %v5901
        %6392 = vmatprep.subr.bf16.mxu0 %v5908
        %6393 = vmatpush1.bf16.msra.mxu0 %v5907
        %6394 = vmatprep.subr.bf16.mxu0 %v5914
        %6395 = vmatpush1.bf16.msra.mxu0 %v5913
        %6396 = vmatprep.subr.bf16.mxu0 %v5920
        %6397 = vmatpush1.bf16.msra.mxu0 %v5919
        %6398 = vmatprep.subr.bf16.mxu0 %v5926
        %6399 = vmatpush1.bf16.msra.mxu0 %v5925
        %6400 = vmatprep.subr.bf16.mxu0 %v5932
        %6401 = vmatpush1.bf16.msra.mxu0 %v5931
        %6402 = vmatprep.subr.bf16.mxu0 %v5938
        %6403 = vmatpush1.bf16.msra.mxu0 %v5937
        %6404 = vmatprep.subr.bf16.mxu0 %v5944
        %6405 = vmatpush1.bf16.msra.mxu0 %v5943
        %6406 = vmatprep.subr.bf16.mxu0 %v5950
        %6407 = vmatpush1.bf16.msra.mxu0 %v5949
        %6408 = vmatprep.subr.bf16.mxu0 %v5956
        %6409 = vmatpush1.bf16.msra.mxu0 %v5955
        %6410 = vmatprep.subr.bf16.mxu0 %v5962
        %6411 = vmatpush1.bf16.msra.mxu0 %v5961
        %6412 = vmatprep.subr.bf16.mxu0 %v5968
        %6413 = vmatpush1.bf16.msra.mxu0 %v5967
        %6414 = vmatprep.subr.bf16.mxu0 %v5974
        %6415 = vmatpush1.bf16.msra.mxu0 %v5973
        %6416 = vmatprep.subr.bf16.mxu0 %v5980
        %6417 = vmatpush1.bf16.msra.mxu0 %v5979
        %6418 = vmatprep.subr.bf16.mxu0 %v5986
        %6419 = vmatpush1.bf16.msra.mxu0 %v5985
        %6420 = vmatprep.subr.bf16.mxu0 %v5992
        %6421 = vmatpush1.bf16.msra.mxu0 %v5991
        %6422 = vmatprep.mubr.bf16.mxu0 %v3634
        %6423 = vmatmul.mubr.bf16.gmra.mrb[0].mxu0 %v3633
        %v6424 = vpop.f32.mrb[0].mxu0
        %v6425 = vadd.f32 %v6384, %v6424
        %v6426 = vpop.f32.mrb[0].mxu0
        %v6427 = vadd.f32 %v6386, %v6426
        %v6428 = vpop.f32.mrb[0].mxu0
        %v6429 = vpop.f32.mrb[0].mxu0
        %6430 = vdwg.mxu0
        %v6431 = vtanh.pop %v6261
        %v6432 = vtanh.pop %v6263
        %v6433 = vtanh.pop %v6343
        %v6434 = vtanh.pop %v6345
        %v6435 = vtanh.pop %v6425
        %v6436 = vtanh.pop %v6427
        %6437 = vst [vmem:[%s464] sm:$0xff] %v6431
        %6438 = vst [vmem:[%s464 + $0x8] sm:$0xff] %v6432
        %6439 = vst [vmem:[%s464 + $0x10] sm:$0xff] %v6433
        %6440 = vst [vmem:[%s464 + $0x18] sm:$0xff] %v6434
        %6441 = vst [vmem:[%s464 + $0x20] sm:$0xff] %v6435
        %6442 = vst [vmem:[%s464 + $0x28] sm:$0xff] %v6436
        %s6443 = sand.u32 %s232, 1
        %s6444 = scalar_lea.sflag [#allocation4], %s6443
        %s6445 = sand.u32 %s232, 1
        %s6446 = smul.addr %s6445, 48
        %s6447 = scalar_lea.vmem [#allocation17], %s6446
        // Predicated region
        $region93: #{tpu_custom_call.1} parent=55 // pred_check
          %p6448 = pneg %p242
        $region94: #{tpu_custom_call.1} parent=55 // pred_check_branch
          %6450 = sbr.rel (%p6448) target = $region96
        $region95: #{tpu_custom_call.1} parent=55 // pred_region
          %s6452 = ssub.s32 768, 768
          %6453 = vsyncadd %s6444, %s6452
          %s6454 = smul.addr %s30, 6
          %s6455 = smul.addr %s6454, 128
          %s6456 = scalar_lea.hbm %s9, %s6455
          %s6458 = sshll.u32 %s6447, 4
          %s6459 = int_to_ptr.vmem [resolvable:$true] %s6458
          %6461 = dma.vmem_to_hbm [thread:$0]  %s6459, 768, %s6456, %s6444
        $region96: #{tpu_custom_call.1} parent=55 // pred_fallthru
          _
      $region56: #{tpu_custom_call.1} parent=5 // pred_fallthru
        _
      %p6462 = scmp.le.s32.totalorder 2, %s25
      // Predicated region
      $region97: #{tpu_custom_call.1} parent=5 // pred_check
        %p6463 = pneg %p6462
      $region98: #{tpu_custom_call.1} parent=5 // pred_check_branch
        %6465 = sbr.rel (%p6463) target = $region100
      $region99: #{tpu_custom_call.1} parent=5 // pred_region
        %s6466 = ssub.s32 %s25, 2
        // Predicated region
        $region101: #{tpu_custom_call.1} parent=99 // pred_check
          %p6467 = pneg %p248
        $region102: #{tpu_custom_call.1} parent=99 // pred_check_branch
          %6469 = sbr.rel (%p6467) target = $region104
        $region103: #{tpu_custom_call.1} parent=99 // pred_region
          %s6470 = sand.u32 %s233, 1
          %s6471 = scalar_lea.sflag [#allocation4], %s6470
          %s6472 = sand.u32 %s233, 1
          %s6473 = smul.addr %s6472, 48
          %s6474 = scalar_lea.vmem [#allocation17], %s6473
          %6475 = dma.done %s6471, 768
        $region104: #{tpu_custom_call.1} parent=99 // pred_fallthru
          _
      $region100: #{tpu_custom_call.1} parent=5 // pred_fallthru
        _
    $region6: #{tpu_custom_call.1} parent=1 // loop_footer
      %s29 = sadd.s32 1, %s25
    $region7: #{tpu_custom_call.1} parent=1 // loop_footer_branch
      %24 = sbr.rel target = $region3
    $region8: #{tpu_custom_call.1} parent=1 // loop_exit
      _
    %6476 = vsyncpa [#allocation3], 1
    %s6477 = scalar_lea.sflag [#allocation3], 1
    %6478 = vsyncpa %s6477, 1
    %6479 = vsyncpa [#allocation6], 1
    %6480 = vsyncpa [#allocation9], 1
    %6481 = vsyncpa [#allocation12], 1
    %6482 = vsyncpa [#allocation15], 1
    %6483 = vsyncpa [#allocation4], 1
    %s6484 = scalar_lea.sflag [#allocation4], 1
    %6485 = vsyncpa %s6484, 1

// kernel: tpu_custom_call.1
$region0: #{tpu_custom_call.1}
  #allocation0 [shape = 'u32[]', space=smem, size = 0x4, offset = 0x4, fixed_abs, tag = 'smem constant byte address 0x4 - core index']
  #allocation1 [shape = 'u32[144,128]{1,0:T(1,128)}', space=vmem, size = 0x12000, scoped, tag = 'internal scratch']
  %s0 = inlined_call_operand.hbm [shape: bf16[16,768], index: 0, kind: input, shape index: {}]
  %s1 = inlined_call_operand.hbm [shape: bf16[768,512], index: 1, kind: input, shape index: {}]
  %s2 = inlined_call_operand.hbm [shape: bf16[512,256], index: 2, kind: input, shape index: {}]
  %s3 = inlined_call_operand.hbm [shape: bf16[256,128], index: 3, kind: input, shape index: {}]
  %s4 = inlined_call_operand.hbm [shape: bf16[128,256], index: 4, kind: input, shape index: {}]
  %s5 = inlined_call_operand.hbm [shape: bf16[256,512], index: 5, kind: input, shape index: {}]
  %s6 = inlined_call_operand.hbm [shape: bf16[256,512], index: 6, kind: input, shape index: {}]
  %s7 = inlined_call_operand.hbm [shape: bf16[512,768], index: 7, kind: input, shape index: {}]
  %s8 = inlined_call_operand.hbm [shape: bf16[512,768], index: 8, kind: input, shape index: {}]
  %s9 = inlined_call_operand.hbm [shape: f32[16,768], index: 9, kind: output, shape index: {}]
  %s10 = sld [smem:[#allocation0]]
  $region105: #{tpu_custom_call.1} parent=0
    _
  %s12 = ssub.s32 1, %s10
  %s13 = scalar_select 0, %s12, %s10
  $region1: #{tpu_custom_call.1} parent=0
    #allocation2 [shape = 'u8[24576]{0}', space=vmem, size = 0x6000, scoped, tag = 'input window, operand 0']
    #allocation3 [shape = 's32[2]{0}', space=sflag, size = 0x8, scoped, tag = 'scoped memory for tpu_custom_call.1']
    #allocation4 [shape = 's32[2]{0}', space=sflag, size = 0x8, scoped, tag = 'scoped memory for tpu_custom_call.1']
    #allocation5 [shape = 'u8[786432]{0}', space=vmem, size = 0xc0000, scoped, tag = 'input window, operand 1, single buffered']
    #allocation6 [shape = 's32[1]{0}', space=sflag, size = 0x4, scoped, tag = 'scoped memory for tpu_custom_call.1']
    #allocation7 [shape = 'u8[262144]{0}', space=vmem, size = 0x40000, scoped, tag = 'input window, operand 2, single buffered']
    #allocation8 [shape = 'u8[65536]{0}', space=vmem, size = 0x10000, scoped, tag = 'input window, operand 3, single buffered']
    #allocation9 [shape = 's32[1]{0}', space=sflag, size = 0x4, scoped, tag = 'scoped memory for tpu_custom_call.1']
    #allocation10 [shape = 'u8[65536]{0}', space=vmem, size = 0x10000, scoped, tag = 'input window, operand 4, single buffered']
    #allocation11 [shape = 'u8[262144]{0}', space=vmem, size = 0x40000, scoped, tag = 'input window, operand 5, single buffered']
    #allocation12 [shape = 's32[1]{0}', space=sflag, size = 0x4, scoped, tag = 'scoped memory for tpu_custom_call.1']
    #allocation13 [shape = 'u8[262144]{0}', space=vmem, size = 0x40000, scoped, tag = 'input window, operand 6, single buffered']
    #allocation14 [shape = 'u8[786432]{0}', space=vmem, size = 0xc0000, scoped, tag = 'input window, operand 7, single buffered']
    #allocation15 [shape = 's32[1]{0}', space=sflag, size = 0x4, scoped, tag = 'scoped memory for tpu_custom_call.1']
    #allocation16 [shape = 'u8[786432]{0}', space=vmem, size = 0xc0000, scoped, tag = 'input window, operand 8, single buffered']
    #allocation17 [shape = 'u8[49152]{0}', space=vmem, size = 0xc000, scoped, tag = 'output window, operand 0']
    %14 = vsyncpa [#allocation3], 0
    %s15 = scalar_lea.sflag [#allocation3], 1
    %16 = vsyncpa %s15, 0
    %17 = vsyncpa [#allocation6], 0
    %18 = vsyncpa [#allocation9], 0
    %19 = vsyncpa [#allocation12], 0
    %20 = vsyncpa [#allocation15], 0
    %21 = vsyncpa [#allocation4], 0
    %s22 = scalar_lea.sflag [#allocation4], 1
    %23 = vsyncpa %s22, 0
    loop: start=0, step=1, limit=4
    $region2: #{tpu_custom_call.1} parent=1 // loop_pre_header
      _
    $region3: #{tpu_custom_call.1} parent=1 // loop_header
      %s25 = sphi 0, %s29
      %p26 = scmp.ge.s32.totalorder %s25, 4
      %s35 = sphi 0, %s37
      %s38 = sphi 0, %s35
      %s39 = sphi 0, %s38
      %s55 = sphi 0, %s39
      %s59 = sphi 0, %s59
      %s61 = sphi 0, %s59
      %s62 = sphi 0, %s61
      %s76 = sphi 0, %s62
      %s80 = sphi 0, %s80
      %s82 = sphi 0, %s80
      %s83 = sphi 0, %s82
      %s97 = sphi 0, %s83
      %s101 = sphi 0, %s101
      %s103 = sphi 0, %s101
      %s104 = sphi 0, %s103
      %s118 = sphi 0, %s104
      %s122 = sphi 0, %s122
      %s124 = sphi 0, %s122
      %s125 = sphi 0, %s124
      %s139 = sphi 0, %s125
      %s143 = sphi 0, %s143
      %s145 = sphi 0, %s143
      %s146 = sphi 0, %s145
      %s160 = sphi 0, %s146
      %s164 = sphi 0, %s164
      %s166 = sphi 0, %s164
      %s167 = sphi 0, %s166
      %s181 = sphi 0, %s167
      %s185 = sphi 0, %s185
      %s187 = sphi 0, %s185
      %s188 = sphi 0, %s187
      %s202 = sphi 0, %s188
      %s206 = sphi 0, %s206
      %s208 = sphi 0, %s206
      %s209 = sphi 0, %s208
      %s223 = sphi 0, %s209
      %s229 = sphi 0, %s231
      %s232 = sphi 0, %s229
      %s233 = sphi 0, %s232
      %s249 = sphi 0, %s233
    $region4: #{tpu_custom_call.1} parent=1 // loop_header_branch
      %28 = sbr.rel (%p26) target = $region8
    $region5: #{tpu_custom_call.1} parent=1 // loop_body
      %s30 = ssub.s32 %s25, 1
      %s31 = ssub.s32 %s25, 2
      %s32 = sadd.s32 %s25, 1
      %s33 = ssub.s32 %s25, %s32
      %p34 = scmp.eq.s32.totalorder %s33, 0
      %s36 = sadd.s32 %s35, 1
      %s37 = scalar_select %p34, %s35, %s36
      %p40 = pneg %p34
      %p41 = scmp.eq.s32.totalorder %s25, 1
      %p42 = por %p40, %p41
      %p43 = scmp.ne.s32.totalorder %s35, %s38
      %p44 = scmp.eq.s32.totalorder %s25, 0
      %p45 = por %p43, %p44
      %p46 = scmp.ne.s32.totalorder %s35, %s38
      %p47 = scmp.eq.s32.totalorder %s30, 1
      %p48 = por %p46, %p47
      %p49 = scmp.ne.s32.totalorder %s38, %s39
      %p50 = scmp.eq.s32.totalorder %s30, 0
      %p51 = por %p49, %p50
      %p52 = scmp.ne.s32.totalorder %s38, %s39
      %p53 = scmp.eq.s32.totalorder %s31, 1
      %p54 = por %p52, %p53
      %p56 = scmp.ne.s32.totalorder %s39, %s55
      %p57 = scmp.eq.s32.totalorder %s31, 0
      %p58 = por %p56, %p57
      %s60 = sadd.s32 %s59, 1
      %p63 = scmp.eq.s32.totalorder %s25, 1
      %p64 = scmp.ne.s32.totalorder %s59, %s61
      %p65 = scmp.eq.s32.totalorder %s25, 0
      %p66 = por %p64, %p65
      %p67 = scmp.ne.s32.totalorder %s59, %s61
      %p68 = scmp.eq.s32.totalorder %s30, 1
      %p69 = por %p67, %p68
      %p70 = scmp.ne.s32.totalorder %s61, %s62
      %p71 = scmp.eq.s32.totalorder %s30, 0
      %p72 = por %p70, %p71
      %p73 = scmp.ne.s32.totalorder %s61, %s62
      %p74 = scmp.eq.s32.totalorder %s31, 1
      %p75 = por %p73, %p74
      %p77 = scmp.ne.s32.totalorder %s62, %s76
      %p78 = scmp.eq.s32.totalorder %s31, 0
      %p79 = por %p77, %p78
      %s81 = sadd.s32 %s80, 1
      %p84 = scmp.eq.s32.totalorder %s25, 1
      %p85 = scmp.ne.s32.totalorder %s80, %s82
      %p86 = scmp.eq.s32.totalorder %s25, 0
      %p87 = por %p85, %p86
      %p88 = scmp.ne.s32.totalorder %s80, %s82
      %p89 = scmp.eq.s32.totalorder %s30, 1
      %p90 = por %p88, %p89
      %p91 = scmp.ne.s32.totalorder %s82, %s83
      %p92 = scmp.eq.s32.totalorder %s30, 0
      %p93 = por %p91, %p92
      %p94 = scmp.ne.s32.totalorder %s82, %s83
      %p95 = scmp.eq.s32.totalorder %s31, 1
      %p96 = por %p94, %p95
      %p98 = scmp.ne.s32.totalorder %s83, %s97
      %p99 = scmp.eq.s32.totalorder %s31, 0
      %p100 = por %p98, %p99
      %s102 = sadd.s32 %s101, 1
      %p105 = scmp.eq.s32.totalorder %s25, 1
      %p106 = scmp.ne.s32.totalorder %s101, %s103
      %p107 = scmp.eq.s32.totalorder %s25, 0
      %p108 = por %p106, %p107
      %p109 = scmp.ne.s32.totalorder %s101, %s103
      %p110 = scmp.eq.s32.totalorder %s30, 1
      %p111 = por %p109, %p110
      %p112 = scmp.ne.s32.totalorder %s103, %s104
      %p113 = scmp.eq.s32.totalorder %s30, 0
      %p114 = por %p112, %p113
      %p115 = scmp.ne.s32.totalorder %s103, %s104
      %p116 = scmp.eq.s32.totalorder %s31, 1
      %p117 = por %p115, %p116
      %p119 = scmp.ne.s32.totalorder %s104, %s118
      %p120 = scmp.eq.s32.totalorder %s31, 0
      %p121 = por %p119, %p120
      %s123 = sadd.s32 %s122, 1
      %p126 = scmp.eq.s32.totalorder %s25, 1
      %p127 = scmp.ne.s32.totalorder %s122, %s124
      %p128 = scmp.eq.s32.totalorder %s25, 0
      %p129 = por %p127, %p128
      %p130 = scmp.ne.s32.totalorder %s122, %s124
      %p131 = scmp.eq.s32.totalorder %s30, 1
      %p132 = por %p130, %p131
      %p133 = scmp.ne.s32.totalorder %s124, %s125
      %p134 = scmp.eq.s32.totalorder %s30, 0
      %p135 = por %p133, %p134
      %p136 = scmp.ne.s32.totalorder %s124, %s125
      %p137 = scmp.eq.s32.totalorder %s31, 1
      %p138 = por %p136, %p137
      %p140 = scmp.ne.s32.totalorder %s125, %s139
      %p141 = scmp.eq.s32.totalorder %s31, 0
      %p142 = por %p140, %p141
      %s144 = sadd.s32 %s143, 1
      %p147 = scmp.eq.s32.totalorder %s25, 1
      %p148 = scmp.ne.s32.totalorder %s143, %s145
      %p149 = scmp.eq.s32.totalorder %s25, 0
      %p150 = por %p148, %p149
      %p151 = scmp.ne.s32.totalorder %s143, %s145
      %p152 = scmp.eq.s32.totalorder %s30, 1
      %p153 = por %p151, %p152
      %p154 = scmp.ne.s32.totalorder %s145, %s146
      %p155 = scmp.eq.s32.totalorder %s30, 0
      %p156 = por %p154, %p155
      %p157 = scmp.ne.s32.totalorder %s145, %s146
      %p158 = scmp.eq.s32.totalorder %s31, 1
      %p159 = por %p157, %p158
      %p161 = scmp.ne.s32.totalorder %s146, %s160
      %p162 = scmp.eq.s32.totalorder %s31, 0
      %p163 = por %p161, %p162
      %s165 = sadd.s32 %s164, 1
      %p168 = scmp.eq.s32.totalorder %s25, 1
      %p169 = scmp.ne.s32.totalorder %s164, %s166
      %p170 = scmp.eq.s32.totalorder %s25, 0
      %p171 = por %p169, %p170
      %p172 = scmp.ne.s32.totalorder %s164, %s166
      %p173 = scmp.eq.s32.totalorder %s30, 1
      %p174 = por %p172, %p173
      %p175 = scmp.ne.s32.totalorder %s166, %s167
      %p176 = scmp.eq.s32.totalorder %s30, 0
      %p177 = por %p175, %p176
      %p178 = scmp.ne.s32.totalorder %s166, %s167
      %p179 = scmp.eq.s32.totalorder %s31, 1
      %p180 = por %p178, %p179
      %p182 = scmp.ne.s32.totalorder %s167, %s181
      %p183 = scmp.eq.s32.totalorder %s31, 0
      %p184 = por %p182, %p183
      %s186 = sadd.s32 %s185, 1
      %p189 = scmp.eq.s32.totalorder %s25, 1
      %p190 = scmp.ne.s32.totalorder %s185, %s187
      %p191 = scmp.eq.s32.totalorder %s25, 0
      %p192 = por %p190, %p191
      %p193 = scmp.ne.s32.totalorder %s185, %s187
      %p194 = scmp.eq.s32.totalorder %s30, 1
      %p195 = por %p193, %p194
      %p196 = scmp.ne.s32.totalorder %s187, %s188
      %p197 = scmp.eq.s32.totalorder %s30, 0
      %p198 = por %p196, %p197
      %p199 = scmp.ne.s32.totalorder %s187, %s188
      %p200 = scmp.eq.s32.totalorder %s31, 1
      %p201 = por %p199, %p200
      %p203 = scmp.ne.s32.totalorder %s188, %s202
      %p204 = scmp.eq.s32.totalorder %s31, 0
      %p205 = por %p203, %p204
      %s207 = sadd.s32 %s206, 1
      %p210 = scmp.eq.s32.totalorder %s25, 1
      %p211 = scmp.ne.s32.totalorder %s206, %s208
      %p212 = scmp.eq.s32.totalorder %s25, 0
      %p213 = por %p211, %p212
      %p214 = scmp.ne.s32.totalorder %s206, %s208
      %p215 = scmp.eq.s32.totalorder %s30, 1
      %p216 = por %p214, %p215
      %p217 = scmp.ne.s32.totalorder %s208, %s209
      %p218 = scmp.eq.s32.totalorder %s30, 0
      %p219 = por %p217, %p218
      %p220 = scmp.ne.s32.totalorder %s208, %s209
      %p221 = scmp.eq.s32.totalorder %s31, 1
      %p222 = por %p220, %p221
      %p224 = scmp.ne.s32.totalorder %s209, %s223
      %p225 = scmp.eq.s32.totalorder %s31, 0
      %p226 = por %p224, %p225
      %s227 = ssub.s32 %s25, %s32
      %p228 = scmp.eq.s32.totalorder %s227, 0
      %s230 = sadd.s32 %s229, 1
      %s231 = scalar_select %p228, %s229, %s230
      %p234 = pneg %p228
      %p235 = scmp.eq.s32.totalorder %s25, 1
      %p236 = por %p234, %p235
      %p237 = scmp.ne.s32.totalorder %s229, %s232
      %p238 = scmp.eq.s32.totalorder %s25, 0
      %p239 = por %p237, %p238
      %p240 = scmp.ne.s32.totalorder %s229, %s232
      %p241 = scmp.eq.s32.totalorder %s30, 1
      %p242 = por %p240, %p241
      %p243 = scmp.ne.s32.totalorder %s232, %s233
      %p244 = scmp.eq.s32.totalorder %s30, 0
      %p245 = por %p243, %p244
      %p246 = scmp.ne.s32.totalorder %s232, %s233
      %p247 = scmp.eq.s32.totalorder %s31, 1
      %p248 = por %p246, %p247
      %p250 = scmp.ne.s32.totalorder %s233, %s249
      %p251 = scmp.eq.s32.totalorder %s31, 0
      %p252 = por %p250, %p251
      %p253 = scmp.le.s32.totalorder 1, %s25
      %p254 = scmp.lt.s32.totalorder %s25, 3
      %p255 = pnand %p253, %p254
      %p256 = pneg %p255
      // Predicated region
      $region9: #{tpu_custom_call.1} parent=5 // pred_check
        _
      $region10: #{tpu_custom_call.1} parent=5 // pred_check_branch
        %258 = sbr.rel (%p255) target = $region12
      $region11: #{tpu_custom_call.1} parent=5 // pred_region
        %s259 = ssub.s32 %s25, 1
        // Predicated region
        $region13: #{tpu_custom_call.1} parent=11 // pred_check
          %p260 = pneg %p72
        $region14: #{tpu_custom_call.1} parent=11 // pred_check_branch
          %262 = sbr.rel (%p260) target = $region16
        $region15: #{tpu_custom_call.1} parent=11 // pred_region
          %s264 = ssub.s32 24576, 24576
          %265 = vsyncadd [#allocation6], %s264
          %s266 = sshll.u32 [#allocation5], 4
          %s267 = int_to_ptr.vmem [resolvable:$true] %s266
          %272 = dma.hbm_to_vmem [thread:$0]  %s1, 24576, %s267, [#allocation6], 256, 256, 16
        $region16: #{tpu_custom_call.1} parent=11 // pred_fallthru
          _
        // Predicated region
        $region17: #{tpu_custom_call.1} parent=11 // pred_check
          %p273 = pneg %p93
        $region18: #{tpu_custom_call.1} parent=11 // pred_check_branch
          %275 = sbr.rel (%p273) target = $region20
        $region19: #{tpu_custom_call.1} parent=11 // pred_region
          %s277 = ssub.s32 8192, 8192
          %278 = vsyncadd [#allocation6], %s277
          %s279 = sshll.u32 [#allocation7], 4
          %s280 = int_to_ptr.vmem [resolvable:$true] %s279
          %285 = dma.hbm_to_vmem [thread:$0]  %s2, 8192, %s280, [#allocation6], 128, 128, 8
        $region20: #{tpu_custom_call.1} parent=11 // pred_fallthru
          _
        // Predicated region
        $region21: #{tpu_custom_call.1} parent=11 // pred_check
          %p286 = pneg %p114
        $region22: #{tpu_custom_call.1} parent=11 // pred_check_branch
          %288 = sbr.rel (%p286) target = $region24
        $region23: #{tpu_custom_call.1} parent=11 // pred_region
          %s290 = ssub.s32 2048, 2048
          %291 = vsyncadd [#allocation9], %s290
          %s292 = sshll.u32 [#allocation8], 4
          %s293 = int_to_ptr.vmem [resolvable:$true] %s292
          %298 = dma.hbm_to_vmem [thread:$0]  %s3, 2048, %s293, [#allocation9], 64, 64, 4
        $region24: #{tpu_custom_call.1} parent=11 // pred_fallthru
          _
        // Predicated region
        $region25: #{tpu_custom_call.1} parent=11 // pred_check
          %p299 = pneg %p135
        $region26: #{tpu_custom_call.1} parent=11 // pred_check_branch
          %301 = sbr.rel (%p299) target = $region28
        $region27: #{tpu_custom_call.1} parent=11 // pred_region
          %s303 = ssub.s32 2048, 2048
          %304 = vsyncadd [#allocation9], %s303
          %s305 = sshll.u32 [#allocation10], 4
          %s306 = int_to_ptr.vmem [resolvable:$true] %s305
          %311 = dma.hbm_to_vmem [thread:$0]  %s4, 2048, %s306, [#allocation9], 128, 128, 8
        $region28: #{tpu_custom_call.1} parent=11 // pred_fallthru
          _
        // Predicated region
        $region29: #{tpu_custom_call.1} parent=11 // pred_check
          %p312 = pneg %p156
        $region30: #{tpu_custom_call.1} parent=11 // pred_check_branch
          %314 = sbr.rel (%p312) target = $region32
        $region31: #{tpu_custom_call.1} parent=11 // pred_region
          %s316 = ssub.s32 8192, 8192
          %317 = vsyncadd [#allocation12], %s316
          %s318 = sshll.u32 [#allocation11], 4
          %s319 = int_to_ptr.vmem [resolvable:$true] %s318
          %324 = dma.hbm_to_vmem [thread:$0]  %s5, 8192, %s319, [#allocation12], 256, 256, 16
        $region32: #{tpu_custom_call.1} parent=11 // pred_fallthru
          _
        // Predicated region
        $region33: #{tpu_custom_call.1} parent=11 // pred_check
          %p325 = pneg %p177
        $region34: #{tpu_custom_call.1} parent=11 // pred_check_branch
          %327 = sbr.rel (%p325) target = $region36
        $region35: #{tpu_custom_call.1} parent=11 // pred_region
          %s329 = ssub.s32 8192, 8192
          %330 = vsyncadd [#allocation12], %s329
          %s331 = sshll.u32 [#allocation13], 4
          %s332 = int_to_ptr.vmem [resolvable:$true] %s331
          %337 = dma.hbm_to_vmem [thread:$0]  %s6, 8192, %s332, [#allocation12], 256, 256, 16
        $region36: #{tpu_custom_call.1} parent=11 // pred_fallthru
          _
        // Predicated region
        $region37: #{tpu_custom_call.1} parent=11 // pred_check
          %p338 = pneg %p198
        $region38: #{tpu_custom_call.1} parent=11 // pred_check_branch
          %340 = sbr.rel (%p338) target = $region40
        $region39: #{tpu_custom_call.1} parent=11 // pred_region
          %s342 = ssub.s32 24576, 24576
          %343 = vsyncadd [#allocation15], %s342
          %s344 = sshll.u32 [#allocation14], 4
          %s345 = int_to_ptr.vmem [resolvable:$true] %s344
          %350 = dma.hbm_to_vmem [thread:$0]  %s7, 24576, %s345, [#allocation15], 384, 384, 24
        $region40: #{tpu_custom_call.1} parent=11 // pred_fallthru
          _
        // Predicated region
        $region41: #{tpu_custom_call.1} parent=11 // pred_check
          %p351 = pneg %p219
        $region42: #{tpu_custom_call.1} parent=11 // pred_check_branch
          %353 = sbr.rel (%p351) target = $region44
        $region43: #{tpu_custom_call.1} parent=11 // pred_region
          %s355 = ssub.s32 24576, 24576
          %356 = vsyncadd [#allocation15], %s355
          %s357 = sshll.u32 [#allocation16], 4
          %s358 = int_to_ptr.vmem [resolvable:$true] %s357
          %363 = dma.hbm_to_vmem [thread:$0]  %s8, 24576, %s358, [#allocation15], 384, 384, 24
        $region44: #{tpu_custom_call.1} parent=11 // pred_fallthru
          _
      $region12: #{tpu_custom_call.1} parent=5 // pred_fallthru
        _
      %p364 = scmp.lt.s32.totalorder %s25, 2
      // Predicated region
      $region45: #{tpu_custom_call.1} parent=5 // pred_check
        %p365 = pneg %p364
      $region46: #{tpu_custom_call.1} parent=5 // pred_check_branch
        %367 = sbr.rel (%p365) target = $region48
      $region47: #{tpu_custom_call.1} parent=5 // pred_region
        // Predicated region
        $region49: #{tpu_custom_call.1} parent=47 // pred_check
          %p368 = pneg %p45
        $region50: #{tpu_custom_call.1} parent=47 // pred_check_branch
          %370 = sbr.rel (%p368) target = $region52
        $region51: #{tpu_custom_call.1} parent=47 // pred_region
          %s371 = sand.u32 %s35, 1
          %s372 = scalar_lea.sflag [#allocation3], %s371
          %s373 = sand.u32 %s35, 1
          %s374 = smul.addr %s373, 24
          %s375 = scalar_lea.vmem [#allocation2], %s374
          %s377 = ssub.s32 384, 384
          %378 = vsyncadd %s372, %s377
          %s379 = smul.addr %s25, 6
          %s380 = smul.addr %s379, 64
          %s381 = scalar_lea.hbm %s0, %s380
          %s383 = sshll.u32 %s375, 4
          %s384 = int_to_ptr.vmem [resolvable:$true] %s383
          %386 = dma.hbm_to_vmem [thread:$0]  %s381, 384, %s384, %s372
        $region52: #{tpu_custom_call.1} parent=47 // pred_fallthru
          _
      $region48: #{tpu_custom_call.1} parent=5 // pred_fallthru
        _
      %p387 = scmp.le.s32.totalorder 1, %s25
      %p388 = scmp.lt.s32.totalorder %s25, 3
      %p389 = pnand %p387, %p388
      %p390 = pneg %p389
      // Predicated region
      $region53: #{tpu_custom_call.1} parent=5 // pred_check
        _
      $region54: #{tpu_custom_call.1} parent=5 // pred_check_branch
        %392 = sbr.rel (%p389) target = $region56
      $region55: #{tpu_custom_call.1} parent=5 // pred_region
        %s393 = ssub.s32 %s25, 1
        %s394 = sand.u32 %s38, 1
        %s395 = scalar_lea.sflag [#allocation3], %s394
        %s396 = sand.u32 %s38, 1
        %s397 = smul.addr %s396, 24
        %s398 = scalar_lea.vmem [#allocation2], %s397
        // Predicated region
        $region57: #{tpu_custom_call.1} parent=55 // pred_check
          %p399 = pneg %p51
        $region58: #{tpu_custom_call.1} parent=55 // pred_check_branch
          %401 = sbr.rel (%p399) target = $region60
        $region59: #{tpu_custom_call.1} parent=55 // pred_region
          %402 = dma.done %s395, 384
        $region60: #{tpu_custom_call.1} parent=55 // pred_fallthru
          _
        // Predicated region
        $region61: #{tpu_custom_call.1} parent=55 // pred_check
          %p403 = pneg %p72
        $region62: #{tpu_custom_call.1} parent=55 // pred_check_branch
          %405 = sbr.rel (%p403) target = $region64
        $region63: #{tpu_custom_call.1} parent=55 // pred_region
          %406 = dma.done [#allocation6], 24576
        $region64: #{tpu_custom_call.1} parent=55 // pred_fallthru
          _
        // Predicated region
        $region65: #{tpu_custom_call.1} parent=55 // pred_check
          %p407 = pneg %p93
        $region66: #{tpu_custom_call.1} parent=55 // pred_check_branch
          %409 = sbr.rel (%p407) target = $region68
        $region67: #{tpu_custom_call.1} parent=55 // pred_region
          %410 = dma.done [#allocation6], 8192
        $region68: #{tpu_custom_call.1} parent=55 // pred_fallthru
          _
        // Predicated region
        $region69: #{tpu_custom_call.1} parent=55 // pred_check
          %p411 = pneg %p114
        $region70: #{tpu_custom_call.1} parent=55 // pred_check_branch
          %413 = sbr.rel (%p411) target = $region72
        $region71: #{tpu_custom_call.1} parent=55 // pred_region
          %414 = dma.done [#allocation9], 2048
        $region72: #{tpu_custom_call.1} parent=55 // pred_fallthru
          _
        // Predicated region
        $region73: #{tpu_custom_call.1} parent=55 // pred_check
          %p415 = pneg %p135
        $region74: #{tpu_custom_call.1} parent=55 // pred_check_branch
          %417 = sbr.rel (%p415) target = $region76
        $region75: #{tpu_custom_call.1} parent=55 // pred_region
          %418 = dma.done [#allocation9], 2048
        $region76: #{tpu_custom_call.1} parent=55 // pred_fallthru
          _
        // Predicated region
        $region77: #{tpu_custom_call.1} parent=55 // pred_check
          %p419 = pneg %p156
        $region78: #{tpu_custom_call.1} parent=55 // pred_check_branch
          %421 = sbr.rel (%p419) target = $region80
        $region79: #{tpu_custom_call.1} parent=55 // pred_region
          %422 = dma.done [#allocation12], 8192
        $region80: #{tpu_custom_call.1} parent=55 // pred_fallthru
          _
        // Predicated region
        $region81: #{tpu_custom_call.1} parent=55 // pred_check
          %p423 = pneg %p177
        $region82: #{tpu_custom_call.1} parent=55 // pred_check_branch
          %425 = sbr.rel (%p423) target = $region84
        $region83: #{tpu_custom_call.1} parent=55 // pred_region
          %426 = dma.done [#allocation12], 8192
        $region84: #{tpu_custom_call.1} parent=55 // pred_fallthru
          _
        // Predicated region
        $region85: #{tpu_custom_call.1} parent=55 // pred_check
          %p427 = pneg %p198
        $region86: #{tpu_custom_call.1} parent=55 // pred_check_branch
          %429 = sbr.rel (%p427) target = $region88
        $region87: #{tpu_custom_call.1} parent=55 // pred_region
          %430 = dma.done [#allocation15], 24576
        $region88: #{tpu_custom_call.1} parent=55 // pred_fallthru
          _
        // Predicated region
        $region89: #{tpu_custom_call.1} parent=55 // pred_check
          %p431 = pneg %p219
        $region90: #{tpu_custom_call.1} parent=55 // pred_check_branch
          %433 = sbr.rel (%p431) target = $region92
        $region91: #{tpu_custom_call.1} parent=55 // pred_region
          %434 = dma.done [#allocation15], 24576
        $region92: #{tpu_custom_call.1} parent=55 // pred_fallthru
          _
        %s435 = sand.u32 %s38, 1
        %s436 = scalar_lea.sflag [#allocation3], %s435
        %s437 = sand.u32 %s38, 1
        %s438 = smul.addr %s437, 24
        %s439 = scalar_lea.vmem [#allocation2], %s438
        %p440 = pneg %p51
        %p441 = pneg %p48
        %p442 = pneg %p72
        %p443 = pneg %p69
        %p444 = pneg %p93
        %p445 = pneg %p90
        %p446 = pneg %p114
        %p447 = pneg %p111
        %p448 = pneg %p135
        %p449 = pneg %p132
        %p450 = pneg %p156
        %p451 = pneg %p153
        %p452 = pneg %p177
        %p453 = pneg %p174
        %p454 = pneg %p198
        %p455 = pneg %p195
        %p456 = pneg %p219
        %p457 = pneg %p216
        %p458 = pneg %p245
        %p459 = pneg %p242
        %s460 = sand.u32 %s232, 1
        %s461 = scalar_lea.sflag [#allocation4], %s460
        %s462 = sand.u32 %s232, 1
        %s463 = smul.addr %s462, 48
        %s464 = scalar_lea.vmem [#allocation17], %s463
        %v466 = vld [vmem:[%s398] sm:$0xff]
        %v467 = vld [vmem:[%s398 + $0x8] sm:$0xff]
        %v468 = vld [vmem:[%s398 + $0x10] sm:$0xff]
        %v469 = vld [vmem:[#allocation5] sm:$0xff]
        %v470 = vld [vmem:[#allocation5 + $0x8] sm:$0xff]
        %v471 = vld [vmem:[#allocation5 + $0x10] sm:$0xff]
        %v472 = vld [vmem:[#allocation5 + $0x18] sm:$0xff]
        %v473 = vld [vmem:[#allocation5 + $0x20] sm:$0xff]
        %v474 = vld [vmem:[#allocation5 + $0x28] sm:$0xff]
        %v475 = vld [vmem:[#allocation5 + $0x30] sm:$0xff]
        %v476 = vld [vmem:[#allocation5 + $0x38] sm:$0xff]
        %v477 = vld [vmem:[#allocation5 + $0x40] sm:$0xff]
        %v478 = vld [vmem:[#allocation5 + $0x48] sm:$0xff]
        %v479 = vld [vmem:[#allocation5 + $0x50] sm:$0xff]
        %v480 = vld [vmem:[#allocation5 + $0x58] sm:$0xff]
        %v481 = vld [vmem:[#allocation5 + $0x60] sm:$0xff]
        %v482 = vld [vmem:[#allocation5 + $0x68] sm:$0xff]
        %v483 = vld [vmem:[#allocation5 + $0x70] sm:$0xff]
        %v484 = vld [vmem:[#allocation5 + $0x78] sm:$0xff]
        %v485 = vld [vmem:[#allocation5 + $0x80] sm:$0xff]
        %v486 = vld [vmem:[#allocation5 + $0x88] sm:$0xff]
        %v487 = vld [vmem:[#allocation5 + $0x90] sm:$0xff]
        %v488 = vld [vmem:[#allocation5 + $0x98] sm:$0xff]
        %v489 = vld [vmem:[#allocation5 + $0xa0] sm:$0xff]
        %v490 = vld [vmem:[#allocation5 + $0xa8] sm:$0xff]
        %v491 = vld [vmem:[#allocation5 + $0xb0] sm:$0xff]
        %v492 = vld [vmem:[#allocation5 + $0xb8] sm:$0xff]
        %v493 = vld [vmem:[#allocation5 + $0xc0] sm:$0xff]
        %v494 = vld [vmem:[#allocation5 + $0xc8] sm:$0xff]
        %v495 = vld [vmem:[#allocation5 + $0xd0] sm:$0xff]
        %v496 = vld [vmem:[#allocation5 + $0xd8] sm:$0xff]
        %v497 = vld [vmem:[#allocation5 + $0xe0] sm:$0xff]
        %v498 = vld [vmem:[#allocation5 + $0xe8] sm:$0xff]
        %v499 = vld [vmem:[#allocation5 + $0xf0] sm:$0xff]
        %v500 = vld [vmem:[#allocation5 + $0xf8] sm:$0xff]
        %v501 = vld [vmem:[#allocation5 + $0x100] sm:$0xff]
        %v502 = vld [vmem:[#allocation5 + $0x108] sm:$0xff]
        %v503 = vld [vmem:[#allocation5 + $0x110] sm:$0xff]
        %v504 = vld [vmem:[#allocation5 + $0x118] sm:$0xff]
        %v505 = vld [vmem:[#allocation5 + $0x120] sm:$0xff]
        %v506 = vld [vmem:[#allocation5 + $0x128] sm:$0xff]
        %v507 = vld [vmem:[#allocation5 + $0x130] sm:$0xff]
        %v508 = vld [vmem:[#allocation5 + $0x138] sm:$0xff]
        %v509 = vld [vmem:[#allocation5 + $0x140] sm:$0xff]
        %v510 = vld [vmem:[#allocation5 + $0x148] sm:$0xff]
        %v511 = vld [vmem:[#allocation5 + $0x150] sm:$0xff]
        %v512 = vld [vmem:[#allocation5 + $0x158] sm:$0xff]
        %v513 = vld [vmem:[#allocation5 + $0x160] sm:$0xff]
        %v514 = vld [vmem:[#allocation5 + $0x168] sm:$0xff]
        %v515 = vld [vmem:[#allocation5 + $0x170] sm:$0xff]
        %v516 = vld [vmem:[#allocation5 + $0x178] sm:$0xff]
        %v517 = vld [vmem:[#allocation5 + $0x180] sm:$0xff]
        %v518 = vld [vmem:[#allocation5 + $0x188] sm:$0xff]
        %v519 = vld [vmem:[#allocation5 + $0x190] sm:$0xff]
        %v520 = vld [vmem:[#allocation5 + $0x198] sm:$0xff]
        %v521 = vld [vmem:[#allocation5 + $0x1a0] sm:$0xff]
        %v522 = vld [vmem:[#allocation5 + $0x1a8] sm:$0xff]
        %v523 = vld [vmem:[#allocation5 + $0x1b0] sm:$0xff]
        %v524 = vld [vmem:[#allocation5 + $0x1b8] sm:$0xff]
        %v525 = vld [vmem:[#allocation5 + $0x1c0] sm:$0xff]
        %v526 = vld [vmem:[#allocation5 + $0x1c8] sm:$0xff]
        %v527 = vld [vmem:[#allocation5 + $0x1d0] sm:$0xff]
        %v528 = vld [vmem:[#allocation5 + $0x1d8] sm:$0xff]
        %v529 = vld [vmem:[#allocation5 + $0x1e0] sm:$0xff]
        %v530 = vld [vmem:[#allocation5 + $0x1e8] sm:$0xff]
        %v531 = vld [vmem:[#allocation5 + $0x1f0] sm:$0xff]
        %v532 = vld [vmem:[#allocation5 + $0x1f8] sm:$0xff]
        %v533 = vld [vmem:[#allocation5 + $0x200] sm:$0xff]
        %v534 = vld [vmem:[#allocation5 + $0x208] sm:$0xff]
        %v535 = vld [vmem:[#allocation5 + $0x210] sm:$0xff]
        %v536 = vld [vmem:[#allocation5 + $0x218] sm:$0xff]
        %v537 = vld [vmem:[#allocation5 + $0x220] sm:$0xff]
        %v538 = vld [vmem:[#allocation5 + $0x228] sm:$0xff]
        %v539 = vld [vmem:[#allocation5 + $0x230] sm:$0xff]
        %v540 = vld [vmem:[#allocation5 + $0x238] sm:$0xff]
        %v541 = vld [vmem:[#allocation5 + $0x240] sm:$0xff]
        %v542 = vld [vmem:[#allocation5 + $0x248] sm:$0xff]
        %v543 = vld [vmem:[#allocation5 + $0x250] sm:$0xff]
        %v544 = vld [vmem:[#allocation5 + $0x258] sm:$0xff]
        %v545 = vld [vmem:[#allocation5 + $0x260] sm:$0xff]
        %v546 = vld [vmem:[#allocation5 + $0x268] sm:$0xff]
        %v547 = vld [vmem:[#allocation5 + $0x270] sm:$0xff]
        %v548 = vld [vmem:[#allocation5 + $0x278] sm:$0xff]
        %v549 = vld [vmem:[#allocation5 + $0x280] sm:$0xff]
        %v550 = vld [vmem:[#allocation5 + $0x288] sm:$0xff]
        %v551 = vld [vmem:[#allocation5 + $0x290] sm:$0xff]
        %v552 = vld [vmem:[#allocation5 + $0x298] sm:$0xff]
        %v553 = vld [vmem:[#allocation5 + $0x2a0] sm:$0xff]
        %v554 = vld [vmem:[#allocation5 + $0x2a8] sm:$0xff]
        %v555 = vld [vmem:[#allocation5 + $0x2b0] sm:$0xff]
        %v556 = vld [vmem:[#allocation5 + $0x2b8] sm:$0xff]
        %v557 = vld [vmem:[#allocation5 + $0x2c0] sm:$0xff]
        %v558 = vld [vmem:[#allocation5 + $0x2c8] sm:$0xff]
        %v559 = vld [vmem:[#allocation5 + $0x2d0] sm:$0xff]
        %v560 = vld [vmem:[#allocation5 + $0x2d8] sm:$0xff]
        %v561 = vld [vmem:[#allocation5 + $0x2e0] sm:$0xff]
        %v562 = vld [vmem:[#allocation5 + $0x2e8] sm:$0xff]
        %v563 = vld [vmem:[#allocation5 + $0x2f0] sm:$0xff]
        %v564 = vld [vmem:[#allocation5 + $0x2f8] sm:$0xff]
        %v565 = vld [vmem:[#allocation5 + $0x300] sm:$0xff]
        %v566 = vld [vmem:[#allocation5 + $0x308] sm:$0xff]
        %v567 = vld [vmem:[#allocation5 + $0x310] sm:$0xff]
        %v568 = vld [vmem:[#allocation5 + $0x318] sm:$0xff]
        %v569 = vld [vmem:[#allocation5 + $0x320] sm:$0xff]
        %v570 = vld [vmem:[#allocation5 + $0x328] sm:$0xff]
        %v571 = vld [vmem:[#allocation5 + $0x330] sm:$0xff]
        %v572 = vld [vmem:[#allocation5 + $0x338] sm:$0xff]
        %v573 = vld [vmem:[#allocation5 + $0x340] sm:$0xff]
        %v574 = vld [vmem:[#allocation5 + $0x348] sm:$0xff]
        %v575 = vld [vmem:[#allocation5 + $0x350] sm:$0xff]
        %v576 = vld [vmem:[#allocation5 + $0x358] sm:$0xff]
        %v577 = vld [vmem:[#allocation5 + $0x360] sm:$0xff]
        %v578 = vld [vmem:[#allocation5 + $0x368] sm:$0xff]
        %v579 = vld [vmem:[#allocation5 + $0x370] sm:$0xff]
        %v580 = vld [vmem:[#allocation5 + $0x378] sm:$0xff]
        %v581 = vld [vmem:[#allocation5 + $0x380] sm:$0xff]
        %v582 = vld [vmem:[#allocation5 + $0x388] sm:$0xff]
        %v583 = vld [vmem:[#allocation5 + $0x390] sm:$0xff]
        %v584 = vld [vmem:[#allocation5 + $0x398] sm:$0xff]
        %v585 = vld [vmem:[#allocation5 + $0x3a0] sm:$0xff]
        %v586 = vld [vmem:[#allocation5 + $0x3a8] sm:$0xff]
        %v587 = vld [vmem:[#allocation5 + $0x3b0] sm:$0xff]
        %v588 = vld [vmem:[#allocation5 + $0x3b8] sm:$0xff]
        %v589 = vld [vmem:[#allocation5 + $0x3c0] sm:$0xff]
        %v590 = vld [vmem:[#allocation5 + $0x3c8] sm:$0xff]
        %v591 = vld [vmem:[#allocation5 + $0x3d0] sm:$0xff]
        %v592 = vld [vmem:[#allocation5 + $0x3d8] sm:$0xff]
        %v593 = vld [vmem:[#allocation5 + $0x3e0] sm:$0xff]
        %v594 = vld [vmem:[#allocation5 + $0x3e8] sm:$0xff]
        %v595 = vld [vmem:[#allocation5 + $0x3f0] sm:$0xff]
        %v596 = vld [vmem:[#allocation5 + $0x3f8] sm:$0xff]
        %v597 = vld [vmem:[#allocation5 + $0x400] sm:$0xff]
        %v598 = vld [vmem:[#allocation5 + $0x408] sm:$0xff]
        %v599 = vld [vmem:[#allocation5 + $0x410] sm:$0xff]
        %v600 = vld [vmem:[#allocation5 + $0x418] sm:$0xff]
        %v601 = vld [vmem:[#allocation5 + $0x420] sm:$0xff]
        %v602 = vld [vmem:[#allocation5 + $0x428] sm:$0xff]
        %v603 = vld [vmem:[#allocation5 + $0x430] sm:$0xff]
        %v604 = vld [vmem:[#allocation5 + $0x438] sm:$0xff]
        %v605 = vld [vmem:[#allocation5 + $0x440] sm:$0xff]
        %v606 = vld [vmem:[#allocation5 + $0x448] sm:$0xff]
        %v607 = vld [vmem:[#allocation5 + $0x450] sm:$0xff]
        %v608 = vld [vmem:[#allocation5 + $0x458] sm:$0xff]
        %v609 = vld [vmem:[#allocation5 + $0x460] sm:$0xff]
        %v610 = vld [vmem:[#allocation5 + $0x468] sm:$0xff]
        %v611 = vld [vmem:[#allocation5 + $0x470] sm:$0xff]
        %v612 = vld [vmem:[#allocation5 + $0x478] sm:$0xff]
        %v613 = vld [vmem:[#allocation5 + $0x480] sm:$0xff]
        %v614 = vld [vmem:[#allocation5 + $0x488] sm:$0xff]
        %v615 = vld [vmem:[#allocation5 + $0x490] sm:$0xff]
        %v616 = vld [vmem:[#allocation5 + $0x498] sm:$0xff]
        %v617 = vld [vmem:[#allocation5 + $0x4a0] sm:$0xff]
        %v618 = vld [vmem:[#allocation5 + $0x4a8] sm:$0xff]
        %v619 = vld [vmem:[#allocation5 + $0x4b0] sm:$0xff]
        %v620 = vld [vmem:[#allocation5 + $0x4b8] sm:$0xff]
        %v621 = vld [vmem:[#allocation5 + $0x4c0] sm:$0xff]
        %v622 = vld [vmem:[#allocation5 + $0x4c8] sm:$0xff]
        %v623 = vld [vmem:[#allocation5 + $0x4d0] sm:$0xff]
        %v624 = vld [vmem:[#allocation5 + $0x4d8] sm:$0xff]
        %v625 = vld [vmem:[#allocation5 + $0x4e0] sm:$0xff]
        %v626 = vld [vmem:[#allocation5 + $0x4e8] sm:$0xff]
        %v627 = vld [vmem:[#allocation5 + $0x4f0] sm:$0xff]
        %v628 = vld [vmem:[#allocation5 + $0x4f8] sm:$0xff]
        %v629 = vld [vmem:[#allocation5 + $0x500] sm:$0xff]
        %v630 = vld [vmem:[#allocation5 + $0x508] sm:$0xff]
        %v631 = vld [vmem:[#allocation5 + $0x510] sm:$0xff]
        %v632 = vld [vmem:[#allocation5 + $0x518] sm:$0xff]
        %v633 = vld [vmem:[#allocation5 + $0x520] sm:$0xff]
        %v634 = vld [vmem:[#allocation5 + $0x528] sm:$0xff]
        %v635 = vld [vmem:[#allocation5 + $0x530] sm:$0xff]
        %v636 = vld [vmem:[#allocation5 + $0x538] sm:$0xff]
        %v637 = vld [vmem:[#allocation5 + $0x540] sm:$0xff]
        %v638 = vld [vmem:[#allocation5 + $0x548] sm:$0xff]
        %v639 = vld [vmem:[#allocation5 + $0x550] sm:$0xff]
        %v640 = vld [vmem:[#allocation5 + $0x558] sm:$0xff]
        %v641 = vld [vmem:[#allocation5 + $0x560] sm:$0xff]
        %v642 = vld [vmem:[#allocation5 + $0x568] sm:$0xff]
        %v643 = vld [vmem:[#allocation5 + $0x570] sm:$0xff]
        %v644 = vld [vmem:[#allocation5 + $0x578] sm:$0xff]
        %v645 = vld [vmem:[#allocation5 + $0x580] sm:$0xff]
        %v646 = vld [vmem:[#allocation5 + $0x588] sm:$0xff]
        %v647 = vld [vmem:[#allocation5 + $0x590] sm:$0xff]
        %v648 = vld [vmem:[#allocation5 + $0x598] sm:$0xff]
        %v649 = vld [vmem:[#allocation5 + $0x5a0] sm:$0xff]
        %v650 = vld [vmem:[#allocation5 + $0x5a8] sm:$0xff]
        %v651 = vld [vmem:[#allocation5 + $0x5b0] sm:$0xff]
        %v652 = vld [vmem:[#allocation5 + $0x5b8] sm:$0xff]
        %v653 = vld [vmem:[#allocation5 + $0x5c0] sm:$0xff]
        %v654 = vld [vmem:[#allocation5 + $0x5c8] sm:$0xff]
        %v655 = vld [vmem:[#allocation5 + $0x5d0] sm:$0xff]
        %v656 = vld [vmem:[#allocation5 + $0x5d8] sm:$0xff]
        %v657 = vld [vmem:[#allocation5 + $0x5e0] sm:$0xff]
        %v658 = vld [vmem:[#allocation5 + $0x5e8] sm:$0xff]
        %v659 = vld [vmem:[#allocation5 + $0x5f0] sm:$0xff]
        %v660 = vld [vmem:[#allocation5 + $0x5f8] sm:$0xff]
        %v664 = vunpack.c.l.b16 %v466
        %v665 = vunpack.c.h.b16 %v466
        %v666 = vunpack.c.l.b16 %v467
        %v667 = vunpack.c.h.b16 %v467
        %v668 = vunpack.c.l.b16 %v468
        %v669 = vunpack.c.h.b16 %v468
        %v670 = vpack.c.b16 %v664, %v664
        %v671 = vpack.c.b16 %v665, %v665
        %v672 = vpack.c.b16 %v666, %v666
        %v673 = vpack.c.b16 %v667, %v667
        %v674 = vpack.c.b16 %v668, %v668
        %v675 = vpack.c.b16 %v669, %v669
        %v874 = vunpack.c.l.b16 %v469
        %v875 = vunpack.c.h.b16 %v469
        %v876 = vunpack.c.l.b16 %v470
        %v877 = vunpack.c.h.b16 %v470
        %v878 = vunpack.c.l.b16 %v471
        %v879 = vunpack.c.h.b16 %v471
        %v880 = vunpack.c.l.b16 %v472
        %v881 = vunpack.c.h.b16 %v472
        %v882 = vunpack.c.l.b16 %v473
        %v883 = vunpack.c.h.b16 %v473
        %v884 = vunpack.c.l.b16 %v474
        %v885 = vunpack.c.h.b16 %v474
        %v886 = vunpack.c.l.b16 %v475
        %v887 = vunpack.c.h.b16 %v475
        %v888 = vunpack.c.l.b16 %v476
        %v889 = vunpack.c.h.b16 %v476
        %v890 = vunpack.c.l.b16 %v477
        %v891 = vunpack.c.h.b16 %v477
        %v892 = vunpack.c.l.b16 %v478
        %v893 = vunpack.c.h.b16 %v478
        %v894 = vunpack.c.l.b16 %v479
        %v895 = vunpack.c.h.b16 %v479
        %v896 = vunpack.c.l.b16 %v480
        %v897 = vunpack.c.h.b16 %v480
        %v898 = vunpack.c.l.b16 %v481
        %v899 = vunpack.c.h.b16 %v481
        %v900 = vunpack.c.l.b16 %v482
        %v901 = vunpack.c.h.b16 %v482
        %v902 = vunpack.c.l.b16 %v483
        %v903 = vunpack.c.h.b16 %v483
        %v904 = vunpack.c.l.b16 %v484
        %v905 = vunpack.c.h.b16 %v484
        %v906 = vunpack.c.l.b16 %v485
        %v907 = vunpack.c.h.b16 %v485
        %v908 = vunpack.c.l.b16 %v486
        %v909 = vunpack.c.h.b16 %v486
        %v910 = vunpack.c.l.b16 %v487
        %v911 = vunpack.c.h.b16 %v487
        %v912 = vunpack.c.l.b16 %v488
        %v913 = vunpack.c.h.b16 %v488
        %v914 = vunpack.c.l.b16 %v489
        %v915 = vunpack.c.h.b16 %v489
        %v916 = vunpack.c.l.b16 %v490
        %v917 = vunpack.c.h.b16 %v490
        %v918 = vunpack.c.l.b16 %v491
        %v919 = vunpack.c.h.b16 %v491
        %v920 = vunpack.c.l.b16 %v492
        %v921 = vunpack.c.h.b16 %v492
        %v922 = vunpack.c.l.b16 %v493
        %v923 = vunpack.c.h.b16 %v493
        %v924 = vunpack.c.l.b16 %v494
        %v925 = vunpack.c.h.b16 %v494
        %v926 = vunpack.c.l.b16 %v495
        %v927 = vunpack.c.h.b16 %v495
        %v928 = vunpack.c.l.b16 %v496
        %v929 = vunpack.c.h.b16 %v496
        %v930 = vunpack.c.l.b16 %v497
        %v931 = vunpack.c.h.b16 %v497
        %v932 = vunpack.c.l.b16 %v498
        %v933 = vunpack.c.h.b16 %v498
        %v934 = vunpack.c.l.b16 %v499
        %v935 = vunpack.c.h.b16 %v499
        %v936 = vunpack.c.l.b16 %v500
        %v937 = vunpack.c.h.b16 %v500
        %v938 = vunpack.c.l.b16 %v501
        %v939 = vunpack.c.h.b16 %v501
        %v940 = vunpack.c.l.b16 %v502
        %v941 = vunpack.c.h.b16 %v502
        %v942 = vunpack.c.l.b16 %v503
        %v943 = vunpack.c.h.b16 %v503
        %v944 = vunpack.c.l.b16 %v504
        %v945 = vunpack.c.h.b16 %v504
        %v946 = vunpack.c.l.b16 %v505
        %v947 = vunpack.c.h.b16 %v505
        %v948 = vunpack.c.l.b16 %v506
        %v949 = vunpack.c.h.b16 %v506
        %v950 = vunpack.c.l.b16 %v507
        %v951 = vunpack.c.h.b16 %v507
        %v952 = vunpack.c.l.b16 %v508
        %v953 = vunpack.c.h.b16 %v508
        %v954 = vunpack.c.l.b16 %v509
        %v955 = vunpack.c.h.b16 %v509
        %v956 = vunpack.c.l.b16 %v510
        %v957 = vunpack.c.h.b16 %v510
        %v958 = vunpack.c.l.b16 %v511
        %v959 = vunpack.c.h.b16 %v511
        %v960 = vunpack.c.l.b16 %v512
        %v961 = vunpack.c.h.b16 %v512
        %v962 = vunpack.c.l.b16 %v513
        %v963 = vunpack.c.h.b16 %v513
        %v964 = vunpack.c.l.b16 %v514
        %v965 = vunpack.c.h.b16 %v514
        %v966 = vunpack.c.l.b16 %v515
        %v967 = vunpack.c.h.b16 %v515
        %v968 = vunpack.c.l.b16 %v516
        %v969 = vunpack.c.h.b16 %v516
        %v970 = vunpack.c.l.b16 %v517
        %v971 = vunpack.c.h.b16 %v517
        %v972 = vunpack.c.l.b16 %v518
        %v973 = vunpack.c.h.b16 %v518
        %v974 = vunpack.c.l.b16 %v519
        %v975 = vunpack.c.h.b16 %v519
        %v976 = vunpack.c.l.b16 %v520
        %v977 = vunpack.c.h.b16 %v520
        %v978 = vunpack.c.l.b16 %v521
        %v979 = vunpack.c.h.b16 %v521
        %v980 = vunpack.c.l.b16 %v522
        %v981 = vunpack.c.h.b16 %v522
        %v982 = vunpack.c.l.b16 %v523
        %v983 = vunpack.c.h.b16 %v523
        %v984 = vunpack.c.l.b16 %v524
        %v985 = vunpack.c.h.b16 %v524
        %v986 = vunpack.c.l.b16 %v525
        %v987 = vunpack.c.h.b16 %v525
        %v988 = vunpack.c.l.b16 %v526
        %v989 = vunpack.c.h.b16 %v526
        %v990 = vunpack.c.l.b16 %v527
        %v991 = vunpack.c.h.b16 %v527
        %v992 = vunpack.c.l.b16 %v528
        %v993 = vunpack.c.h.b16 %v528
        %v994 = vunpack.c.l.b16 %v529
        %v995 = vunpack.c.h.b16 %v529
        %v996 = vunpack.c.l.b16 %v530
        %v997 = vunpack.c.h.b16 %v530
        %v998 = vunpack.c.l.b16 %v531
        %v999 = vunpack.c.h.b16 %v531
        %v1000 = vunpack.c.l.b16 %v532
        %v1001 = vunpack.c.h.b16 %v532
        %v1002 = vunpack.c.l.b16 %v533
        %v1003 = vunpack.c.h.b16 %v533
        %v1004 = vunpack.c.l.b16 %v534
        %v1005 = vunpack.c.h.b16 %v534
        %v1006 = vunpack.c.l.b16 %v535
        %v1007 = vunpack.c.h.b16 %v535
        %v1008 = vunpack.c.l.b16 %v536
        %v1009 = vunpack.c.h.b16 %v536
        %v1010 = vunpack.c.l.b16 %v537
        %v1011 = vunpack.c.h.b16 %v537
        %v1012 = vunpack.c.l.b16 %v538
        %v1013 = vunpack.c.h.b16 %v538
        %v1014 = vunpack.c.l.b16 %v539
        %v1015 = vunpack.c.h.b16 %v539
        %v1016 = vunpack.c.l.b16 %v540
        %v1017 = vunpack.c.h.b16 %v540
        %v1018 = vunpack.c.l.b16 %v541
        %v1019 = vunpack.c.h.b16 %v541
        %v1020 = vunpack.c.l.b16 %v542
        %v1021 = vunpack.c.h.b16 %v542
        %v1022 = vunpack.c.l.b16 %v543
        %v1023 = vunpack.c.h.b16 %v543
        %v1024 = vunpack.c.l.b16 %v544
        %v1025 = vunpack.c.h.b16 %v544
        %v1026 = vunpack.c.l.b16 %v545
        %v1027 = vunpack.c.h.b16 %v545
        %v1028 = vunpack.c.l.b16 %v546
        %v1029 = vunpack.c.h.b16 %v546
        %v1030 = vunpack.c.l.b16 %v547
        %v1031 = vunpack.c.h.b16 %v547
        %v1032 = vunpack.c.l.b16 %v548
        %v1033 = vunpack.c.h.b16 %v548
        %v1034 = vunpack.c.l.b16 %v549
        %v1035 = vunpack.c.h.b16 %v549
        %v1036 = vunpack.c.l.b16 %v550
        %v1037 = vunpack.c.h.b16 %v550
        %v1038 = vunpack.c.l.b16 %v551
        %v1039 = vunpack.c.h.b16 %v551
        %v1040 = vunpack.c.l.b16 %v552
        %v1041 = vunpack.c.h.b16 %v552
        %v1042 = vunpack.c.l.b16 %v553
        %v1043 = vunpack.c.h.b16 %v553
        %v1044 = vunpack.c.l.b16 %v554
        %v1045 = vunpack.c.h.b16 %v554
        %v1046 = vunpack.c.l.b16 %v555
        %v1047 = vunpack.c.h.b16 %v555
        %v1048 = vunpack.c.l.b16 %v556
        %v1049 = vunpack.c.h.b16 %v556
        %v1050 = vunpack.c.l.b16 %v557
        %v1051 = vunpack.c.h.b16 %v557
        %v1052 = vunpack.c.l.b16 %v558
        %v1053 = vunpack.c.h.b16 %v558
        %v1054 = vunpack.c.l.b16 %v559
        %v1055 = vunpack.c.h.b16 %v559
        %v1056 = vunpack.c.l.b16 %v560
        %v1057 = vunpack.c.h.b16 %v560
        %v1058 = vunpack.c.l.b16 %v561
        %v1059 = vunpack.c.h.b16 %v561
        %v1060 = vunpack.c.l.b16 %v562
        %v1061 = vunpack.c.h.b16 %v562
        %v1062 = vunpack.c.l.b16 %v563
        %v1063 = vunpack.c.h.b16 %v563
        %v1064 = vunpack.c.l.b16 %v564
        %v1065 = vunpack.c.h.b16 %v564
        %v1066 = vunpack.c.l.b16 %v565
        %v1067 = vunpack.c.h.b16 %v565
        %v1068 = vunpack.c.l.b16 %v566
        %v1069 = vunpack.c.h.b16 %v566
        %v1070 = vunpack.c.l.b16 %v567
        %v1071 = vunpack.c.h.b16 %v567
        %v1072 = vunpack.c.l.b16 %v568
        %v1073 = vunpack.c.h.b16 %v568
        %v1074 = vunpack.c.l.b16 %v569
        %v1075 = vunpack.c.h.b16 %v569
        %v1076 = vunpack.c.l.b16 %v570
        %v1077 = vunpack.c.h.b16 %v570
        %v1078 = vunpack.c.l.b16 %v571
        %v1079 = vunpack.c.h.b16 %v571
        %v1080 = vunpack.c.l.b16 %v572
        %v1081 = vunpack.c.h.b16 %v572
        %v1082 = vunpack.c.l.b16 %v573
        %v1083 = vunpack.c.h.b16 %v573
        %v1084 = vunpack.c.l.b16 %v574
        %v1085 = vunpack.c.h.b16 %v574
        %v1086 = vunpack.c.l.b16 %v575
        %v1087 = vunpack.c.h.b16 %v575
        %v1088 = vunpack.c.l.b16 %v576
        %v1089 = vunpack.c.h.b16 %v576
        %v1090 = vunpack.c.l.b16 %v577
        %v1091 = vunpack.c.h.b16 %v577
        %v1092 = vunpack.c.l.b16 %v578
        %v1093 = vunpack.c.h.b16 %v578
        %v1094 = vunpack.c.l.b16 %v579
        %v1095 = vunpack.c.h.b16 %v579
        %v1096 = vunpack.c.l.b16 %v580
        %v1097 = vunpack.c.h.b16 %v580
        %v1098 = vunpack.c.l.b16 %v581
        %v1099 = vunpack.c.h.b16 %v581
        %v1100 = vunpack.c.l.b16 %v582
        %v1101 = vunpack.c.h.b16 %v582
        %v1102 = vunpack.c.l.b16 %v583
        %v1103 = vunpack.c.h.b16 %v583
        %v1104 = vunpack.c.l.b16 %v584
        %v1105 = vunpack.c.h.b16 %v584
        %v1106 = vunpack.c.l.b16 %v585
        %v1107 = vunpack.c.h.b16 %v585
        %v1108 = vunpack.c.l.b16 %v586
        %v1109 = vunpack.c.h.b16 %v586
        %v1110 = vunpack.c.l.b16 %v587
        %v1111 = vunpack.c.h.b16 %v587
        %v1112 = vunpack.c.l.b16 %v588
        %v1113 = vunpack.c.h.b16 %v588
        %v1114 = vunpack.c.l.b16 %v589
        %v1115 = vunpack.c.h.b16 %v589
        %v1116 = vunpack.c.l.b16 %v590
        %v1117 = vunpack.c.h.b16 %v590
        %v1118 = vunpack.c.l.b16 %v591
        %v1119 = vunpack.c.h.b16 %v591
        %v1120 = vunpack.c.l.b16 %v592
        %v1121 = vunpack.c.h.b16 %v592
        %v1122 = vunpack.c.l.b16 %v593
        %v1123 = vunpack.c.h.b16 %v593
        %v1124 = vunpack.c.l.b16 %v594
        %v1125 = vunpack.c.h.b16 %v594
        %v1126 = vunpack.c.l.b16 %v595
        %v1127 = vunpack.c.h.b16 %v595
        %v1128 = vunpack.c.l.b16 %v596
        %v1129 = vunpack.c.h.b16 %v596
        %v1130 = vunpack.c.l.b16 %v597
        %v1131 = vunpack.c.h.b16 %v597
        %v1132 = vunpack.c.l.b16 %v598
        %v1133 = vunpack.c.h.b16 %v598
        %v1134 = vunpack.c.l.b16 %v599
        %v1135 = vunpack.c.h.b16 %v599
        %v1136 = vunpack.c.l.b16 %v600
        %v1137 = vunpack.c.h.b16 %v600
        %v1138 = vunpack.c.l.b16 %v601
        %v1139 = vunpack.c.h.b16 %v601
        %v1140 = vunpack.c.l.b16 %v602
        %v1141 = vunpack.c.h.b16 %v602
        %v1142 = vunpack.c.l.b16 %v603
        %v1143 = vunpack.c.h.b16 %v603
        %v1144 = vunpack.c.l.b16 %v604
        %v1145 = vunpack.c.h.b16 %v604
        %v1146 = vunpack.c.l.b16 %v605
        %v1147 = vunpack.c.h.b16 %v605
        %v1148 = vunpack.c.l.b16 %v606
        %v1149 = vunpack.c.h.b16 %v606
        %v1150 = vunpack.c.l.b16 %v607
        %v1151 = vunpack.c.h.b16 %v607
        %v1152 = vunpack.c.l.b16 %v608
        %v1153 = vunpack.c.h.b16 %v608
        %v1154 = vunpack.c.l.b16 %v609
        %v1155 = vunpack.c.h.b16 %v609
        %v1156 = vunpack.c.l.b16 %v610
        %v1157 = vunpack.c.h.b16 %v610
        %v1158 = vunpack.c.l.b16 %v611
        %v1159 = vunpack.c.h.b16 %v611
        %v1160 = vunpack.c.l.b16 %v612
        %v1161 = vunpack.c.h.b16 %v612
        %v1162 = vunpack.c.l.b16 %v613
        %v1163 = vunpack.c.h.b16 %v613
        %v1164 = vunpack.c.l.b16 %v614
        %v1165 = vunpack.c.h.b16 %v614
        %v1166 = vunpack.c.l.b16 %v615
        %v1167 = vunpack.c.h.b16 %v615
        %v1168 = vunpack.c.l.b16 %v616
        %v1169 = vunpack.c.h.b16 %v616
        %v1170 = vunpack.c.l.b16 %v617
        %v1171 = vunpack.c.h.b16 %v617
        %v1172 = vunpack.c.l.b16 %v618
        %v1173 = vunpack.c.h.b16 %v618
        %v1174 = vunpack.c.l.b16 %v619
        %v1175 = vunpack.c.h.b16 %v619
        %v1176 = vunpack.c.l.b16 %v620
        %v1177 = vunpack.c.h.b16 %v620
        %v1178 = vunpack.c.l.b16 %v621
        %v1179 = vunpack.c.h.b16 %v621
        %v1180 = vunpack.c.l.b16 %v622
        %v1181 = vunpack.c.h.b16 %v622
        %v1182 = vunpack.c.l.b16 %v623
        %v1183 = vunpack.c.h.b16 %v623
        %v1184 = vunpack.c.l.b16 %v624
        %v1185 = vunpack.c.h.b16 %v624
        %v1186 = vunpack.c.l.b16 %v625
        %v1187 = vunpack.c.h.b16 %v625
        %v1188 = vunpack.c.l.b16 %v626
        %v1189 = vunpack.c.h.b16 %v626
        %v1190 = vunpack.c.l.b16 %v627
        %v1191 = vunpack.c.h.b16 %v627
        %v1192 = vunpack.c.l.b16 %v628
        %v1193 = vunpack.c.h.b16 %v628
        %v1194 = vunpack.c.l.b16 %v629
        %v1195 = vunpack.c.h.b16 %v629
        %v1196 = vunpack.c.l.b16 %v630
        %v1197 = vunpack.c.h.b16 %v630
        %v1198 = vunpack.c.l.b16 %v631
        %v1199 = vunpack.c.h.b16 %v631
        %v1200 = vunpack.c.l.b16 %v632
        %v1201 = vunpack.c.h.b16 %v632
        %v1202 = vunpack.c.l.b16 %v633
        %v1203 = vunpack.c.h.b16 %v633
        %v1204 = vunpack.c.l.b16 %v634
        %v1205 = vunpack.c.h.b16 %v634
        %v1206 = vunpack.c.l.b16 %v635
        %v1207 = vunpack.c.h.b16 %v635
        %v1208 = vunpack.c.l.b16 %v636
        %v1209 = vunpack.c.h.b16 %v636
        %v1210 = vunpack.c.l.b16 %v637
        %v1211 = vunpack.c.h.b16 %v637
        %v1212 = vunpack.c.l.b16 %v638
        %v1213 = vunpack.c.h.b16 %v638
        %v1214 = vunpack.c.l.b16 %v639
        %v1215 = vunpack.c.h.b16 %v639
        %v1216 = vunpack.c.l.b16 %v640
        %v1217 = vunpack.c.h.b16 %v640
        %v1218 = vunpack.c.l.b16 %v641
        %v1219 = vunpack.c.h.b16 %v641
        %v1220 = vunpack.c.l.b16 %v642
        %v1221 = vunpack.c.h.b16 %v642
        %v1222 = vunpack.c.l.b16 %v643
        %v1223 = vunpack.c.h.b16 %v643
        %v1224 = vunpack.c.l.b16 %v644
        %v1225 = vunpack.c.h.b16 %v644
        %v1226 = vunpack.c.l.b16 %v645
        %v1227 = vunpack.c.h.b16 %v645
        %v1228 = vunpack.c.l.b16 %v646
        %v1229 = vunpack.c.h.b16 %v646
        %v1230 = vunpack.c.l.b16 %v647
        %v1231 = vunpack.c.h.b16 %v647
        %v1232 = vunpack.c.l.b16 %v648
        %v1233 = vunpack.c.h.b16 %v648
        %v1234 = vunpack.c.l.b16 %v649
        %v1235 = vunpack.c.h.b16 %v649
        %v1236 = vunpack.c.l.b16 %v650
        %v1237 = vunpack.c.h.b16 %v650
        %v1238 = vunpack.c.l.b16 %v651
        %v1239 = vunpack.c.h.b16 %v651
        %v1240 = vunpack.c.l.b16 %v652
        %v1241 = vunpack.c.h.b16 %v652
        %v1242 = vunpack.c.l.b16 %v653
        %v1243 = vunpack.c.h.b16 %v653
        %v1244 = vunpack.c.l.b16 %v654
        %v1245 = vunpack.c.h.b16 %v654
        %v1246 = vunpack.c.l.b16 %v655
        %v1247 = vunpack.c.h.b16 %v655
        %v1248 = vunpack.c.l.b16 %v656
        %v1249 = vunpack.c.h.b16 %v656
        %v1250 = vunpack.c.l.b16 %v657
        %v1251 = vunpack.c.h.b16 %v657
        %v1252 = vunpack.c.l.b16 %v658
        %v1253 = vunpack.c.h.b16 %v658
        %v1254 = vunpack.c.l.b16 %v659
        %v1255 = vunpack.c.h.b16 %v659
        %v1256 = vunpack.c.l.b16 %v660
        %v1257 = vunpack.c.h.b16 %v660
        %v1258 = vpack.c.b16 %v878, %v874
        %v1259 = vpack.c.b16 %v879, %v875
        %v1260 = vpack.c.b16 %v880, %v876
        %v1261 = vpack.c.b16 %v881, %v877
        %v1262 = vpack.c.b16 %v886, %v882
        %v1263 = vpack.c.b16 %v887, %v883
        %v1264 = vpack.c.b16 %v888, %v884
        %v1265 = vpack.c.b16 %v889, %v885
        %v1266 = vpack.c.b16 %v894, %v890
        %v1267 = vpack.c.b16 %v895, %v891
        %v1268 = vpack.c.b16 %v896, %v892
        %v1269 = vpack.c.b16 %v897, %v893
        %v1270 = vpack.c.b16 %v902, %v898
        %v1271 = vpack.c.b16 %v903, %v899
        %v1272 = vpack.c.b16 %v904, %v900
        %v1273 = vpack.c.b16 %v905, %v901
        %v1274 = vpack.c.b16 %v910, %v906
        %v1275 = vpack.c.b16 %v911, %v907
        %v1276 = vpack.c.b16 %v912, %v908
        %v1277 = vpack.c.b16 %v913, %v909
        %v1278 = vpack.c.b16 %v918, %v914
        %v1279 = vpack.c.b16 %v919, %v915
        %v1280 = vpack.c.b16 %v920, %v916
        %v1281 = vpack.c.b16 %v921, %v917
        %v1282 = vpack.c.b16 %v926, %v922
        %v1283 = vpack.c.b16 %v927, %v923
        %v1284 = vpack.c.b16 %v928, %v924
        %v1285 = vpack.c.b16 %v929, %v925
        %v1286 = vpack.c.b16 %v934, %v930
        %v1287 = vpack.c.b16 %v935, %v931
        %v1288 = vpack.c.b16 %v936, %v932
        %v1289 = vpack.c.b16 %v937, %v933
        %v1290 = vpack.c.b16 %v942, %v938
        %v1291 = vpack.c.b16 %v943, %v939
        %v1292 = vpack.c.b16 %v944, %v940
        %v1293 = vpack.c.b16 %v945, %v941
        %v1294 = vpack.c.b16 %v950, %v946
        %v1295 = vpack.c.b16 %v951, %v947
        %v1296 = vpack.c.b16 %v952, %v948
        %v1297 = vpack.c.b16 %v953, %v949
        %v1298 = vpack.c.b16 %v958, %v954
        %v1299 = vpack.c.b16 %v959, %v955
        %v1300 = vpack.c.b16 %v960, %v956
        %v1301 = vpack.c.b16 %v961, %v957
        %v1302 = vpack.c.b16 %v966, %v962
        %v1303 = vpack.c.b16 %v967, %v963
        %v1304 = vpack.c.b16 %v968, %v964
        %v1305 = vpack.c.b16 %v969, %v965
        %v1306 = vpack.c.b16 %v974, %v970
        %v1307 = vpack.c.b16 %v975, %v971
        %v1308 = vpack.c.b16 %v976, %v972
        %v1309 = vpack.c.b16 %v977, %v973
        %v1310 = vpack.c.b16 %v982, %v978
        %v1311 = vpack.c.b16 %v983, %v979
        %v1312 = vpack.c.b16 %v984, %v980
        %v1313 = vpack.c.b16 %v985, %v981
        %v1314 = vpack.c.b16 %v990, %v986
        %v1315 = vpack.c.b16 %v991, %v987
        %v1316 = vpack.c.b16 %v992, %v988
        %v1317 = vpack.c.b16 %v993, %v989
        %v1318 = vpack.c.b16 %v998, %v994
        %v1319 = vpack.c.b16 %v999, %v995
        %v1320 = vpack.c.b16 %v1000, %v996
        %v1321 = vpack.c.b16 %v1001, %v997
        %v1322 = vpack.c.b16 %v1006, %v1002
        %v1323 = vpack.c.b16 %v1007, %v1003
        %v1324 = vpack.c.b16 %v1008, %v1004
        %v1325 = vpack.c.b16 %v1009, %v1005
        %v1326 = vpack.c.b16 %v1014, %v1010
        %v1327 = vpack.c.b16 %v1015, %v1011
        %v1328 = vpack.c.b16 %v1016, %v1012
        %v1329 = vpack.c.b16 %v1017, %v1013
        %v1330 = vpack.c.b16 %v1022, %v1018
        %v1331 = vpack.c.b16 %v1023, %v1019
        %v1332 = vpack.c.b16 %v1024, %v1020
        %v1333 = vpack.c.b16 %v1025, %v1021
        %v1334 = vpack.c.b16 %v1030, %v1026
        %v1335 = vpack.c.b16 %v1031, %v1027
        %v1336 = vpack.c.b16 %v1032, %v1028
        %v1337 = vpack.c.b16 %v1033, %v1029
        %v1338 = vpack.c.b16 %v1038, %v1034
        %v1339 = vpack.c.b16 %v1039, %v1035
        %v1340 = vpack.c.b16 %v1040, %v1036
        %v1341 = vpack.c.b16 %v1041, %v1037
        %v1342 = vpack.c.b16 %v1046, %v1042
        %v1343 = vpack.c.b16 %v1047, %v1043
        %v1344 = vpack.c.b16 %v1048, %v1044
        %v1345 = vpack.c.b16 %v1049, %v1045
        %v1346 = vpack.c.b16 %v1054, %v1050
        %v1347 = vpack.c.b16 %v1055, %v1051
        %v1348 = vpack.c.b16 %v1056, %v1052
        %v1349 = vpack.c.b16 %v1057, %v1053
        %v1350 = vpack.c.b16 %v1062, %v1058
        %v1351 = vpack.c.b16 %v1063, %v1059
        %v1352 = vpack.c.b16 %v1064, %v1060
        %v1353 = vpack.c.b16 %v1065, %v1061
        %v1354 = vpack.c.b16 %v1070, %v1066
        %v1355 = vpack.c.b16 %v1071, %v1067
        %v1356 = vpack.c.b16 %v1072, %v1068
        %v1357 = vpack.c.b16 %v1073, %v1069
        %v1358 = vpack.c.b16 %v1078, %v1074
        %v1359 = vpack.c.b16 %v1079, %v1075
        %v1360 = vpack.c.b16 %v1080, %v1076
        %v1361 = vpack.c.b16 %v1081, %v1077
        %v1362 = vpack.c.b16 %v1086, %v1082
        %v1363 = vpack.c.b16 %v1087, %v1083
        %v1364 = vpack.c.b16 %v1088, %v1084
        %v1365 = vpack.c.b16 %v1089, %v1085
        %v1366 = vpack.c.b16 %v1094, %v1090
        %v1367 = vpack.c.b16 %v1095, %v1091
        %v1368 = vpack.c.b16 %v1096, %v1092
        %v1369 = vpack.c.b16 %v1097, %v1093
        %v1370 = vpack.c.b16 %v1102, %v1098
        %v1371 = vpack.c.b16 %v1103, %v1099
        %v1372 = vpack.c.b16 %v1104, %v1100
        %v1373 = vpack.c.b16 %v1105, %v1101
        %v1374 = vpack.c.b16 %v1110, %v1106
        %v1375 = vpack.c.b16 %v1111, %v1107
        %v1376 = vpack.c.b16 %v1112, %v1108
        %v1377 = vpack.c.b16 %v1113, %v1109
        %v1378 = vpack.c.b16 %v1118, %v1114
        %v1379 = vpack.c.b16 %v1119, %v1115
        %v1380 = vpack.c.b16 %v1120, %v1116
        %v1381 = vpack.c.b16 %v1121, %v1117
        %v1382 = vpack.c.b16 %v1126, %v1122
        %v1383 = vpack.c.b16 %v1127, %v1123
        %v1384 = vpack.c.b16 %v1128, %v1124
        %v1385 = vpack.c.b16 %v1129, %v1125
        %v1386 = vpack.c.b16 %v1134, %v1130
        %v1387 = vpack.c.b16 %v1135, %v1131
        %v1388 = vpack.c.b16 %v1136, %v1132
        %v1389 = vpack.c.b16 %v1137, %v1133
        %v1390 = vpack.c.b16 %v1142, %v1138
        %v1391 = vpack.c.b16 %v1143, %v1139
        %v1392 = vpack.c.b16 %v1144, %v1140
        %v1393 = vpack.c.b16 %v1145, %v1141
        %v1394 = vpack.c.b16 %v1150, %v1146
        %v1395 = vpack.c.b16 %v1151, %v1147
        %v1396 = vpack.c.b16 %v1152, %v1148
        %v1397 = vpack.c.b16 %v1153, %v1149
        %v1398 = vpack.c.b16 %v1158, %v1154
        %v1399 = vpack.c.b16 %v1159, %v1155
        %v1400 = vpack.c.b16 %v1160, %v1156
        %v1401 = vpack.c.b16 %v1161, %v1157
        %v1402 = vpack.c.b16 %v1166, %v1162
        %v1403 = vpack.c.b16 %v1167, %v1163
        %v1404 = vpack.c.b16 %v1168, %v1164
        %v1405 = vpack.c.b16 %v1169, %v1165
        %v1406 = vpack.c.b16 %v1174, %v1170
        %v1407 = vpack.c.b16 %v1175, %v1171
        %v1408 = vpack.c.b16 %v1176, %v1172
        %v1409 = vpack.c.b16 %v1177, %v1173
        %v1410 = vpack.c.b16 %v1182, %v1178
        %v1411 = vpack.c.b16 %v1183, %v1179
        %v1412 = vpack.c.b16 %v1184, %v1180
        %v1413 = vpack.c.b16 %v1185, %v1181
        %v1414 = vpack.c.b16 %v1190, %v1186
        %v1415 = vpack.c.b16 %v1191, %v1187
        %v1416 = vpack.c.b16 %v1192, %v1188
        %v1417 = vpack.c.b16 %v1193, %v1189
        %v1418 = vpack.c.b16 %v1198, %v1194
        %v1419 = vpack.c.b16 %v1199, %v1195
        %v1420 = vpack.c.b16 %v1200, %v1196
        %v1421 = vpack.c.b16 %v1201, %v1197
        %v1422 = vpack.c.b16 %v1206, %v1202
        %v1423 = vpack.c.b16 %v1207, %v1203
        %v1424 = vpack.c.b16 %v1208, %v1204
        %v1425 = vpack.c.b16 %v1209, %v1205
        %v1426 = vpack.c.b16 %v1214, %v1210
        %v1427 = vpack.c.b16 %v1215, %v1211
        %v1428 = vpack.c.b16 %v1216, %v1212
        %v1429 = vpack.c.b16 %v1217, %v1213
        %v1430 = vpack.c.b16 %v1222, %v1218
        %v1431 = vpack.c.b16 %v1223, %v1219
        %v1432 = vpack.c.b16 %v1224, %v1220
        %v1433 = vpack.c.b16 %v1225, %v1221
        %v1434 = vpack.c.b16 %v1230, %v1226
        %v1435 = vpack.c.b16 %v1231, %v1227
        %v1436 = vpack.c.b16 %v1232, %v1228
        %v1437 = vpack.c.b16 %v1233, %v1229
        %v1438 = vpack.c.b16 %v1238, %v1234
        %v1439 = vpack.c.b16 %v1239, %v1235
        %v1440 = vpack.c.b16 %v1240, %v1236
        %v1441 = vpack.c.b16 %v1241, %v1237
        %v1442 = vpack.c.b16 %v1246, %v1242
        %v1443 = vpack.c.b16 %v1247, %v1243
        %v1444 = vpack.c.b16 %v1248, %v1244
        %v1445 = vpack.c.b16 %v1249, %v1245
        %v1446 = vpack.c.b16 %v1254, %v1250
        %v1447 = vpack.c.b16 %v1255, %v1251
        %v1448 = vpack.c.b16 %v1256, %v1252
        %v1449 = vpack.c.b16 %v1257, %v1253
        %1642 = vmatprep.subr.bf16.mxu0 %v1259
        %1643 = vmatpush1.bf16.msra.mxu0 %v1258
        %1644 = vmatprep.subr.bf16.mxu0 %v1263
        %1645 = vmatpush1.bf16.msra.mxu0 %v1262
        %1646 = vmatprep.subr.bf16.mxu0 %v1267
        %1647 = vmatpush1.bf16.msra.mxu0 %v1266
        %1648 = vmatprep.subr.bf16.mxu0 %v1271
        %1649 = vmatpush1.bf16.msra.mxu0 %v1270
        %1650 = vmatprep.subr.bf16.mxu0 %v1275
        %1651 = vmatpush1.bf16.msra.mxu0 %v1274
        %1652 = vmatprep.subr.bf16.mxu0 %v1279
        %1653 = vmatpush1.bf16.msra.mxu0 %v1278
        %1654 = vmatprep.subr.bf16.mxu0 %v1283
        %1655 = vmatpush1.bf16.msra.mxu0 %v1282
        %1656 = vmatprep.subr.bf16.mxu0 %v1287
        %1657 = vmatpush1.bf16.msra.mxu0 %v1286
        %1658 = vmatprep.subr.bf16.mxu0 %v1291
        %1659 = vmatpush1.bf16.msra.mxu0 %v1290
        %1660 = vmatprep.subr.bf16.mxu0 %v1295
        %1661 = vmatpush1.bf16.msra.mxu0 %v1294
        %1662 = vmatprep.subr.bf16.mxu0 %v1299
        %1663 = vmatpush1.bf16.msra.mxu0 %v1298
        %1664 = vmatprep.subr.bf16.mxu0 %v1303
        %1665 = vmatpush1.bf16.msra.mxu0 %v1302
        %1666 = vmatprep.subr.bf16.mxu0 %v1307
        %1667 = vmatpush1.bf16.msra.mxu0 %v1306
        %1668 = vmatprep.subr.bf16.mxu0 %v1311
        %1669 = vmatpush1.bf16.msra.mxu0 %v1310
        %1670 = vmatprep.subr.bf16.mxu0 %v1315
        %1671 = vmatpush1.bf16.msra.mxu0 %v1314
        %1672 = vmatprep.subr.bf16.mxu0 %v1319
        %1673 = vmatpush1.bf16.msra.mxu0 %v1318
        %1674 = vmatprep.mubr.bf16.mxu0 %v671
        %1675 = vmatmul.mubr.bf16.gmra.mrb[0].mxu0 %v670
        %v1676 = vpop.f32.mrb[0].mxu0
        %v1677 = vadd.f32 0.0, %v1676
        %v1678 = vpop.f32.mrb[0].mxu0
        %v1679 = vadd.f32 0.0, %v1678
        %v1680 = vpop.f32.mrb[0].mxu0
        %v1681 = vpop.f32.mrb[0].mxu0
        %1682 = vdwg.mxu0
        %1683 = vmatprep.subr.bf16.mxu0 %v1323
        %1684 = vmatpush1.bf16.msra.mxu0 %v1322
        %1685 = vmatprep.subr.bf16.mxu0 %v1327
        %1686 = vmatpush1.bf16.msra.mxu0 %v1326
        %1687 = vmatprep.subr.bf16.mxu0 %v1331
        %1688 = vmatpush1.bf16.msra.mxu0 %v1330
        %1689 = vmatprep.subr.bf16.mxu0 %v1335
        %1690 = vmatpush1.bf16.msra.mxu0 %v1334
        %1691 = vmatprep.subr.bf16.mxu0 %v1339
        %1692 = vmatpush1.bf16.msra.mxu0 %v1338
        %1693 = vmatprep.subr.bf16.mxu0 %v1343
        %1694 = vmatpush1.bf16.msra.mxu0 %v1342
        %1695 = vmatprep.subr.bf16.mxu0 %v1347
        %1696 = vmatpush1.bf16.msra.mxu0 %v1346
        %1697 = vmatprep.subr.bf16.mxu0 %v1351
        %1698 = vmatpush1.bf16.msra.mxu0 %v1350
        %1699 = vmatprep.subr.bf16.mxu0 %v1355
        %1700 = vmatpush1.bf16.msra.mxu0 %v1354
        %1701 = vmatprep.subr.bf16.mxu0 %v1359
        %1702 = vmatpush1.bf16.msra.mxu0 %v1358
        %1703 = vmatprep.subr.bf16.mxu0 %v1363
        %1704 = vmatpush1.bf16.msra.mxu0 %v1362
        %1705 = vmatprep.subr.bf16.mxu0 %v1367
        %1706 = vmatpush1.bf16.msra.mxu0 %v1366
        %1707 = vmatprep.subr.bf16.mxu0 %v1371
        %1708 = vmatpush1.bf16.msra.mxu0 %v1370
        %1709 = vmatprep.subr.bf16.mxu0 %v1375
        %1710 = vmatpush1.bf16.msra.mxu0 %v1374
        %1711 = vmatprep.subr.bf16.mxu0 %v1379
        %1712 = vmatpush1.bf16.msra.mxu0 %v1378
        %1713 = vmatprep.subr.bf16.mxu0 %v1383
        %1714 = vmatpush1.bf16.msra.mxu0 %v1382
        %1715 = vmatprep.mubr.bf16.mxu0 %v673
        %1716 = vmatmul.mubr.bf16.gmra.mrb[0].mxu0 %v672
        %v1717 = vpop.f32.mrb[0].mxu0
        %v1718 = vadd.f32 %v1677, %v1717
        %v1719 = vpop.f32.mrb[0].mxu0
        %v1720 = vadd.f32 %v1679, %v1719
        %v1721 = vpop.f32.mrb[0].mxu0
        %v1722 = vpop.f32.mrb[0].mxu0
        %1723 = vdwg.mxu0
        %1724 = vmatprep.subr.bf16.mxu0 %v1387
        %1725 = vmatpush1.bf16.msra.mxu0 %v1386
        %1726 = vmatprep.subr.bf16.mxu0 %v1391
        %1727 = vmatpush1.bf16.msra.mxu0 %v1390
        %1728 = vmatprep.subr.bf16.mxu0 %v1395
        %1729 = vmatpush1.bf16.msra.mxu0 %v1394
        %1730 = vmatprep.subr.bf16.mxu0 %v1399
        %1731 = vmatpush1.bf16.msra.mxu0 %v1398
        %1732 = vmatprep.subr.bf16.mxu0 %v1403
        %1733 = vmatpush1.bf16.msra.mxu0 %v1402
        %1734 = vmatprep.subr.bf16.mxu0 %v1407
        %1735 = vmatpush1.bf16.msra.mxu0 %v1406
        %1736 = vmatprep.subr.bf16.mxu0 %v1411
        %1737 = vmatpush1.bf16.msra.mxu0 %v1410
        %1738 = vmatprep.subr.bf16.mxu0 %v1415
        %1739 = vmatpush1.bf16.msra.mxu0 %v1414
        %1740 = vmatprep.subr.bf16.mxu0 %v1419
        %1741 = vmatpush1.bf16.msra.mxu0 %v1418
        %1742 = vmatprep.subr.bf16.mxu0 %v1423
        %1743 = vmatpush1.bf16.msra.mxu0 %v1422
        %1744 = vmatprep.subr.bf16.mxu0 %v1427
        %1745 = vmatpush1.bf16.msra.mxu0 %v1426
        %1746 = vmatprep.subr.bf16.mxu0 %v1431
        %1747 = vmatpush1.bf16.msra.mxu0 %v1430
        %1748 = vmatprep.subr.bf16.mxu0 %v1435
        %1749 = vmatpush1.bf16.msra.mxu0 %v1434
        %1750 = vmatprep.subr.bf16.mxu0 %v1439
        %1751 = vmatpush1.bf16.msra.mxu0 %v1438
        %1752 = vmatprep.subr.bf16.mxu0 %v1443
        %1753 = vmatpush1.bf16.msra.mxu0 %v1442
        %1754 = vmatprep.subr.bf16.mxu0 %v1447
        %1755 = vmatpush1.bf16.msra.mxu0 %v1446
        %1756 = vmatprep.mubr.bf16.mxu0 %v675
        %1757 = vmatmul.mubr.bf16.gmra.mrb[0].mxu0 %v674
        %v1758 = vpop.f32.mrb[0].mxu0
        %v1759 = vadd.f32 %v1718, %v1758
        %v1760 = vpop.f32.mrb[0].mxu0
        %v1761 = vadd.f32 %v1720, %v1760
        %v1762 = vpop.f32.mrb[0].mxu0
        %v1763 = vpop.f32.mrb[0].mxu0
        %1764 = vdwg.mxu0
        %1765 = vmatprep.subr.bf16.mxu0 %v1261
        %1766 = vmatpush1.bf16.msra.mxu0 %v1260
        %1767 = vmatprep.subr.bf16.mxu0 %v1265
        %1768 = vmatpush1.bf16.msra.mxu0 %v1264
        %1769 = vmatprep.subr.bf16.mxu0 %v1269
        %1770 = vmatpush1.bf16.msra.mxu0 %v1268
        %1771 = vmatprep.subr.bf16.mxu0 %v1273
        %1772 = vmatpush1.bf16.msra.mxu0 %v1272
        %1773 = vmatprep.subr.bf16.mxu0 %v1277
        %1774 = vmatpush1.bf16.msra.mxu0 %v1276
        %1775 = vmatprep.subr.bf16.mxu0 %v1281
        %1776 = vmatpush1.bf16.msra.mxu0 %v1280
        %1777 = vmatprep.subr.bf16.mxu0 %v1285
        %1778 = vmatpush1.bf16.msra.mxu0 %v1284
        %1779 = vmatprep.subr.bf16.mxu0 %v1289
        %1780 = vmatpush1.bf16.msra.mxu0 %v1288
        %1781 = vmatprep.subr.bf16.mxu0 %v1293
        %1782 = vmatpush1.bf16.msra.mxu0 %v1292
        %1783 = vmatprep.subr.bf16.mxu0 %v1297
        %1784 = vmatpush1.bf16.msra.mxu0 %v1296
        %1785 = vmatprep.subr.bf16.mxu0 %v1301
        %1786 = vmatpush1.bf16.msra.mxu0 %v1300
        %1787 = vmatprep.subr.bf16.mxu0 %v1305
        %1788 = vmatpush1.bf16.msra.mxu0 %v1304
        %1789 = vmatprep.subr.bf16.mxu0 %v1309
        %1790 = vmatpush1.bf16.msra.mxu0 %v1308
        %1791 = vmatprep.subr.bf16.mxu0 %v1313
        %1792 = vmatpush1.bf16.msra.mxu0 %v1312
        %1793 = vmatprep.subr.bf16.mxu0 %v1317
        %1794 = vmatpush1.bf16.msra.mxu0 %v1316
        %1795 = vmatprep.subr.bf16.mxu0 %v1321
        %1796 = vmatpush1.bf16.msra.mxu0 %v1320
        %1797 = vmatprep.mubr.bf16.mxu0 %v671
        %1798 = vmatmul.mubr.bf16.gmra.mrb[0].mxu0 %v670
        %v1799 = vpop.f32.mrb[0].mxu0
        %v1800 = vadd.f32 0.0, %v1799
        %v1801 = vpop.f32.mrb[0].mxu0
        %v1802 = vadd.f32 0.0, %v1801
        %v1803 = vpop.f32.mrb[0].mxu0
        %v1804 = vpop.f32.mrb[0].mxu0
        %1805 = vdwg.mxu0
        %1806 = vmatprep.subr.bf16.mxu0 %v1325
        %1807 = vmatpush1.bf16.msra.mxu0 %v1324
        %1808 = vmatprep.subr.bf16.mxu0 %v1329
        %1809 = vmatpush1.bf16.msra.mxu0 %v1328
        %1810 = vmatprep.subr.bf16.mxu0 %v1333
        %1811 = vmatpush1.bf16.msra.mxu0 %v1332
        %1812 = vmatprep.subr.bf16.mxu0 %v1337
        %1813 = vmatpush1.bf16.msra.mxu0 %v1336
        %1814 = vmatprep.subr.bf16.mxu0 %v1341
        %1815 = vmatpush1.bf16.msra.mxu0 %v1340
        %1816 = vmatprep.subr.bf16.mxu0 %v1345
        %1817 = vmatpush1.bf16.msra.mxu0 %v1344
        %1818 = vmatprep.subr.bf16.mxu0 %v1349
        %1819 = vmatpush1.bf16.msra.mxu0 %v1348
        %1820 = vmatprep.subr.bf16.mxu0 %v1353
        %1821 = vmatpush1.bf16.msra.mxu0 %v1352
        %1822 = vmatprep.subr.bf16.mxu0 %v1357
        %1823 = vmatpush1.bf16.msra.mxu0 %v1356
        %1824 = vmatprep.subr.bf16.mxu0 %v1361
        %1825 = vmatpush1.bf16.msra.mxu0 %v1360
        %1826 = vmatprep.subr.bf16.mxu0 %v1365
        %1827 = vmatpush1.bf16.msra.mxu0 %v1364
        %1828 = vmatprep.subr.bf16.mxu0 %v1369
        %1829 = vmatpush1.bf16.msra.mxu0 %v1368
        %1830 = vmatprep.subr.bf16.mxu0 %v1373
        %1831 = vmatpush1.bf16.msra.mxu0 %v1372
        %1832 = vmatprep.subr.bf16.mxu0 %v1377
        %1833 = vmatpush1.bf16.msra.mxu0 %v1376
        %1834 = vmatprep.subr.bf16.mxu0 %v1381
        %1835 = vmatpush1.bf16.msra.mxu0 %v1380
        %1836 = vmatprep.subr.bf16.mxu0 %v1385
        %1837 = vmatpush1.bf16.msra.mxu0 %v1384
        %1838 = vmatprep.mubr.bf16.mxu0 %v673
        %1839 = vmatmul.mubr.bf16.gmra.mrb[0].mxu0 %v672
        %v1840 = vpop.f32.mrb[0].mxu0
        %v1841 = vadd.f32 %v1800, %v1840
        %v1842 = vpop.f32.mrb[0].mxu0
        %v1843 = vadd.f32 %v1802, %v1842
        %v1844 = vpop.f32.mrb[0].mxu0
        %v1845 = vpop.f32.mrb[0].mxu0
        %1846 = vdwg.mxu0
        %1847 = vmatprep.subr.bf16.mxu0 %v1389
        %1848 = vmatpush1.bf16.msra.mxu0 %v1388
        %1849 = vmatprep.subr.bf16.mxu0 %v1393
        %1850 = vmatpush1.bf16.msra.mxu0 %v1392
        %1851 = vmatprep.subr.bf16.mxu0 %v1397
        %1852 = vmatpush1.bf16.msra.mxu0 %v1396
        %1853 = vmatprep.subr.bf16.mxu0 %v1401
        %1854 = vmatpush1.bf16.msra.mxu0 %v1400
        %1855 = vmatprep.subr.bf16.mxu0 %v1405
        %1856 = vmatpush1.bf16.msra.mxu0 %v1404
        %1857 = vmatprep.subr.bf16.mxu0 %v1409
        %1858 = vmatpush1.bf16.msra.mxu0 %v1408
        %1859 = vmatprep.subr.bf16.mxu0 %v1413
        %1860 = vmatpush1.bf16.msra.mxu0 %v1412
        %1861 = vmatprep.subr.bf16.mxu0 %v1417
        %1862 = vmatpush1.bf16.msra.mxu0 %v1416
        %1863 = vmatprep.subr.bf16.mxu0 %v1421
        %1864 = vmatpush1.bf16.msra.mxu0 %v1420
        %1865 = vmatprep.subr.bf16.mxu0 %v1425
        %1866 = vmatpush1.bf16.msra.mxu0 %v1424
        %1867 = vmatprep.subr.bf16.mxu0 %v1429
        %1868 = vmatpush1.bf16.msra.mxu0 %v1428
        %1869 = vmatprep.subr.bf16.mxu0 %v1433
        %1870 = vmatpush1.bf16.msra.mxu0 %v1432
        %1871 = vmatprep.subr.bf16.mxu0 %v1437
        %1872 = vmatpush1.bf16.msra.mxu0 %v1436
        %1873 = vmatprep.subr.bf16.mxu0 %v1441
        %1874 = vmatpush1.bf16.msra.mxu0 %v1440
        %1875 = vmatprep.subr.bf16.mxu0 %v1445
        %1876 = vmatpush1.bf16.msra.mxu0 %v1444
        %1877 = vmatprep.subr.bf16.mxu0 %v1449
        %1878 = vmatpush1.bf16.msra.mxu0 %v1448
        %1879 = vmatprep.mubr.bf16.mxu0 %v675
        %1880 = vmatmul.mubr.bf16.gmra.mrb[0].mxu0 %v674
        %v1881 = vpop.f32.mrb[0].mxu0
        %v1882 = vadd.f32 %v1841, %v1881
        %v1883 = vpop.f32.mrb[0].mxu0
        %v1884 = vadd.f32 %v1843, %v1883
        %v1885 = vpop.f32.mrb[0].mxu0
        %v1886 = vpop.f32.mrb[0].mxu0
        %1887 = vdwg.mxu0
        %v1888 = vmax.f32 %v1759, 0.0
        %v1889 = vmax.f32 %v1761, 0.0
        %v1890 = vmax.f32 %v1882, 0.0
        %v1891 = vmax.f32 %v1884, 0.0
        %v1892 = vpack.c.bf16 %v1888, %v1888
        %v1893 = vpack.c.bf16 %v1889, %v1889
        %v1894 = vpack.c.bf16 %v1890, %v1890
        %v1895 = vpack.c.bf16 %v1891, %v1891
        %v1896 = vmul.f32 %v1759, 0.2
        %v1897 = vmul.f32 %v1761, 0.2
        %v1898 = vmul.f32 %v1882, 0.2
        %v1899 = vmul.f32 %v1884, 0.2
        %v1900 = vmax.f32 %v1759, %v1896
        %v1901 = vmax.f32 %v1761, %v1897
        %v1902 = vmax.f32 %v1882, %v1898
        %v1903 = vmax.f32 %v1884, %v1899
        %v1904 = vpack.c.bf16 %v1900, %v1900
        %v1905 = vpack.c.bf16 %v1901, %v1901
        %v1906 = vpack.c.bf16 %v1902, %v1902
        %v1907 = vpack.c.bf16 %v1903, %v1903
        %v1908 = vld [vmem:[#allocation7] sm:$0xff]
        %v1909 = vld [vmem:[#allocation7 + $0x8] sm:$0xff]
        %v1910 = vld [vmem:[#allocation7 + $0x10] sm:$0xff]
        %v1911 = vld [vmem:[#allocation7 + $0x18] sm:$0xff]
        %v1912 = vld [vmem:[#allocation7 + $0x20] sm:$0xff]
        %v1913 = vld [vmem:[#allocation7 + $0x28] sm:$0xff]
        %v1914 = vld [vmem:[#allocation7 + $0x30] sm:$0xff]
        %v1915 = vld [vmem:[#allocation7 + $0x38] sm:$0xff]
        %v1916 = vld [vmem:[#allocation7 + $0x40] sm:$0xff]
        %v1917 = vld [vmem:[#allocation7 + $0x48] sm:$0xff]
        %v1918 = vld [vmem:[#allocation7 + $0x50] sm:$0xff]
        %v1919 = vld [vmem:[#allocation7 + $0x58] sm:$0xff]
        %v1920 = vld [vmem:[#allocation7 + $0x60] sm:$0xff]
        %v1921 = vld [vmem:[#allocation7 + $0x68] sm:$0xff]
        %v1922 = vld [vmem:[#allocation7 + $0x70] sm:$0xff]
        %v1923 = vld [vmem:[#allocation7 + $0x78] sm:$0xff]
        %v1924 = vld [vmem:[#allocation7 + $0x80] sm:$0xff]
        %v1925 = vld [vmem:[#allocation7 + $0x88] sm:$0xff]
        %v1926 = vld [vmem:[#allocation7 + $0x90] sm:$0xff]
        %v1927 = vld [vmem:[#allocation7 + $0x98] sm:$0xff]
        %v1928 = vld [vmem:[#allocation7 + $0xa0] sm:$0xff]
        %v1929 = vld [vmem:[#allocation7 + $0xa8] sm:$0xff]
        %v1930 = vld [vmem:[#allocation7 + $0xb0] sm:$0xff]
        %v1931 = vld [vmem:[#allocation7 + $0xb8] sm:$0xff]
        %v1932 = vld [vmem:[#allocation7 + $0xc0] sm:$0xff]
        %v1933 = vld [vmem:[#allocation7 + $0xc8] sm:$0xff]
        %v1934 = vld [vmem:[#allocation7 + $0xd0] sm:$0xff]
        %v1935 = vld [vmem:[#allocation7 + $0xd8] sm:$0xff]
        %v1936 = vld [vmem:[#allocation7 + $0xe0] sm:$0xff]
        %v1937 = vld [vmem:[#allocation7 + $0xe8] sm:$0xff]
        %v1938 = vld [vmem:[#allocation7 + $0xf0] sm:$0xff]
        %v1939 = vld [vmem:[#allocation7 + $0xf8] sm:$0xff]
        %v1940 = vld [vmem:[#allocation7 + $0x100] sm:$0xff]
        %v1941 = vld [vmem:[#allocation7 + $0x108] sm:$0xff]
        %v1942 = vld [vmem:[#allocation7 + $0x110] sm:$0xff]
        %v1943 = vld [vmem:[#allocation7 + $0x118] sm:$0xff]
        %v1944 = vld [vmem:[#allocation7 + $0x120] sm:$0xff]
        %v1945 = vld [vmem:[#allocation7 + $0x128] sm:$0xff]
        %v1946 = vld [vmem:[#allocation7 + $0x130] sm:$0xff]
        %v1947 = vld [vmem:[#allocation7 + $0x138] sm:$0xff]
        %v1948 = vld [vmem:[#allocation7 + $0x140] sm:$0xff]
        %v1949 = vld [vmem:[#allocation7 + $0x148] sm:$0xff]
        %v1950 = vld [vmem:[#allocation7 + $0x150] sm:$0xff]
        %v1951 = vld [vmem:[#allocation7 + $0x158] sm:$0xff]
        %v1952 = vld [vmem:[#allocation7 + $0x160] sm:$0xff]
        %v1953 = vld [vmem:[#allocation7 + $0x168] sm:$0xff]
        %v1954 = vld [vmem:[#allocation7 + $0x170] sm:$0xff]
        %v1955 = vld [vmem:[#allocation7 + $0x178] sm:$0xff]
        %v1956 = vld [vmem:[#allocation7 + $0x180] sm:$0xff]
        %v1957 = vld [vmem:[#allocation7 + $0x188] sm:$0xff]
        %v1958 = vld [vmem:[#allocation7 + $0x190] sm:$0xff]
        %v1959 = vld [vmem:[#allocation7 + $0x198] sm:$0xff]
        %v1960 = vld [vmem:[#allocation7 + $0x1a0] sm:$0xff]
        %v1961 = vld [vmem:[#allocation7 + $0x1a8] sm:$0xff]
        %v1962 = vld [vmem:[#allocation7 + $0x1b0] sm:$0xff]
        %v1963 = vld [vmem:[#allocation7 + $0x1b8] sm:$0xff]
        %v1964 = vld [vmem:[#allocation7 + $0x1c0] sm:$0xff]
        %v1965 = vld [vmem:[#allocation7 + $0x1c8] sm:$0xff]
        %v1966 = vld [vmem:[#allocation7 + $0x1d0] sm:$0xff]
        %v1967 = vld [vmem:[#allocation7 + $0x1d8] sm:$0xff]
        %v1968 = vld [vmem:[#allocation7 + $0x1e0] sm:$0xff]
        %v1969 = vld [vmem:[#allocation7 + $0x1e8] sm:$0xff]
        %v1970 = vld [vmem:[#allocation7 + $0x1f0] sm:$0xff]
        %v1971 = vld [vmem:[#allocation7 + $0x1f8] sm:$0xff]
        %v2036 = vunpack.c.l.b16 %v1908
        %v2037 = vunpack.c.h.b16 %v1908
        %v2038 = vunpack.c.l.b16 %v1909
        %v2039 = vunpack.c.h.b16 %v1909
        %v2040 = vunpack.c.l.b16 %v1910
        %v2041 = vunpack.c.h.b16 %v1910
        %v2042 = vunpack.c.l.b16 %v1911
        %v2043 = vunpack.c.h.b16 %v1911
        %v2044 = vunpack.c.l.b16 %v1912
        %v2045 = vunpack.c.h.b16 %v1912
        %v2046 = vunpack.c.l.b16 %v1913
        %v2047 = vunpack.c.h.b16 %v1913
        %v2048 = vunpack.c.l.b16 %v1914
        %v2049 = vunpack.c.h.b16 %v1914
        %v2050 = vunpack.c.l.b16 %v1915
        %v2051 = vunpack.c.h.b16 %v1915
        %v2052 = vunpack.c.l.b16 %v1916
        %v2053 = vunpack.c.h.b16 %v1916
        %v2054 = vunpack.c.l.b16 %v1917
        %v2055 = vunpack.c.h.b16 %v1917
        %v2056 = vunpack.c.l.b16 %v1918
        %v2057 = vunpack.c.h.b16 %v1918
        %v2058 = vunpack.c.l.b16 %v1919
        %v2059 = vunpack.c.h.b16 %v1919
        %v2060 = vunpack.c.l.b16 %v1920
        %v2061 = vunpack.c.h.b16 %v1920
        %v2062 = vunpack.c.l.b16 %v1921
        %v2063 = vunpack.c.h.b16 %v1921
        %v2064 = vunpack.c.l.b16 %v1922
        %v2065 = vunpack.c.h.b16 %v1922
        %v2066 = vunpack.c.l.b16 %v1923
        %v2067 = vunpack.c.h.b16 %v1923
        %v2068 = vunpack.c.l.b16 %v1924
        %v2069 = vunpack.c.h.b16 %v1924
        %v2070 = vunpack.c.l.b16 %v1925
        %v2071 = vunpack.c.h.b16 %v1925
        %v2072 = vunpack.c.l.b16 %v1926
        %v2073 = vunpack.c.h.b16 %v1926
        %v2074 = vunpack.c.l.b16 %v1927
        %v2075 = vunpack.c.h.b16 %v1927
        %v2076 = vunpack.c.l.b16 %v1928
        %v2077 = vunpack.c.h.b16 %v1928
        %v2078 = vunpack.c.l.b16 %v1929
        %v2079 = vunpack.c.h.b16 %v1929
        %v2080 = vunpack.c.l.b16 %v1930
        %v2081 = vunpack.c.h.b16 %v1930
        %v2082 = vunpack.c.l.b16 %v1931
        %v2083 = vunpack.c.h.b16 %v1931
        %v2084 = vunpack.c.l.b16 %v1932
        %v2085 = vunpack.c.h.b16 %v1932
        %v2086 = vunpack.c.l.b16 %v1933
        %v2087 = vunpack.c.h.b16 %v1933
        %v2088 = vunpack.c.l.b16 %v1934
        %v2089 = vunpack.c.h.b16 %v1934
        %v2090 = vunpack.c.l.b16 %v1935
        %v2091 = vunpack.c.h.b16 %v1935
        %v2092 = vunpack.c.l.b16 %v1936
        %v2093 = vunpack.c.h.b16 %v1936
        %v2094 = vunpack.c.l.b16 %v1937
        %v2095 = vunpack.c.h.b16 %v1937
        %v2096 = vunpack.c.l.b16 %v1938
        %v2097 = vunpack.c.h.b16 %v1938
        %v2098 = vunpack.c.l.b16 %v1939
        %v2099 = vunpack.c.h.b16 %v1939
        %v2100 = vunpack.c.l.b16 %v1940
        %v2101 = vunpack.c.h.b16 %v1940
        %v2102 = vunpack.c.l.b16 %v1941
        %v2103 = vunpack.c.h.b16 %v1941
        %v2104 = vunpack.c.l.b16 %v1942
        %v2105 = vunpack.c.h.b16 %v1942
        %v2106 = vunpack.c.l.b16 %v1943
        %v2107 = vunpack.c.h.b16 %v1943
        %v2108 = vunpack.c.l.b16 %v1944
        %v2109 = vunpack.c.h.b16 %v1944
        %v2110 = vunpack.c.l.b16 %v1945
        %v2111 = vunpack.c.h.b16 %v1945
        %v2112 = vunpack.c.l.b16 %v1946
        %v2113 = vunpack.c.h.b16 %v1946
        %v2114 = vunpack.c.l.b16 %v1947
        %v2115 = vunpack.c.h.b16 %v1947
        %v2116 = vunpack.c.l.b16 %v1948
        %v2117 = vunpack.c.h.b16 %v1948
        %v2118 = vunpack.c.l.b16 %v1949
        %v2119 = vunpack.c.h.b16 %v1949
        %v2120 = vunpack.c.l.b16 %v1950
        %v2121 = vunpack.c.h.b16 %v1950
        %v2122 = vunpack.c.l.b16 %v1951
        %v2123 = vunpack.c.h.b16 %v1951
        %v2124 = vunpack.c.l.b16 %v1952
        %v2125 = vunpack.c.h.b16 %v1952
        %v2126 = vunpack.c.l.b16 %v1953
        %v2127 = vunpack.c.h.b16 %v1953
        %v2128 = vunpack.c.l.b16 %v1954
        %v2129 = vunpack.c.h.b16 %v1954
        %v2130 = vunpack.c.l.b16 %v1955
        %v2131 = vunpack.c.h.b16 %v1955
        %v2132 = vunpack.c.l.b16 %v1956
        %v2133 = vunpack.c.h.b16 %v1956
        %v2134 = vunpack.c.l.b16 %v1957
        %v2135 = vunpack.c.h.b16 %v1957
        %v2136 = vunpack.c.l.b16 %v1958
        %v2137 = vunpack.c.h.b16 %v1958
        %v2138 = vunpack.c.l.b16 %v1959
        %v2139 = vunpack.c.h.b16 %v1959
        %v2140 = vunpack.c.l.b16 %v1960
        %v2141 = vunpack.c.h.b16 %v1960
        %v2142 = vunpack.c.l.b16 %v1961
        %v2143 = vunpack.c.h.b16 %v1961
        %v2144 = vunpack.c.l.b16 %v1962
        %v2145 = vunpack.c.h.b16 %v1962
        %v2146 = vunpack.c.l.b16 %v1963
        %v2147 = vunpack.c.h.b16 %v1963
        %v2148 = vunpack.c.l.b16 %v1964
        %v2149 = vunpack.c.h.b16 %v1964
        %v2150 = vunpack.c.l.b16 %v1965
        %v2151 = vunpack.c.h.b16 %v1965
        %v2152 = vunpack.c.l.b16 %v1966
        %v2153 = vunpack.c.h.b16 %v1966
        %v2154 = vunpack.c.l.b16 %v1967
        %v2155 = vunpack.c.h.b16 %v1967
        %v2156 = vunpack.c.l.b16 %v1968
        %v2157 = vunpack.c.h.b16 %v1968
        %v2158 = vunpack.c.l.b16 %v1969
        %v2159 = vunpack.c.h.b16 %v1969
        %v2160 = vunpack.c.l.b16 %v1970
        %v2161 = vunpack.c.h.b16 %v1970
        %v2162 = vunpack.c.l.b16 %v1971
        %v2163 = vunpack.c.h.b16 %v1971
        %v2164 = vpack.c.b16 %v2038, %v2036
        %v2165 = vpack.c.b16 %v2039, %v2037
        %v2166 = vpack.c.b16 %v2042, %v2040
        %v2167 = vpack.c.b16 %v2043, %v2041
        %v2168 = vpack.c.b16 %v2046, %v2044
        %v2169 = vpack.c.b16 %v2047, %v2045
        %v2170 = vpack.c.b16 %v2050, %v2048
        %v2171 = vpack.c.b16 %v2051, %v2049
        %v2172 = vpack.c.b16 %v2054, %v2052
        %v2173 = vpack.c.b16 %v2055, %v2053
        %v2174 = vpack.c.b16 %v2058, %v2056
        %v2175 = vpack.c.b16 %v2059, %v2057
        %v2176 = vpack.c.b16 %v2062, %v2060
        %v2177 = vpack.c.b16 %v2063, %v2061
        %v2178 = vpack.c.b16 %v2066, %v2064
        %v2179 = vpack.c.b16 %v2067, %v2065
        %v2180 = vpack.c.b16 %v2070, %v2068
        %v2181 = vpack.c.b16 %v2071, %v2069
        %v2182 = vpack.c.b16 %v2074, %v2072
        %v2183 = vpack.c.b16 %v2075, %v2073
        %v2184 = vpack.c.b16 %v2078, %v2076
        %v2185 = vpack.c.b16 %v2079, %v2077
        %v2186 = vpack.c.b16 %v2082, %v2080
        %v2187 = vpack.c.b16 %v2083, %v2081
        %v2188 = vpack.c.b16 %v2086, %v2084
        %v2189 = vpack.c.b16 %v2087, %v2085
        %v2190 = vpack.c.b16 %v2090, %v2088
        %v2191 = vpack.c.b16 %v2091, %v2089
        %v2192 = vpack.c.b16 %v2094, %v2092
        %v2193 = vpack.c.b16 %v2095, %v2093
        %v2194 = vpack.c.b16 %v2098, %v2096
        %v2195 = vpack.c.b16 %v2099, %v2097
        %v2196 = vpack.c.b16 %v2102, %v2100
        %v2197 = vpack.c.b16 %v2103, %v2101
        %v2198 = vpack.c.b16 %v2106, %v2104
        %v2199 = vpack.c.b16 %v2107, %v2105
        %v2200 = vpack.c.b16 %v2110, %v2108
        %v2201 = vpack.c.b16 %v2111, %v2109
        %v2202 = vpack.c.b16 %v2114, %v2112
        %v2203 = vpack.c.b16 %v2115, %v2113
        %v2204 = vpack.c.b16 %v2118, %v2116
        %v2205 = vpack.c.b16 %v2119, %v2117
        %v2206 = vpack.c.b16 %v2122, %v2120
        %v2207 = vpack.c.b16 %v2123, %v2121
        %v2208 = vpack.c.b16 %v2126, %v2124
        %v2209 = vpack.c.b16 %v2127, %v2125
        %v2210 = vpack.c.b16 %v2130, %v2128
        %v2211 = vpack.c.b16 %v2131, %v2129
        %v2212 = vpack.c.b16 %v2134, %v2132
        %v2213 = vpack.c.b16 %v2135, %v2133
        %v2214 = vpack.c.b16 %v2138, %v2136
        %v2215 = vpack.c.b16 %v2139, %v2137
        %v2216 = vpack.c.b16 %v2142, %v2140
        %v2217 = vpack.c.b16 %v2143, %v2141
        %v2218 = vpack.c.b16 %v2146, %v2144
        %v2219 = vpack.c.b16 %v2147, %v2145
        %v2220 = vpack.c.b16 %v2150, %v2148
        %v2221 = vpack.c.b16 %v2151, %v2149
        %v2222 = vpack.c.b16 %v2154, %v2152
        %v2223 = vpack.c.b16 %v2155, %v2153
        %v2224 = vpack.c.b16 %v2158, %v2156
        %v2225 = vpack.c.b16 %v2159, %v2157
        %v2226 = vpack.c.b16 %v2162, %v2160
        %v2227 = vpack.c.b16 %v2163, %v2161
        %2292 = vmatprep.subr.bf16.mxu0 %v2165
        %2293 = vmatpush1.bf16.msra.mxu0 %v2164
        %2294 = vmatprep.subr.bf16.mxu0 %v2167
        %2295 = vmatpush1.bf16.msra.mxu0 %v2166
        %2296 = vmatprep.subr.bf16.mxu0 %v2169
        %2297 = vmatpush1.bf16.msra.mxu0 %v2168
        %2298 = vmatprep.subr.bf16.mxu0 %v2171
        %2299 = vmatpush1.bf16.msra.mxu0 %v2170
        %2300 = vmatprep.subr.bf16.mxu0 %v2173
        %2301 = vmatpush1.bf16.msra.mxu0 %v2172
        %2302 = vmatprep.subr.bf16.mxu0 %v2175
        %2303 = vmatpush1.bf16.msra.mxu0 %v2174
        %2304 = vmatprep.subr.bf16.mxu0 %v2177
        %2305 = vmatpush1.bf16.msra.mxu0 %v2176
        %2306 = vmatprep.subr.bf16.mxu0 %v2179
        %2307 = vmatpush1.bf16.msra.mxu0 %v2178
        %2308 = vmatprep.subr.bf16.mxu0 %v2181
        %2309 = vmatpush1.bf16.msra.mxu0 %v2180
        %2310 = vmatprep.subr.bf16.mxu0 %v2183
        %2311 = vmatpush1.bf16.msra.mxu0 %v2182
        %2312 = vmatprep.subr.bf16.mxu0 %v2185
        %2313 = vmatpush1.bf16.msra.mxu0 %v2184
        %2314 = vmatprep.subr.bf16.mxu0 %v2187
        %2315 = vmatpush1.bf16.msra.mxu0 %v2186
        %2316 = vmatprep.subr.bf16.mxu0 %v2189
        %2317 = vmatpush1.bf16.msra.mxu0 %v2188
        %2318 = vmatprep.subr.bf16.mxu0 %v2191
        %2319 = vmatpush1.bf16.msra.mxu0 %v2190
        %2320 = vmatprep.subr.bf16.mxu0 %v2193
        %2321 = vmatpush1.bf16.msra.mxu0 %v2192
        %2322 = vmatprep.subr.bf16.mxu0 %v2195
        %2323 = vmatpush1.bf16.msra.mxu0 %v2194
        %2324 = vmatprep.mubr.bf16.mxu0 %v1905
        %2325 = vmatmul.mubr.bf16.gmra.mrb[0].mxu0 %v1904
        %v2326 = vpop.f32.mrb[0].mxu0
        %v2327 = vadd.f32 0.0, %v2326
        %v2328 = vpop.f32.mrb[0].mxu0
        %v2329 = vadd.f32 0.0, %v2328
        %v2330 = vpop.f32.mrb[0].mxu0
        %v2331 = vpop.f32.mrb[0].mxu0
        %2332 = vdwg.mxu0
        %2333 = vmatprep.subr.bf16.mxu0 %v2197
        %2334 = vmatpush1.bf16.msra.mxu0 %v2196
        %2335 = vmatprep.subr.bf16.mxu0 %v2199
        %2336 = vmatpush1.bf16.msra.mxu0 %v2198
        %2337 = vmatprep.subr.bf16.mxu0 %v2201
        %2338 = vmatpush1.bf16.msra.mxu0 %v2200
        %2339 = vmatprep.subr.bf16.mxu0 %v2203
        %2340 = vmatpush1.bf16.msra.mxu0 %v2202
        %2341 = vmatprep.subr.bf16.mxu0 %v2205
        %2342 = vmatpush1.bf16.msra.mxu0 %v2204
        %2343 = vmatprep.subr.bf16.mxu0 %v2207
        %2344 = vmatpush1.bf16.msra.mxu0 %v2206
        %2345 = vmatprep.subr.bf16.mxu0 %v2209
        %2346 = vmatpush1.bf16.msra.mxu0 %v2208
        %2347 = vmatprep.subr.bf16.mxu0 %v2211
        %2348 = vmatpush1.bf16.msra.mxu0 %v2210
        %2349 = vmatprep.subr.bf16.mxu0 %v2213
        %2350 = vmatpush1.bf16.msra.mxu0 %v2212
        %2351 = vmatprep.subr.bf16.mxu0 %v2215
        %2352 = vmatpush1.bf16.msra.mxu0 %v2214
        %2353 = vmatprep.subr.bf16.mxu0 %v2217
        %2354 = vmatpush1.bf16.msra.mxu0 %v2216
        %2355 = vmatprep.subr.bf16.mxu0 %v2219
        %2356 = vmatpush1.bf16.msra.mxu0 %v2218
        %2357 = vmatprep.subr.bf16.mxu0 %v2221
        %2358 = vmatpush1.bf16.msra.mxu0 %v2220
        %2359 = vmatprep.subr.bf16.mxu0 %v2223
        %2360 = vmatpush1.bf16.msra.mxu0 %v2222
        %2361 = vmatprep.subr.bf16.mxu0 %v2225
        %2362 = vmatpush1.bf16.msra.mxu0 %v2224
        %2363 = vmatprep.subr.bf16.mxu0 %v2227
        %2364 = vmatpush1.bf16.msra.mxu0 %v2226
        %2365 = vmatprep.mubr.bf16.mxu0 %v1907
        %2366 = vmatmul.mubr.bf16.gmra.mrb[0].mxu0 %v1906
        %v2367 = vpop.f32.mrb[0].mxu0
        %v2368 = vadd.f32 %v2327, %v2367
        %v2369 = vpop.f32.mrb[0].mxu0
        %v2370 = vadd.f32 %v2329, %v2369
        %v2371 = vpop.f32.mrb[0].mxu0
        %v2372 = vpop.f32.mrb[0].mxu0
        %2373 = vdwg.mxu0
        %v2374 = vmax.f32 %v2368, 0.0
        %v2375 = vmax.f32 %v2370, 0.0
        %v2376 = vpack.c.bf16 %v2374, %v2374
        %v2377 = vpack.c.bf16 %v2375, %v2375
        %v2378 = vmul.f32 %v2368, 0.2
        %v2379 = vmul.f32 %v2370, 0.2
        %v2380 = vmax.f32 %v2368, %v2378
        %v2381 = vmax.f32 %v2370, %v2379
        %v2382 = vpack.c.bf16 %v2380, %v2380
        %v2383 = vpack.c.bf16 %v2381, %v2381
        %v2384 = vld [vmem:[#allocation8] sm:$0xf]
        %v2385 = vld [vmem:[#allocation8 + $0x4] sm:$0xf]
        %v2386 = vld [vmem:[#allocation8 + $0x8] sm:$0xf]
        %v2387 = vld [vmem:[#allocation8 + $0xc] sm:$0xf]
        %v2388 = vld [vmem:[#allocation8 + $0x10] sm:$0xf]
        %v2389 = vld [vmem:[#allocation8 + $0x14] sm:$0xf]
        %v2390 = vld [vmem:[#allocation8 + $0x18] sm:$0xf]
        %v2391 = vld [vmem:[#allocation8 + $0x1c] sm:$0xf]
        %v2392 = vld [vmem:[#allocation8 + $0x20] sm:$0xf]
        %v2393 = vld [vmem:[#allocation8 + $0x24] sm:$0xf]
        %v2394 = vld [vmem:[#allocation8 + $0x28] sm:$0xf]
        %v2395 = vld [vmem:[#allocation8 + $0x2c] sm:$0xf]
        %v2396 = vld [vmem:[#allocation8 + $0x30] sm:$0xf]
        %v2397 = vld [vmem:[#allocation8 + $0x34] sm:$0xf]
        %v2398 = vld [vmem:[#allocation8 + $0x38] sm:$0xf]
        %v2399 = vld [vmem:[#allocation8 + $0x3c] sm:$0xf]
        %v2400 = vld [vmem:[#allocation8 + $0x40] sm:$0xf]
        %v2401 = vld [vmem:[#allocation8 + $0x44] sm:$0xf]
        %v2402 = vld [vmem:[#allocation8 + $0x48] sm:$0xf]
        %v2403 = vld [vmem:[#allocation8 + $0x4c] sm:$0xf]
        %v2404 = vld [vmem:[#allocation8 + $0x50] sm:$0xf]
        %v2405 = vld [vmem:[#allocation8 + $0x54] sm:$0xf]
        %v2406 = vld [vmem:[#allocation8 + $0x58] sm:$0xf]
        %v2407 = vld [vmem:[#allocation8 + $0x5c] sm:$0xf]
        %v2408 = vld [vmem:[#allocation8 + $0x60] sm:$0xf]
        %v2409 = vld [vmem:[#allocation8 + $0x64] sm:$0xf]
        %v2410 = vld [vmem:[#allocation8 + $0x68] sm:$0xf]
        %v2411 = vld [vmem:[#allocation8 + $0x6c] sm:$0xf]
        %v2412 = vld [vmem:[#allocation8 + $0x70] sm:$0xf]
        %v2413 = vld [vmem:[#allocation8 + $0x74] sm:$0xf]
        %v2414 = vld [vmem:[#allocation8 + $0x78] sm:$0xf]
        %v2415 = vld [vmem:[#allocation8 + $0x7c] sm:$0xf]
        %v2448 = vunpack.c.l.b16 %v2384
        %v2449 = vunpack.c.l.b16 %v2385
        %v2450 = vunpack.c.l.b16 %v2386
        %v2451 = vunpack.c.l.b16 %v2387
        %v2452 = vunpack.c.l.b16 %v2388
        %v2453 = vunpack.c.l.b16 %v2389
        %v2454 = vunpack.c.l.b16 %v2390
        %v2455 = vunpack.c.l.b16 %v2391
        %v2456 = vunpack.c.l.b16 %v2392
        %v2457 = vunpack.c.l.b16 %v2393
        %v2458 = vunpack.c.l.b16 %v2394
        %v2459 = vunpack.c.l.b16 %v2395
        %v2460 = vunpack.c.l.b16 %v2396
        %v2461 = vunpack.c.l.b16 %v2397
        %v2462 = vunpack.c.l.b16 %v2398
        %v2463 = vunpack.c.l.b16 %v2399
        %v2464 = vunpack.c.l.b16 %v2400
        %v2465 = vunpack.c.l.b16 %v2401
        %v2466 = vunpack.c.l.b16 %v2402
        %v2467 = vunpack.c.l.b16 %v2403
        %v2468 = vunpack.c.l.b16 %v2404
        %v2469 = vunpack.c.l.b16 %v2405
        %v2470 = vunpack.c.l.b16 %v2406
        %v2471 = vunpack.c.l.b16 %v2407
        %v2472 = vunpack.c.l.b16 %v2408
        %v2473 = vunpack.c.l.b16 %v2409
        %v2474 = vunpack.c.l.b16 %v2410
        %v2475 = vunpack.c.l.b16 %v2411
        %v2476 = vunpack.c.l.b16 %v2412
        %v2477 = vunpack.c.l.b16 %v2413
        %v2478 = vunpack.c.l.b16 %v2414
        %v2479 = vunpack.c.l.b16 %v2415
        %v2480 = vpack.c.b16 %v2449, %v2448
        %v2481 = vpack.c.b16 %v2451, %v2450
        %v2482 = vpack.c.b16 %v2453, %v2452
        %v2483 = vpack.c.b16 %v2455, %v2454
        %v2484 = vpack.c.b16 %v2457, %v2456
        %v2485 = vpack.c.b16 %v2459, %v2458
        %v2486 = vpack.c.b16 %v2461, %v2460
        %v2487 = vpack.c.b16 %v2463, %v2462
        %v2488 = vpack.c.b16 %v2465, %v2464
        %v2489 = vpack.c.b16 %v2467, %v2466
        %v2490 = vpack.c.b16 %v2469, %v2468
        %v2491 = vpack.c.b16 %v2471, %v2470
        %v2492 = vpack.c.b16 %v2473, %v2472
        %v2493 = vpack.c.b16 %v2475, %v2474
        %v2494 = vpack.c.b16 %v2477, %v2476
        %v2495 = vpack.c.b16 %v2479, %v2478
        %2512 = vmatprep.subr.bf16.mxu0 0
        %2513 = vmatpush1.bf16.msra.mxu0 %v2480
        %2514 = vmatprep.subr.bf16.mxu0 0
        %2515 = vmatpush1.bf16.msra.mxu0 %v2481
        %2516 = vmatprep.subr.bf16.mxu0 0
        %2517 = vmatpush1.bf16.msra.mxu0 %v2482
        %2518 = vmatprep.subr.bf16.mxu0 0
        %2519 = vmatpush1.bf16.msra.mxu0 %v2483
        %2520 = vmatprep.subr.bf16.mxu0 0
        %2521 = vmatpush1.bf16.msra.mxu0 %v2484
        %2522 = vmatprep.subr.bf16.mxu0 0
        %2523 = vmatpush1.bf16.msra.mxu0 %v2485
        %2524 = vmatprep.subr.bf16.mxu0 0
        %2525 = vmatpush1.bf16.msra.mxu0 %v2486
        %2526 = vmatprep.subr.bf16.mxu0 0
        %2527 = vmatpush1.bf16.msra.mxu0 %v2487
        %2528 = vmatprep.subr.bf16.mxu0 0
        %2529 = vmatpush1.bf16.msra.mxu0 %v2488
        %2530 = vmatprep.subr.bf16.mxu0 0
        %2531 = vmatpush1.bf16.msra.mxu0 %v2489
        %2532 = vmatprep.subr.bf16.mxu0 0
        %2533 = vmatpush1.bf16.msra.mxu0 %v2490
        %2534 = vmatprep.subr.bf16.mxu0 0
        %2535 = vmatpush1.bf16.msra.mxu0 %v2491
        %2536 = vmatprep.subr.bf16.mxu0 0
        %2537 = vmatpush1.bf16.msra.mxu0 %v2492
        %2538 = vmatprep.subr.bf16.mxu0 0
        %2539 = vmatpush1.bf16.msra.mxu0 %v2493
        %2540 = vmatprep.subr.bf16.mxu0 0
        %2541 = vmatpush1.bf16.msra.mxu0 %v2494
        %2542 = vmatprep.subr.bf16.mxu0 0
        %2543 = vmatpush1.bf16.msra.mxu0 %v2495
        %2544 = vmatprep.mubr.bf16.mxu0 %v2383
        %2545 = vmatmul.mubr.bf16.gmra.mrb[0].mxu0 %v2382
        %v2546 = vpop.f32.mrb[0].mxu0
        %v2547 = vadd.f32 0.0, %v2546
        %v2548 = vpop.f32.mrb[0].mxu0
        %v2549 = vpop.f32.mrb[0].mxu0
        %v2550 = vpop.f32.mrb[0].mxu0
        %2551 = vdwg.mxu0
        %v2552 = vmax.f32 %v2547, 0.0
        %v2553 = vpack.c.bf16 %v2552, %v2552
        %v2554 = vld [vmem:[#allocation10] sm:$0xff]
        %v2555 = vld [vmem:[#allocation10 + $0x8] sm:$0xff]
        %v2556 = vld [vmem:[#allocation10 + $0x10] sm:$0xff]
        %v2557 = vld [vmem:[#allocation10 + $0x18] sm:$0xff]
        %v2558 = vld [vmem:[#allocation10 + $0x20] sm:$0xff]
        %v2559 = vld [vmem:[#allocation10 + $0x28] sm:$0xff]
        %v2560 = vld [vmem:[#allocation10 + $0x30] sm:$0xff]
        %v2561 = vld [vmem:[#allocation10 + $0x38] sm:$0xff]
        %v2562 = vld [vmem:[#allocation10 + $0x40] sm:$0xff]
        %v2563 = vld [vmem:[#allocation10 + $0x48] sm:$0xff]
        %v2564 = vld [vmem:[#allocation10 + $0x50] sm:$0xff]
        %v2565 = vld [vmem:[#allocation10 + $0x58] sm:$0xff]
        %v2566 = vld [vmem:[#allocation10 + $0x60] sm:$0xff]
        %v2567 = vld [vmem:[#allocation10 + $0x68] sm:$0xff]
        %v2568 = vld [vmem:[#allocation10 + $0x70] sm:$0xff]
        %v2569 = vld [vmem:[#allocation10 + $0x78] sm:$0xff]
        %v2586 = vunpack.c.l.b16 %v2554
        %v2587 = vunpack.c.h.b16 %v2554
        %v2588 = vunpack.c.l.b16 %v2555
        %v2589 = vunpack.c.h.b16 %v2555
        %v2590 = vunpack.c.l.b16 %v2556
        %v2591 = vunpack.c.h.b16 %v2556
        %v2592 = vunpack.c.l.b16 %v2557
        %v2593 = vunpack.c.h.b16 %v2557
        %v2594 = vunpack.c.l.b16 %v2558
        %v2595 = vunpack.c.h.b16 %v2558
        %v2596 = vunpack.c.l.b16 %v2559
        %v2597 = vunpack.c.h.b16 %v2559
        %v2598 = vunpack.c.l.b16 %v2560
        %v2599 = vunpack.c.h.b16 %v2560
        %v2600 = vunpack.c.l.b16 %v2561
        %v2601 = vunpack.c.h.b16 %v2561
        %v2602 = vunpack.c.l.b16 %v2562
        %v2603 = vunpack.c.h.b16 %v2562
        %v2604 = vunpack.c.l.b16 %v2563
        %v2605 = vunpack.c.h.b16 %v2563
        %v2606 = vunpack.c.l.b16 %v2564
        %v2607 = vunpack.c.h.b16 %v2564
        %v2608 = vunpack.c.l.b16 %v2565
        %v2609 = vunpack.c.h.b16 %v2565
        %v2610 = vunpack.c.l.b16 %v2566
        %v2611 = vunpack.c.h.b16 %v2566
        %v2612 = vunpack.c.l.b16 %v2567
        %v2613 = vunpack.c.h.b16 %v2567
        %v2614 = vunpack.c.l.b16 %v2568
        %v2615 = vunpack.c.h.b16 %v2568
        %v2616 = vunpack.c.l.b16 %v2569
        %v2617 = vunpack.c.h.b16 %v2569
        %v2618 = vpack.c.b16 %v2588, %v2586
        %v2619 = vpack.c.b16 %v2589, %v2587
        %v2620 = vpack.c.b16 %v2592, %v2590
        %v2621 = vpack.c.b16 %v2593, %v2591
        %v2622 = vpack.c.b16 %v2596, %v2594
        %v2623 = vpack.c.b16 %v2597, %v2595
        %v2624 = vpack.c.b16 %v2600, %v2598
        %v2625 = vpack.c.b16 %v2601, %v2599
        %v2626 = vpack.c.b16 %v2604, %v2602
        %v2627 = vpack.c.b16 %v2605, %v2603
        %v2628 = vpack.c.b16 %v2608, %v2606
        %v2629 = vpack.c.b16 %v2609, %v2607
        %v2630 = vpack.c.b16 %v2612, %v2610
        %v2631 = vpack.c.b16 %v2613, %v2611
        %v2632 = vpack.c.b16 %v2616, %v2614
        %v2633 = vpack.c.b16 %v2617, %v2615
        %2650 = vmatprep.subr.bf16.mxu0 %v2619
        %2651 = vmatpush1.bf16.msra.mxu0 %v2618
        %2652 = vmatprep.subr.bf16.mxu0 %v2621
        %2653 = vmatpush1.bf16.msra.mxu0 %v2620
        %2654 = vmatprep.subr.bf16.mxu0 %v2623
        %2655 = vmatpush1.bf16.msra.mxu0 %v2622
        %2656 = vmatprep.subr.bf16.mxu0 %v2625
        %2657 = vmatpush1.bf16.msra.mxu0 %v2624
        %2658 = vmatprep.subr.bf16.mxu0 %v2627
        %2659 = vmatpush1.bf16.msra.mxu0 %v2626
        %2660 = vmatprep.subr.bf16.mxu0 %v2629
        %2661 = vmatpush1.bf16.msra.mxu0 %v2628
        %2662 = vmatprep.subr.bf16.mxu0 %v2631
        %2663 = vmatpush1.bf16.msra.mxu0 %v2630
        %2664 = vmatprep.subr.bf16.mxu0 %v2633
        %2665 = vmatpush1.bf16.msra.mxu0 %v2632
        %2666 = vmatprep.subr.bf16.mxu0 0
        %2667 = vmatpush1.bf16.msra.mxu0 0
        %2668 = vmatprep.subr.bf16.mxu0 0
        %2669 = vmatpush1.bf16.msra.mxu0 0
        %2670 = vmatprep.subr.bf16.mxu0 0
        %2671 = vmatpush1.bf16.msra.mxu0 0
        %2672 = vmatprep.subr.bf16.mxu0 0
        %2673 = vmatpush1.bf16.msra.mxu0 0
        %2674 = vmatprep.subr.bf16.mxu0 0
        %2675 = vmatpush1.bf16.msra.mxu0 0
        %2676 = vmatprep.subr.bf16.mxu0 0
        %2677 = vmatpush1.bf16.msra.mxu0 0
        %2678 = vmatprep.subr.bf16.mxu0 0
        %2679 = vmatpush1.bf16.msra.mxu0 0
        %2680 = vmatprep.subr.bf16.mxu0 0
        %2681 = vmatpush1.bf16.msra.mxu0 0
        %2682 = vmatprep.mubr.bf16.mxu0 0
        %2683 = vmatmul.mubr.bf16.gmra.mrb[0].mxu0 %v2553
        %v2684 = vpop.f32.mrb[0].mxu0
        %v2685 = vadd.f32 0.0, %v2684
        %v2686 = vpop.f32.mrb[0].mxu0
        %v2687 = vadd.f32 0.0, %v2686
        %v2688 = vpop.f32.mrb[0].mxu0
        %v2689 = vpop.f32.mrb[0].mxu0
        %2690 = vdwg.mxu0
        %v2691 = vmax.f32 %v2685, 0.0
        %v2692 = vmax.f32 %v2687, 0.0
        %v2693 = vpack.c.bf16 %v2691, %v2691
        %v2694 = vpack.c.bf16 %v2692, %v2692
        %v2695 = vld [vmem:[#allocation11] sm:$0xff]
        %v2696 = vld [vmem:[#allocation11 + $0x8] sm:$0xff]
        %v2697 = vld [vmem:[#allocation11 + $0x10] sm:$0xff]
        %v2698 = vld [vmem:[#allocation11 + $0x18] sm:$0xff]
        %v2699 = vld [vmem:[#allocation11 + $0x20] sm:$0xff]
        %v2700 = vld [vmem:[#allocation11 + $0x28] sm:$0xff]
        %v2701 = vld [vmem:[#allocation11 + $0x30] sm:$0xff]
        %v2702 = vld [vmem:[#allocation11 + $0x38] sm:$0xff]
        %v2703 = vld [vmem:[#allocation11 + $0x40] sm:$0xff]
        %v2704 = vld [vmem:[#allocation11 + $0x48] sm:$0xff]
        %v2705 = vld [vmem:[#allocation11 + $0x50] sm:$0xff]
        %v2706 = vld [vmem:[#allocation11 + $0x58] sm:$0xff]
        %v2707 = vld [vmem:[#allocation11 + $0x60] sm:$0xff]
        %v2708 = vld [vmem:[#allocation11 + $0x68] sm:$0xff]
        %v2709 = vld [vmem:[#allocation11 + $0x70] sm:$0xff]
        %v2710 = vld [vmem:[#allocation11 + $0x78] sm:$0xff]
        %v2711 = vld [vmem:[#allocation11 + $0x80] sm:$0xff]
        %v2712 = vld [vmem:[#allocation11 + $0x88] sm:$0xff]
        %v2713 = vld [vmem:[#allocation11 + $0x90] sm:$0xff]
        %v2714 = vld [vmem:[#allocation11 + $0x98] sm:$0xff]
        %v2715 = vld [vmem:[#allocation11 + $0xa0] sm:$0xff]
        %v2716 = vld [vmem:[#allocation11 + $0xa8] sm:$0xff]
        %v2717 = vld [vmem:[#allocation11 + $0xb0] sm:$0xff]
        %v2718 = vld [vmem:[#allocation11 + $0xb8] sm:$0xff]
        %v2719 = vld [vmem:[#allocation11 + $0xc0] sm:$0xff]
        %v2720 = vld [vmem:[#allocation11 + $0xc8] sm:$0xff]
        %v2721 = vld [vmem:[#allocation11 + $0xd0] sm:$0xff]
        %v2722 = vld [vmem:[#allocation11 + $0xd8] sm:$0xff]
        %v2723 = vld [vmem:[#allocation11 + $0xe0] sm:$0xff]
        %v2724 = vld [vmem:[#allocation11 + $0xe8] sm:$0xff]
        %v2725 = vld [vmem:[#allocation11 + $0xf0] sm:$0xff]
        %v2726 = vld [vmem:[#allocation11 + $0xf8] sm:$0xff]
        %v2727 = vld [vmem:[#allocation11 + $0x100] sm:$0xff]
        %v2728 = vld [vmem:[#allocation11 + $0x108] sm:$0xff]
        %v2729 = vld [vmem:[#allocation11 + $0x110] sm:$0xff]
        %v2730 = vld [vmem:[#allocation11 + $0x118] sm:$0xff]
        %v2731 = vld [vmem:[#allocation11 + $0x120] sm:$0xff]
        %v2732 = vld [vmem:[#allocation11 + $0x128] sm:$0xff]
        %v2733 = vld [vmem:[#allocation11 + $0x130] sm:$0xff]
        %v2734 = vld [vmem:[#allocation11 + $0x138] sm:$0xff]
        %v2735 = vld [vmem:[#allocation11 + $0x140] sm:$0xff]
        %v2736 = vld [vmem:[#allocation11 + $0x148] sm:$0xff]
        %v2737 = vld [vmem:[#allocation11 + $0x150] sm:$0xff]
        %v2738 = vld [vmem:[#allocation11 + $0x158] sm:$0xff]
        %v2739 = vld [vmem:[#allocation11 + $0x160] sm:$0xff]
        %v2740 = vld [vmem:[#allocation11 + $0x168] sm:$0xff]
        %v2741 = vld [vmem:[#allocation11 + $0x170] sm:$0xff]
        %v2742 = vld [vmem:[#allocation11 + $0x178] sm:$0xff]
        %v2743 = vld [vmem:[#allocation11 + $0x180] sm:$0xff]
        %v2744 = vld [vmem:[#allocation11 + $0x188] sm:$0xff]
        %v2745 = vld [vmem:[#allocation11 + $0x190] sm:$0xff]
        %v2746 = vld [vmem:[#allocation11 + $0x198] sm:$0xff]
        %v2747 = vld [vmem:[#allocation11 + $0x1a0] sm:$0xff]
        %v2748 = vld [vmem:[#allocation11 + $0x1a8] sm:$0xff]
        %v2749 = vld [vmem:[#allocation11 + $0x1b0] sm:$0xff]
        %v2750 = vld [vmem:[#allocation11 + $0x1b8] sm:$0xff]
        %v2751 = vld [vmem:[#allocation11 + $0x1c0] sm:$0xff]
        %v2752 = vld [vmem:[#allocation11 + $0x1c8] sm:$0xff]
        %v2753 = vld [vmem:[#allocation11 + $0x1d0] sm:$0xff]
        %v2754 = vld [vmem:[#allocation11 + $0x1d8] sm:$0xff]
        %v2755 = vld [vmem:[#allocation11 + $0x1e0] sm:$0xff]
        %v2756 = vld [vmem:[#allocation11 + $0x1e8] sm:$0xff]
        %v2757 = vld [vmem:[#allocation11 + $0x1f0] sm:$0xff]
        %v2758 = vld [vmem:[#allocation11 + $0x1f8] sm:$0xff]
        %v2759 = vld [vmem:[#allocation13] sm:$0xff]
        %v2760 = vld [vmem:[#allocation13 + $0x8] sm:$0xff]
        %v2761 = vld [vmem:[#allocation13 + $0x10] sm:$0xff]
        %v2762 = vld [vmem:[#allocation13 + $0x18] sm:$0xff]
        %v2763 = vld [vmem:[#allocation13 + $0x20] sm:$0xff]
        %v2764 = vld [vmem:[#allocation13 + $0x28] sm:$0xff]
        %v2765 = vld [vmem:[#allocation13 + $0x30] sm:$0xff]
        %v2766 = vld [vmem:[#allocation13 + $0x38] sm:$0xff]
        %v2767 = vld [vmem:[#allocation13 + $0x40] sm:$0xff]
        %v2768 = vld [vmem:[#allocation13 + $0x48] sm:$0xff]
        %v2769 = vld [vmem:[#allocation13 + $0x50] sm:$0xff]
        %v2770 = vld [vmem:[#allocation13 + $0x58] sm:$0xff]
        %v2771 = vld [vmem:[#allocation13 + $0x60] sm:$0xff]
        %v2772 = vld [vmem:[#allocation13 + $0x68] sm:$0xff]
        %v2773 = vld [vmem:[#allocation13 + $0x70] sm:$0xff]
        %v2774 = vld [vmem:[#allocation13 + $0x78] sm:$0xff]
        %v2775 = vld [vmem:[#allocation13 + $0x80] sm:$0xff]
        %v2776 = vld [vmem:[#allocation13 + $0x88] sm:$0xff]
        %v2777 = vld [vmem:[#allocation13 + $0x90] sm:$0xff]
        %v2778 = vld [vmem:[#allocation13 + $0x98] sm:$0xff]
        %v2779 = vld [vmem:[#allocation13 + $0xa0] sm:$0xff]
        %v2780 = vld [vmem:[#allocation13 + $0xa8] sm:$0xff]
        %v2781 = vld [vmem:[#allocation13 + $0xb0] sm:$0xff]
        %v2782 = vld [vmem:[#allocation13 + $0xb8] sm:$0xff]
        %v2783 = vld [vmem:[#allocation13 + $0xc0] sm:$0xff]
        %v2784 = vld [vmem:[#allocation13 + $0xc8] sm:$0xff]
        %v2785 = vld [vmem:[#allocation13 + $0xd0] sm:$0xff]
        %v2786 = vld [vmem:[#allocation13 + $0xd8] sm:$0xff]
        %v2787 = vld [vmem:[#allocation13 + $0xe0] sm:$0xff]
        %v2788 = vld [vmem:[#allocation13 + $0xe8] sm:$0xff]
        %v2789 = vld [vmem:[#allocation13 + $0xf0] sm:$0xff]
        %v2790 = vld [vmem:[#allocation13 + $0xf8] sm:$0xff]
        %v2791 = vld [vmem:[#allocation13 + $0x100] sm:$0xff]
        %v2792 = vld [vmem:[#allocation13 + $0x108] sm:$0xff]
        %v2793 = vld [vmem:[#allocation13 + $0x110] sm:$0xff]
        %v2794 = vld [vmem:[#allocation13 + $0x118] sm:$0xff]
        %v2795 = vld [vmem:[#allocation13 + $0x120] sm:$0xff]
        %v2796 = vld [vmem:[#allocation13 + $0x128] sm:$0xff]
        %v2797 = vld [vmem:[#allocation13 + $0x130] sm:$0xff]
        %v2798 = vld [vmem:[#allocation13 + $0x138] sm:$0xff]
        %v2799 = vld [vmem:[#allocation13 + $0x140] sm:$0xff]
        %v2800 = vld [vmem:[#allocation13 + $0x148] sm:$0xff]
        %v2801 = vld [vmem:[#allocation13 + $0x150] sm:$0xff]
        %v2802 = vld [vmem:[#allocation13 + $0x158] sm:$0xff]
        %v2803 = vld [vmem:[#allocation13 + $0x160] sm:$0xff]
        %v2804 = vld [vmem:[#allocation13 + $0x168] sm:$0xff]
        %v2805 = vld [vmem:[#allocation13 + $0x170] sm:$0xff]
        %v2806 = vld [vmem:[#allocation13 + $0x178] sm:$0xff]
        %v2807 = vld [vmem:[#allocation13 + $0x180] sm:$0xff]
        %v2808 = vld [vmem:[#allocation13 + $0x188] sm:$0xff]
        %v2809 = vld [vmem:[#allocation13 + $0x190] sm:$0xff]
        %v2810 = vld [vmem:[#allocation13 + $0x198] sm:$0xff]
        %v2811 = vld [vmem:[#allocation13 + $0x1a0] sm:$0xff]
        %v2812 = vld [vmem:[#allocation13 + $0x1a8] sm:$0xff]
        %v2813 = vld [vmem:[#allocation13 + $0x1b0] sm:$0xff]
        %v2814 = vld [vmem:[#allocation13 + $0x1b8] sm:$0xff]
        %v2815 = vld [vmem:[#allocation13 + $0x1c0] sm:$0xff]
        %v2816 = vld [vmem:[#allocation13 + $0x1c8] sm:$0xff]
        %v2817 = vld [vmem:[#allocation13 + $0x1d0] sm:$0xff]
        %v2818 = vld [vmem:[#allocation13 + $0x1d8] sm:$0xff]
        %v2819 = vld [vmem:[#allocation13 + $0x1e0] sm:$0xff]
        %v2820 = vld [vmem:[#allocation13 + $0x1e8] sm:$0xff]
        %v2821 = vld [vmem:[#allocation13 + $0x1f0] sm:$0xff]
        %v2822 = vld [vmem:[#allocation13 + $0x1f8] sm:$0xff]
        %v2887 = vunpack.c.l.b16 %v2759
        %v2888 = vunpack.c.h.b16 %v2759
        %v2889 = vunpack.c.l.b16 %v2760
        %v2890 = vunpack.c.h.b16 %v2760
        %v2891 = vunpack.c.l.b16 %v2761
        %v2892 = vunpack.c.h.b16 %v2761
        %v2893 = vunpack.c.l.b16 %v2762
        %v2894 = vunpack.c.h.b16 %v2762
        %v2895 = vunpack.c.l.b16 %v2763
        %v2896 = vunpack.c.h.b16 %v2763
        %v2897 = vunpack.c.l.b16 %v2764
        %v2898 = vunpack.c.h.b16 %v2764
        %v2899 = vunpack.c.l.b16 %v2765
        %v2900 = vunpack.c.h.b16 %v2765
        %v2901 = vunpack.c.l.b16 %v2766
        %v2902 = vunpack.c.h.b16 %v2766
        %v2903 = vunpack.c.l.b16 %v2767
        %v2904 = vunpack.c.h.b16 %v2767
        %v2905 = vunpack.c.l.b16 %v2768
        %v2906 = vunpack.c.h.b16 %v2768
        %v2907 = vunpack.c.l.b16 %v2769
        %v2908 = vunpack.c.h.b16 %v2769
        %v2909 = vunpack.c.l.b16 %v2770
        %v2910 = vunpack.c.h.b16 %v2770
        %v2911 = vunpack.c.l.b16 %v2771
        %v2912 = vunpack.c.h.b16 %v2771
        %v2913 = vunpack.c.l.b16 %v2772
        %v2914 = vunpack.c.h.b16 %v2772
        %v2915 = vunpack.c.l.b16 %v2773
        %v2916 = vunpack.c.h.b16 %v2773
        %v2917 = vunpack.c.l.b16 %v2774
        %v2918 = vunpack.c.h.b16 %v2774
        %v2919 = vunpack.c.l.b16 %v2775
        %v2920 = vunpack.c.h.b16 %v2775
        %v2921 = vunpack.c.l.b16 %v2776
        %v2922 = vunpack.c.h.b16 %v2776
        %v2923 = vunpack.c.l.b16 %v2777
        %v2924 = vunpack.c.h.b16 %v2777
        %v2925 = vunpack.c.l.b16 %v2778
        %v2926 = vunpack.c.h.b16 %v2778
        %v2927 = vunpack.c.l.b16 %v2779
        %v2928 = vunpack.c.h.b16 %v2779
        %v2929 = vunpack.c.l.b16 %v2780
        %v2930 = vunpack.c.h.b16 %v2780
        %v2931 = vunpack.c.l.b16 %v2781
        %v2932 = vunpack.c.h.b16 %v2781
        %v2933 = vunpack.c.l.b16 %v2782
        %v2934 = vunpack.c.h.b16 %v2782
        %v2935 = vunpack.c.l.b16 %v2783
        %v2936 = vunpack.c.h.b16 %v2783
        %v2937 = vunpack.c.l.b16 %v2784
        %v2938 = vunpack.c.h.b16 %v2784
        %v2939 = vunpack.c.l.b16 %v2785
        %v2940 = vunpack.c.h.b16 %v2785
        %v2941 = vunpack.c.l.b16 %v2786
        %v2942 = vunpack.c.h.b16 %v2786
        %v2943 = vunpack.c.l.b16 %v2787
        %v2944 = vunpack.c.h.b16 %v2787
        %v2945 = vunpack.c.l.b16 %v2788
        %v2946 = vunpack.c.h.b16 %v2788
        %v2947 = vunpack.c.l.b16 %v2789
        %v2948 = vunpack.c.h.b16 %v2789
        %v2949 = vunpack.c.l.b16 %v2790
        %v2950 = vunpack.c.h.b16 %v2790
        %v2951 = vunpack.c.l.b16 %v2791
        %v2952 = vunpack.c.h.b16 %v2791
        %v2953 = vunpack.c.l.b16 %v2792
        %v2954 = vunpack.c.h.b16 %v2792
        %v2955 = vunpack.c.l.b16 %v2793
        %v2956 = vunpack.c.h.b16 %v2793
        %v2957 = vunpack.c.l.b16 %v2794
        %v2958 = vunpack.c.h.b16 %v2794
        %v2959 = vunpack.c.l.b16 %v2795
        %v2960 = vunpack.c.h.b16 %v2795
        %v2961 = vunpack.c.l.b16 %v2796
        %v2962 = vunpack.c.h.b16 %v2796
        %v2963 = vunpack.c.l.b16 %v2797
        %v2964 = vunpack.c.h.b16 %v2797
        %v2965 = vunpack.c.l.b16 %v2798
        %v2966 = vunpack.c.h.b16 %v2798
        %v2967 = vunpack.c.l.b16 %v2799
        %v2968 = vunpack.c.h.b16 %v2799
        %v2969 = vunpack.c.l.b16 %v2800
        %v2970 = vunpack.c.h.b16 %v2800
        %v2971 = vunpack.c.l.b16 %v2801
        %v2972 = vunpack.c.h.b16 %v2801
        %v2973 = vunpack.c.l.b16 %v2802
        %v2974 = vunpack.c.h.b16 %v2802
        %v2975 = vunpack.c.l.b16 %v2803
        %v2976 = vunpack.c.h.b16 %v2803
        %v2977 = vunpack.c.l.b16 %v2804
        %v2978 = vunpack.c.h.b16 %v2804
        %v2979 = vunpack.c.l.b16 %v2805
        %v2980 = vunpack.c.h.b16 %v2805
        %v2981 = vunpack.c.l.b16 %v2806
        %v2982 = vunpack.c.h.b16 %v2806
        %v2983 = vunpack.c.l.b16 %v2807
        %v2984 = vunpack.c.h.b16 %v2807
        %v2985 = vunpack.c.l.b16 %v2808
        %v2986 = vunpack.c.h.b16 %v2808
        %v2987 = vunpack.c.l.b16 %v2809
        %v2988 = vunpack.c.h.b16 %v2809
        %v2989 = vunpack.c.l.b16 %v2810
        %v2990 = vunpack.c.h.b16 %v2810
        %v2991 = vunpack.c.l.b16 %v2811
        %v2992 = vunpack.c.h.b16 %v2811
        %v2993 = vunpack.c.l.b16 %v2812
        %v2994 = vunpack.c.h.b16 %v2812
        %v2995 = vunpack.c.l.b16 %v2813
        %v2996 = vunpack.c.h.b16 %v2813
        %v2997 = vunpack.c.l.b16 %v2814
        %v2998 = vunpack.c.h.b16 %v2814
        %v2999 = vunpack.c.l.b16 %v2815
        %v3000 = vunpack.c.h.b16 %v2815
        %v3001 = vunpack.c.l.b16 %v2816
        %v3002 = vunpack.c.h.b16 %v2816
        %v3003 = vunpack.c.l.b16 %v2817
        %v3004 = vunpack.c.h.b16 %v2817
        %v3005 = vunpack.c.l.b16 %v2818
        %v3006 = vunpack.c.h.b16 %v2818
        %v3007 = vunpack.c.l.b16 %v2819
        %v3008 = vunpack.c.h.b16 %v2819
        %v3009 = vunpack.c.l.b16 %v2820
        %v3010 = vunpack.c.h.b16 %v2820
        %v3011 = vunpack.c.l.b16 %v2821
        %v3012 = vunpack.c.h.b16 %v2821
        %v3013 = vunpack.c.l.b16 %v2822
        %v3014 = vunpack.c.h.b16 %v2822
        %v3015 = vpack.c.b16 %v2891, %v2887
        %v3016 = vpack.c.b16 %v2892, %v2888
        %v3017 = vpack.c.b16 %v2893, %v2889
        %v3018 = vpack.c.b16 %v2894, %v2890
        %v3019 = vpack.c.b16 %v2899, %v2895
        %v3020 = vpack.c.b16 %v2900, %v2896
        %v3021 = vpack.c.b16 %v2901, %v2897
        %v3022 = vpack.c.b16 %v2902, %v2898
        %v3023 = vpack.c.b16 %v2907, %v2903
        %v3024 = vpack.c.b16 %v2908, %v2904
        %v3025 = vpack.c.b16 %v2909, %v2905
        %v3026 = vpack.c.b16 %v2910, %v2906
        %v3027 = vpack.c.b16 %v2915, %v2911
        %v3028 = vpack.c.b16 %v2916, %v2912
        %v3029 = vpack.c.b16 %v2917, %v2913
        %v3030 = vpack.c.b16 %v2918, %v2914
        %v3031 = vpack.c.b16 %v2923, %v2919
        %v3032 = vpack.c.b16 %v2924, %v2920
        %v3033 = vpack.c.b16 %v2925, %v2921
        %v3034 = vpack.c.b16 %v2926, %v2922
        %v3035 = vpack.c.b16 %v2931, %v2927
        %v3036 = vpack.c.b16 %v2932, %v2928
        %v3037 = vpack.c.b16 %v2933, %v2929
        %v3038 = vpack.c.b16 %v2934, %v2930
        %v3039 = vpack.c.b16 %v2939, %v2935
        %v3040 = vpack.c.b16 %v2940, %v2936
        %v3041 = vpack.c.b16 %v2941, %v2937
        %v3042 = vpack.c.b16 %v2942, %v2938
        %v3043 = vpack.c.b16 %v2947, %v2943
        %v3044 = vpack.c.b16 %v2948, %v2944
        %v3045 = vpack.c.b16 %v2949, %v2945
        %v3046 = vpack.c.b16 %v2950, %v2946
        %v3047 = vpack.c.b16 %v2955, %v2951
        %v3048 = vpack.c.b16 %v2956, %v2952
        %v3049 = vpack.c.b16 %v2957, %v2953
        %v3050 = vpack.c.b16 %v2958, %v2954
        %v3051 = vpack.c.b16 %v2963, %v2959
        %v3052 = vpack.c.b16 %v2964, %v2960
        %v3053 = vpack.c.b16 %v2965, %v2961
        %v3054 = vpack.c.b16 %v2966, %v2962
        %v3055 = vpack.c.b16 %v2971, %v2967
        %v3056 = vpack.c.b16 %v2972, %v2968
        %v3057 = vpack.c.b16 %v2973, %v2969
        %v3058 = vpack.c.b16 %v2974, %v2970
        %v3059 = vpack.c.b16 %v2979, %v2975
        %v3060 = vpack.c.b16 %v2980, %v2976
        %v3061 = vpack.c.b16 %v2981, %v2977
        %v3062 = vpack.c.b16 %v2982, %v2978
        %v3063 = vpack.c.b16 %v2987, %v2983
        %v3064 = vpack.c.b16 %v2988, %v2984
        %v3065 = vpack.c.b16 %v2989, %v2985
        %v3066 = vpack.c.b16 %v2990, %v2986
        %v3067 = vpack.c.b16 %v2995, %v2991
        %v3068 = vpack.c.b16 %v2996, %v2992
        %v3069 = vpack.c.b16 %v2997, %v2993
        %v3070 = vpack.c.b16 %v2998, %v2994
        %v3071 = vpack.c.b16 %v3003, %v2999
        %v3072 = vpack.c.b16 %v3004, %v3000
        %v3073 = vpack.c.b16 %v3005, %v3001
        %v3074 = vpack.c.b16 %v3006, %v3002
        %v3075 = vpack.c.b16 %v3011, %v3007
        %v3076 = vpack.c.b16 %v3012, %v3008
        %v3077 = vpack.c.b16 %v3013, %v3009
        %v3078 = vpack.c.b16 %v3014, %v3010
        %3143 = vmatprep.subr.bf16.mxu0 %v3016
        %3144 = vmatpush1.bf16.msra.mxu0 %v3015
        %3145 = vmatprep.subr.bf16.mxu0 %v3020
        %3146 = vmatpush1.bf16.msra.mxu0 %v3019
        %3147 = vmatprep.subr.bf16.mxu0 %v3024
        %3148 = vmatpush1.bf16.msra.mxu0 %v3023
        %3149 = vmatprep.subr.bf16.mxu0 %v3028
        %3150 = vmatpush1.bf16.msra.mxu0 %v3027
        %3151 = vmatprep.subr.bf16.mxu0 %v3032
        %3152 = vmatpush1.bf16.msra.mxu0 %v3031
        %3153 = vmatprep.subr.bf16.mxu0 %v3036
        %3154 = vmatpush1.bf16.msra.mxu0 %v3035
        %3155 = vmatprep.subr.bf16.mxu0 %v3040
        %3156 = vmatpush1.bf16.msra.mxu0 %v3039
        %3157 = vmatprep.subr.bf16.mxu0 %v3044
        %3158 = vmatpush1.bf16.msra.mxu0 %v3043
        %3159 = vmatprep.subr.bf16.mxu0 %v3048
        %3160 = vmatpush1.bf16.msra.mxu0 %v3047
        %3161 = vmatprep.subr.bf16.mxu0 %v3052
        %3162 = vmatpush1.bf16.msra.mxu0 %v3051
        %3163 = vmatprep.subr.bf16.mxu0 %v3056
        %3164 = vmatpush1.bf16.msra.mxu0 %v3055
        %3165 = vmatprep.subr.bf16.mxu0 %v3060
        %3166 = vmatpush1.bf16.msra.mxu0 %v3059
        %3167 = vmatprep.subr.bf16.mxu0 %v3064
        %3168 = vmatpush1.bf16.msra.mxu0 %v3063
        %3169 = vmatprep.subr.bf16.mxu0 %v3068
        %3170 = vmatpush1.bf16.msra.mxu0 %v3067
        %3171 = vmatprep.subr.bf16.mxu0 %v3072
        %3172 = vmatpush1.bf16.msra.mxu0 %v3071
        %3173 = vmatprep.subr.bf16.mxu0 %v3076
        %3174 = vmatpush1.bf16.msra.mxu0 %v3075
        %3175 = vmatprep.mubr.bf16.mxu0 %v2377
        %3176 = vmatmul.mubr.bf16.gmra.mrb[0].mxu0 %v2376
        %v3177 = vpop.f32.mrb[0].mxu0
        %v3178 = vadd.f32 0.0, %v3177
        %v3179 = vpop.f32.mrb[0].mxu0
        %v3180 = vadd.f32 0.0, %v3179
        %v3181 = vpop.f32.mrb[0].mxu0
        %v3182 = vpop.f32.mrb[0].mxu0
        %3183 = vdwg.mxu0
        %3184 = vmatprep.subr.bf16.mxu0 %v3018
        %3185 = vmatpush1.bf16.msra.mxu0 %v3017
        %3186 = vmatprep.subr.bf16.mxu0 %v3022
        %3187 = vmatpush1.bf16.msra.mxu0 %v3021
        %3188 = vmatprep.subr.bf16.mxu0 %v3026
        %3189 = vmatpush1.bf16.msra.mxu0 %v3025
        %3190 = vmatprep.subr.bf16.mxu0 %v3030
        %3191 = vmatpush1.bf16.msra.mxu0 %v3029
        %3192 = vmatprep.subr.bf16.mxu0 %v3034
        %3193 = vmatpush1.bf16.msra.mxu0 %v3033
        %3194 = vmatprep.subr.bf16.mxu0 %v3038
        %3195 = vmatpush1.bf16.msra.mxu0 %v3037
        %3196 = vmatprep.subr.bf16.mxu0 %v3042
        %3197 = vmatpush1.bf16.msra.mxu0 %v3041
        %3198 = vmatprep.subr.bf16.mxu0 %v3046
        %3199 = vmatpush1.bf16.msra.mxu0 %v3045
        %3200 = vmatprep.subr.bf16.mxu0 %v3050
        %3201 = vmatpush1.bf16.msra.mxu0 %v3049
        %3202 = vmatprep.subr.bf16.mxu0 %v3054
        %3203 = vmatpush1.bf16.msra.mxu0 %v3053
        %3204 = vmatprep.subr.bf16.mxu0 %v3058
        %3205 = vmatpush1.bf16.msra.mxu0 %v3057
        %3206 = vmatprep.subr.bf16.mxu0 %v3062
        %3207 = vmatpush1.bf16.msra.mxu0 %v3061
        %3208 = vmatprep.subr.bf16.mxu0 %v3066
        %3209 = vmatpush1.bf16.msra.mxu0 %v3065
        %3210 = vmatprep.subr.bf16.mxu0 %v3070
        %3211 = vmatpush1.bf16.msra.mxu0 %v3069
        %3212 = vmatprep.subr.bf16.mxu0 %v3074
        %3213 = vmatpush1.bf16.msra.mxu0 %v3073
        %3214 = vmatprep.subr.bf16.mxu0 %v3078
        %3215 = vmatpush1.bf16.msra.mxu0 %v3077
        %3216 = vmatprep.mubr.bf16.mxu0 %v2377
        %3217 = vmatmul.mubr.bf16.gmra.mrb[0].mxu0 %v2376
        %v3218 = vpop.f32.mrb[0].mxu0
        %v3219 = vadd.f32 0.0, %v3218
        %v3220 = vpop.f32.mrb[0].mxu0
        %v3221 = vadd.f32 0.0, %v3220
        %v3222 = vpop.f32.mrb[0].mxu0
        %v3223 = vpop.f32.mrb[0].mxu0
        %3224 = vdwg.mxu0
        %v3289 = vunpack.c.l.b16 %v2695
        %v3290 = vunpack.c.h.b16 %v2695
        %v3291 = vunpack.c.l.b16 %v2696
        %v3292 = vunpack.c.h.b16 %v2696
        %v3293 = vunpack.c.l.b16 %v2697
        %v3294 = vunpack.c.h.b16 %v2697
        %v3295 = vunpack.c.l.b16 %v2698
        %v3296 = vunpack.c.h.b16 %v2698
        %v3297 = vunpack.c.l.b16 %v2699
        %v3298 = vunpack.c.h.b16 %v2699
        %v3299 = vunpack.c.l.b16 %v2700
        %v3300 = vunpack.c.h.b16 %v2700
        %v3301 = vunpack.c.l.b16 %v2701
        %v3302 = vunpack.c.h.b16 %v2701
        %v3303 = vunpack.c.l.b16 %v2702
        %v3304 = vunpack.c.h.b16 %v2702
        %v3305 = vunpack.c.l.b16 %v2703
        %v3306 = vunpack.c.h.b16 %v2703
        %v3307 = vunpack.c.l.b16 %v2704
        %v3308 = vunpack.c.h.b16 %v2704
        %v3309 = vunpack.c.l.b16 %v2705
        %v3310 = vunpack.c.h.b16 %v2705
        %v3311 = vunpack.c.l.b16 %v2706
        %v3312 = vunpack.c.h.b16 %v2706
        %v3313 = vunpack.c.l.b16 %v2707
        %v3314 = vunpack.c.h.b16 %v2707
        %v3315 = vunpack.c.l.b16 %v2708
        %v3316 = vunpack.c.h.b16 %v2708
        %v3317 = vunpack.c.l.b16 %v2709
        %v3318 = vunpack.c.h.b16 %v2709
        %v3319 = vunpack.c.l.b16 %v2710
        %v3320 = vunpack.c.h.b16 %v2710
        %v3321 = vunpack.c.l.b16 %v2711
        %v3322 = vunpack.c.h.b16 %v2711
        %v3323 = vunpack.c.l.b16 %v2712
        %v3324 = vunpack.c.h.b16 %v2712
        %v3325 = vunpack.c.l.b16 %v2713
        %v3326 = vunpack.c.h.b16 %v2713
        %v3327 = vunpack.c.l.b16 %v2714
        %v3328 = vunpack.c.h.b16 %v2714
        %v3329 = vunpack.c.l.b16 %v2715
        %v3330 = vunpack.c.h.b16 %v2715
        %v3331 = vunpack.c.l.b16 %v2716
        %v3332 = vunpack.c.h.b16 %v2716
        %v3333 = vunpack.c.l.b16 %v2717
        %v3334 = vunpack.c.h.b16 %v2717
        %v3335 = vunpack.c.l.b16 %v2718
        %v3336 = vunpack.c.h.b16 %v2718
        %v3337 = vunpack.c.l.b16 %v2719
        %v3338 = vunpack.c.h.b16 %v2719
        %v3339 = vunpack.c.l.b16 %v2720
        %v3340 = vunpack.c.h.b16 %v2720
        %v3341 = vunpack.c.l.b16 %v2721
        %v3342 = vunpack.c.h.b16 %v2721
        %v3343 = vunpack.c.l.b16 %v2722
        %v3344 = vunpack.c.h.b16 %v2722
        %v3345 = vunpack.c.l.b16 %v2723
        %v3346 = vunpack.c.h.b16 %v2723
        %v3347 = vunpack.c.l.b16 %v2724
        %v3348 = vunpack.c.h.b16 %v2724
        %v3349 = vunpack.c.l.b16 %v2725
        %v3350 = vunpack.c.h.b16 %v2725
        %v3351 = vunpack.c.l.b16 %v2726
        %v3352 = vunpack.c.h.b16 %v2726
        %v3353 = vunpack.c.l.b16 %v2727
        %v3354 = vunpack.c.h.b16 %v2727
        %v3355 = vunpack.c.l.b16 %v2728
        %v3356 = vunpack.c.h.b16 %v2728
        %v3357 = vunpack.c.l.b16 %v2729
        %v3358 = vunpack.c.h.b16 %v2729
        %v3359 = vunpack.c.l.b16 %v2730
        %v3360 = vunpack.c.h.b16 %v2730
        %v3361 = vunpack.c.l.b16 %v2731
        %v3362 = vunpack.c.h.b16 %v2731
        %v3363 = vunpack.c.l.b16 %v2732
        %v3364 = vunpack.c.h.b16 %v2732
        %v3365 = vunpack.c.l.b16 %v2733
        %v3366 = vunpack.c.h.b16 %v2733
        %v3367 = vunpack.c.l.b16 %v2734
        %v3368 = vunpack.c.h.b16 %v2734
        %v3369 = vunpack.c.l.b16 %v2735
        %v3370 = vunpack.c.h.b16 %v2735
        %v3371 = vunpack.c.l.b16 %v2736
        %v3372 = vunpack.c.h.b16 %v2736
        %v3373 = vunpack.c.l.b16 %v2737
        %v3374 = vunpack.c.h.b16 %v2737
        %v3375 = vunpack.c.l.b16 %v2738
        %v3376 = vunpack.c.h.b16 %v2738
        %v3377 = vunpack.c.l.b16 %v2739
        %v3378 = vunpack.c.h.b16 %v2739
        %v3379 = vunpack.c.l.b16 %v2740
        %v3380 = vunpack.c.h.b16 %v2740
        %v3381 = vunpack.c.l.b16 %v2741
        %v3382 = vunpack.c.h.b16 %v2741
        %v3383 = vunpack.c.l.b16 %v2742
        %v3384 = vunpack.c.h.b16 %v2742
        %v3385 = vunpack.c.l.b16 %v2743
        %v3386 = vunpack.c.h.b16 %v2743
        %v3387 = vunpack.c.l.b16 %v2744
        %v3388 = vunpack.c.h.b16 %v2744
        %v3389 = vunpack.c.l.b16 %v2745
        %v3390 = vunpack.c.h.b16 %v2745
        %v3391 = vunpack.c.l.b16 %v2746
        %v3392 = vunpack.c.h.b16 %v2746
        %v3393 = vunpack.c.l.b16 %v2747
        %v3394 = vunpack.c.h.b16 %v2747
        %v3395 = vunpack.c.l.b16 %v2748
        %v3396 = vunpack.c.h.b16 %v2748
        %v3397 = vunpack.c.l.b16 %v2749
        %v3398 = vunpack.c.h.b16 %v2749
        %v3399 = vunpack.c.l.b16 %v2750
        %v3400 = vunpack.c.h.b16 %v2750
        %v3401 = vunpack.c.l.b16 %v2751
        %v3402 = vunpack.c.h.b16 %v2751
        %v3403 = vunpack.c.l.b16 %v2752
        %v3404 = vunpack.c.h.b16 %v2752
        %v3405 = vunpack.c.l.b16 %v2753
        %v3406 = vunpack.c.h.b16 %v2753
        %v3407 = vunpack.c.l.b16 %v2754
        %v3408 = vunpack.c.h.b16 %v2754
        %v3409 = vunpack.c.l.b16 %v2755
        %v3410 = vunpack.c.h.b16 %v2755
        %v3411 = vunpack.c.l.b16 %v2756
        %v3412 = vunpack.c.h.b16 %v2756
        %v3413 = vunpack.c.l.b16 %v2757
        %v3414 = vunpack.c.h.b16 %v2757
        %v3415 = vunpack.c.l.b16 %v2758
        %v3416 = vunpack.c.h.b16 %v2758
        %v3417 = vpack.c.b16 %v3293, %v3289
        %v3418 = vpack.c.b16 %v3294, %v3290
        %v3419 = vpack.c.b16 %v3295, %v3291
        %v3420 = vpack.c.b16 %v3296, %v3292
        %v3421 = vpack.c.b16 %v3301, %v3297
        %v3422 = vpack.c.b16 %v3302, %v3298
        %v3423 = vpack.c.b16 %v3303, %v3299
        %v3424 = vpack.c.b16 %v3304, %v3300
        %v3425 = vpack.c.b16 %v3309, %v3305
        %v3426 = vpack.c.b16 %v3310, %v3306
        %v3427 = vpack.c.b16 %v3311, %v3307
        %v3428 = vpack.c.b16 %v3312, %v3308
        %v3429 = vpack.c.b16 %v3317, %v3313
        %v3430 = vpack.c.b16 %v3318, %v3314
        %v3431 = vpack.c.b16 %v3319, %v3315
        %v3432 = vpack.c.b16 %v3320, %v3316
        %v3433 = vpack.c.b16 %v3325, %v3321
        %v3434 = vpack.c.b16 %v3326, %v3322
        %v3435 = vpack.c.b16 %v3327, %v3323
        %v3436 = vpack.c.b16 %v3328, %v3324
        %v3437 = vpack.c.b16 %v3333, %v3329
        %v3438 = vpack.c.b16 %v3334, %v3330
        %v3439 = vpack.c.b16 %v3335, %v3331
        %v3440 = vpack.c.b16 %v3336, %v3332
        %v3441 = vpack.c.b16 %v3341, %v3337
        %v3442 = vpack.c.b16 %v3342, %v3338
        %v3443 = vpack.c.b16 %v3343, %v3339
        %v3444 = vpack.c.b16 %v3344, %v3340
        %v3445 = vpack.c.b16 %v3349, %v3345
        %v3446 = vpack.c.b16 %v3350, %v3346
        %v3447 = vpack.c.b16 %v3351, %v3347
        %v3448 = vpack.c.b16 %v3352, %v3348
        %v3449 = vpack.c.b16 %v3357, %v3353
        %v3450 = vpack.c.b16 %v3358, %v3354
        %v3451 = vpack.c.b16 %v3359, %v3355
        %v3452 = vpack.c.b16 %v3360, %v3356
        %v3453 = vpack.c.b16 %v3365, %v3361
        %v3454 = vpack.c.b16 %v3366, %v3362
        %v3455 = vpack.c.b16 %v3367, %v3363
        %v3456 = vpack.c.b16 %v3368, %v3364
        %v3457 = vpack.c.b16 %v3373, %v3369
        %v3458 = vpack.c.b16 %v3374, %v3370
        %v3459 = vpack.c.b16 %v3375, %v3371
        %v3460 = vpack.c.b16 %v3376, %v3372
        %v3461 = vpack.c.b16 %v3381, %v3377
        %v3462 = vpack.c.b16 %v3382, %v3378
        %v3463 = vpack.c.b16 %v3383, %v3379
        %v3464 = vpack.c.b16 %v3384, %v3380
        %v3465 = vpack.c.b16 %v3389, %v3385
        %v3466 = vpack.c.b16 %v3390, %v3386
        %v3467 = vpack.c.b16 %v3391, %v3387
        %v3468 = vpack.c.b16 %v3392, %v3388
        %v3469 = vpack.c.b16 %v3397, %v3393
        %v3470 = vpack.c.b16 %v3398, %v3394
        %v3471 = vpack.c.b16 %v3399, %v3395
        %v3472 = vpack.c.b16 %v3400, %v3396
        %v3473 = vpack.c.b16 %v3405, %v3401
        %v3474 = vpack.c.b16 %v3406, %v3402
        %v3475 = vpack.c.b16 %v3407, %v3403
        %v3476 = vpack.c.b16 %v3408, %v3404
        %v3477 = vpack.c.b16 %v3413, %v3409
        %v3478 = vpack.c.b16 %v3414, %v3410
        %v3479 = vpack.c.b16 %v3415, %v3411
        %v3480 = vpack.c.b16 %v3416, %v3412
        %3545 = vmatprep.subr.bf16.mxu0 %v3418
        %3546 = vmatpush1.bf16.msra.mxu0 %v3417
        %3547 = vmatprep.subr.bf16.mxu0 %v3422
        %3548 = vmatpush1.bf16.msra.mxu0 %v3421
        %3549 = vmatprep.subr.bf16.mxu0 %v3426
        %3550 = vmatpush1.bf16.msra.mxu0 %v3425
        %3551 = vmatprep.subr.bf16.mxu0 %v3430
        %3552 = vmatpush1.bf16.msra.mxu0 %v3429
        %3553 = vmatprep.subr.bf16.mxu0 %v3434
        %3554 = vmatpush1.bf16.msra.mxu0 %v3433
        %3555 = vmatprep.subr.bf16.mxu0 %v3438
        %3556 = vmatpush1.bf16.msra.mxu0 %v3437
        %3557 = vmatprep.subr.bf16.mxu0 %v3442
        %3558 = vmatpush1.bf16.msra.mxu0 %v3441
        %3559 = vmatprep.subr.bf16.mxu0 %v3446
        %3560 = vmatpush1.bf16.msra.mxu0 %v3445
        %3561 = vmatprep.subr.bf16.mxu0 %v3450
        %3562 = vmatpush1.bf16.msra.mxu0 %v3449
        %3563 = vmatprep.subr.bf16.mxu0 %v3454
        %3564 = vmatpush1.bf16.msra.mxu0 %v3453
        %3565 = vmatprep.subr.bf16.mxu0 %v3458
        %3566 = vmatpush1.bf16.msra.mxu0 %v3457
        %3567 = vmatprep.subr.bf16.mxu0 %v3462
        %3568 = vmatpush1.bf16.msra.mxu0 %v3461
        %3569 = vmatprep.subr.bf16.mxu0 %v3466
        %3570 = vmatpush1.bf16.msra.mxu0 %v3465
        %3571 = vmatprep.subr.bf16.mxu0 %v3470
        %3572 = vmatpush1.bf16.msra.mxu0 %v3469
        %3573 = vmatprep.subr.bf16.mxu0 %v3474
        %3574 = vmatpush1.bf16.msra.mxu0 %v3473
        %3575 = vmatprep.subr.bf16.mxu0 %v3478
        %3576 = vmatpush1.bf16.msra.mxu0 %v3477
        %3577 = vmatprep.mubr.bf16.mxu0 %v2694
        %3578 = vmatmul.mubr.bf16.gmra.mrb[0].mxu0 %v2693
        %v3579 = vpop.f32.mrb[0].mxu0
        %v3580 = vadd.f32 %v3178, %v3579
        %v3581 = vpop.f32.mrb[0].mxu0
        %v3582 = vadd.f32 %v3180, %v3581
        %v3583 = vpop.f32.mrb[0].mxu0
        %v3584 = vpop.f32.mrb[0].mxu0
        %3585 = vdwg.mxu0
        %3586 = vmatprep.subr.bf16.mxu0 %v3420
        %3587 = vmatpush1.bf16.msra.mxu0 %v3419
        %3588 = vmatprep.subr.bf16.mxu0 %v3424
        %3589 = vmatpush1.bf16.msra.mxu0 %v3423
        %3590 = vmatprep.subr.bf16.mxu0 %v3428
        %3591 = vmatpush1.bf16.msra.mxu0 %v3427
        %3592 = vmatprep.subr.bf16.mxu0 %v3432
        %3593 = vmatpush1.bf16.msra.mxu0 %v3431
        %3594 = vmatprep.subr.bf16.mxu0 %v3436
        %3595 = vmatpush1.bf16.msra.mxu0 %v3435
        %3596 = vmatprep.subr.bf16.mxu0 %v3440
        %3597 = vmatpush1.bf16.msra.mxu0 %v3439
        %3598 = vmatprep.subr.bf16.mxu0 %v3444
        %3599 = vmatpush1.bf16.msra.mxu0 %v3443
        %3600 = vmatprep.subr.bf16.mxu0 %v3448
        %3601 = vmatpush1.bf16.msra.mxu0 %v3447
        %3602 = vmatprep.subr.bf16.mxu0 %v3452
        %3603 = vmatpush1.bf16.msra.mxu0 %v3451
        %3604 = vmatprep.subr.bf16.mxu0 %v3456
        %3605 = vmatpush1.bf16.msra.mxu0 %v3455
        %3606 = vmatprep.subr.bf16.mxu0 %v3460
        %3607 = vmatpush1.bf16.msra.mxu0 %v3459
        %3608 = vmatprep.subr.bf16.mxu0 %v3464
        %3609 = vmatpush1.bf16.msra.mxu0 %v3463
        %3610 = vmatprep.subr.bf16.mxu0 %v3468
        %3611 = vmatpush1.bf16.msra.mxu0 %v3467
        %3612 = vmatprep.subr.bf16.mxu0 %v3472
        %3613 = vmatpush1.bf16.msra.mxu0 %v3471
        %3614 = vmatprep.subr.bf16.mxu0 %v3476
        %3615 = vmatpush1.bf16.msra.mxu0 %v3475
        %3616 = vmatprep.subr.bf16.mxu0 %v3480
        %3617 = vmatpush1.bf16.msra.mxu0 %v3479
        %3618 = vmatprep.mubr.bf16.mxu0 %v2694
        %3619 = vmatmul.mubr.bf16.gmra.mrb[0].mxu0 %v2693
        %v3620 = vpop.f32.mrb[0].mxu0
        %v3621 = vadd.f32 %v3219, %v3620
        %v3622 = vpop.f32.mrb[0].mxu0
        %v3623 = vadd.f32 %v3221, %v3622
        %v3624 = vpop.f32.mrb[0].mxu0
        %v3625 = vpop.f32.mrb[0].mxu0
        %3626 = vdwg.mxu0
        %v3627 = vmax.f32 %v3580, 0.0
        %v3628 = vmax.f32 %v3582, 0.0
        %v3629 = vmax.f32 %v3621, 0.0
        %v3630 = vmax.f32 %v3623, 0.0
        %v3631 = vpack.c.bf16 %v3627, %v3627
        %v3632 = vpack.c.bf16 %v3628, %v3628
        %v3633 = vpack.c.bf16 %v3629, %v3629
        %v3634 = vpack.c.bf16 %v3630, %v3630
        %v3635 = vld [vmem:[#allocation14] sm:$0xff]
        %v3636 = vld [vmem:[#allocation14 + $0x8] sm:$0xff]
        %v3637 = vld [vmem:[#allocation14 + $0x10] sm:$0xff]
        %v3638 = vld [vmem:[#allocation14 + $0x18] sm:$0xff]
        %v3639 = vld [vmem:[#allocation14 + $0x20] sm:$0xff]
        %v3640 = vld [vmem:[#allocation14 + $0x28] sm:$0xff]
        %v3641 = vld [vmem:[#allocation14 + $0x30] sm:$0xff]
        %v3642 = vld [vmem:[#allocation14 + $0x38] sm:$0xff]
        %v3643 = vld [vmem:[#allocation14 + $0x40] sm:$0xff]
        %v3644 = vld [vmem:[#allocation14 + $0x48] sm:$0xff]
        %v3645 = vld [vmem:[#allocation14 + $0x50] sm:$0xff]
        %v3646 = vld [vmem:[#allocation14 + $0x58] sm:$0xff]
        %v3647 = vld [vmem:[#allocation14 + $0x60] sm:$0xff]
        %v3648 = vld [vmem:[#allocation14 + $0x68] sm:$0xff]
        %v3649 = vld [vmem:[#allocation14 + $0x70] sm:$0xff]
        %v3650 = vld [vmem:[#allocation14 + $0x78] sm:$0xff]
        %v3651 = vld [vmem:[#allocation14 + $0x80] sm:$0xff]
        %v3652 = vld [vmem:[#allocation14 + $0x88] sm:$0xff]
        %v3653 = vld [vmem:[#allocation14 + $0x90] sm:$0xff]
        %v3654 = vld [vmem:[#allocation14 + $0x98] sm:$0xff]
        %v3655 = vld [vmem:[#allocation14 + $0xa0] sm:$0xff]
        %v3656 = vld [vmem:[#allocation14 + $0xa8] sm:$0xff]
        %v3657 = vld [vmem:[#allocation14 + $0xb0] sm:$0xff]
        %v3658 = vld [vmem:[#allocation14 + $0xb8] sm:$0xff]
        %v3659 = vld [vmem:[#allocation14 + $0xc0] sm:$0xff]
        %v3660 = vld [vmem:[#allocation14 + $0xc8] sm:$0xff]
        %v3661 = vld [vmem:[#allocation14 + $0xd0] sm:$0xff]
        %v3662 = vld [vmem:[#allocation14 + $0xd8] sm:$0xff]
        %v3663 = vld [vmem:[#allocation14 + $0xe0] sm:$0xff]
        %v3664 = vld [vmem:[#allocation14 + $0xe8] sm:$0xff]
        %v3665 = vld [vmem:[#allocation14 + $0xf0] sm:$0xff]
        %v3666 = vld [vmem:[#allocation14 + $0xf8] sm:$0xff]
        %v3667 = vld [vmem:[#allocation14 + $0x100] sm:$0xff]
        %v3668 = vld [vmem:[#allocation14 + $0x108] sm:$0xff]
        %v3669 = vld [vmem:[#allocation14 + $0x110] sm:$0xff]
        %v3670 = vld [vmem:[#allocation14 + $0x118] sm:$0xff]
        %v3671 = vld [vmem:[#allocation14 + $0x120] sm:$0xff]
        %v3672 = vld [vmem:[#allocation14 + $0x128] sm:$0xff]
        %v3673 = vld [vmem:[#allocation14 + $0x130] sm:$0xff]
        %v3674 = vld [vmem:[#allocation14 + $0x138] sm:$0xff]
        %v3675 = vld [vmem:[#allocation14 + $0x140] sm:$0xff]
        %v3676 = vld [vmem:[#allocation14 + $0x148] sm:$0xff]
        %v3677 = vld [vmem:[#allocation14 + $0x150] sm:$0xff]
        %v3678 = vld [vmem:[#allocation14 + $0x158] sm:$0xff]
        %v3679 = vld [vmem:[#allocation14 + $0x160] sm:$0xff]
        %v3680 = vld [vmem:[#allocation14 + $0x168] sm:$0xff]
        %v3681 = vld [vmem:[#allocation14 + $0x170] sm:$0xff]
        %v3682 = vld [vmem:[#allocation14 + $0x178] sm:$0xff]
        %v3683 = vld [vmem:[#allocation14 + $0x180] sm:$0xff]
        %v3684 = vld [vmem:[#allocation14 + $0x188] sm:$0xff]
        %v3685 = vld [vmem:[#allocation14 + $0x190] sm:$0xff]
        %v3686 = vld [vmem:[#allocation14 + $0x198] sm:$0xff]
        %v3687 = vld [vmem:[#allocation14 + $0x1a0] sm:$0xff]
        %v3688 = vld [vmem:[#allocation14 + $0x1a8] sm:$0xff]
        %v3689 = vld [vmem:[#allocation14 + $0x1b0] sm:$0xff]
        %v3690 = vld [vmem:[#allocation14 + $0x1b8] sm:$0xff]
        %v3691 = vld [vmem:[#allocation14 + $0x1c0] sm:$0xff]
        %v3692 = vld [vmem:[#allocation14 + $0x1c8] sm:$0xff]
        %v3693 = vld [vmem:[#allocation14 + $0x1d0] sm:$0xff]
        %v3694 = vld [vmem:[#allocation14 + $0x1d8] sm:$0xff]
        %v3695 = vld [vmem:[#allocation14 + $0x1e0] sm:$0xff]
        %v3696 = vld [vmem:[#allocation14 + $0x1e8] sm:$0xff]
        %v3697 = vld [vmem:[#allocation14 + $0x1f0] sm:$0xff]
        %v3698 = vld [vmem:[#allocation14 + $0x1f8] sm:$0xff]
        %v3699 = vld [vmem:[#allocation14 + $0x200] sm:$0xff]
        %v3700 = vld [vmem:[#allocation14 + $0x208] sm:$0xff]
        %v3701 = vld [vmem:[#allocation14 + $0x210] sm:$0xff]
        %v3702 = vld [vmem:[#allocation14 + $0x218] sm:$0xff]
        %v3703 = vld [vmem:[#allocation14 + $0x220] sm:$0xff]
        %v3704 = vld [vmem:[#allocation14 + $0x228] sm:$0xff]
        %v3705 = vld [vmem:[#allocation14 + $0x230] sm:$0xff]
        %v3706 = vld [vmem:[#allocation14 + $0x238] sm:$0xff]
        %v3707 = vld [vmem:[#allocation14 + $0x240] sm:$0xff]
        %v3708 = vld [vmem:[#allocation14 + $0x248] sm:$0xff]
        %v3709 = vld [vmem:[#allocation14 + $0x250] sm:$0xff]
        %v3710 = vld [vmem:[#allocation14 + $0x258] sm:$0xff]
        %v3711 = vld [vmem:[#allocation14 + $0x260] sm:$0xff]
        %v3712 = vld [vmem:[#allocation14 + $0x268] sm:$0xff]
        %v3713 = vld [vmem:[#allocation14 + $0x270] sm:$0xff]
        %v3714 = vld [vmem:[#allocation14 + $0x278] sm:$0xff]
        %v3715 = vld [vmem:[#allocation14 + $0x280] sm:$0xff]
        %v3716 = vld [vmem:[#allocation14 + $0x288] sm:$0xff]
        %v3717 = vld [vmem:[#allocation14 + $0x290] sm:$0xff]
        %v3718 = vld [vmem:[#allocation14 + $0x298] sm:$0xff]
        %v3719 = vld [vmem:[#allocation14 + $0x2a0] sm:$0xff]
        %v3720 = vld [vmem:[#allocation14 + $0x2a8] sm:$0xff]
        %v3721 = vld [vmem:[#allocation14 + $0x2b0] sm:$0xff]
        %v3722 = vld [vmem:[#allocation14 + $0x2b8] sm:$0xff]
        %v3723 = vld [vmem:[#allocation14 + $0x2c0] sm:$0xff]
        %v3724 = vld [vmem:[#allocation14 + $0x2c8] sm:$0xff]
        %v3725 = vld [vmem:[#allocation14 + $0x2d0] sm:$0xff]
        %v3726 = vld [vmem:[#allocation14 + $0x2d8] sm:$0xff]
        %v3727 = vld [vmem:[#allocation14 + $0x2e0] sm:$0xff]
        %v3728 = vld [vmem:[#allocation14 + $0x2e8] sm:$0xff]
        %v3729 = vld [vmem:[#allocation14 + $0x2f0] sm:$0xff]
        %v3730 = vld [vmem:[#allocation14 + $0x2f8] sm:$0xff]
        %v3731 = vld [vmem:[#allocation14 + $0x300] sm:$0xff]
        %v3732 = vld [vmem:[#allocation14 + $0x308] sm:$0xff]
        %v3733 = vld [vmem:[#allocation14 + $0x310] sm:$0xff]
        %v3734 = vld [vmem:[#allocation14 + $0x318] sm:$0xff]
        %v3735 = vld [vmem:[#allocation14 + $0x320] sm:$0xff]
        %v3736 = vld [vmem:[#allocation14 + $0x328] sm:$0xff]
        %v3737 = vld [vmem:[#allocation14 + $0x330] sm:$0xff]
        %v3738 = vld [vmem:[#allocation14 + $0x338] sm:$0xff]
        %v3739 = vld [vmem:[#allocation14 + $0x340] sm:$0xff]
        %v3740 = vld [vmem:[#allocation14 + $0x348] sm:$0xff]
        %v3741 = vld [vmem:[#allocation14 + $0x350] sm:$0xff]
        %v3742 = vld [vmem:[#allocation14 + $0x358] sm:$0xff]
        %v3743 = vld [vmem:[#allocation14 + $0x360] sm:$0xff]
        %v3744 = vld [vmem:[#allocation14 + $0x368] sm:$0xff]
        %v3745 = vld [vmem:[#allocation14 + $0x370] sm:$0xff]
        %v3746 = vld [vmem:[#allocation14 + $0x378] sm:$0xff]
        %v3747 = vld [vmem:[#allocation14 + $0x380] sm:$0xff]
        %v3748 = vld [vmem:[#allocation14 + $0x388] sm:$0xff]
        %v3749 = vld [vmem:[#allocation14 + $0x390] sm:$0xff]
        %v3750 = vld [vmem:[#allocation14 + $0x398] sm:$0xff]
        %v3751 = vld [vmem:[#allocation14 + $0x3a0] sm:$0xff]
        %v3752 = vld [vmem:[#allocation14 + $0x3a8] sm:$0xff]
        %v3753 = vld [vmem:[#allocation14 + $0x3b0] sm:$0xff]
        %v3754 = vld [vmem:[#allocation14 + $0x3b8] sm:$0xff]
        %v3755 = vld [vmem:[#allocation14 + $0x3c0] sm:$0xff]
        %v3756 = vld [vmem:[#allocation14 + $0x3c8] sm:$0xff]
        %v3757 = vld [vmem:[#allocation14 + $0x3d0] sm:$0xff]
        %v3758 = vld [vmem:[#allocation14 + $0x3d8] sm:$0xff]
        %v3759 = vld [vmem:[#allocation14 + $0x3e0] sm:$0xff]
        %v3760 = vld [vmem:[#allocation14 + $0x3e8] sm:$0xff]
        %v3761 = vld [vmem:[#allocation14 + $0x3f0] sm:$0xff]
        %v3762 = vld [vmem:[#allocation14 + $0x3f8] sm:$0xff]
        %v3763 = vld [vmem:[#allocation14 + $0x400] sm:$0xff]
        %v3764 = vld [vmem:[#allocation14 + $0x408] sm:$0xff]
        %v3765 = vld [vmem:[#allocation14 + $0x410] sm:$0xff]
        %v3766 = vld [vmem:[#allocation14 + $0x418] sm:$0xff]
        %v3767 = vld [vmem:[#allocation14 + $0x420] sm:$0xff]
        %v3768 = vld [vmem:[#allocation14 + $0x428] sm:$0xff]
        %v3769 = vld [vmem:[#allocation14 + $0x430] sm:$0xff]
        %v3770 = vld [vmem:[#allocation14 + $0x438] sm:$0xff]
        %v3771 = vld [vmem:[#allocation14 + $0x440] sm:$0xff]
        %v3772 = vld [vmem:[#allocation14 + $0x448] sm:$0xff]
        %v3773 = vld [vmem:[#allocation14 + $0x450] sm:$0xff]
        %v3774 = vld [vmem:[#allocation14 + $0x458] sm:$0xff]
        %v3775 = vld [vmem:[#allocation14 + $0x460] sm:$0xff]
        %v3776 = vld [vmem:[#allocation14 + $0x468] sm:$0xff]
        %v3777 = vld [vmem:[#allocation14 + $0x470] sm:$0xff]
        %v3778 = vld [vmem:[#allocation14 + $0x478] sm:$0xff]
        %v3779 = vld [vmem:[#allocation14 + $0x480] sm:$0xff]
        %v3780 = vld [vmem:[#allocation14 + $0x488] sm:$0xff]
        %v3781 = vld [vmem:[#allocation14 + $0x490] sm:$0xff]
        %v3782 = vld [vmem:[#allocation14 + $0x498] sm:$0xff]
        %v3783 = vld [vmem:[#allocation14 + $0x4a0] sm:$0xff]
        %v3784 = vld [vmem:[#allocation14 + $0x4a8] sm:$0xff]
        %v3785 = vld [vmem:[#allocation14 + $0x4b0] sm:$0xff]
        %v3786 = vld [vmem:[#allocation14 + $0x4b8] sm:$0xff]
        %v3787 = vld [vmem:[#allocation14 + $0x4c0] sm:$0xff]
        %v3788 = vld [vmem:[#allocation14 + $0x4c8] sm:$0xff]
        %v3789 = vld [vmem:[#allocation14 + $0x4d0] sm:$0xff]
        %v3790 = vld [vmem:[#allocation14 + $0x4d8] sm:$0xff]
        %v3791 = vld [vmem:[#allocation14 + $0x4e0] sm:$0xff]
        %v3792 = vld [vmem:[#allocation14 + $0x4e8] sm:$0xff]
        %v3793 = vld [vmem:[#allocation14 + $0x4f0] sm:$0xff]
        %v3794 = vld [vmem:[#allocation14 + $0x4f8] sm:$0xff]
        %v3795 = vld [vmem:[#allocation14 + $0x500] sm:$0xff]
        %v3796 = vld [vmem:[#allocation14 + $0x508] sm:$0xff]
        %v3797 = vld [vmem:[#allocation14 + $0x510] sm:$0xff]
        %v3798 = vld [vmem:[#allocation14 + $0x518] sm:$0xff]
        %v3799 = vld [vmem:[#allocation14 + $0x520] sm:$0xff]
        %v3800 = vld [vmem:[#allocation14 + $0x528] sm:$0xff]
        %v3801 = vld [vmem:[#allocation14 + $0x530] sm:$0xff]
        %v3802 = vld [vmem:[#allocation14 + $0x538] sm:$0xff]
        %v3803 = vld [vmem:[#allocation14 + $0x540] sm:$0xff]
        %v3804 = vld [vmem:[#allocation14 + $0x548] sm:$0xff]
        %v3805 = vld [vmem:[#allocation14 + $0x550] sm:$0xff]
        %v3806 = vld [vmem:[#allocation14 + $0x558] sm:$0xff]
        %v3807 = vld [vmem:[#allocation14 + $0x560] sm:$0xff]
        %v3808 = vld [vmem:[#allocation14 + $0x568] sm:$0xff]
        %v3809 = vld [vmem:[#allocation14 + $0x570] sm:$0xff]
        %v3810 = vld [vmem:[#allocation14 + $0x578] sm:$0xff]
        %v3811 = vld [vmem:[#allocation14 + $0x580] sm:$0xff]
        %v3812 = vld [vmem:[#allocation14 + $0x588] sm:$0xff]
        %v3813 = vld [vmem:[#allocation14 + $0x590] sm:$0xff]
        %v3814 = vld [vmem:[#allocation14 + $0x598] sm:$0xff]
        %v3815 = vld [vmem:[#allocation14 + $0x5a0] sm:$0xff]
        %v3816 = vld [vmem:[#allocation14 + $0x5a8] sm:$0xff]
        %v3817 = vld [vmem:[#allocation14 + $0x5b0] sm:$0xff]
        %v3818 = vld [vmem:[#allocation14 + $0x5b8] sm:$0xff]
        %v3819 = vld [vmem:[#allocation14 + $0x5c0] sm:$0xff]
        %v3820 = vld [vmem:[#allocation14 + $0x5c8] sm:$0xff]
        %v3821 = vld [vmem:[#allocation14 + $0x5d0] sm:$0xff]
        %v3822 = vld [vmem:[#allocation14 + $0x5d8] sm:$0xff]
        %v3823 = vld [vmem:[#allocation14 + $0x5e0] sm:$0xff]
        %v3824 = vld [vmem:[#allocation14 + $0x5e8] sm:$0xff]
        %v3825 = vld [vmem:[#allocation14 + $0x5f0] sm:$0xff]
        %v3826 = vld [vmem:[#allocation14 + $0x5f8] sm:$0xff]
        %v3827 = vld [vmem:[#allocation16] sm:$0xff]
        %v3828 = vld [vmem:[#allocation16 + $0x8] sm:$0xff]
        %v3829 = vld [vmem:[#allocation16 + $0x10] sm:$0xff]
        %v3830 = vld [vmem:[#allocation16 + $0x18] sm:$0xff]
        %v3831 = vld [vmem:[#allocation16 + $0x20] sm:$0xff]
        %v3832 = vld [vmem:[#allocation16 + $0x28] sm:$0xff]
        %v3833 = vld [vmem:[#allocation16 + $0x30] sm:$0xff]
        %v3834 = vld [vmem:[#allocation16 + $0x38] sm:$0xff]
        %v3835 = vld [vmem:[#allocation16 + $0x40] sm:$0xff]
        %v3836 = vld [vmem:[#allocation16 + $0x48] sm:$0xff]
        %v3837 = vld [vmem:[#allocation16 + $0x50] sm:$0xff]
        %v3838 = vld [vmem:[#allocation16 + $0x58] sm:$0xff]
        %v3839 = vld [vmem:[#allocation16 + $0x60] sm:$0xff]
        %v3840 = vld [vmem:[#allocation16 + $0x68] sm:$0xff]
        %v3841 = vld [vmem:[#allocation16 + $0x70] sm:$0xff]
        %v3842 = vld [vmem:[#allocation16 + $0x78] sm:$0xff]
        %v3843 = vld [vmem:[#allocation16 + $0x80] sm:$0xff]
        %v3844 = vld [vmem:[#allocation16 + $0x88] sm:$0xff]
        %v3845 = vld [vmem:[#allocation16 + $0x90] sm:$0xff]
        %v3846 = vld [vmem:[#allocation16 + $0x98] sm:$0xff]
        %v3847 = vld [vmem:[#allocation16 + $0xa0] sm:$0xff]
        %v3848 = vld [vmem:[#allocation16 + $0xa8] sm:$0xff]
        %v3849 = vld [vmem:[#allocation16 + $0xb0] sm:$0xff]
        %v3850 = vld [vmem:[#allocation16 + $0xb8] sm:$0xff]
        %v3851 = vld [vmem:[#allocation16 + $0xc0] sm:$0xff]
        %v3852 = vld [vmem:[#allocation16 + $0xc8] sm:$0xff]
        %v3853 = vld [vmem:[#allocation16 + $0xd0] sm:$0xff]
        %v3854 = vld [vmem:[#allocation16 + $0xd8] sm:$0xff]
        %v3855 = vld [vmem:[#allocation16 + $0xe0] sm:$0xff]
        %v3856 = vld [vmem:[#allocation16 + $0xe8] sm:$0xff]
        %v3857 = vld [vmem:[#allocation16 + $0xf0] sm:$0xff]
        %v3858 = vld [vmem:[#allocation16 + $0xf8] sm:$0xff]
        %v3859 = vld [vmem:[#allocation16 + $0x100] sm:$0xff]
        %v3860 = vld [vmem:[#allocation16 + $0x108] sm:$0xff]
        %v3861 = vld [vmem:[#allocation16 + $0x110] sm:$0xff]
        %v3862 = vld [vmem:[#allocation16 + $0x118] sm:$0xff]
        %v3863 = vld [vmem:[#allocation16 + $0x120] sm:$0xff]
        %v3864 = vld [vmem:[#allocation16 + $0x128] sm:$0xff]
        %v3865 = vld [vmem:[#allocation16 + $0x130] sm:$0xff]
        %v3866 = vld [vmem:[#allocation16 + $0x138] sm:$0xff]
        %v3867 = vld [vmem:[#allocation16 + $0x140] sm:$0xff]
        %v3868 = vld [vmem:[#allocation16 + $0x148] sm:$0xff]
        %v3869 = vld [vmem:[#allocation16 + $0x150] sm:$0xff]
        %v3870 = vld [vmem:[#allocation16 + $0x158] sm:$0xff]
        %v3871 = vld [vmem:[#allocation16 + $0x160] sm:$0xff]
        %v3872 = vld [vmem:[#allocation16 + $0x168] sm:$0xff]
        %v3873 = vld [vmem:[#allocation16 + $0x170] sm:$0xff]
        %v3874 = vld [vmem:[#allocation16 + $0x178] sm:$0xff]
        %v3875 = vld [vmem:[#allocation16 + $0x180] sm:$0xff]
        %v3876 = vld [vmem:[#allocation16 + $0x188] sm:$0xff]
        %v3877 = vld [vmem:[#allocation16 + $0x190] sm:$0xff]
        %v3878 = vld [vmem:[#allocation16 + $0x198] sm:$0xff]
        %v3879 = vld [vmem:[#allocation16 + $0x1a0] sm:$0xff]
        %v3880 = vld [vmem:[#allocation16 + $0x1a8] sm:$0xff]
        %v3881 = vld [vmem:[#allocation16 + $0x1b0] sm:$0xff]
        %v3882 = vld [vmem:[#allocation16 + $0x1b8] sm:$0xff]
        %v3883 = vld [vmem:[#allocation16 + $0x1c0] sm:$0xff]
        %v3884 = vld [vmem:[#allocation16 + $0x1c8] sm:$0xff]
        %v3885 = vld [vmem:[#allocation16 + $0x1d0] sm:$0xff]
        %v3886 = vld [vmem:[#allocation16 + $0x1d8] sm:$0xff]
        %v3887 = vld [vmem:[#allocation16 + $0x1e0] sm:$0xff]
        %v3888 = vld [vmem:[#allocation16 + $0x1e8] sm:$0xff]
        %v3889 = vld [vmem:[#allocation16 + $0x1f0] sm:$0xff]
        %v3890 = vld [vmem:[#allocation16 + $0x1f8] sm:$0xff]
        %v3891 = vld [vmem:[#allocation16 + $0x200] sm:$0xff]
        %v3892 = vld [vmem:[#allocation16 + $0x208] sm:$0xff]
        %v3893 = vld [vmem:[#allocation16 + $0x210] sm:$0xff]
        %v3894 = vld [vmem:[#allocation16 + $0x218] sm:$0xff]
        %v3895 = vld [vmem:[#allocation16 + $0x220] sm:$0xff]
        %v3896 = vld [vmem:[#allocation16 + $0x228] sm:$0xff]
        %v3897 = vld [vmem:[#allocation16 + $0x230] sm:$0xff]
        %v3898 = vld [vmem:[#allocation16 + $0x238] sm:$0xff]
        %v3899 = vld [vmem:[#allocation16 + $0x240] sm:$0xff]
        %v3900 = vld [vmem:[#allocation16 + $0x248] sm:$0xff]
        %v3901 = vld [vmem:[#allocation16 + $0x250] sm:$0xff]
        %v3902 = vld [vmem:[#allocation16 + $0x258] sm:$0xff]
        %v3903 = vld [vmem:[#allocation16 + $0x260] sm:$0xff]
        %v3904 = vld [vmem:[#allocation16 + $0x268] sm:$0xff]
        %v3905 = vld [vmem:[#allocation16 + $0x270] sm:$0xff]
        %v3906 = vld [vmem:[#allocation16 + $0x278] sm:$0xff]
        %v3907 = vld [vmem:[#allocation16 + $0x280] sm:$0xff]
        %v3908 = vld [vmem:[#allocation16 + $0x288] sm:$0xff]
        %v3909 = vld [vmem:[#allocation16 + $0x290] sm:$0xff]
        %v3910 = vld [vmem:[#allocation16 + $0x298] sm:$0xff]
        %v3911 = vld [vmem:[#allocation16 + $0x2a0] sm:$0xff]
        %v3912 = vld [vmem:[#allocation16 + $0x2a8] sm:$0xff]
        %v3913 = vld [vmem:[#allocation16 + $0x2b0] sm:$0xff]
        %v3914 = vld [vmem:[#allocation16 + $0x2b8] sm:$0xff]
        %v3915 = vld [vmem:[#allocation16 + $0x2c0] sm:$0xff]
        %v3916 = vld [vmem:[#allocation16 + $0x2c8] sm:$0xff]
        %v3917 = vld [vmem:[#allocation16 + $0x2d0] sm:$0xff]
        %v3918 = vld [vmem:[#allocation16 + $0x2d8] sm:$0xff]
        %v3919 = vld [vmem:[#allocation16 + $0x2e0] sm:$0xff]
        %v3920 = vld [vmem:[#allocation16 + $0x2e8] sm:$0xff]
        %v3921 = vld [vmem:[#allocation16 + $0x2f0] sm:$0xff]
        %v3922 = vld [vmem:[#allocation16 + $0x2f8] sm:$0xff]
        %v3923 = vld [vmem:[#allocation16 + $0x300] sm:$0xff]
        %v3924 = vld [vmem:[#allocation16 + $0x308] sm:$0xff]
        %v3925 = vld [vmem:[#allocation16 + $0x310] sm:$0xff]
        %v3926 = vld [vmem:[#allocation16 + $0x318] sm:$0xff]
        %v3927 = vld [vmem:[#allocation16 + $0x320] sm:$0xff]
        %v3928 = vld [vmem:[#allocation16 + $0x328] sm:$0xff]
        %v3929 = vld [vmem:[#allocation16 + $0x330] sm:$0xff]
        %v3930 = vld [vmem:[#allocation16 + $0x338] sm:$0xff]
        %v3931 = vld [vmem:[#allocation16 + $0x340] sm:$0xff]
        %v3932 = vld [vmem:[#allocation16 + $0x348] sm:$0xff]
        %v3933 = vld [vmem:[#allocation16 + $0x350] sm:$0xff]
        %v3934 = vld [vmem:[#allocation16 + $0x358] sm:$0xff]
        %v3935 = vld [vmem:[#allocation16 + $0x360] sm:$0xff]
        %v3936 = vld [vmem:[#allocation16 + $0x368] sm:$0xff]
        %v3937 = vld [vmem:[#allocation16 + $0x370] sm:$0xff]
        %v3938 = vld [vmem:[#allocation16 + $0x378] sm:$0xff]
        %v3939 = vld [vmem:[#allocation16 + $0x380] sm:$0xff]
        %v3940 = vld [vmem:[#allocation16 + $0x388] sm:$0xff]
        %v3941 = vld [vmem:[#allocation16 + $0x390] sm:$0xff]
        %v3942 = vld [vmem:[#allocation16 + $0x398] sm:$0xff]
        %v3943 = vld [vmem:[#allocation16 + $0x3a0] sm:$0xff]
        %v3944 = vld [vmem:[#allocation16 + $0x3a8] sm:$0xff]
        %v3945 = vld [vmem:[#allocation16 + $0x3b0] sm:$0xff]
        %v3946 = vld [vmem:[#allocation16 + $0x3b8] sm:$0xff]
        %v3947 = vld [vmem:[#allocation16 + $0x3c0] sm:$0xff]
        %v3948 = vld [vmem:[#allocation16 + $0x3c8] sm:$0xff]
        %v3949 = vld [vmem:[#allocation16 + $0x3d0] sm:$0xff]
        %v3950 = vld [vmem:[#allocation16 + $0x3d8] sm:$0xff]
        %v3951 = vld [vmem:[#allocation16 + $0x3e0] sm:$0xff]
        %v3952 = vld [vmem:[#allocation16 + $0x3e8] sm:$0xff]
        %v3953 = vld [vmem:[#allocation16 + $0x3f0] sm:$0xff]
        %v3954 = vld [vmem:[#allocation16 + $0x3f8] sm:$0xff]
        %v3955 = vld [vmem:[#allocation16 + $0x400] sm:$0xff]
        %v3956 = vld [vmem:[#allocation16 + $0x408] sm:$0xff]
        %v3957 = vld [vmem:[#allocation16 + $0x410] sm:$0xff]
        %v3958 = vld [vmem:[#allocation16 + $0x418] sm:$0xff]
        %v3959 = vld [vmem:[#allocation16 + $0x420] sm:$0xff]
        %v3960 = vld [vmem:[#allocation16 + $0x428] sm:$0xff]
        %v3961 = vld [vmem:[#allocation16 + $0x430] sm:$0xff]
        %v3962 = vld [vmem:[#allocation16 + $0x438] sm:$0xff]
        %v3963 = vld [vmem:[#allocation16 + $0x440] sm:$0xff]
        %v3964 = vld [vmem:[#allocation16 + $0x448] sm:$0xff]
        %v3965 = vld [vmem:[#allocation16 + $0x450] sm:$0xff]
        %v3966 = vld [vmem:[#allocation16 + $0x458] sm:$0xff]
        %v3967 = vld [vmem:[#allocation16 + $0x460] sm:$0xff]
        %v3968 = vld [vmem:[#allocation16 + $0x468] sm:$0xff]
        %v3969 = vld [vmem:[#allocation16 + $0x470] sm:$0xff]
        %v3970 = vld [vmem:[#allocation16 + $0x478] sm:$0xff]
        %v3971 = vld [vmem:[#allocation16 + $0x480] sm:$0xff]
        %v3972 = vld [vmem:[#allocation16 + $0x488] sm:$0xff]
        %v3973 = vld [vmem:[#allocation16 + $0x490] sm:$0xff]
        %v3974 = vld [vmem:[#allocation16 + $0x498] sm:$0xff]
        %v3975 = vld [vmem:[#allocation16 + $0x4a0] sm:$0xff]
        %v3976 = vld [vmem:[#allocation16 + $0x4a8] sm:$0xff]
        %v3977 = vld [vmem:[#allocation16 + $0x4b0] sm:$0xff]
        %v3978 = vld [vmem:[#allocation16 + $0x4b8] sm:$0xff]
        %v3979 = vld [vmem:[#allocation16 + $0x4c0] sm:$0xff]
        %v3980 = vld [vmem:[#allocation16 + $0x4c8] sm:$0xff]
        %v3981 = vld [vmem:[#allocation16 + $0x4d0] sm:$0xff]
        %v3982 = vld [vmem:[#allocation16 + $0x4d8] sm:$0xff]
        %v3983 = vld [vmem:[#allocation16 + $0x4e0] sm:$0xff]
        %v3984 = vld [vmem:[#allocation16 + $0x4e8] sm:$0xff]
        %v3985 = vld [vmem:[#allocation16 + $0x4f0] sm:$0xff]
        %v3986 = vld [vmem:[#allocation16 + $0x4f8] sm:$0xff]
        %v3987 = vld [vmem:[#allocation16 + $0x500] sm:$0xff]
        %v3988 = vld [vmem:[#allocation16 + $0x508] sm:$0xff]
        %v3989 = vld [vmem:[#allocation16 + $0x510] sm:$0xff]
        %v3990 = vld [vmem:[#allocation16 + $0x518] sm:$0xff]
        %v3991 = vld [vmem:[#allocation16 + $0x520] sm:$0xff]
        %v3992 = vld [vmem:[#allocation16 + $0x528] sm:$0xff]
        %v3993 = vld [vmem:[#allocation16 + $0x530] sm:$0xff]
        %v3994 = vld [vmem:[#allocation16 + $0x538] sm:$0xff]
        %v3995 = vld [vmem:[#allocation16 + $0x540] sm:$0xff]
        %v3996 = vld [vmem:[#allocation16 + $0x548] sm:$0xff]
        %v3997 = vld [vmem:[#allocation16 + $0x550] sm:$0xff]
        %v3998 = vld [vmem:[#allocation16 + $0x558] sm:$0xff]
        %v3999 = vld [vmem:[#allocation16 + $0x560] sm:$0xff]
        %v4000 = vld [vmem:[#allocation16 + $0x568] sm:$0xff]
        %v4001 = vld [vmem:[#allocation16 + $0x570] sm:$0xff]
        %v4002 = vld [vmem:[#allocation16 + $0x578] sm:$0xff]
        %v4003 = vld [vmem:[#allocation16 + $0x580] sm:$0xff]
        %v4004 = vld [vmem:[#allocation16 + $0x588] sm:$0xff]
        %v4005 = vld [vmem:[#allocation16 + $0x590] sm:$0xff]
        %v4006 = vld [vmem:[#allocation16 + $0x598] sm:$0xff]
        %v4007 = vld [vmem:[#allocation16 + $0x5a0] sm:$0xff]
        %v4008 = vld [vmem:[#allocation16 + $0x5a8] sm:$0xff]
        %v4009 = vld [vmem:[#allocation16 + $0x5b0] sm:$0xff]
        %v4010 = vld [vmem:[#allocation16 + $0x5b8] sm:$0xff]
        %v4011 = vld [vmem:[#allocation16 + $0x5c0] sm:$0xff]
        %v4012 = vld [vmem:[#allocation16 + $0x5c8] sm:$0xff]
        %v4013 = vld [vmem:[#allocation16 + $0x5d0] sm:$0xff]
        %v4014 = vld [vmem:[#allocation16 + $0x5d8] sm:$0xff]
        %v4015 = vld [vmem:[#allocation16 + $0x5e0] sm:$0xff]
        %v4016 = vld [vmem:[#allocation16 + $0x5e8] sm:$0xff]
        %v4017 = vld [vmem:[#allocation16 + $0x5f0] sm:$0xff]
        %v4018 = vld [vmem:[#allocation16 + $0x5f8] sm:$0xff]
        %v4211 = vunpack.c.l.b16 %v3827
        %v4212 = vunpack.c.h.b16 %v3827
        %v4213 = vunpack.c.l.b16 %v3828
        %v4214 = vunpack.c.h.b16 %v3828
        %v4215 = vunpack.c.l.b16 %v3829
        %v4216 = vunpack.c.h.b16 %v3829
        %v4217 = vunpack.c.l.b16 %v3830
        %v4218 = vunpack.c.h.b16 %v3830
        %v4219 = vunpack.c.l.b16 %v3831
        %v4220 = vunpack.c.h.b16 %v3831
        %v4221 = vunpack.c.l.b16 %v3832
        %v4222 = vunpack.c.h.b16 %v3832
        %v4223 = vunpack.c.l.b16 %v3833
        %v4224 = vunpack.c.h.b16 %v3833
        %v4225 = vunpack.c.l.b16 %v3834
        %v4226 = vunpack.c.h.b16 %v3834
        %v4227 = vunpack.c.l.b16 %v3835
        %v4228 = vunpack.c.h.b16 %v3835
        %v4229 = vunpack.c.l.b16 %v3836
        %v4230 = vunpack.c.h.b16 %v3836
        %v4231 = vunpack.c.l.b16 %v3837
        %v4232 = vunpack.c.h.b16 %v3837
        %v4233 = vunpack.c.l.b16 %v3838
        %v4234 = vunpack.c.h.b16 %v3838
        %v4235 = vunpack.c.l.b16 %v3839
        %v4236 = vunpack.c.h.b16 %v3839
        %v4237 = vunpack.c.l.b16 %v3840
        %v4238 = vunpack.c.h.b16 %v3840
        %v4239 = vunpack.c.l.b16 %v3841
        %v4240 = vunpack.c.h.b16 %v3841
        %v4241 = vunpack.c.l.b16 %v3842
        %v4242 = vunpack.c.h.b16 %v3842
        %v4243 = vunpack.c.l.b16 %v3843
        %v4244 = vunpack.c.h.b16 %v3843
        %v4245 = vunpack.c.l.b16 %v3844
        %v4246 = vunpack.c.h.b16 %v3844
        %v4247 = vunpack.c.l.b16 %v3845
        %v4248 = vunpack.c.h.b16 %v3845
        %v4249 = vunpack.c.l.b16 %v3846
        %v4250 = vunpack.c.h.b16 %v3846
        %v4251 = vunpack.c.l.b16 %v3847
        %v4252 = vunpack.c.h.b16 %v3847
        %v4253 = vunpack.c.l.b16 %v3848
        %v4254 = vunpack.c.h.b16 %v3848
        %v4255 = vunpack.c.l.b16 %v3849
        %v4256 = vunpack.c.h.b16 %v3849
        %v4257 = vunpack.c.l.b16 %v3850
        %v4258 = vunpack.c.h.b16 %v3850
        %v4259 = vunpack.c.l.b16 %v3851
        %v4260 = vunpack.c.h.b16 %v3851
        %v4261 = vunpack.c.l.b16 %v3852
        %v4262 = vunpack.c.h.b16 %v3852
        %v4263 = vunpack.c.l.b16 %v3853
        %v4264 = vunpack.c.h.b16 %v3853
        %v4265 = vunpack.c.l.b16 %v3854
        %v4266 = vunpack.c.h.b16 %v3854
        %v4267 = vunpack.c.l.b16 %v3855
        %v4268 = vunpack.c.h.b16 %v3855
        %v4269 = vunpack.c.l.b16 %v3856
        %v4270 = vunpack.c.h.b16 %v3856
        %v4271 = vunpack.c.l.b16 %v3857
        %v4272 = vunpack.c.h.b16 %v3857
        %v4273 = vunpack.c.l.b16 %v3858
        %v4274 = vunpack.c.h.b16 %v3858
        %v4275 = vunpack.c.l.b16 %v3859
        %v4276 = vunpack.c.h.b16 %v3859
        %v4277 = vunpack.c.l.b16 %v3860
        %v4278 = vunpack.c.h.b16 %v3860
        %v4279 = vunpack.c.l.b16 %v3861
        %v4280 = vunpack.c.h.b16 %v3861
        %v4281 = vunpack.c.l.b16 %v3862
        %v4282 = vunpack.c.h.b16 %v3862
        %v4283 = vunpack.c.l.b16 %v3863
        %v4284 = vunpack.c.h.b16 %v3863
        %v4285 = vunpack.c.l.b16 %v3864
        %v4286 = vunpack.c.h.b16 %v3864
        %v4287 = vunpack.c.l.b16 %v3865
        %v4288 = vunpack.c.h.b16 %v3865
        %v4289 = vunpack.c.l.b16 %v3866
        %v4290 = vunpack.c.h.b16 %v3866
        %v4291 = vunpack.c.l.b16 %v3867
        %v4292 = vunpack.c.h.b16 %v3867
        %v4293 = vunpack.c.l.b16 %v3868
        %v4294 = vunpack.c.h.b16 %v3868
        %v4295 = vunpack.c.l.b16 %v3869
        %v4296 = vunpack.c.h.b16 %v3869
        %v4297 = vunpack.c.l.b16 %v3870
        %v4298 = vunpack.c.h.b16 %v3870
        %v4299 = vunpack.c.l.b16 %v3871
        %v4300 = vunpack.c.h.b16 %v3871
        %v4301 = vunpack.c.l.b16 %v3872
        %v4302 = vunpack.c.h.b16 %v3872
        %v4303 = vunpack.c.l.b16 %v3873
        %v4304 = vunpack.c.h.b16 %v3873
        %v4305 = vunpack.c.l.b16 %v3874
        %v4306 = vunpack.c.h.b16 %v3874
        %v4307 = vunpack.c.l.b16 %v3875
        %v4308 = vunpack.c.h.b16 %v3875
        %v4309 = vunpack.c.l.b16 %v3876
        %v4310 = vunpack.c.h.b16 %v3876
        %v4311 = vunpack.c.l.b16 %v3877
        %v4312 = vunpack.c.h.b16 %v3877
        %v4313 = vunpack.c.l.b16 %v3878
        %v4314 = vunpack.c.h.b16 %v3878
        %v4315 = vunpack.c.l.b16 %v3879
        %v4316 = vunpack.c.h.b16 %v3879
        %v4317 = vunpack.c.l.b16 %v3880
        %v4318 = vunpack.c.h.b16 %v3880
        %v4319 = vunpack.c.l.b16 %v3881
        %v4320 = vunpack.c.h.b16 %v3881
        %v4321 = vunpack.c.l.b16 %v3882
        %v4322 = vunpack.c.h.b16 %v3882
        %v4323 = vunpack.c.l.b16 %v3883
        %v4324 = vunpack.c.h.b16 %v3883
        %v4325 = vunpack.c.l.b16 %v3884
        %v4326 = vunpack.c.h.b16 %v3884
        %v4327 = vunpack.c.l.b16 %v3885
        %v4328 = vunpack.c.h.b16 %v3885
        %v4329 = vunpack.c.l.b16 %v3886
        %v4330 = vunpack.c.h.b16 %v3886
        %v4331 = vunpack.c.l.b16 %v3887
        %v4332 = vunpack.c.h.b16 %v3887
        %v4333 = vunpack.c.l.b16 %v3888
        %v4334 = vunpack.c.h.b16 %v3888
        %v4335 = vunpack.c.l.b16 %v3889
        %v4336 = vunpack.c.h.b16 %v3889
        %v4337 = vunpack.c.l.b16 %v3890
        %v4338 = vunpack.c.h.b16 %v3890
        %v4339 = vunpack.c.l.b16 %v3891
        %v4340 = vunpack.c.h.b16 %v3891
        %v4341 = vunpack.c.l.b16 %v3892
        %v4342 = vunpack.c.h.b16 %v3892
        %v4343 = vunpack.c.l.b16 %v3893
        %v4344 = vunpack.c.h.b16 %v3893
        %v4345 = vunpack.c.l.b16 %v3894
        %v4346 = vunpack.c.h.b16 %v3894
        %v4347 = vunpack.c.l.b16 %v3895
        %v4348 = vunpack.c.h.b16 %v3895
        %v4349 = vunpack.c.l.b16 %v3896
        %v4350 = vunpack.c.h.b16 %v3896
        %v4351 = vunpack.c.l.b16 %v3897
        %v4352 = vunpack.c.h.b16 %v3897
        %v4353 = vunpack.c.l.b16 %v3898
        %v4354 = vunpack.c.h.b16 %v3898
        %v4355 = vunpack.c.l.b16 %v3899
        %v4356 = vunpack.c.h.b16 %v3899
        %v4357 = vunpack.c.l.b16 %v3900
        %v4358 = vunpack.c.h.b16 %v3900
        %v4359 = vunpack.c.l.b16 %v3901
        %v4360 = vunpack.c.h.b16 %v3901
        %v4361 = vunpack.c.l.b16 %v3902
        %v4362 = vunpack.c.h.b16 %v3902
        %v4363 = vunpack.c.l.b16 %v3903
        %v4364 = vunpack.c.h.b16 %v3903
        %v4365 = vunpack.c.l.b16 %v3904
        %v4366 = vunpack.c.h.b16 %v3904
        %v4367 = vunpack.c.l.b16 %v3905
        %v4368 = vunpack.c.h.b16 %v3905
        %v4369 = vunpack.c.l.b16 %v3906
        %v4370 = vunpack.c.h.b16 %v3906
        %v4371 = vunpack.c.l.b16 %v3907
        %v4372 = vunpack.c.h.b16 %v3907
        %v4373 = vunpack.c.l.b16 %v3908
        %v4374 = vunpack.c.h.b16 %v3908
        %v4375 = vunpack.c.l.b16 %v3909
        %v4376 = vunpack.c.h.b16 %v3909
        %v4377 = vunpack.c.l.b16 %v3910
        %v4378 = vunpack.c.h.b16 %v3910
        %v4379 = vunpack.c.l.b16 %v3911
        %v4380 = vunpack.c.h.b16 %v3911
        %v4381 = vunpack.c.l.b16 %v3912
        %v4382 = vunpack.c.h.b16 %v3912
        %v4383 = vunpack.c.l.b16 %v3913
        %v4384 = vunpack.c.h.b16 %v3913
        %v4385 = vunpack.c.l.b16 %v3914
        %v4386 = vunpack.c.h.b16 %v3914
        %v4387 = vunpack.c.l.b16 %v3915
        %v4388 = vunpack.c.h.b16 %v3915
        %v4389 = vunpack.c.l.b16 %v3916
        %v4390 = vunpack.c.h.b16 %v3916
        %v4391 = vunpack.c.l.b16 %v3917
        %v4392 = vunpack.c.h.b16 %v3917
        %v4393 = vunpack.c.l.b16 %v3918
        %v4394 = vunpack.c.h.b16 %v3918
        %v4395 = vunpack.c.l.b16 %v3919
        %v4396 = vunpack.c.h.b16 %v3919
        %v4397 = vunpack.c.l.b16 %v3920
        %v4398 = vunpack.c.h.b16 %v3920
        %v4399 = vunpack.c.l.b16 %v3921
        %v4400 = vunpack.c.h.b16 %v3921
        %v4401 = vunpack.c.l.b16 %v3922
        %v4402 = vunpack.c.h.b16 %v3922
        %v4403 = vunpack.c.l.b16 %v3923
        %v4404 = vunpack.c.h.b16 %v3923
        %v4405 = vunpack.c.l.b16 %v3924
        %v4406 = vunpack.c.h.b16 %v3924
        %v4407 = vunpack.c.l.b16 %v3925
        %v4408 = vunpack.c.h.b16 %v3925
        %v4409 = vunpack.c.l.b16 %v3926
        %v4410 = vunpack.c.h.b16 %v3926
        %v4411 = vunpack.c.l.b16 %v3927
        %v4412 = vunpack.c.h.b16 %v3927
        %v4413 = vunpack.c.l.b16 %v3928
        %v4414 = vunpack.c.h.b16 %v3928
        %v4415 = vunpack.c.l.b16 %v3929
        %v4416 = vunpack.c.h.b16 %v3929
        %v4417 = vunpack.c.l.b16 %v3930
        %v4418 = vunpack.c.h.b16 %v3930
        %v4419 = vunpack.c.l.b16 %v3931
        %v4420 = vunpack.c.h.b16 %v3931
        %v4421 = vunpack.c.l.b16 %v3932
        %v4422 = vunpack.c.h.b16 %v3932
        %v4423 = vunpack.c.l.b16 %v3933
        %v4424 = vunpack.c.h.b16 %v3933
        %v4425 = vunpack.c.l.b16 %v3934
        %v4426 = vunpack.c.h.b16 %v3934
        %v4427 = vunpack.c.l.b16 %v3935
        %v4428 = vunpack.c.h.b16 %v3935
        %v4429 = vunpack.c.l.b16 %v3936
        %v4430 = vunpack.c.h.b16 %v3936
        %v4431 = vunpack.c.l.b16 %v3937
        %v4432 = vunpack.c.h.b16 %v3937
        %v4433 = vunpack.c.l.b16 %v3938
        %v4434 = vunpack.c.h.b16 %v3938
        %v4435 = vunpack.c.l.b16 %v3939
        %v4436 = vunpack.c.h.b16 %v3939
        %v4437 = vunpack.c.l.b16 %v3940
        %v4438 = vunpack.c.h.b16 %v3940
        %v4439 = vunpack.c.l.b16 %v3941
        %v4440 = vunpack.c.h.b16 %v3941
        %v4441 = vunpack.c.l.b16 %v3942
        %v4442 = vunpack.c.h.b16 %v3942
        %v4443 = vunpack.c.l.b16 %v3943
        %v4444 = vunpack.c.h.b16 %v3943
        %v4445 = vunpack.c.l.b16 %v3944
        %v4446 = vunpack.c.h.b16 %v3944
        %v4447 = vunpack.c.l.b16 %v3945
        %v4448 = vunpack.c.h.b16 %v3945
        %v4449 = vunpack.c.l.b16 %v3946
        %v4450 = vunpack.c.h.b16 %v3946
        %v4451 = vunpack.c.l.b16 %v3947
        %v4452 = vunpack.c.h.b16 %v3947
        %v4453 = vunpack.c.l.b16 %v3948
        %v4454 = vunpack.c.h.b16 %v3948
        %v4455 = vunpack.c.l.b16 %v3949
        %v4456 = vunpack.c.h.b16 %v3949
        %v4457 = vunpack.c.l.b16 %v3950
        %v4458 = vunpack.c.h.b16 %v3950
        %v4459 = vunpack.c.l.b16 %v3951
        %v4460 = vunpack.c.h.b16 %v3951
        %v4461 = vunpack.c.l.b16 %v3952
        %v4462 = vunpack.c.h.b16 %v3952
        %v4463 = vunpack.c.l.b16 %v3953
        %v4464 = vunpack.c.h.b16 %v3953
        %v4465 = vunpack.c.l.b16 %v3954
        %v4466 = vunpack.c.h.b16 %v3954
        %v4467 = vunpack.c.l.b16 %v3955
        %v4468 = vunpack.c.h.b16 %v3955
        %v4469 = vunpack.c.l.b16 %v3956
        %v4470 = vunpack.c.h.b16 %v3956
        %v4471 = vunpack.c.l.b16 %v3957
        %v4472 = vunpack.c.h.b16 %v3957
        %v4473 = vunpack.c.l.b16 %v3958
        %v4474 = vunpack.c.h.b16 %v3958
        %v4475 = vunpack.c.l.b16 %v3959
        %v4476 = vunpack.c.h.b16 %v3959
        %v4477 = vunpack.c.l.b16 %v3960
        %v4478 = vunpack.c.h.b16 %v3960
        %v4479 = vunpack.c.l.b16 %v3961
        %v4480 = vunpack.c.h.b16 %v3961
        %v4481 = vunpack.c.l.b16 %v3962
        %v4482 = vunpack.c.h.b16 %v3962
        %v4483 = vunpack.c.l.b16 %v3963
        %v4484 = vunpack.c.h.b16 %v3963
        %v4485 = vunpack.c.l.b16 %v3964
        %v4486 = vunpack.c.h.b16 %v3964
        %v4487 = vunpack.c.l.b16 %v3965
        %v4488 = vunpack.c.h.b16 %v3965
        %v4489 = vunpack.c.l.b16 %v3966
        %v4490 = vunpack.c.h.b16 %v3966
        %v4491 = vunpack.c.l.b16 %v3967
        %v4492 = vunpack.c.h.b16 %v3967
        %v4493 = vunpack.c.l.b16 %v3968
        %v4494 = vunpack.c.h.b16 %v3968
        %v4495 = vunpack.c.l.b16 %v3969
        %v4496 = vunpack.c.h.b16 %v3969
        %v4497 = vunpack.c.l.b16 %v3970
        %v4498 = vunpack.c.h.b16 %v3970
        %v4499 = vunpack.c.l.b16 %v3971
        %v4500 = vunpack.c.h.b16 %v3971
        %v4501 = vunpack.c.l.b16 %v3972
        %v4502 = vunpack.c.h.b16 %v3972
        %v4503 = vunpack.c.l.b16 %v3973
        %v4504 = vunpack.c.h.b16 %v3973
        %v4505 = vunpack.c.l.b16 %v3974
        %v4506 = vunpack.c.h.b16 %v3974
        %v4507 = vunpack.c.l.b16 %v3975
        %v4508 = vunpack.c.h.b16 %v3975
        %v4509 = vunpack.c.l.b16 %v3976
        %v4510 = vunpack.c.h.b16 %v3976
        %v4511 = vunpack.c.l.b16 %v3977
        %v4512 = vunpack.c.h.b16 %v3977
        %v4513 = vunpack.c.l.b16 %v3978
        %v4514 = vunpack.c.h.b16 %v3978
        %v4515 = vunpack.c.l.b16 %v3979
        %v4516 = vunpack.c.h.b16 %v3979
        %v4517 = vunpack.c.l.b16 %v3980
        %v4518 = vunpack.c.h.b16 %v3980
        %v4519 = vunpack.c.l.b16 %v3981
        %v4520 = vunpack.c.h.b16 %v3981
        %v4521 = vunpack.c.l.b16 %v3982
        %v4522 = vunpack.c.h.b16 %v3982
        %v4523 = vunpack.c.l.b16 %v3983
        %v4524 = vunpack.c.h.b16 %v3983
        %v4525 = vunpack.c.l.b16 %v3984
        %v4526 = vunpack.c.h.b16 %v3984
        %v4527 = vunpack.c.l.b16 %v3985
        %v4528 = vunpack.c.h.b16 %v3985
        %v4529 = vunpack.c.l.b16 %v3986
        %v4530 = vunpack.c.h.b16 %v3986
        %v4531 = vunpack.c.l.b16 %v3987
        %v4532 = vunpack.c.h.b16 %v3987
        %v4533 = vunpack.c.l.b16 %v3988
        %v4534 = vunpack.c.h.b16 %v3988
        %v4535 = vunpack.c.l.b16 %v3989
        %v4536 = vunpack.c.h.b16 %v3989
        %v4537 = vunpack.c.l.b16 %v3990
        %v4538 = vunpack.c.h.b16 %v3990
        %v4539 = vunpack.c.l.b16 %v3991
        %v4540 = vunpack.c.h.b16 %v3991
        %v4541 = vunpack.c.l.b16 %v3992
        %v4542 = vunpack.c.h.b16 %v3992
        %v4543 = vunpack.c.l.b16 %v3993
        %v4544 = vunpack.c.h.b16 %v3993
        %v4545 = vunpack.c.l.b16 %v3994
        %v4546 = vunpack.c.h.b16 %v3994
        %v4547 = vunpack.c.l.b16 %v3995
        %v4548 = vunpack.c.h.b16 %v3995
        %v4549 = vunpack.c.l.b16 %v3996
        %v4550 = vunpack.c.h.b16 %v3996
        %v4551 = vunpack.c.l.b16 %v3997
        %v4552 = vunpack.c.h.b16 %v3997
        %v4553 = vunpack.c.l.b16 %v3998
        %v4554 = vunpack.c.h.b16 %v3998
        %v4555 = vunpack.c.l.b16 %v3999
        %v4556 = vunpack.c.h.b16 %v3999
        %v4557 = vunpack.c.l.b16 %v4000
        %v4558 = vunpack.c.h.b16 %v4000
        %v4559 = vunpack.c.l.b16 %v4001
        %v4560 = vunpack.c.h.b16 %v4001
        %v4561 = vunpack.c.l.b16 %v4002
        %v4562 = vunpack.c.h.b16 %v4002
        %v4563 = vunpack.c.l.b16 %v4003
        %v4564 = vunpack.c.h.b16 %v4003
        %v4565 = vunpack.c.l.b16 %v4004
        %v4566 = vunpack.c.h.b16 %v4004
        %v4567 = vunpack.c.l.b16 %v4005
        %v4568 = vunpack.c.h.b16 %v4005
        %v4569 = vunpack.c.l.b16 %v4006
        %v4570 = vunpack.c.h.b16 %v4006
        %v4571 = vunpack.c.l.b16 %v4007
        %v4572 = vunpack.c.h.b16 %v4007
        %v4573 = vunpack.c.l.b16 %v4008
        %v4574 = vunpack.c.h.b16 %v4008
        %v4575 = vunpack.c.l.b16 %v4009
        %v4576 = vunpack.c.h.b16 %v4009
        %v4577 = vunpack.c.l.b16 %v4010
        %v4578 = vunpack.c.h.b16 %v4010
        %v4579 = vunpack.c.l.b16 %v4011
        %v4580 = vunpack.c.h.b16 %v4011
        %v4581 = vunpack.c.l.b16 %v4012
        %v4582 = vunpack.c.h.b16 %v4012
        %v4583 = vunpack.c.l.b16 %v4013
        %v4584 = vunpack.c.h.b16 %v4013
        %v4585 = vunpack.c.l.b16 %v4014
        %v4586 = vunpack.c.h.b16 %v4014
        %v4587 = vunpack.c.l.b16 %v4015
        %v4588 = vunpack.c.h.b16 %v4015
        %v4589 = vunpack.c.l.b16 %v4016
        %v4590 = vunpack.c.h.b16 %v4016
        %v4591 = vunpack.c.l.b16 %v4017
        %v4592 = vunpack.c.h.b16 %v4017
        %v4593 = vunpack.c.l.b16 %v4018
        %v4594 = vunpack.c.h.b16 %v4018
        %v4595 = vpack.c.b16 %v4217, %v4211
        %v4596 = vpack.c.b16 %v4218, %v4212
        %v4597 = vpack.c.b16 %v4219, %v4213
        %v4598 = vpack.c.b16 %v4220, %v4214
        %v4599 = vpack.c.b16 %v4221, %v4215
        %v4600 = vpack.c.b16 %v4222, %v4216
        %v4601 = vpack.c.b16 %v4229, %v4223
        %v4602 = vpack.c.b16 %v4230, %v4224
        %v4603 = vpack.c.b16 %v4231, %v4225
        %v4604 = vpack.c.b16 %v4232, %v4226
        %v4605 = vpack.c.b16 %v4233, %v4227
        %v4606 = vpack.c.b16 %v4234, %v4228
        %v4607 = vpack.c.b16 %v4241, %v4235
        %v4608 = vpack.c.b16 %v4242, %v4236
        %v4609 = vpack.c.b16 %v4243, %v4237
        %v4610 = vpack.c.b16 %v4244, %v4238
        %v4611 = vpack.c.b16 %v4245, %v4239
        %v4612 = vpack.c.b16 %v4246, %v4240
        %v4613 = vpack.c.b16 %v4253, %v4247
        %v4614 = vpack.c.b16 %v4254, %v4248
        %v4615 = vpack.c.b16 %v4255, %v4249
        %v4616 = vpack.c.b16 %v4256, %v4250
        %v4617 = vpack.c.b16 %v4257, %v4251
        %v4618 = vpack.c.b16 %v4258, %v4252
        %v4619 = vpack.c.b16 %v4265, %v4259
        %v4620 = vpack.c.b16 %v4266, %v4260
        %v4621 = vpack.c.b16 %v4267, %v4261
        %v4622 = vpack.c.b16 %v4268, %v4262
        %v4623 = vpack.c.b16 %v4269, %v4263
        %v4624 = vpack.c.b16 %v4270, %v4264
        %v4625 = vpack.c.b16 %v4277, %v4271
        %v4626 = vpack.c.b16 %v4278, %v4272
        %v4627 = vpack.c.b16 %v4279, %v4273
        %v4628 = vpack.c.b16 %v4280, %v4274
        %v4629 = vpack.c.b16 %v4281, %v4275
        %v4630 = vpack.c.b16 %v4282, %v4276
        %v4631 = vpack.c.b16 %v4289, %v4283
        %v4632 = vpack.c.b16 %v4290, %v4284
        %v4633 = vpack.c.b16 %v4291, %v4285
        %v4634 = vpack.c.b16 %v4292, %v4286
        %v4635 = vpack.c.b16 %v4293, %v4287
        %v4636 = vpack.c.b16 %v4294, %v4288
        %v4637 = vpack.c.b16 %v4301, %v4295
        %v4638 = vpack.c.b16 %v4302, %v4296
        %v4639 = vpack.c.b16 %v4303, %v4297
        %v4640 = vpack.c.b16 %v4304, %v4298
        %v4641 = vpack.c.b16 %v4305, %v4299
        %v4642 = vpack.c.b16 %v4306, %v4300
        %v4643 = vpack.c.b16 %v4313, %v4307
        %v4644 = vpack.c.b16 %v4314, %v4308
        %v4645 = vpack.c.b16 %v4315, %v4309
        %v4646 = vpack.c.b16 %v4316, %v4310
        %v4647 = vpack.c.b16 %v4317, %v4311
        %v4648 = vpack.c.b16 %v4318, %v4312
        %v4649 = vpack.c.b16 %v4325, %v4319
        %v4650 = vpack.c.b16 %v4326, %v4320
        %v4651 = vpack.c.b16 %v4327, %v4321
        %v4652 = vpack.c.b16 %v4328, %v4322
        %v4653 = vpack.c.b16 %v4329, %v4323
        %v4654 = vpack.c.b16 %v4330, %v4324
        %v4655 = vpack.c.b16 %v4337, %v4331
        %v4656 = vpack.c.b16 %v4338, %v4332
        %v4657 = vpack.c.b16 %v4339, %v4333
        %v4658 = vpack.c.b16 %v4340, %v4334
        %v4659 = vpack.c.b16 %v4341, %v4335
        %v4660 = vpack.c.b16 %v4342, %v4336
        %v4661 = vpack.c.b16 %v4349, %v4343
        %v4662 = vpack.c.b16 %v4350, %v4344
        %v4663 = vpack.c.b16 %v4351, %v4345
        %v4664 = vpack.c.b16 %v4352, %v4346
        %v4665 = vpack.c.b16 %v4353, %v4347
        %v4666 = vpack.c.b16 %v4354, %v4348
        %v4667 = vpack.c.b16 %v4361, %v4355
        %v4668 = vpack.c.b16 %v4362, %v4356
        %v4669 = vpack.c.b16 %v4363, %v4357
        %v4670 = vpack.c.b16 %v4364, %v4358
        %v4671 = vpack.c.b16 %v4365, %v4359
        %v4672 = vpack.c.b16 %v4366, %v4360
        %v4673 = vpack.c.b16 %v4373, %v4367
        %v4674 = vpack.c.b16 %v4374, %v4368
        %v4675 = vpack.c.b16 %v4375, %v4369
        %v4676 = vpack.c.b16 %v4376, %v4370
        %v4677 = vpack.c.b16 %v4377, %v4371
        %v4678 = vpack.c.b16 %v4378, %v4372
        %v4679 = vpack.c.b16 %v4385, %v4379
        %v4680 = vpack.c.b16 %v4386, %v4380
        %v4681 = vpack.c.b16 %v4387, %v4381
        %v4682 = vpack.c.b16 %v4388, %v4382
        %v4683 = vpack.c.b16 %v4389, %v4383
        %v4684 = vpack.c.b16 %v4390, %v4384
        %v4685 = vpack.c.b16 %v4397, %v4391
        %v4686 = vpack.c.b16 %v4398, %v4392
        %v4687 = vpack.c.b16 %v4399, %v4393
        %v4688 = vpack.c.b16 %v4400, %v4394
        %v4689 = vpack.c.b16 %v4401, %v4395
        %v4690 = vpack.c.b16 %v4402, %v4396
        %v4691 = vpack.c.b16 %v4409, %v4403
        %v4692 = vpack.c.b16 %v4410, %v4404
        %v4693 = vpack.c.b16 %v4411, %v4405
        %v4694 = vpack.c.b16 %v4412, %v4406
        %v4695 = vpack.c.b16 %v4413, %v4407
        %v4696 = vpack.c.b16 %v4414, %v4408
        %v4697 = vpack.c.b16 %v4421, %v4415
        %v4698 = vpack.c.b16 %v4422, %v4416
        %v4699 = vpack.c.b16 %v4423, %v4417
        %v4700 = vpack.c.b16 %v4424, %v4418
        %v4701 = vpack.c.b16 %v4425, %v4419
        %v4702 = vpack.c.b16 %v4426, %v4420
        %v4703 = vpack.c.b16 %v4433, %v4427
        %v4704 = vpack.c.b16 %v4434, %v4428
        %v4705 = vpack.c.b16 %v4435, %v4429
        %v4706 = vpack.c.b16 %v4436, %v4430
        %v4707 = vpack.c.b16 %v4437, %v4431
        %v4708 = vpack.c.b16 %v4438, %v4432
        %v4709 = vpack.c.b16 %v4445, %v4439
        %v4710 = vpack.c.b16 %v4446, %v4440
        %v4711 = vpack.c.b16 %v4447, %v4441
        %v4712 = vpack.c.b16 %v4448, %v4442
        %v4713 = vpack.c.b16 %v4449, %v4443
        %v4714 = vpack.c.b16 %v4450, %v4444
        %v4715 = vpack.c.b16 %v4457, %v4451
        %v4716 = vpack.c.b16 %v4458, %v4452
        %v4717 = vpack.c.b16 %v4459, %v4453
        %v4718 = vpack.c.b16 %v4460, %v4454
        %v4719 = vpack.c.b16 %v4461, %v4455
        %v4720 = vpack.c.b16 %v4462, %v4456
        %v4721 = vpack.c.b16 %v4469, %v4463
        %v4722 = vpack.c.b16 %v4470, %v4464
        %v4723 = vpack.c.b16 %v4471, %v4465
        %v4724 = vpack.c.b16 %v4472, %v4466
        %v4725 = vpack.c.b16 %v4473, %v4467
        %v4726 = vpack.c.b16 %v4474, %v4468
        %v4727 = vpack.c.b16 %v4481, %v4475
        %v4728 = vpack.c.b16 %v4482, %v4476
        %v4729 = vpack.c.b16 %v4483, %v4477
        %v4730 = vpack.c.b16 %v4484, %v4478
        %v4731 = vpack.c.b16 %v4485, %v4479
        %v4732 = vpack.c.b16 %v4486, %v4480
        %v4733 = vpack.c.b16 %v4493, %v4487
        %v4734 = vpack.c.b16 %v4494, %v4488
        %v4735 = vpack.c.b16 %v4495, %v4489
        %v4736 = vpack.c.b16 %v4496, %v4490
        %v4737 = vpack.c.b16 %v4497, %v4491
        %v4738 = vpack.c.b16 %v4498, %v4492
        %v4739 = vpack.c.b16 %v4505, %v4499
        %v4740 = vpack.c.b16 %v4506, %v4500
        %v4741 = vpack.c.b16 %v4507, %v4501
        %v4742 = vpack.c.b16 %v4508, %v4502
        %v4743 = vpack.c.b16 %v4509, %v4503
        %v4744 = vpack.c.b16 %v4510, %v4504
        %v4745 = vpack.c.b16 %v4517, %v4511
        %v4746 = vpack.c.b16 %v4518, %v4512
        %v4747 = vpack.c.b16 %v4519, %v4513
        %v4748 = vpack.c.b16 %v4520, %v4514
        %v4749 = vpack.c.b16 %v4521, %v4515
        %v4750 = vpack.c.b16 %v4522, %v4516
        %v4751 = vpack.c.b16 %v4529, %v4523
        %v4752 = vpack.c.b16 %v4530, %v4524
        %v4753 = vpack.c.b16 %v4531, %v4525
        %v4754 = vpack.c.b16 %v4532, %v4526
        %v4755 = vpack.c.b16 %v4533, %v4527
        %v4756 = vpack.c.b16 %v4534, %v4528
        %v4757 = vpack.c.b16 %v4541, %v4535
        %v4758 = vpack.c.b16 %v4542, %v4536
        %v4759 = vpack.c.b16 %v4543, %v4537
        %v4760 = vpack.c.b16 %v4544, %v4538
        %v4761 = vpack.c.b16 %v4545, %v4539
        %v4762 = vpack.c.b16 %v4546, %v4540
        %v4763 = vpack.c.b16 %v4553, %v4547
        %v4764 = vpack.c.b16 %v4554, %v4548
        %v4765 = vpack.c.b16 %v4555, %v4549
        %v4766 = vpack.c.b16 %v4556, %v4550
        %v4767 = vpack.c.b16 %v4557, %v4551
        %v4768 = vpack.c.b16 %v4558, %v4552
        %v4769 = vpack.c.b16 %v4565, %v4559
        %v4770 = vpack.c.b16 %v4566, %v4560
        %v4771 = vpack.c.b16 %v4567, %v4561
        %v4772 = vpack.c.b16 %v4568, %v4562
        %v4773 = vpack.c.b16 %v4569, %v4563
        %v4774 = vpack.c.b16 %v4570, %v4564
        %v4775 = vpack.c.b16 %v4577, %v4571
        %v4776 = vpack.c.b16 %v4578, %v4572
        %v4777 = vpack.c.b16 %v4579, %v4573
        %v4778 = vpack.c.b16 %v4580, %v4574
        %v4779 = vpack.c.b16 %v4581, %v4575
        %v4780 = vpack.c.b16 %v4582, %v4576
        %v4781 = vpack.c.b16 %v4589, %v4583
        %v4782 = vpack.c.b16 %v4590, %v4584
        %v4783 = vpack.c.b16 %v4591, %v4585
        %v4784 = vpack.c.b16 %v4592, %v4586
        %v4785 = vpack.c.b16 %v4593, %v4587
        %v4786 = vpack.c.b16 %v4594, %v4588
        %4979 = vmatprep.subr.bf16.mxu0 %v4596
        %4980 = vmatpush1.bf16.msra.mxu0 %v4595
        %4981 = vmatprep.subr.bf16.mxu0 %v4602
        %4982 = vmatpush1.bf16.msra.mxu0 %v4601
        %4983 = vmatprep.subr.bf16.mxu0 %v4608
        %4984 = vmatpush1.bf16.msra.mxu0 %v4607
        %4985 = vmatprep.subr.bf16.mxu0 %v4614
        %4986 = vmatpush1.bf16.msra.mxu0 %v4613
        %4987 = vmatprep.subr.bf16.mxu0 %v4620
        %4988 = vmatpush1.bf16.msra.mxu0 %v4619
        %4989 = vmatprep.subr.bf16.mxu0 %v4626
        %4990 = vmatpush1.bf16.msra.mxu0 %v4625
        %4991 = vmatprep.subr.bf16.mxu0 %v4632
        %4992 = vmatpush1.bf16.msra.mxu0 %v4631
        %4993 = vmatprep.subr.bf16.mxu0 %v4638
        %4994 = vmatpush1.bf16.msra.mxu0 %v4637
        %4995 = vmatprep.subr.bf16.mxu0 %v4644
        %4996 = vmatpush1.bf16.msra.mxu0 %v4643
        %4997 = vmatprep.subr.bf16.mxu0 %v4650
        %4998 = vmatpush1.bf16.msra.mxu0 %v4649
        %4999 = vmatprep.subr.bf16.mxu0 %v4656
        %5000 = vmatpush1.bf16.msra.mxu0 %v4655
        %5001 = vmatprep.subr.bf16.mxu0 %v4662
        %5002 = vmatpush1.bf16.msra.mxu0 %v4661
        %5003 = vmatprep.subr.bf16.mxu0 %v4668
        %5004 = vmatpush1.bf16.msra.mxu0 %v4667
        %5005 = vmatprep.subr.bf16.mxu0 %v4674
        %5006 = vmatpush1.bf16.msra.mxu0 %v4673
        %5007 = vmatprep.subr.bf16.mxu0 %v4680
        %5008 = vmatpush1.bf16.msra.mxu0 %v4679
        %5009 = vmatprep.subr.bf16.mxu0 %v4686
        %5010 = vmatpush1.bf16.msra.mxu0 %v4685
        %5011 = vmatprep.mubr.bf16.mxu0 %v1893
        %5012 = vmatmul.mubr.bf16.gmra.mrb[0].mxu0 %v1892
        %v5013 = vpop.f32.mrb[0].mxu0
        %v5014 = vadd.f32 0.0, %v5013
        %v5015 = vpop.f32.mrb[0].mxu0
        %v5016 = vadd.f32 0.0, %v5015
        %v5017 = vpop.f32.mrb[0].mxu0
        %v5018 = vpop.f32.mrb[0].mxu0
        %5019 = vdwg.mxu0
        %5020 = vmatprep.subr.bf16.mxu0 %v4692
        %5021 = vmatpush1.bf16.msra.mxu0 %v4691
        %5022 = vmatprep.subr.bf16.mxu0 %v4698
        %5023 = vmatpush1.bf16.msra.mxu0 %v4697
        %5024 = vmatprep.subr.bf16.mxu0 %v4704
        %5025 = vmatpush1.bf16.msra.mxu0 %v4703
        %5026 = vmatprep.subr.bf16.mxu0 %v4710
        %5027 = vmatpush1.bf16.msra.mxu0 %v4709
        %5028 = vmatprep.subr.bf16.mxu0 %v4716
        %5029 = vmatpush1.bf16.msra.mxu0 %v4715
        %5030 = vmatprep.subr.bf16.mxu0 %v4722
        %5031 = vmatpush1.bf16.msra.mxu0 %v4721
        %5032 = vmatprep.subr.bf16.mxu0 %v4728
        %5033 = vmatpush1.bf16.msra.mxu0 %v4727
        %5034 = vmatprep.subr.bf16.mxu0 %v4734
        %5035 = vmatpush1.bf16.msra.mxu0 %v4733
        %5036 = vmatprep.subr.bf16.mxu0 %v4740
        %5037 = vmatpush1.bf16.msra.mxu0 %v4739
        %5038 = vmatprep.subr.bf16.mxu0 %v4746
        %5039 = vmatpush1.bf16.msra.mxu0 %v4745
        %5040 = vmatprep.subr.bf16.mxu0 %v4752
        %5041 = vmatpush1.bf16.msra.mxu0 %v4751
        %5042 = vmatprep.subr.bf16.mxu0 %v4758
        %5043 = vmatpush1.bf16.msra.mxu0 %v4757
        %5044 = vmatprep.subr.bf16.mxu0 %v4764
        %5045 = vmatpush1.bf16.msra.mxu0 %v4763
        %5046 = vmatprep.subr.bf16.mxu0 %v4770
        %5047 = vmatpush1.bf16.msra.mxu0 %v4769
        %5048 = vmatprep.subr.bf16.mxu0 %v4776
        %5049 = vmatpush1.bf16.msra.mxu0 %v4775
        %5050 = vmatprep.subr.bf16.mxu0 %v4782
        %5051 = vmatpush1.bf16.msra.mxu0 %v4781
        %5052 = vmatprep.mubr.bf16.mxu0 %v1895
        %5053 = vmatmul.mubr.bf16.gmra.mrb[0].mxu0 %v1894
        %v5054 = vpop.f32.mrb[0].mxu0
        %v5055 = vadd.f32 %v5014, %v5054
        %v5056 = vpop.f32.mrb[0].mxu0
        %v5057 = vadd.f32 %v5016, %v5056
        %v5058 = vpop.f32.mrb[0].mxu0
        %v5059 = vpop.f32.mrb[0].mxu0
        %5060 = vdwg.mxu0
        %5061 = vmatprep.subr.bf16.mxu0 %v4598
        %5062 = vmatpush1.bf16.msra.mxu0 %v4597
        %5063 = vmatprep.subr.bf16.mxu0 %v4604
        %5064 = vmatpush1.bf16.msra.mxu0 %v4603
        %5065 = vmatprep.subr.bf16.mxu0 %v4610
        %5066 = vmatpush1.bf16.msra.mxu0 %v4609
        %5067 = vmatprep.subr.bf16.mxu0 %v4616
        %5068 = vmatpush1.bf16.msra.mxu0 %v4615
        %5069 = vmatprep.subr.bf16.mxu0 %v4622
        %5070 = vmatpush1.bf16.msra.mxu0 %v4621
        %5071 = vmatprep.subr.bf16.mxu0 %v4628
        %5072 = vmatpush1.bf16.msra.mxu0 %v4627
        %5073 = vmatprep.subr.bf16.mxu0 %v4634
        %5074 = vmatpush1.bf16.msra.mxu0 %v4633
        %5075 = vmatprep.subr.bf16.mxu0 %v4640
        %5076 = vmatpush1.bf16.msra.mxu0 %v4639
        %5077 = vmatprep.subr.bf16.mxu0 %v4646
        %5078 = vmatpush1.bf16.msra.mxu0 %v4645
        %5079 = vmatprep.subr.bf16.mxu0 %v4652
        %5080 = vmatpush1.bf16.msra.mxu0 %v4651
        %5081 = vmatprep.subr.bf16.mxu0 %v4658
        %5082 = vmatpush1.bf16.msra.mxu0 %v4657
        %5083 = vmatprep.subr.bf16.mxu0 %v4664
        %5084 = vmatpush1.bf16.msra.mxu0 %v4663
        %5085 = vmatprep.subr.bf16.mxu0 %v4670
        %5086 = vmatpush1.bf16.msra.mxu0 %v4669
        %5087 = vmatprep.subr.bf16.mxu0 %v4676
        %5088 = vmatpush1.bf16.msra.mxu0 %v4675
        %5089 = vmatprep.subr.bf16.mxu0 %v4682
        %5090 = vmatpush1.bf16.msra.mxu0 %v4681
        %5091 = vmatprep.subr.bf16.mxu0 %v4688
        %5092 = vmatpush1.bf16.msra.mxu0 %v4687
        %5093 = vmatprep.mubr.bf16.mxu0 %v1893
        %5094 = vmatmul.mubr.bf16.gmra.mrb[0].mxu0 %v1892
        %v5095 = vpop.f32.mrb[0].mxu0
        %v5096 = vadd.f32 0.0, %v5095
        %v5097 = vpop.f32.mrb[0].mxu0
        %v5098 = vadd.f32 0.0, %v5097
        %v5099 = vpop.f32.mrb[0].mxu0
        %v5100 = vpop.f32.mrb[0].mxu0
        %5101 = vdwg.mxu0
        %5102 = vmatprep.subr.bf16.mxu0 %v4694
        %5103 = vmatpush1.bf16.msra.mxu0 %v4693
        %5104 = vmatprep.subr.bf16.mxu0 %v4700
        %5105 = vmatpush1.bf16.msra.mxu0 %v4699
        %5106 = vmatprep.subr.bf16.mxu0 %v4706
        %5107 = vmatpush1.bf16.msra.mxu0 %v4705
        %5108 = vmatprep.subr.bf16.mxu0 %v4712
        %5109 = vmatpush1.bf16.msra.mxu0 %v4711
        %5110 = vmatprep.subr.bf16.mxu0 %v4718
        %5111 = vmatpush1.bf16.msra.mxu0 %v4717
        %5112 = vmatprep.subr.bf16.mxu0 %v4724
        %5113 = vmatpush1.bf16.msra.mxu0 %v4723
        %5114 = vmatprep.subr.bf16.mxu0 %v4730
        %5115 = vmatpush1.bf16.msra.mxu0 %v4729
        %5116 = vmatprep.subr.bf16.mxu0 %v4736
        %5117 = vmatpush1.bf16.msra.mxu0 %v4735
        %5118 = vmatprep.subr.bf16.mxu0 %v4742
        %5119 = vmatpush1.bf16.msra.mxu0 %v4741
        %5120 = vmatprep.subr.bf16.mxu0 %v4748
        %5121 = vmatpush1.bf16.msra.mxu0 %v4747
        %5122 = vmatprep.subr.bf16.mxu0 %v4754
        %5123 = vmatpush1.bf16.msra.mxu0 %v4753
        %5124 = vmatprep.subr.bf16.mxu0 %v4760
        %5125 = vmatpush1.bf16.msra.mxu0 %v4759
        %5126 = vmatprep.subr.bf16.mxu0 %v4766
        %5127 = vmatpush1.bf16.msra.mxu0 %v4765
        %5128 = vmatprep.subr.bf16.mxu0 %v4772
        %5129 = vmatpush1.bf16.msra.mxu0 %v4771
        %5130 = vmatprep.subr.bf16.mxu0 %v4778
        %5131 = vmatpush1.bf16.msra.mxu0 %v4777
        %5132 = vmatprep.subr.bf16.mxu0 %v4784
        %5133 = vmatpush1.bf16.msra.mxu0 %v4783
        %5134 = vmatprep.mubr.bf16.mxu0 %v1895
        %5135 = vmatmul.mubr.bf16.gmra.mrb[0].mxu0 %v1894
        %v5136 = vpop.f32.mrb[0].mxu0
        %v5137 = vadd.f32 %v5096, %v5136
        %v5138 = vpop.f32.mrb[0].mxu0
        %v5139 = vadd.f32 %v5098, %v5138
        %v5140 = vpop.f32.mrb[0].mxu0
        %v5141 = vpop.f32.mrb[0].mxu0
        %5142 = vdwg.mxu0
        %5143 = vmatprep.subr.bf16.mxu0 %v4600
        %5144 = vmatpush1.bf16.msra.mxu0 %v4599
        %5145 = vmatprep.subr.bf16.mxu0 %v4606
        %5146 = vmatpush1.bf16.msra.mxu0 %v4605
        %5147 = vmatprep.subr.bf16.mxu0 %v4612
        %5148 = vmatpush1.bf16.msra.mxu0 %v4611
        %5149 = vmatprep.subr.bf16.mxu0 %v4618
        %5150 = vmatpush1.bf16.msra.mxu0 %v4617
        %5151 = vmatprep.subr.bf16.mxu0 %v4624
        %5152 = vmatpush1.bf16.msra.mxu0 %v4623
        %5153 = vmatprep.subr.bf16.mxu0 %v4630
        %5154 = vmatpush1.bf16.msra.mxu0 %v4629
        %5155 = vmatprep.subr.bf16.mxu0 %v4636
        %5156 = vmatpush1.bf16.msra.mxu0 %v4635
        %5157 = vmatprep.subr.bf16.mxu0 %v4642
        %5158 = vmatpush1.bf16.msra.mxu0 %v4641
        %5159 = vmatprep.subr.bf16.mxu0 %v4648
        %5160 = vmatpush1.bf16.msra.mxu0 %v4647
        %5161 = vmatprep.subr.bf16.mxu0 %v4654
        %5162 = vmatpush1.bf16.msra.mxu0 %v4653
        %5163 = vmatprep.subr.bf16.mxu0 %v4660
        %5164 = vmatpush1.bf16.msra.mxu0 %v4659
        %5165 = vmatprep.subr.bf16.mxu0 %v4666
        %5166 = vmatpush1.bf16.msra.mxu0 %v4665
        %5167 = vmatprep.subr.bf16.mxu0 %v4672
        %5168 = vmatpush1.bf16.msra.mxu0 %v4671
        %5169 = vmatprep.subr.bf16.mxu0 %v4678
        %5170 = vmatpush1.bf16.msra.mxu0 %v4677
        %5171 = vmatprep.subr.bf16.mxu0 %v4684
        %5172 = vmatpush1.bf16.msra.mxu0 %v4683
        %5173 = vmatprep.subr.bf16.mxu0 %v4690
        %5174 = vmatpush1.bf16.msra.mxu0 %v4689
        %5175 = vmatprep.mubr.bf16.mxu0 %v1893
        %5176 = vmatmul.mubr.bf16.gmra.mrb[0].mxu0 %v1892
        %v5177 = vpop.f32.mrb[0].mxu0
        %v5178 = vadd.f32 0.0, %v5177
        %v5179 = vpop.f32.mrb[0].mxu0
        %v5180 = vadd.f32 0.0, %v5179
        %v5181 = vpop.f32.mrb[0].mxu0
        %v5182 = vpop.f32.mrb[0].mxu0
        %5183 = vdwg.mxu0
        %5184 = vmatprep.subr.bf16.mxu0 %v4696
        %5185 = vmatpush1.bf16.msra.mxu0 %v4695
        %5186 = vmatprep.subr.bf16.mxu0 %v4702
        %5187 = vmatpush1.bf16.msra.mxu0 %v4701
        %5188 = vmatprep.subr.bf16.mxu0 %v4708
        %5189 = vmatpush1.bf16.msra.mxu0 %v4707
        %5190 = vmatprep.subr.bf16.mxu0 %v4714
        %5191 = vmatpush1.bf16.msra.mxu0 %v4713
        %5192 = vmatprep.subr.bf16.mxu0 %v4720
        %5193 = vmatpush1.bf16.msra.mxu0 %v4719
        %5194 = vmatprep.subr.bf16.mxu0 %v4726
        %5195 = vmatpush1.bf16.msra.mxu0 %v4725
        %5196 = vmatprep.subr.bf16.mxu0 %v4732
        %5197 = vmatpush1.bf16.msra.mxu0 %v4731
        %5198 = vmatprep.subr.bf16.mxu0 %v4738
        %5199 = vmatpush1.bf16.msra.mxu0 %v4737
        %5200 = vmatprep.subr.bf16.mxu0 %v4744
        %5201 = vmatpush1.bf16.msra.mxu0 %v4743
        %5202 = vmatprep.subr.bf16.mxu0 %v4750
        %5203 = vmatpush1.bf16.msra.mxu0 %v4749
        %5204 = vmatprep.subr.bf16.mxu0 %v4756
        %5205 = vmatpush1.bf16.msra.mxu0 %v4755
        %5206 = vmatprep.subr.bf16.mxu0 %v4762
        %5207 = vmatpush1.bf16.msra.mxu0 %v4761
        %5208 = vmatprep.subr.bf16.mxu0 %v4768
        %5209 = vmatpush1.bf16.msra.mxu0 %v4767
        %5210 = vmatprep.subr.bf16.mxu0 %v4774
        %5211 = vmatpush1.bf16.msra.mxu0 %v4773
        %5212 = vmatprep.subr.bf16.mxu0 %v4780
        %5213 = vmatpush1.bf16.msra.mxu0 %v4779
        %5214 = vmatprep.subr.bf16.mxu0 %v4786
        %5215 = vmatpush1.bf16.msra.mxu0 %v4785
        %5216 = vmatprep.mubr.bf16.mxu0 %v1895
        %5217 = vmatmul.mubr.bf16.gmra.mrb[0].mxu0 %v1894
        %v5218 = vpop.f32.mrb[0].mxu0
        %v5219 = vadd.f32 %v5178, %v5218
        %v5220 = vpop.f32.mrb[0].mxu0
        %v5221 = vadd.f32 %v5180, %v5220
        %v5222 = vpop.f32.mrb[0].mxu0
        %v5223 = vpop.f32.mrb[0].mxu0
        %5224 = vdwg.mxu0
        %v5417 = vunpack.c.l.b16 %v3635
        %v5418 = vunpack.c.h.b16 %v3635
        %v5419 = vunpack.c.l.b16 %v3636
        %v5420 = vunpack.c.h.b16 %v3636
        %v5421 = vunpack.c.l.b16 %v3637
        %v5422 = vunpack.c.h.b16 %v3637
        %v5423 = vunpack.c.l.b16 %v3638
        %v5424 = vunpack.c.h.b16 %v3638
        %v5425 = vunpack.c.l.b16 %v3639
        %v5426 = vunpack.c.h.b16 %v3639
        %v5427 = vunpack.c.l.b16 %v3640
        %v5428 = vunpack.c.h.b16 %v3640
        %v5429 = vunpack.c.l.b16 %v3641
        %v5430 = vunpack.c.h.b16 %v3641
        %v5431 = vunpack.c.l.b16 %v3642
        %v5432 = vunpack.c.h.b16 %v3642
        %v5433 = vunpack.c.l.b16 %v3643
        %v5434 = vunpack.c.h.b16 %v3643
        %v5435 = vunpack.c.l.b16 %v3644
        %v5436 = vunpack.c.h.b16 %v3644
        %v5437 = vunpack.c.l.b16 %v3645
        %v5438 = vunpack.c.h.b16 %v3645
        %v5439 = vunpack.c.l.b16 %v3646
        %v5440 = vunpack.c.h.b16 %v3646
        %v5441 = vunpack.c.l.b16 %v3647
        %v5442 = vunpack.c.h.b16 %v3647
        %v5443 = vunpack.c.l.b16 %v3648
        %v5444 = vunpack.c.h.b16 %v3648
        %v5445 = vunpack.c.l.b16 %v3649
        %v5446 = vunpack.c.h.b16 %v3649
        %v5447 = vunpack.c.l.b16 %v3650
        %v5448 = vunpack.c.h.b16 %v3650
        %v5449 = vunpack.c.l.b16 %v3651
        %v5450 = vunpack.c.h.b16 %v3651
        %v5451 = vunpack.c.l.b16 %v3652
        %v5452 = vunpack.c.h.b16 %v3652
        %v5453 = vunpack.c.l.b16 %v3653
        %v5454 = vunpack.c.h.b16 %v3653
        %v5455 = vunpack.c.l.b16 %v3654
        %v5456 = vunpack.c.h.b16 %v3654
        %v5457 = vunpack.c.l.b16 %v3655
        %v5458 = vunpack.c.h.b16 %v3655
        %v5459 = vunpack.c.l.b16 %v3656
        %v5460 = vunpack.c.h.b16 %v3656
        %v5461 = vunpack.c.l.b16 %v3657
        %v5462 = vunpack.c.h.b16 %v3657
        %v5463 = vunpack.c.l.b16 %v3658
        %v5464 = vunpack.c.h.b16 %v3658
        %v5465 = vunpack.c.l.b16 %v3659
        %v5466 = vunpack.c.h.b16 %v3659
        %v5467 = vunpack.c.l.b16 %v3660
        %v5468 = vunpack.c.h.b16 %v3660
        %v5469 = vunpack.c.l.b16 %v3661
        %v5470 = vunpack.c.h.b16 %v3661
        %v5471 = vunpack.c.l.b16 %v3662
        %v5472 = vunpack.c.h.b16 %v3662
        %v5473 = vunpack.c.l.b16 %v3663
        %v5474 = vunpack.c.h.b16 %v3663
        %v5475 = vunpack.c.l.b16 %v3664
        %v5476 = vunpack.c.h.b16 %v3664
        %v5477 = vunpack.c.l.b16 %v3665
        %v5478 = vunpack.c.h.b16 %v3665
        %v5479 = vunpack.c.l.b16 %v3666
        %v5480 = vunpack.c.h.b16 %v3666
        %v5481 = vunpack.c.l.b16 %v3667
        %v5482 = vunpack.c.h.b16 %v3667
        %v5483 = vunpack.c.l.b16 %v3668
        %v5484 = vunpack.c.h.b16 %v3668
        %v5485 = vunpack.c.l.b16 %v3669
        %v5486 = vunpack.c.h.b16 %v3669
        %v5487 = vunpack.c.l.b16 %v3670
        %v5488 = vunpack.c.h.b16 %v3670
        %v5489 = vunpack.c.l.b16 %v3671
        %v5490 = vunpack.c.h.b16 %v3671
        %v5491 = vunpack.c.l.b16 %v3672
        %v5492 = vunpack.c.h.b16 %v3672
        %v5493 = vunpack.c.l.b16 %v3673
        %v5494 = vunpack.c.h.b16 %v3673
        %v5495 = vunpack.c.l.b16 %v3674
        %v5496 = vunpack.c.h.b16 %v3674
        %v5497 = vunpack.c.l.b16 %v3675
        %v5498 = vunpack.c.h.b16 %v3675
        %v5499 = vunpack.c.l.b16 %v3676
        %v5500 = vunpack.c.h.b16 %v3676
        %v5501 = vunpack.c.l.b16 %v3677
        %v5502 = vunpack.c.h.b16 %v3677
        %v5503 = vunpack.c.l.b16 %v3678
        %v5504 = vunpack.c.h.b16 %v3678
        %v5505 = vunpack.c.l.b16 %v3679
        %v5506 = vunpack.c.h.b16 %v3679
        %v5507 = vunpack.c.l.b16 %v3680
        %v5508 = vunpack.c.h.b16 %v3680
        %v5509 = vunpack.c.l.b16 %v3681
        %v5510 = vunpack.c.h.b16 %v3681
        %v5511 = vunpack.c.l.b16 %v3682
        %v5512 = vunpack.c.h.b16 %v3682
        %v5513 = vunpack.c.l.b16 %v3683
        %v5514 = vunpack.c.h.b16 %v3683
        %v5515 = vunpack.c.l.b16 %v3684
        %v5516 = vunpack.c.h.b16 %v3684
        %v5517 = vunpack.c.l.b16 %v3685
        %v5518 = vunpack.c.h.b16 %v3685
        %v5519 = vunpack.c.l.b16 %v3686
        %v5520 = vunpack.c.h.b16 %v3686
        %v5521 = vunpack.c.l.b16 %v3687
        %v5522 = vunpack.c.h.b16 %v3687
        %v5523 = vunpack.c.l.b16 %v3688
        %v5524 = vunpack.c.h.b16 %v3688
        %v5525 = vunpack.c.l.b16 %v3689
        %v5526 = vunpack.c.h.b16 %v3689
        %v5527 = vunpack.c.l.b16 %v3690
        %v5528 = vunpack.c.h.b16 %v3690
        %v5529 = vunpack.c.l.b16 %v3691
        %v5530 = vunpack.c.h.b16 %v3691
        %v5531 = vunpack.c.l.b16 %v3692
        %v5532 = vunpack.c.h.b16 %v3692
        %v5533 = vunpack.c.l.b16 %v3693
        %v5534 = vunpack.c.h.b16 %v3693
        %v5535 = vunpack.c.l.b16 %v3694
        %v5536 = vunpack.c.h.b16 %v3694
        %v5537 = vunpack.c.l.b16 %v3695
        %v5538 = vunpack.c.h.b16 %v3695
        %v5539 = vunpack.c.l.b16 %v3696
        %v5540 = vunpack.c.h.b16 %v3696
        %v5541 = vunpack.c.l.b16 %v3697
        %v5542 = vunpack.c.h.b16 %v3697
        %v5543 = vunpack.c.l.b16 %v3698
        %v5544 = vunpack.c.h.b16 %v3698
        %v5545 = vunpack.c.l.b16 %v3699
        %v5546 = vunpack.c.h.b16 %v3699
        %v5547 = vunpack.c.l.b16 %v3700
        %v5548 = vunpack.c.h.b16 %v3700
        %v5549 = vunpack.c.l.b16 %v3701
        %v5550 = vunpack.c.h.b16 %v3701
        %v5551 = vunpack.c.l.b16 %v3702
        %v5552 = vunpack.c.h.b16 %v3702
        %v5553 = vunpack.c.l.b16 %v3703
        %v5554 = vunpack.c.h.b16 %v3703
        %v5555 = vunpack.c.l.b16 %v3704
        %v5556 = vunpack.c.h.b16 %v3704
        %v5557 = vunpack.c.l.b16 %v3705
        %v5558 = vunpack.c.h.b16 %v3705
        %v5559 = vunpack.c.l.b16 %v3706
        %v5560 = vunpack.c.h.b16 %v3706
        %v5561 = vunpack.c.l.b16 %v3707
        %v5562 = vunpack.c.h.b16 %v3707
        %v5563 = vunpack.c.l.b16 %v3708
        %v5564 = vunpack.c.h.b16 %v3708
        %v5565 = vunpack.c.l.b16 %v3709
        %v5566 = vunpack.c.h.b16 %v3709
        %v5567 = vunpack.c.l.b16 %v3710
        %v5568 = vunpack.c.h.b16 %v3710
        %v5569 = vunpack.c.l.b16 %v3711
        %v5570 = vunpack.c.h.b16 %v3711
        %v5571 = vunpack.c.l.b16 %v3712
        %v5572 = vunpack.c.h.b16 %v3712
        %v5573 = vunpack.c.l.b16 %v3713
        %v5574 = vunpack.c.h.b16 %v3713
        %v5575 = vunpack.c.l.b16 %v3714
        %v5576 = vunpack.c.h.b16 %v3714
        %v5577 = vunpack.c.l.b16 %v3715
        %v5578 = vunpack.c.h.b16 %v3715
        %v5579 = vunpack.c.l.b16 %v3716
        %v5580 = vunpack.c.h.b16 %v3716
        %v5581 = vunpack.c.l.b16 %v3717
        %v5582 = vunpack.c.h.b16 %v3717
        %v5583 = vunpack.c.l.b16 %v3718
        %v5584 = vunpack.c.h.b16 %v3718
        %v5585 = vunpack.c.l.b16 %v3719
        %v5586 = vunpack.c.h.b16 %v3719
        %v5587 = vunpack.c.l.b16 %v3720
        %v5588 = vunpack.c.h.b16 %v3720
        %v5589 = vunpack.c.l.b16 %v3721
        %v5590 = vunpack.c.h.b16 %v3721
        %v5591 = vunpack.c.l.b16 %v3722
        %v5592 = vunpack.c.h.b16 %v3722
        %v5593 = vunpack.c.l.b16 %v3723
        %v5594 = vunpack.c.h.b16 %v3723
        %v5595 = vunpack.c.l.b16 %v3724
        %v5596 = vunpack.c.h.b16 %v3724
        %v5597 = vunpack.c.l.b16 %v3725
        %v5598 = vunpack.c.h.b16 %v3725
        %v5599 = vunpack.c.l.b16 %v3726
        %v5600 = vunpack.c.h.b16 %v3726
        %v5601 = vunpack.c.l.b16 %v3727
        %v5602 = vunpack.c.h.b16 %v3727
        %v5603 = vunpack.c.l.b16 %v3728
        %v5604 = vunpack.c.h.b16 %v3728
        %v5605 = vunpack.c.l.b16 %v3729
        %v5606 = vunpack.c.h.b16 %v3729
        %v5607 = vunpack.c.l.b16 %v3730
        %v5608 = vunpack.c.h.b16 %v3730
        %v5609 = vunpack.c.l.b16 %v3731
        %v5610 = vunpack.c.h.b16 %v3731
        %v5611 = vunpack.c.l.b16 %v3732
        %v5612 = vunpack.c.h.b16 %v3732
        %v5613 = vunpack.c.l.b16 %v3733
        %v5614 = vunpack.c.h.b16 %v3733
        %v5615 = vunpack.c.l.b16 %v3734
        %v5616 = vunpack.c.h.b16 %v3734
        %v5617 = vunpack.c.l.b16 %v3735
        %v5618 = vunpack.c.h.b16 %v3735
        %v5619 = vunpack.c.l.b16 %v3736
        %v5620 = vunpack.c.h.b16 %v3736
        %v5621 = vunpack.c.l.b16 %v3737
        %v5622 = vunpack.c.h.b16 %v3737
        %v5623 = vunpack.c.l.b16 %v3738
        %v5624 = vunpack.c.h.b16 %v3738
        %v5625 = vunpack.c.l.b16 %v3739
        %v5626 = vunpack.c.h.b16 %v3739
        %v5627 = vunpack.c.l.b16 %v3740
        %v5628 = vunpack.c.h.b16 %v3740
        %v5629 = vunpack.c.l.b16 %v3741
        %v5630 = vunpack.c.h.b16 %v3741
        %v5631 = vunpack.c.l.b16 %v3742
        %v5632 = vunpack.c.h.b16 %v3742
        %v5633 = vunpack.c.l.b16 %v3743
        %v5634 = vunpack.c.h.b16 %v3743
        %v5635 = vunpack.c.l.b16 %v3744
        %v5636 = vunpack.c.h.b16 %v3744
        %v5637 = vunpack.c.l.b16 %v3745
        %v5638 = vunpack.c.h.b16 %v3745
        %v5639 = vunpack.c.l.b16 %v3746
        %v5640 = vunpack.c.h.b16 %v3746
        %v5641 = vunpack.c.l.b16 %v3747
        %v5642 = vunpack.c.h.b16 %v3747
        %v5643 = vunpack.c.l.b16 %v3748
        %v5644 = vunpack.c.h.b16 %v3748
        %v5645 = vunpack.c.l.b16 %v3749
        %v5646 = vunpack.c.h.b16 %v3749
        %v5647 = vunpack.c.l.b16 %v3750
        %v5648 = vunpack.c.h.b16 %v3750
        %v5649 = vunpack.c.l.b16 %v3751
        %v5650 = vunpack.c.h.b16 %v3751
        %v5651 = vunpack.c.l.b16 %v3752
        %v5652 = vunpack.c.h.b16 %v3752
        %v5653 = vunpack.c.l.b16 %v3753
        %v5654 = vunpack.c.h.b16 %v3753
        %v5655 = vunpack.c.l.b16 %v3754
        %v5656 = vunpack.c.h.b16 %v3754
        %v5657 = vunpack.c.l.b16 %v3755
        %v5658 = vunpack.c.h.b16 %v3755
        %v5659 = vunpack.c.l.b16 %v3756
        %v5660 = vunpack.c.h.b16 %v3756
        %v5661 = vunpack.c.l.b16 %v3757
        %v5662 = vunpack.c.h.b16 %v3757
        %v5663 = vunpack.c.l.b16 %v3758
        %v5664 = vunpack.c.h.b16 %v3758
        %v5665 = vunpack.c.l.b16 %v3759
        %v5666 = vunpack.c.h.b16 %v3759
        %v5667 = vunpack.c.l.b16 %v3760
        %v5668 = vunpack.c.h.b16 %v3760
        %v5669 = vunpack.c.l.b16 %v3761
        %v5670 = vunpack.c.h.b16 %v3761
        %v5671 = vunpack.c.l.b16 %v3762
        %v5672 = vunpack.c.h.b16 %v3762
        %v5673 = vunpack.c.l.b16 %v3763
        %v5674 = vunpack.c.h.b16 %v3763
        %v5675 = vunpack.c.l.b16 %v3764
        %v5676 = vunpack.c.h.b16 %v3764
        %v5677 = vunpack.c.l.b16 %v3765
        %v5678 = vunpack.c.h.b16 %v3765
        %v5679 = vunpack.c.l.b16 %v3766
        %v5680 = vunpack.c.h.b16 %v3766
        %v5681 = vunpack.c.l.b16 %v3767
        %v5682 = vunpack.c.h.b16 %v3767
        %v5683 = vunpack.c.l.b16 %v3768
        %v5684 = vunpack.c.h.b16 %v3768
        %v5685 = vunpack.c.l.b16 %v3769
        %v5686 = vunpack.c.h.b16 %v3769
        %v5687 = vunpack.c.l.b16 %v3770
        %v5688 = vunpack.c.h.b16 %v3770
        %v5689 = vunpack.c.l.b16 %v3771
        %v5690 = vunpack.c.h.b16 %v3771
        %v5691 = vunpack.c.l.b16 %v3772
        %v5692 = vunpack.c.h.b16 %v3772
        %v5693 = vunpack.c.l.b16 %v3773
        %v5694 = vunpack.c.h.b16 %v3773
        %v5695 = vunpack.c.l.b16 %v3774
        %v5696 = vunpack.c.h.b16 %v3774
        %v5697 = vunpack.c.l.b16 %v3775
        %v5698 = vunpack.c.h.b16 %v3775
        %v5699 = vunpack.c.l.b16 %v3776
        %v5700 = vunpack.c.h.b16 %v3776
        %v5701 = vunpack.c.l.b16 %v3777
        %v5702 = vunpack.c.h.b16 %v3777
        %v5703 = vunpack.c.l.b16 %v3778
        %v5704 = vunpack.c.h.b16 %v3778
        %v5705 = vunpack.c.l.b16 %v3779
        %v5706 = vunpack.c.h.b16 %v3779
        %v5707 = vunpack.c.l.b16 %v3780
        %v5708 = vunpack.c.h.b16 %v3780
        %v5709 = vunpack.c.l.b16 %v3781
        %v5710 = vunpack.c.h.b16 %v3781
        %v5711 = vunpack.c.l.b16 %v3782
        %v5712 = vunpack.c.h.b16 %v3782
        %v5713 = vunpack.c.l.b16 %v3783
        %v5714 = vunpack.c.h.b16 %v3783
        %v5715 = vunpack.c.l.b16 %v3784
        %v5716 = vunpack.c.h.b16 %v3784
        %v5717 = vunpack.c.l.b16 %v3785
        %v5718 = vunpack.c.h.b16 %v3785
        %v5719 = vunpack.c.l.b16 %v3786
        %v5720 = vunpack.c.h.b16 %v3786
        %v5721 = vunpack.c.l.b16 %v3787
        %v5722 = vunpack.c.h.b16 %v3787
        %v5723 = vunpack.c.l.b16 %v3788
        %v5724 = vunpack.c.h.b16 %v3788
        %v5725 = vunpack.c.l.b16 %v3789
        %v5726 = vunpack.c.h.b16 %v3789
        %v5727 = vunpack.c.l.b16 %v3790
        %v5728 = vunpack.c.h.b16 %v3790
        %v5729 = vunpack.c.l.b16 %v3791
        %v5730 = vunpack.c.h.b16 %v3791
        %v5731 = vunpack.c.l.b16 %v3792
        %v5732 = vunpack.c.h.b16 %v3792
        %v5733 = vunpack.c.l.b16 %v3793
        %v5734 = vunpack.c.h.b16 %v3793
        %v5735 = vunpack.c.l.b16 %v3794
        %v5736 = vunpack.c.h.b16 %v3794
        %v5737 = vunpack.c.l.b16 %v3795
        %v5738 = vunpack.c.h.b16 %v3795
        %v5739 = vunpack.c.l.b16 %v3796
        %v5740 = vunpack.c.h.b16 %v3796
        %v5741 = vunpack.c.l.b16 %v3797
        %v5742 = vunpack.c.h.b16 %v3797
        %v5743 = vunpack.c.l.b16 %v3798
        %v5744 = vunpack.c.h.b16 %v3798
        %v5745 = vunpack.c.l.b16 %v3799
        %v5746 = vunpack.c.h.b16 %v3799
        %v5747 = vunpack.c.l.b16 %v3800
        %v5748 = vunpack.c.h.b16 %v3800
        %v5749 = vunpack.c.l.b16 %v3801
        %v5750 = vunpack.c.h.b16 %v3801
        %v5751 = vunpack.c.l.b16 %v3802
        %v5752 = vunpack.c.h.b16 %v3802
        %v5753 = vunpack.c.l.b16 %v3803
        %v5754 = vunpack.c.h.b16 %v3803
        %v5755 = vunpack.c.l.b16 %v3804
        %v5756 = vunpack.c.h.b16 %v3804
        %v5757 = vunpack.c.l.b16 %v3805
        %v5758 = vunpack.c.h.b16 %v3805
        %v5759 = vunpack.c.l.b16 %v3806
        %v5760 = vunpack.c.h.b16 %v3806
        %v5761 = vunpack.c.l.b16 %v3807
        %v5762 = vunpack.c.h.b16 %v3807
        %v5763 = vunpack.c.l.b16 %v3808
        %v5764 = vunpack.c.h.b16 %v3808
        %v5765 = vunpack.c.l.b16 %v3809
        %v5766 = vunpack.c.h.b16 %v3809
        %v5767 = vunpack.c.l.b16 %v3810
        %v5768 = vunpack.c.h.b16 %v3810
        %v5769 = vunpack.c.l.b16 %v3811
        %v5770 = vunpack.c.h.b16 %v3811
        %v5771 = vunpack.c.l.b16 %v3812
        %v5772 = vunpack.c.h.b16 %v3812
        %v5773 = vunpack.c.l.b16 %v3813
        %v5774 = vunpack.c.h.b16 %v3813
        %v5775 = vunpack.c.l.b16 %v3814
        %v5776 = vunpack.c.h.b16 %v3814
        %v5777 = vunpack.c.l.b16 %v3815
        %v5778 = vunpack.c.h.b16 %v3815
        %v5779 = vunpack.c.l.b16 %v3816
        %v5780 = vunpack.c.h.b16 %v3816
        %v5781 = vunpack.c.l.b16 %v3817
        %v5782 = vunpack.c.h.b16 %v3817
        %v5783 = vunpack.c.l.b16 %v3818
        %v5784 = vunpack.c.h.b16 %v3818
        %v5785 = vunpack.c.l.b16 %v3819
        %v5786 = vunpack.c.h.b16 %v3819
        %v5787 = vunpack.c.l.b16 %v3820
        %v5788 = vunpack.c.h.b16 %v3820
        %v5789 = vunpack.c.l.b16 %v3821
        %v5790 = vunpack.c.h.b16 %v3821
        %v5791 = vunpack.c.l.b16 %v3822
        %v5792 = vunpack.c.h.b16 %v3822
        %v5793 = vunpack.c.l.b16 %v3823
        %v5794 = vunpack.c.h.b16 %v3823
        %v5795 = vunpack.c.l.b16 %v3824
        %v5796 = vunpack.c.h.b16 %v3824
        %v5797 = vunpack.c.l.b16 %v3825
        %v5798 = vunpack.c.h.b16 %v3825
        %v5799 = vunpack.c.l.b16 %v3826
        %v5800 = vunpack.c.h.b16 %v3826
        %v5801 = vpack.c.b16 %v5423, %v5417
        %v5802 = vpack.c.b16 %v5424, %v5418
        %v5803 = vpack.c.b16 %v5425, %v5419
        %v5804 = vpack.c.b16 %v5426, %v5420
        %v5805 = vpack.c.b16 %v5427, %v5421
        %v5806 = vpack.c.b16 %v5428, %v5422
        %v5807 = vpack.c.b16 %v5435, %v5429
        %v5808 = vpack.c.b16 %v5436, %v5430
        %v5809 = vpack.c.b16 %v5437, %v5431
        %v5810 = vpack.c.b16 %v5438, %v5432
        %v5811 = vpack.c.b16 %v5439, %v5433
        %v5812 = vpack.c.b16 %v5440, %v5434
        %v5813 = vpack.c.b16 %v5447, %v5441
        %v5814 = vpack.c.b16 %v5448, %v5442
        %v5815 = vpack.c.b16 %v5449, %v5443
        %v5816 = vpack.c.b16 %v5450, %v5444
        %v5817 = vpack.c.b16 %v5451, %v5445
        %v5818 = vpack.c.b16 %v5452, %v5446
        %v5819 = vpack.c.b16 %v5459, %v5453
        %v5820 = vpack.c.b16 %v5460, %v5454
        %v5821 = vpack.c.b16 %v5461, %v5455
        %v5822 = vpack.c.b16 %v5462, %v5456
        %v5823 = vpack.c.b16 %v5463, %v5457
        %v5824 = vpack.c.b16 %v5464, %v5458
        %v5825 = vpack.c.b16 %v5471, %v5465
        %v5826 = vpack.c.b16 %v5472, %v5466
        %v5827 = vpack.c.b16 %v5473, %v5467
        %v5828 = vpack.c.b16 %v5474, %v5468
        %v5829 = vpack.c.b16 %v5475, %v5469
        %v5830 = vpack.c.b16 %v5476, %v5470
        %v5831 = vpack.c.b16 %v5483, %v5477
        %v5832 = vpack.c.b16 %v5484, %v5478
        %v5833 = vpack.c.b16 %v5485, %v5479
        %v5834 = vpack.c.b16 %v5486, %v5480
        %v5835 = vpack.c.b16 %v5487, %v5481
        %v5836 = vpack.c.b16 %v5488, %v5482
        %v5837 = vpack.c.b16 %v5495, %v5489
        %v5838 = vpack.c.b16 %v5496, %v5490
        %v5839 = vpack.c.b16 %v5497, %v5491
        %v5840 = vpack.c.b16 %v5498, %v5492
        %v5841 = vpack.c.b16 %v5499, %v5493
        %v5842 = vpack.c.b16 %v5500, %v5494
        %v5843 = vpack.c.b16 %v5507, %v5501
        %v5844 = vpack.c.b16 %v5508, %v5502
        %v5845 = vpack.c.b16 %v5509, %v5503
        %v5846 = vpack.c.b16 %v5510, %v5504
        %v5847 = vpack.c.b16 %v5511, %v5505
        %v5848 = vpack.c.b16 %v5512, %v5506
        %v5849 = vpack.c.b16 %v5519, %v5513
        %v5850 = vpack.c.b16 %v5520, %v5514
        %v5851 = vpack.c.b16 %v5521, %v5515
        %v5852 = vpack.c.b16 %v5522, %v5516
        %v5853 = vpack.c.b16 %v5523, %v5517
        %v5854 = vpack.c.b16 %v5524, %v5518
        %v5855 = vpack.c.b16 %v5531, %v5525
        %v5856 = vpack.c.b16 %v5532, %v5526
        %v5857 = vpack.c.b16 %v5533, %v5527
        %v5858 = vpack.c.b16 %v5534, %v5528
        %v5859 = vpack.c.b16 %v5535, %v5529
        %v5860 = vpack.c.b16 %v5536, %v5530
        %v5861 = vpack.c.b16 %v5543, %v5537
        %v5862 = vpack.c.b16 %v5544, %v5538
        %v5863 = vpack.c.b16 %v5545, %v5539
        %v5864 = vpack.c.b16 %v5546, %v5540
        %v5865 = vpack.c.b16 %v5547, %v5541
        %v5866 = vpack.c.b16 %v5548, %v5542
        %v5867 = vpack.c.b16 %v5555, %v5549
        %v5868 = vpack.c.b16 %v5556, %v5550
        %v5869 = vpack.c.b16 %v5557, %v5551
        %v5870 = vpack.c.b16 %v5558, %v5552
        %v5871 = vpack.c.b16 %v5559, %v5553
        %v5872 = vpack.c.b16 %v5560, %v5554
        %v5873 = vpack.c.b16 %v5567, %v5561
        %v5874 = vpack.c.b16 %v5568, %v5562
        %v5875 = vpack.c.b16 %v5569, %v5563
        %v5876 = vpack.c.b16 %v5570, %v5564
        %v5877 = vpack.c.b16 %v5571, %v5565
        %v5878 = vpack.c.b16 %v5572, %v5566
        %v5879 = vpack.c.b16 %v5579, %v5573
        %v5880 = vpack.c.b16 %v5580, %v5574
        %v5881 = vpack.c.b16 %v5581, %v5575
        %v5882 = vpack.c.b16 %v5582, %v5576
        %v5883 = vpack.c.b16 %v5583, %v5577
        %v5884 = vpack.c.b16 %v5584, %v5578
        %v5885 = vpack.c.b16 %v5591, %v5585
        %v5886 = vpack.c.b16 %v5592, %v5586
        %v5887 = vpack.c.b16 %v5593, %v5587
        %v5888 = vpack.c.b16 %v5594, %v5588
        %v5889 = vpack.c.b16 %v5595, %v5589
        %v5890 = vpack.c.b16 %v5596, %v5590
        %v5891 = vpack.c.b16 %v5603, %v5597
        %v5892 = vpack.c.b16 %v5604, %v5598
        %v5893 = vpack.c.b16 %v5605, %v5599
        %v5894 = vpack.c.b16 %v5606, %v5600
        %v5895 = vpack.c.b16 %v5607, %v5601
        %v5896 = vpack.c.b16 %v5608, %v5602
        %v5897 = vpack.c.b16 %v5615, %v5609
        %v5898 = vpack.c.b16 %v5616, %v5610
        %v5899 = vpack.c.b16 %v5617, %v5611
        %v5900 = vpack.c.b16 %v5618, %v5612
        %v5901 = vpack.c.b16 %v5619, %v5613
        %v5902 = vpack.c.b16 %v5620, %v5614
        %v5903 = vpack.c.b16 %v5627, %v5621
        %v5904 = vpack.c.b16 %v5628, %v5622
        %v5905 = vpack.c.b16 %v5629, %v5623
        %v5906 = vpack.c.b16 %v5630, %v5624
        %v5907 = vpack.c.b16 %v5631, %v5625
        %v5908 = vpack.c.b16 %v5632, %v5626
        %v5909 = vpack.c.b16 %v5639, %v5633
        %v5910 = vpack.c.b16 %v5640, %v5634
        %v5911 = vpack.c.b16 %v5641, %v5635
        %v5912 = vpack.c.b16 %v5642, %v5636
        %v5913 = vpack.c.b16 %v5643, %v5637
        %v5914 = vpack.c.b16 %v5644, %v5638
        %v5915 = vpack.c.b16 %v5651, %v5645
        %v5916 = vpack.c.b16 %v5652, %v5646
        %v5917 = vpack.c.b16 %v5653, %v5647
        %v5918 = vpack.c.b16 %v5654, %v5648
        %v5919 = vpack.c.b16 %v5655, %v5649
        %v5920 = vpack.c.b16 %v5656, %v5650
        %v5921 = vpack.c.b16 %v5663, %v5657
        %v5922 = vpack.c.b16 %v5664, %v5658
        %v5923 = vpack.c.b16 %v5665, %v5659
        %v5924 = vpack.c.b16 %v5666, %v5660
        %v5925 = vpack.c.b16 %v5667, %v5661
        %v5926 = vpack.c.b16 %v5668, %v5662
        %v5927 = vpack.c.b16 %v5675, %v5669
        %v5928 = vpack.c.b16 %v5676, %v5670
        %v5929 = vpack.c.b16 %v5677, %v5671
        %v5930 = vpack.c.b16 %v5678, %v5672
        %v5931 = vpack.c.b16 %v5679, %v5673
        %v5932 = vpack.c.b16 %v5680, %v5674
        %v5933 = vpack.c.b16 %v5687, %v5681
        %v5934 = vpack.c.b16 %v5688, %v5682
        %v5935 = vpack.c.b16 %v5689, %v5683
        %v5936 = vpack.c.b16 %v5690, %v5684
        %v5937 = vpack.c.b16 %v5691, %v5685
        %v5938 = vpack.c.b16 %v5692, %v5686
        %v5939 = vpack.c.b16 %v5699, %v5693
        %v5940 = vpack.c.b16 %v5700, %v5694
        %v5941 = vpack.c.b16 %v5701, %v5695
        %v5942 = vpack.c.b16 %v5702, %v5696
        %v5943 = vpack.c.b16 %v5703, %v5697
        %v5944 = vpack.c.b16 %v5704, %v5698
        %v5945 = vpack.c.b16 %v5711, %v5705
        %v5946 = vpack.c.b16 %v5712, %v5706
        %v5947 = vpack.c.b16 %v5713, %v5707
        %v5948 = vpack.c.b16 %v5714, %v5708
        %v5949 = vpack.c.b16 %v5715, %v5709
        %v5950 = vpack.c.b16 %v5716, %v5710
        %v5951 = vpack.c.b16 %v5723, %v5717
        %v5952 = vpack.c.b16 %v5724, %v5718
        %v5953 = vpack.c.b16 %v5725, %v5719
        %v5954 = vpack.c.b16 %v5726, %v5720
        %v5955 = vpack.c.b16 %v5727, %v5721
        %v5956 = vpack.c.b16 %v5728, %v5722
        %v5957 = vpack.c.b16 %v5735, %v5729
        %v5958 = vpack.c.b16 %v5736, %v5730
        %v5959 = vpack.c.b16 %v5737, %v5731
        %v5960 = vpack.c.b16 %v5738, %v5732
        %v5961 = vpack.c.b16 %v5739, %v5733
        %v5962 = vpack.c.b16 %v5740, %v5734
        %v5963 = vpack.c.b16 %v5747, %v5741
        %v5964 = vpack.c.b16 %v5748, %v5742
        %v5965 = vpack.c.b16 %v5749, %v5743
        %v5966 = vpack.c.b16 %v5750, %v5744
        %v5967 = vpack.c.b16 %v5751, %v5745
        %v5968 = vpack.c.b16 %v5752, %v5746
        %v5969 = vpack.c.b16 %v5759, %v5753
        %v5970 = vpack.c.b16 %v5760, %v5754
        %v5971 = vpack.c.b16 %v5761, %v5755
        %v5972 = vpack.c.b16 %v5762, %v5756
        %v5973 = vpack.c.b16 %v5763, %v5757
        %v5974 = vpack.c.b16 %v5764, %v5758
        %v5975 = vpack.c.b16 %v5771, %v5765
        %v5976 = vpack.c.b16 %v5772, %v5766
        %v5977 = vpack.c.b16 %v5773, %v5767
        %v5978 = vpack.c.b16 %v5774, %v5768
        %v5979 = vpack.c.b16 %v5775, %v5769
        %v5980 = vpack.c.b16 %v5776, %v5770
        %v5981 = vpack.c.b16 %v5783, %v5777
        %v5982 = vpack.c.b16 %v5784, %v5778
        %v5983 = vpack.c.b16 %v5785, %v5779
        %v5984 = vpack.c.b16 %v5786, %v5780
        %v5985 = vpack.c.b16 %v5787, %v5781
        %v5986 = vpack.c.b16 %v5788, %v5782
        %v5987 = vpack.c.b16 %v5795, %v5789
        %v5988 = vpack.c.b16 %v5796, %v5790
        %v5989 = vpack.c.b16 %v5797, %v5791
        %v5990 = vpack.c.b16 %v5798, %v5792
        %v5991 = vpack.c.b16 %v5799, %v5793
        %v5992 = vpack.c.b16 %v5800, %v5794
        %6185 = vmatprep.subr.bf16.mxu0 %v5802
        %6186 = vmatpush1.bf16.msra.mxu0 %v5801
        %6187 = vmatprep.subr.bf16.mxu0 %v5808
        %6188 = vmatpush1.bf16.msra.mxu0 %v5807
        %6189 = vmatprep.subr.bf16.mxu0 %v5814
        %6190 = vmatpush1.bf16.msra.mxu0 %v5813
        %6191 = vmatprep.subr.bf16.mxu0 %v5820
        %6192 = vmatpush1.bf16.msra.mxu0 %v5819
        %6193 = vmatprep.subr.bf16.mxu0 %v5826
        %6194 = vmatpush1.bf16.msra.mxu0 %v5825
        %6195 = vmatprep.subr.bf16.mxu0 %v5832
        %6196 = vmatpush1.bf16.msra.mxu0 %v5831
        %6197 = vmatprep.subr.bf16.mxu0 %v5838
        %6198 = vmatpush1.bf16.msra.mxu0 %v5837
        %6199 = vmatprep.subr.bf16.mxu0 %v5844
        %6200 = vmatpush1.bf16.msra.mxu0 %v5843
        %6201 = vmatprep.subr.bf16.mxu0 %v5850
        %6202 = vmatpush1.bf16.msra.mxu0 %v5849
        %6203 = vmatprep.subr.bf16.mxu0 %v5856
        %6204 = vmatpush1.bf16.msra.mxu0 %v5855
        %6205 = vmatprep.subr.bf16.mxu0 %v5862
        %6206 = vmatpush1.bf16.msra.mxu0 %v5861
        %6207 = vmatprep.subr.bf16.mxu0 %v5868
        %6208 = vmatpush1.bf16.msra.mxu0 %v5867
        %6209 = vmatprep.subr.bf16.mxu0 %v5874
        %6210 = vmatpush1.bf16.msra.mxu0 %v5873
        %6211 = vmatprep.subr.bf16.mxu0 %v5880
        %6212 = vmatpush1.bf16.msra.mxu0 %v5879
        %6213 = vmatprep.subr.bf16.mxu0 %v5886
        %6214 = vmatpush1.bf16.msra.mxu0 %v5885
        %6215 = vmatprep.subr.bf16.mxu0 %v5892
        %6216 = vmatpush1.bf16.msra.mxu0 %v5891
        %6217 = vmatprep.mubr.bf16.mxu0 %v3632
        %6218 = vmatmul.mubr.bf16.gmra.mrb[0].mxu0 %v3631
        %v6219 = vpop.f32.mrb[0].mxu0
        %v6220 = vadd.f32 %v5055, %v6219
        %v6221 = vpop.f32.mrb[0].mxu0
        %v6222 = vadd.f32 %v5057, %v6221
        %v6223 = vpop.f32.mrb[0].mxu0
        %v6224 = vpop.f32.mrb[0].mxu0
        %6225 = vdwg.mxu0
        %6226 = vmatprep.subr.bf16.mxu0 %v5898
        %6227 = vmatpush1.bf16.msra.mxu0 %v5897
        %6228 = vmatprep.subr.bf16.mxu0 %v5904
        %6229 = vmatpush1.bf16.msra.mxu0 %v5903
        %6230 = vmatprep.subr.bf16.mxu0 %v5910
        %6231 = vmatpush1.bf16.msra.mxu0 %v5909
        %6232 = vmatprep.subr.bf16.mxu0 %v5916
        %6233 = vmatpush1.bf16.msra.mxu0 %v5915
        %6234 = vmatprep.subr.bf16.mxu0 %v5922
        %6235 = vmatpush1.bf16.msra.mxu0 %v5921
        %6236 = vmatprep.subr.bf16.mxu0 %v5928
        %6237 = vmatpush1.bf16.msra.mxu0 %v5927
        %6238 = vmatprep.subr.bf16.mxu0 %v5934
        %6239 = vmatpush1.bf16.msra.mxu0 %v5933
        %6240 = vmatprep.subr.bf16.mxu0 %v5940
        %6241 = vmatpush1.bf16.msra.mxu0 %v5939
        %6242 = vmatprep.subr.bf16.mxu0 %v5946
        %6243 = vmatpush1.bf16.msra.mxu0 %v5945
        %6244 = vmatprep.subr.bf16.mxu0 %v5952
        %6245 = vmatpush1.bf16.msra.mxu0 %v5951
        %6246 = vmatprep.subr.bf16.mxu0 %v5958
        %6247 = vmatpush1.bf16.msra.mxu0 %v5957
        %6248 = vmatprep.subr.bf16.mxu0 %v5964
        %6249 = vmatpush1.bf16.msra.mxu0 %v5963
        %6250 = vmatprep.subr.bf16.mxu0 %v5970
        %6251 = vmatpush1.bf16.msra.mxu0 %v5969
        %6252 = vmatprep.subr.bf16.mxu0 %v5976
        %6253 = vmatpush1.bf16.msra.mxu0 %v5975
        %6254 = vmatprep.subr.bf16.mxu0 %v5982
        %6255 = vmatpush1.bf16.msra.mxu0 %v5981
        %6256 = vmatprep.subr.bf16.mxu0 %v5988
        %6257 = vmatpush1.bf16.msra.mxu0 %v5987
        %6258 = vmatprep.mubr.bf16.mxu0 %v3634
        %6259 = vmatmul.mubr.bf16.gmra.mrb[0].mxu0 %v3633
        %v6260 = vpop.f32.mrb[0].mxu0
        %v6261 = vadd.f32 %v6220, %v6260
        %v6262 = vpop.f32.mrb[0].mxu0
        %v6263 = vadd.f32 %v6222, %v6262
        %v6264 = vpop.f32.mrb[0].mxu0
        %v6265 = vpop.f32.mrb[0].mxu0
        %6266 = vdwg.mxu0
        %6267 = vmatprep.subr.bf16.mxu0 %v5804
        %6268 = vmatpush1.bf16.msra.mxu0 %v5803
        %6269 = vmatprep.subr.bf16.mxu0 %v5810
        %6270 = vmatpush1.bf16.msra.mxu0 %v5809
        %6271 = vmatprep.subr.bf16.mxu0 %v5816
        %6272 = vmatpush1.bf16.msra.mxu0 %v5815
        %6273 = vmatprep.subr.bf16.mxu0 %v5822
        %6274 = vmatpush1.bf16.msra.mxu0 %v5821
        %6275 = vmatprep.subr.bf16.mxu0 %v5828
        %6276 = vmatpush1.bf16.msra.mxu0 %v5827
        %6277 = vmatprep.subr.bf16.mxu0 %v5834
        %6278 = vmatpush1.bf16.msra.mxu0 %v5833
        %6279 = vmatprep.subr.bf16.mxu0 %v5840
        %6280 = vmatpush1.bf16.msra.mxu0 %v5839
        %6281 = vmatprep.subr.bf16.mxu0 %v5846
        %6282 = vmatpush1.bf16.msra.mxu0 %v5845
        %6283 = vmatprep.subr.bf16.mxu0 %v5852
        %6284 = vmatpush1.bf16.msra.mxu0 %v5851
        %6285 = vmatprep.subr.bf16.mxu0 %v5858
        %6286 = vmatpush1.bf16.msra.mxu0 %v5857
        %6287 = vmatprep.subr.bf16.mxu0 %v5864
        %6288 = vmatpush1.bf16.msra.mxu0 %v5863
        %6289 = vmatprep.subr.bf16.mxu0 %v5870
        %6290 = vmatpush1.bf16.msra.mxu0 %v5869
        %6291 = vmatprep.subr.bf16.mxu0 %v5876
        %6292 = vmatpush1.bf16.msra.mxu0 %v5875
        %6293 = vmatprep.subr.bf16.mxu0 %v5882
        %6294 = vmatpush1.bf16.msra.mxu0 %v5881
        %6295 = vmatprep.subr.bf16.mxu0 %v5888
        %6296 = vmatpush1.bf16.msra.mxu0 %v5887
        %6297 = vmatprep.subr.bf16.mxu0 %v5894
        %6298 = vmatpush1.bf16.msra.mxu0 %v5893
        %6299 = vmatprep.mubr.bf16.mxu0 %v3632
        %6300 = vmatmul.mubr.bf16.gmra.mrb[0].mxu0 %v3631
        %v6301 = vpop.f32.mrb[0].mxu0
        %v6302 = vadd.f32 %v5137, %v6301
        %v6303 = vpop.f32.mrb[0].mxu0
        %v6304 = vadd.f32 %v5139, %v6303
        %v6305 = vpop.f32.mrb[0].mxu0
        %v6306 = vpop.f32.mrb[0].mxu0
        %6307 = vdwg.mxu0
        %6308 = vmatprep.subr.bf16.mxu0 %v5900
        %6309 = vmatpush1.bf16.msra.mxu0 %v5899
        %6310 = vmatprep.subr.bf16.mxu0 %v5906
        %6311 = vmatpush1.bf16.msra.mxu0 %v5905
        %6312 = vmatprep.subr.bf16.mxu0 %v5912
        %6313 = vmatpush1.bf16.msra.mxu0 %v5911
        %6314 = vmatprep.subr.bf16.mxu0 %v5918
        %6315 = vmatpush1.bf16.msra.mxu0 %v5917
        %6316 = vmatprep.subr.bf16.mxu0 %v5924
        %6317 = vmatpush1.bf16.msra.mxu0 %v5923
        %6318 = vmatprep.subr.bf16.mxu0 %v5930
        %6319 = vmatpush1.bf16.msra.mxu0 %v5929
        %6320 = vmatprep.subr.bf16.mxu0 %v5936
        %6321 = vmatpush1.bf16.msra.mxu0 %v5935
        %6322 = vmatprep.subr.bf16.mxu0 %v5942
        %6323 = vmatpush1.bf16.msra.mxu0 %v5941
        %6324 = vmatprep.subr.bf16.mxu0 %v5948
        %6325 = vmatpush1.bf16.msra.mxu0 %v5947
        %6326 = vmatprep.subr.bf16.mxu0 %v5954
        %6327 = vmatpush1.bf16.msra.mxu0 %v5953
        %6328 = vmatprep.subr.bf16.mxu0 %v5960
        %6329 = vmatpush1.bf16.msra.mxu0 %v5959
        %6330 = vmatprep.subr.bf16.mxu0 %v5966
        %6331 = vmatpush1.bf16.msra.mxu0 %v5965
        %6332 = vmatprep.subr.bf16.mxu0 %v5972
        %6333 = vmatpush1.bf16.msra.mxu0 %v5971
        %6334 = vmatprep.subr.bf16.mxu0 %v5978
        %6335 = vmatpush1.bf16.msra.mxu0 %v5977
        %6336 = vmatprep.subr.bf16.mxu0 %v5984
        %6337 = vmatpush1.bf16.msra.mxu0 %v5983
        %6338 = vmatprep.subr.bf16.mxu0 %v5990
        %6339 = vmatpush1.bf16.msra.mxu0 %v5989
        %6340 = vmatprep.mubr.bf16.mxu0 %v3634
        %6341 = vmatmul.mubr.bf16.gmra.mrb[0].mxu0 %v3633
        %v6342 = vpop.f32.mrb[0].mxu0
        %v6343 = vadd.f32 %v6302, %v6342
        %v6344 = vpop.f32.mrb[0].mxu0
        %v6345 = vadd.f32 %v6304, %v6344
        %v6346 = vpop.f32.mrb[0].mxu0
        %v6347 = vpop.f32.mrb[0].mxu0
        %6348 = vdwg.mxu0
        %6349 = vmatprep.subr.bf16.mxu0 %v5806
        %6350 = vmatpush1.bf16.msra.mxu0 %v5805
        %6351 = vmatprep.subr.bf16.mxu0 %v5812
        %6352 = vmatpush1.bf16.msra.mxu0 %v5811
        %6353 = vmatprep.subr.bf16.mxu0 %v5818
        %6354 = vmatpush1.bf16.msra.mxu0 %v5817
        %6355 = vmatprep.subr.bf16.mxu0 %v5824
        %6356 = vmatpush1.bf16.msra.mxu0 %v5823
        %6357 = vmatprep.subr.bf16.mxu0 %v5830
        %6358 = vmatpush1.bf16.msra.mxu0 %v5829
        %6359 = vmatprep.subr.bf16.mxu0 %v5836
        %6360 = vmatpush1.bf16.msra.mxu0 %v5835
        %6361 = vmatprep.subr.bf16.mxu0 %v5842
        %6362 = vmatpush1.bf16.msra.mxu0 %v5841
        %6363 = vmatprep.subr.bf16.mxu0 %v5848
        %6364 = vmatpush1.bf16.msra.mxu0 %v5847
        %6365 = vmatprep.subr.bf16.mxu0 %v5854
        %6366 = vmatpush1.bf16.msra.mxu0 %v5853
        %6367 = vmatprep.subr.bf16.mxu0 %v5860
        %6368 = vmatpush1.bf16.msra.mxu0 %v5859
        %6369 = vmatprep.subr.bf16.mxu0 %v5866
        %6370 = vmatpush1.bf16.msra.mxu0 %v5865
        %6371 = vmatprep.subr.bf16.mxu0 %v5872
        %6372 = vmatpush1.bf16.msra.mxu0 %v5871
        %6373 = vmatprep.subr.bf16.mxu0 %v5878
        %6374 = vmatpush1.bf16.msra.mxu0 %v5877
        %6375 = vmatprep.subr.bf16.mxu0 %v5884
        %6376 = vmatpush1.bf16.msra.mxu0 %v5883
        %6377 = vmatprep.subr.bf16.mxu0 %v5890
        %6378 = vmatpush1.bf16.msra.mxu0 %v5889
        %6379 = vmatprep.subr.bf16.mxu0 %v5896
        %6380 = vmatpush1.bf16.msra.mxu0 %v5895
        %6381 = vmatprep.mubr.bf16.mxu0 %v3632
        %6382 = vmatmul.mubr.bf16.gmra.mrb[0].mxu0 %v3631
        %v6383 = vpop.f32.mrb[0].mxu0
        %v6384 = vadd.f32 %v5219, %v6383
        %v6385 = vpop.f32.mrb[0].mxu0
        %v6386 = vadd.f32 %v5221, %v6385
        %v6387 = vpop.f32.mrb[0].mxu0
        %v6388 = vpop.f32.mrb[0].mxu0
        %6389 = vdwg.mxu0
        %6390 = vmatprep.subr.bf16.mxu0 %v5902
        %6391 = vmatpush1.bf16.msra.mxu0 %v5901
        %6392 = vmatprep.subr.bf16.mxu0 %v5908
        %6393 = vmatpush1.bf16.msra.mxu0 %v5907
        %6394 = vmatprep.subr.bf16.mxu0 %v5914
        %6395 = vmatpush1.bf16.msra.mxu0 %v5913
        %6396 = vmatprep.subr.bf16.mxu0 %v5920
        %6397 = vmatpush1.bf16.msra.mxu0 %v5919
        %6398 = vmatprep.subr.bf16.mxu0 %v5926
        %6399 = vmatpush1.bf16.msra.mxu0 %v5925
        %6400 = vmatprep.subr.bf16.mxu0 %v5932
        %6401 = vmatpush1.bf16.msra.mxu0 %v5931
        %6402 = vmatprep.subr.bf16.mxu0 %v5938
        %6403 = vmatpush1.bf16.msra.mxu0 %v5937
        %6404 = vmatprep.subr.bf16.mxu0 %v5944
        %6405 = vmatpush1.bf16.msra.mxu0 %v5943
        %6406 = vmatprep.subr.bf16.mxu0 %v5950
        %6407 = vmatpush1.bf16.msra.mxu0 %v5949
        %6408 = vmatprep.subr.bf16.mxu0 %v5956
        %6409 = vmatpush1.bf16.msra.mxu0 %v5955
        %6410 = vmatprep.subr.bf16.mxu0 %v5962
        %6411 = vmatpush1.bf16.msra.mxu0 %v5961
        %6412 = vmatprep.subr.bf16.mxu0 %v5968
        %6413 = vmatpush1.bf16.msra.mxu0 %v5967
        %6414 = vmatprep.subr.bf16.mxu0 %v5974
        %6415 = vmatpush1.bf16.msra.mxu0 %v5973
        %6416 = vmatprep.subr.bf16.mxu0 %v5980
        %6417 = vmatpush1.bf16.msra.mxu0 %v5979
        %6418 = vmatprep.subr.bf16.mxu0 %v5986
        %6419 = vmatpush1.bf16.msra.mxu0 %v5985
        %6420 = vmatprep.subr.bf16.mxu0 %v5992
        %6421 = vmatpush1.bf16.msra.mxu0 %v5991
        %6422 = vmatprep.mubr.bf16.mxu0 %v3634
        %6423 = vmatmul.mubr.bf16.gmra.mrb[0].mxu0 %v3633
        %v6424 = vpop.f32.mrb[0].mxu0
        %v6425 = vadd.f32 %v6384, %v6424
        %v6426 = vpop.f32.mrb[0].mxu0
        %v6427 = vadd.f32 %v6386, %v6426
        %v6428 = vpop.f32.mrb[0].mxu0
        %v6429 = vpop.f32.mrb[0].mxu0
        %6430 = vdwg.mxu0
        %v6431 = vtanh.pop %v6261
        %v6432 = vtanh.pop %v6263
        %v6433 = vtanh.pop %v6343
        %v6434 = vtanh.pop %v6345
        %v6435 = vtanh.pop %v6425
        %v6436 = vtanh.pop %v6427
        %6437 = vst [vmem:[%s464] sm:$0xff] %v6431
        %6438 = vst [vmem:[%s464 + $0x8] sm:$0xff] %v6432
        %6439 = vst [vmem:[%s464 + $0x10] sm:$0xff] %v6433
        %6440 = vst [vmem:[%s464 + $0x18] sm:$0xff] %v6434
        %6441 = vst [vmem:[%s464 + $0x20] sm:$0xff] %v6435
        %6442 = vst [vmem:[%s464 + $0x28] sm:$0xff] %v6436
        %s6443 = sand.u32 %s232, 1
        %s6444 = scalar_lea.sflag [#allocation4], %s6443
        %s6445 = sand.u32 %s232, 1
        %s6446 = smul.addr %s6445, 48
        %s6447 = scalar_lea.vmem [#allocation17], %s6446
        // Predicated region
        $region93: #{tpu_custom_call.1} parent=55 // pred_check
          %p6448 = pneg %p242
        $region94: #{tpu_custom_call.1} parent=55 // pred_check_branch
          %6450 = sbr.rel (%p6448) target = $region96
        $region95: #{tpu_custom_call.1} parent=55 // pred_region
          %s6452 = ssub.s32 768, 768
          %6453 = vsyncadd %s6444, %s6452
          %s6454 = smul.addr %s30, 6
          %s6455 = smul.addr %s6454, 128
          %s6456 = scalar_lea.hbm %s9, %s6455
          %s6458 = sshll.u32 %s6447, 4
          %s6459 = int_to_ptr.vmem [resolvable:$true] %s6458
          %6461 = dma.vmem_to_hbm [thread:$0]  %s6459, 768, %s6456, %s6444
        $region96: #{tpu_custom_call.1} parent=55 // pred_fallthru
          _
      $region56: #{tpu_custom_call.1} parent=5 // pred_fallthru
        _
      %p6462 = scmp.le.s32.totalorder 2, %s25
      // Predicated region
      $region97: #{tpu_custom_call.1} parent=5 // pred_check
        %p6463 = pneg %p6462
      $region98: #{tpu_custom_call.1} parent=5 // pred_check_branch
        %6465 = sbr.rel (%p6463) target = $region100
      $region99: #{tpu_custom_call.1} parent=5 // pred_region
        %s6466 = ssub.s32 %s25, 2
        // Predicated region
        $region101: #{tpu_custom_call.1} parent=99 // pred_check
          %p6467 = pneg %p248
        $region102: #{tpu_custom_call.1} parent=99 // pred_check_branch
          %6469 = sbr.rel (%p6467) target = $region104
        $region103: #{tpu_custom_call.1} parent=99 // pred_region
          %s6470 = sand.u32 %s233, 1
          %s6471 = scalar_lea.sflag [#allocation4], %s6470
          %s6472 = sand.u32 %s233, 1
          %s6473 = smul.addr %s6472, 48
          %s6474 = scalar_lea.vmem [#allocation17], %s6473
          %6475 = dma.done %s6471, 768
        $region104: #{tpu_custom_call.1} parent=99 // pred_fallthru
          _
      $region100: #{tpu_custom_call.1} parent=5 // pred_fallthru
        _
    $region6: #{tpu_custom_call.1} parent=1 // loop_footer
      %s29 = sadd.s32 1, %s25
    $region7: #{tpu_custom_call.1} parent=1 // loop_footer_branch
      %24 = sbr.rel target = $region3
    $region8: #{tpu_custom_call.1} parent=1 // loop_exit
      _
    %6476 = vsyncpa [#allocation3], 1
    %s6477 = scalar_lea.sflag [#allocation3], 1
    %6478 = vsyncpa %s6477, 1
    %6479 = vsyncpa [#allocation6], 1
    %6480 = vsyncpa [#allocation9], 1
    %6481 = vsyncpa [#allocation12], 1
    %6482 = vsyncpa [#allocation15], 1
    %6483 = vsyncpa [#allocation4], 1
    %s6484 = scalar_lea.sflag [#allocation4], 1
    %6485 = vsyncpa %s6484, 1

</llo_original>
